<compile_context>
chip_gen: v7x
topology: tpu7x:2x2x1
jax: 0.10.0
libtpu: 0.0.40
codegen_flags: <defaults>
</compile_context>

<pallas_src>
import functools

import jax
import jax.numpy as jnp
from jax import lax
from jax.experimental import pallas as pl
from jax.experimental.pallas import tpu as pltpu


def _round_up(x, m):
    return ((x + m - 1) // m) * m


# which original 3x3 taps kh collapse onto row-offset dh for output row-phase a
# (the same table is used for columns with (b, kw, dw)).
_TAP_SETS = {(0, 0): (0,), (0, 1): (1, 2), (1, 0): (0, 1), (1, 1): (2,)}


# ---------------------------------------------------------------------------
# Shared in-kernel conv body (fused im2col + nearest-2x phase decomposition)
# ---------------------------------------------------------------------------
def _phase_accumulators(x_ref, w_ref, *, tile_h, W, cin, cp):
    """Returns acc[a][b] : (tile_h*W, cp) float32 = conv output for the output
    pixels (2i+a, 2j+b) of the current (batch, row-tile) grid step."""
    h0 = pl.program_id(1) * tile_h
    # one dynamic row-window load per step; all 9 stencil taps are static slices
    win = x_ref[0, pl.ds(h0, tile_h + 2), :, :]            # (tile_h+2, W+2, cin) bf16
    rows = tile_h * W
    acc = [[jnp.zeros((rows, cp), jnp.float32) for _ in range(2)] for _ in range(2)]
    phase_taps = ((0, 0), (0, 1), (1, 0), (1, 1))
    for rh in range(3):
        row_users = [(a, dh) for (a, dh) in phase_taps if a + dh == rh]
        for rw in range(3):
            col_users = [(b, dw) for (b, dw) in phase_taps if b + dw == rw]
            tap = win[rh:rh + tile_h, rw:rw + W, :].reshape(rows, cin)
            for (a, dh) in row_users:
                for (b, dw) in col_users:
                    widx = ((a * 2 + b) * 2 + dh) * 2 + dw
                    acc[a][b] = acc[a][b] + jnp.dot(
                        tap, w_ref[widx], preferred_element_type=jnp.float32)
    return acc


# ---------------------------------------------------------------------------
# Pass 1: stats-only kernel (BatchNorm batch statistics, no conv writeback)
# ---------------------------------------------------------------------------
def _stats_kernel(x_ref, w_ref, sum_ref, ssq_ref, *, tile_h, W, cin, cp):
    acc = _phase_accumulators(x_ref, w_ref, tile_h=tile_h, W=W, cin=cin, cp=cp)
    s = jnp.zeros((1, cp), jnp.float32)
    q = jnp.zeros((1, cp), jnp.float32)
    for a in range(2):
        for b in range(2):
            y = acc[a][b]
            s = s + jnp.sum(y, axis=0, keepdims=True)
            q = q + jnp.sum(y * y, axis=0, keepdims=True)
    # sublane-replicated so the stats blocks stay (8, cp)-shaped
    sum_ref[...] = jnp.broadcast_to(s, sum_ref.shape)
    ssq_ref[...] = jnp.broadcast_to(q, ssq_ref.shape)


# ---------------------------------------------------------------------------
# Pass 2: conv recompute fused with BatchNorm(affine) + ReLU, single writeback
# ---------------------------------------------------------------------------
def _conv_bn_relu_kernel(x_ref, w_ref, scale_ref, shift_ref, o_ref, *,
                         tile_h, W, cin, cp):
    acc = _phase_accumulators(x_ref, w_ref, tile_h=tile_h, W=W, cin=cin, cp=cp)
    scale = scale_ref[...]
    shift = shift_ref[...]
    outs = []
    for a in range(2):
        for b in range(2):
            outs.append(jnp.maximum(acc[a][b] * scale + shift, 0.0))
    # lane-dense store: (rows, 4*cp) with 4*cp a multiple of 128
    o_ref[...] = jnp.concatenate(outs, axis=1)


# ---------------------------------------------------------------------------
# Wrapper
# ---------------------------------------------------------------------------
def up_conv_forward(x_nchw, weight, bias, gamma, beta, *,
                    eps=1e-5, compute_dtype=jnp.bfloat16):
    """x_nchw: [N, Cin, H, W] -> [N, Cout, 2H, 2W] (float32).

    Semantics: Upsample(x2 nearest) -> Conv2d(3x3, s1, p1, bias=True)
    -> BatchNorm2d (training-mode batch stats) -> ReLU.
    """
    del bias  # exactly absorbed by train-mode BatchNorm (it subtracts the batch mean)
    n, cin, h, w = x_nchw.shape
    cout = weight.shape[0]
    cp = _round_up(cout, 32)            # 4*cp (the output lane dim) is a multiple of 128

    # ---- inputs in kernel-friendly layout --------------------------------
    x_pad = jnp.pad(jnp.transpose(x_nchw, (0, 2, 3, 1)).astype(compute_dtype),
                    ((0, 0), (1, 1), (1, 1), (0, 0)))            # [N, H+2, W+2, Cin]

    # fold the nearest-2x upsample into 16 per-(phase, tap) weight matrices
    w_f32 = weight.astype(jnp.float32)                           # [Cout, Cin, 3, 3]
    taps = []
    for a in range(2):
        for b in range(2):
            for dh in range(2):
                for dw in range(2):
                    acc = jnp.zeros((cin, cout), jnp.float32)
                    for kh in _TAP_SETS[(a, dh)]:
                        for kw in _TAP_SETS[(b, dw)]:
                            acc = acc + jnp.transpose(w_f32[:, :, kh, kw], (1, 0))
                    taps.append(jnp.pad(acc, ((0, 0), (0, cp - cout))))
    w_taps = jnp.stack(taps, axis=0).astype(compute_dtype)       # [16, Cin, cp]

    # ---- generation-aware tile / VMEM budget ------------------------------
    try:
        phys_vmem = int(pltpu.get_tpu_info().vmem_capacity_bytes)
    except Exception:  # conservative v7x-safe fallback
        phys_vmem = 64 * 1024 * 1024
    budget = max(12 << 20, int(phys_vmem * 0.40))

    img_bytes = (h + 2) * (w + 2) * cin * 2
    wgt_bytes = 16 * cin * cp * 2

    def _work(th):
        rows = th * w
        acc_b = 4 * rows * cp * 4            # 4 f32 phase accumulators
        out_b = 2 * rows * 4 * cp * 4        # double-buffered output block
        tap_b = 2 * rows * cin * 4           # im2col tap temporaries (headroom)
        return 2 * img_bytes + 2 * wgt_bytes + acc_b + out_b + tap_b + (2 << 20)

    divisors = [d for d in range(1, h + 1) if h % d == 0 and (d * w) % 8 == 0]
    if not divisors:
        # TODO(synk): support (tile_h*W) % 8 != 0 via padded output rows
        divisors = [h]
    tile_h = divisors[0]
    for d in sorted(divisors, reverse=True):
        if _work(d) <= budget:
            tile_h = d
            break
    if n == 1 and tile_h == h and h > 1:
        # keep >= 2 grid steps so the "parallel" grid can shard across both TCs (v7x)
        smaller = [d for d in divisors if d < h]
        if smaller and _work(max(smaller)) <= budget:
            tile_h = max(smaller)
    num_ht = h // tile_h
    vmem_limit = int(min(phys_vmem - (2 << 20),
                         max(_work(tile_h) + (6 << 20), 32 << 20)))
    cparams = pltpu.CompilerParams(dimension_semantics=("parallel", "parallel"),
                                   vmem_limit_bytes=vmem_limit)

    grid = (n, num_ht)
    rows_per_step = tile_h * w
    stats_rows = n * num_ht * 8

    # x image block is constant along the row-tile axis -> fetched once per batch n
    x_spec = pl.BlockSpec((1, h + 2, w + 2, cin), lambda i, t: (i, 0, 0, 0))
    w_spec = pl.BlockSpec((16, cin, cp), lambda i, t: (0, 0, 0))
    stats_spec = pl.BlockSpec((8, cp), lambda i, t: (i * num_ht + t, 0))

    # ---- pass 1: BatchNorm batch statistics (no conv intermediate in HBM) ---
    psum, pssq = pl.pallas_call(
        functools.partial(_stats_kernel, tile_h=tile_h, W=w, cin=cin, cp=cp),
        out_shape=(jax.ShapeDtypeStruct((stats_rows, cp), jnp.float32),
                   jax.ShapeDtypeStruct((stats_rows, cp), jnp.float32)),
        grid_spec=pltpu.PrefetchScalarGridSpec(
            num_scalar_prefetch=0, grid=grid,
            in_specs=[x_spec, w_spec],
            out_specs=[stats_spec, stats_spec]),
        compiler_params=cparams,
    )(x_pad, w_taps)

    col_sum = psum.reshape(n * num_ht, 8, cp)[:, 0, :].sum(axis=0)[:cout]
    col_ssq = pssq.reshape(n * num_ht, 8, cp)[:, 0, :].sum(axis=0)[:cout]
    cnt = jnp.float32(4 * n * h * w)                  # N * 2H * 2W elements per channel
    mean = col_sum / cnt
    var = jnp.maximum(col_ssq / cnt - mean * mean, 0.0)   # biased, PyTorch-style
    # TODO(synk): for very large N*H*W consider centered two-pass sums; E[x^2]-E[x]^2
    # in f32 loses precision when |mean| >> std.
    scale = gamma.astype(jnp.float32) * lax.rsqrt(var + eps)
    shift = beta.astype(jnp.float32) - mean * scale
    scale_row = jnp.pad(scale, (0, cp - cout)).reshape(1, cp)
    shift_row = jnp.pad(shift, (0, cp - cout)).reshape(1, cp)

    # ---- pass 2: conv recompute fused with BN + ReLU, single activation write ---
    out_flat = pl.pallas_call(
        functools.partial(_conv_bn_relu_kernel, tile_h=tile_h, W=w, cin=cin, cp=cp),
        out_shape=jax.ShapeDtypeStruct((n * h * w, 4 * cp), jnp.float32),
        grid_spec=pltpu.PrefetchScalarGridSpec(
            num_scalar_prefetch=0, grid=grid,
            in_specs=[x_spec, w_spec,
                      pl.BlockSpec((1, cp), lambda i, t: (0, 0)),
                      pl.BlockSpec((1, cp), lambda i, t: (0, 0))],
            out_specs=pl.BlockSpec((rows_per_step, 4 * cp),
                                   lambda i, t: (i * num_ht + t, 0))),
        compiler_params=cparams,
    )(x_pad, w_taps, scale_row, shift_row)

    # [M, 4*cp] -> [N, H, W, 2, 2, Cout] -> NCHW [N, Cout, 2H, 2W]
    out = out_flat.reshape(n, h, w, 2, 2, cp)[..., :cout]
    out = out.transpose(0, 5, 1, 3, 2, 4).reshape(n, cout, 2 * h, 2 * w)
    # TODO(synk): fold this phase->NCHW de-interleave into the second kernel (needs
    # in-kernel lane<->sublane transposes); left to XLA here for lowering safety.
    return out


# ---------------------------------------------------------------------------
# Pure-JAX reference (with conv bias, to prove it is absorbed by train-mode BN)
# ---------------------------------------------------------------------------
def up_conv_reference(x_nchw, weight, bias, gamma, beta, *, eps=1e-5):
    x_up = jnp.repeat(jnp.repeat(x_nchw, 2, axis=2), 2, axis=3)
    y = lax.conv_general_dilated(
        x_up, weight, window_strides=(1, 1), padding=((1, 1), (1, 1)),
        dimension_numbers=("NCHW", "OIHW", "NCHW"),
    ) + bias.reshape(1, -1, 1, 1)
    mean = jnp.mean(y, axis=(0, 2, 3), keepdims=True)
    var = jnp.mean((y - mean) ** 2, axis=(0, 2, 3), keepdims=True)
    yhat = (y - mean) * lax.rsqrt(var + eps)
    return jnp.maximum(yhat * gamma.reshape(1, -1, 1, 1) + beta.reshape(1, -1, 1, 1), 0.0)


# ---------------------------------------------------------------------------
if __name__ == "__main__":
    key = jax.random.PRNGKey(0)
    k_x, k_w, k_b, k_g, k_be = jax.random.split(key, 5)

    N, Cin, Cout, H, W = 2, 4, 8, 16, 16

    x = jax.random.normal(k_x, (N, Cin, H, W), dtype=jnp.float32)
    weight = jax.random.normal(k_w, (Cout, Cin, 3, 3), dtype=jnp.float32) * 0.1
    bias = jax.random.normal(k_b, (Cout,), dtype=jnp.float32) * 0.1
    gamma = 1.0 + 0.1 * jax.random.normal(k_g, (Cout,), dtype=jnp.float32)
    beta = 0.1 * jax.random.normal(k_be, (Cout,), dtype=jnp.float32)

    fwd = jax.jit(up_conv_forward, static_argnames=("eps", "compute_dtype"))
    out = jax.block_until_ready(fwd(x, weight, bias, gamma, beta))

    ref = up_conv_reference(x, weight, bias, gamma, beta)
    assert out.shape == (N, Cout, 2 * H, 2 * W), out.shape
    max_err = float(jnp.max(jnp.abs(out - ref)))
    # bf16 matmul operands with f32 accumulation / f32 BN math -> ~1e-2 worst case
    assert max_err < 3e-2, max_err

    print("KERNEL_OK")
</pallas_src>

<mosaic_0001>
module attributes {stable_mosaic.version = 11 : i64} {
  func.func @_stats_kernel(%arg0: i32, %arg1: i32, %arg2: memref<1x18x18x4xbf16, #tpu.memory_space<vmem>>, %arg3: memref<16x4x32xbf16, #tpu.memory_space<vmem>>, %arg4: memref<8x32xf32, #tpu.memory_space<vmem>>, %arg5: memref<8x32xf32, #tpu.memory_space<vmem>>) attributes {dimension_semantics = [#tpu.dimension_semantics<parallel>, #tpu.dimension_semantics<parallel>], iteration_bounds = array<i64: 2, 1>, scalar_prefetch = 0 : i64, scratch_operands = 0 : i64, tpu.core_type = #tpu.core_type<tc>, window_params = [{transform_indices = @transform_0, window_bounds = array<i64: 1, 18, 18, 4>}, {pipeline_mode = #tpu.pipeline_mode<synchronous>, transform_indices = @transform_1, window_bounds = array<i64: 16, 4, 32>}, {transform_indices = @transform_2, window_bounds = array<i64: 8, 32>}, {transform_indices = @transform_3, window_bounds = array<i64: 8, 32>}]} {
    %c16_i32 = arith.constant 16 : i32
    %0 = arith.muli %arg1, %c16_i32 : i32
    %c0 = arith.constant 0 : index
    %1 = arith.index_cast %0 : i32 to index
    %c0_0 = arith.constant 0 : index
    %c0_1 = arith.constant 0 : index
    %2 = vector.load %arg2[%c0, %1, %c0_0, %c0_1] : memref<1x18x18x4xbf16, #tpu.memory_space<vmem>>, vector<1x18x18x4xbf16>
    %3 = vector.shape_cast %2 : vector<1x18x18x4xbf16> to vector<18x18x4xbf16>
    %cst = arith.constant 0.000000e+00 : f32
    %4 = vector.broadcast %cst : f32 to vector<256x32xf32>
    %cst_2 = arith.constant 0.000000e+00 : f32
    %5 = vector.broadcast %cst_2 : f32 to vector<256x32xf32>
    %cst_3 = arith.constant 0.000000e+00 : f32
    %6 = vector.broadcast %cst_3 : f32 to vector<256x32xf32>
    %cst_4 = arith.constant 0.000000e+00 : f32
    %7 = vector.broadcast %cst_4 : f32 to vector<256x32xf32>
    %8 = vector.extract_strided_slice %3 {offsets = [0, 0, 0], sizes = [16, 16, 4], strides = [1, 1, 1]} : vector<18x18x4xbf16> to vector<16x16x4xbf16>
    %9 = vector.shape_cast %8 : vector<16x16x4xbf16> to vector<256x4xbf16>
    %c0_5 = arith.constant 0 : index
    %c0_6 = arith.constant 0 : index
    %c0_7 = arith.constant 0 : index
    %10 = vector.load %arg3[%c0_5, %c0_6, %c0_7] : memref<16x4x32xbf16, #tpu.memory_space<vmem>>, vector<1x4x32xbf16>
    %11 = vector.shape_cast %10 : vector<1x4x32xbf16> to vector<4x32xbf16>
    %cst_8 = arith.constant dense<0.000000e+00> : vector<256x32xf32>
    %12 = tpu.matmul %9, %11, %cst_8 {dimension_numbers = #tpu.dot_dimension_numbers<[1], [0], [0], [1], [0, 0, 1, 1], [], []>} : vector<256x4xbf16>, vector<4x32xbf16>, vector<256x32xf32> -> vector<256x32xf32>
    %13 = arith.addf %4, %12 : vector<256x32xf32>
    %14 = vector.extract_strided_slice %3 {offsets = [0, 1, 0], sizes = [16, 16, 4], strides = [1, 1, 1]} : vector<18x18x4xbf16> to vector<16x16x4xbf16>
    %15 = vector.shape_cast %14 : vector<16x16x4xbf16> to vector<256x4xbf16>
    %c1 = arith.constant 1 : index
    %c0_9 = arith.constant 0 : index
    %c0_10 = arith.constant 0 : index
    %16 = vector.load %arg3[%c1, %c0_9, %c0_10] : memref<16x4x32xbf16, #tpu.memory_space<vmem>>, vector<1x4x32xbf16>
    %17 = vector.shape_cast %16 : vector<1x4x32xbf16> to vector<4x32xbf16>
    %cst_11 = arith.constant dense<0.000000e+00> : vector<256x32xf32>
    %18 = tpu.matmul %15, %17, %cst_11 {dimension_numbers = #tpu.dot_dimension_numbers<[1], [0], [0], [1], [0, 0, 1, 1], [], []>} : vector<256x4xbf16>, vector<4x32xbf16>, vector<256x32xf32> -> vector<256x32xf32>
    %19 = arith.addf %13, %18 : vector<256x32xf32>
    %c4 = arith.constant 4 : index
    %c0_12 = arith.constant 0 : index
    %c0_13 = arith.constant 0 : index
    %20 = vector.load %arg3[%c4, %c0_12, %c0_13] : memref<16x4x32xbf16, #tpu.memory_space<vmem>>, vector<1x4x32xbf16>
    %21 = vector.shape_cast %20 : vector<1x4x32xbf16> to vector<4x32xbf16>
    %cst_14 = arith.constant dense<0.000000e+00> : vector<256x32xf32>
    %22 = tpu.matmul %15, %21, %cst_14 {dimension_numbers = #tpu.dot_dimension_numbers<[1], [0], [0], [1], [0, 0, 1, 1], [], []>} : vector<256x4xbf16>, vector<4x32xbf16>, vector<256x32xf32> -> vector<256x32xf32>
    %23 = arith.addf %5, %22 : vector<256x32xf32>
    %24 = vector.extract_strided_slice %3 {offsets = [0, 2, 0], sizes = [16, 16, 4], strides = [1, 1, 1]} : vector<18x18x4xbf16> to vector<16x16x4xbf16>
    %25 = vector.shape_cast %24 : vector<16x16x4xbf16> to vector<256x4xbf16>
    %c5 = arith.constant 5 : index
    %c0_15 = arith.constant 0 : index
    %c0_16 = arith.constant 0 : index
    %26 = vector.load %arg3[%c5, %c0_15, %c0_16] : memref<16x4x32xbf16, #tpu.memory_space<vmem>>, vector<1x4x32xbf16>
    %27 = vector.shape_cast %26 : vector<1x4x32xbf16> to vector<4x32xbf16>
    %cst_17 = arith.constant dense<0.000000e+00> : vector<256x32xf32>
    %28 = tpu.matmul %25, %27, %cst_17 {dimension_numbers = #tpu.dot_dimension_numbers<[1], [0], [0], [1], [0, 0, 1, 1], [], []>} : vector<256x4xbf16>, vector<4x32xbf16>, vector<256x32xf32> -> vector<256x32xf32>
    %29 = arith.addf %23, %28 : vector<256x32xf32>
    %30 = vector.extract_strided_slice %3 {offsets = [1, 0, 0], sizes = [16, 16, 4], strides = [1, 1, 1]} : vector<18x18x4xbf16> to vector<16x16x4xbf16>
    %31 = vector.shape_cast %30 : vector<16x16x4xbf16> to vector<256x4xbf16>
    %c2 = arith.constant 2 : index
    %c0_18 = arith.constant 0 : index
    %c0_19 = arith.constant 0 : index
    %32 = vector.load %arg3[%c2, %c0_18, %c0_19] : memref<16x4x32xbf16, #tpu.memory_space<vmem>>, vector<1x4x32xbf16>
    %33 = vector.shape_cast %32 : vector<1x4x32xbf16> to vector<4x32xbf16>
    %cst_20 = arith.constant dense<0.000000e+00> : vector<256x32xf32>
    %34 = tpu.matmul %31, %33, %cst_20 {dimension_numbers = #tpu.dot_dimension_numbers<[1], [0], [0], [1], [0, 0, 1, 1], [], []>} : vector<256x4xbf16>, vector<4x32xbf16>, vector<256x32xf32> -> vector<256x32xf32>
    %35 = arith.addf %19, %34 : vector<256x32xf32>
    %c8 = arith.constant 8 : index
    %c0_21 = arith.constant 0 : index
    %c0_22 = arith.constant 0 : index
    %36 = vector.load %arg3[%c8, %c0_21, %c0_22] : memref<16x4x32xbf16, #tpu.memory_space<vmem>>, vector<1x4x32xbf16>
    %37 = vector.shape_cast %36 : vector<1x4x32xbf16> to vector<4x32xbf16>
    %cst_23 = arith.constant dense<0.000000e+00> : vector<256x32xf32>
    %38 = tpu.matmul %31, %37, %cst_23 {dimension_numbers = #tpu.dot_dimension_numbers<[1], [0], [0], [1], [0, 0, 1, 1], [], []>} : vector<256x4xbf16>, vector<4x32xbf16>, vector<256x32xf32> -> vector<256x32xf32>
    %39 = arith.addf %6, %38 : vector<256x32xf32>
    %40 = vector.extract_strided_slice %3 {offsets = [1, 1, 0], sizes = [16, 16, 4], strides = [1, 1, 1]} : vector<18x18x4xbf16> to vector<16x16x4xbf16>
    %41 = vector.shape_cast %40 : vector<16x16x4xbf16> to vector<256x4xbf16>
    %c3 = arith.constant 3 : index
    %c0_24 = arith.constant 0 : index
    %c0_25 = arith.constant 0 : index
    %42 = vector.load %arg3[%c3, %c0_24, %c0_25] : memref<16x4x32xbf16, #tpu.memory_space<vmem>>, vector<1x4x32xbf16>
    %43 = vector.shape_cast %42 : vector<1x4x32xbf16> to vector<4x32xbf16>
    %cst_26 = arith.constant dense<0.000000e+00> : vector<256x32xf32>
    %44 = tpu.matmul %41, %43, %cst_26 {dimension_numbers = #tpu.dot_dimension_numbers<[1], [0], [0], [1], [0, 0, 1, 1], [], []>} : vector<256x4xbf16>, vector<4x32xbf16>, vector<256x32xf32> -> vector<256x32xf32>
    %45 = arith.addf %35, %44 : vector<256x32xf32>
    %c6 = arith.constant 6 : index
    %c0_27 = arith.constant 0 : index
    %c0_28 = arith.constant 0 : index
    %46 = vector.load %arg3[%c6, %c0_27, %c0_28] : memref<16x4x32xbf16, #tpu.memory_space<vmem>>, vector<1x4x32xbf16>
    %47 = vector.shape_cast %46 : vector<1x4x32xbf16> to vector<4x32xbf16>
    %cst_29 = arith.constant dense<0.000000e+00> : vector<256x32xf32>
    %48 = tpu.matmul %41, %47, %cst_29 {dimension_numbers = #tpu.dot_dimension_numbers<[1], [0], [0], [1], [0, 0, 1, 1], [], []>} : vector<256x4xbf16>, vector<4x32xbf16>, vector<256x32xf32> -> vector<256x32xf32>
    %49 = arith.addf %29, %48 : vector<256x32xf32>
    %c9 = arith.constant 9 : index
    %c0_30 = arith.constant 0 : index
    %c0_31 = arith.constant 0 : index
    %50 = vector.load %arg3[%c9, %c0_30, %c0_31] : memref<16x4x32xbf16, #tpu.memory_space<vmem>>, vector<1x4x32xbf16>
    %51 = vector.shape_cast %50 : vector<1x4x32xbf16> to vector<4x32xbf16>
    %cst_32 = arith.constant dense<0.000000e+00> : vector<256x32xf32>
    %52 = tpu.matmul %41, %51, %cst_32 {dimension_numbers = #tpu.dot_dimension_numbers<[1], [0], [0], [1], [0, 0, 1, 1], [], []>} : vector<256x4xbf16>, vector<4x32xbf16>, vector<256x32xf32> -> vector<256x32xf32>
    %53 = arith.addf %39, %52 : vector<256x32xf32>
    %c12 = arith.constant 12 : index
    %c0_33 = arith.constant 0 : index
    %c0_34 = arith.constant 0 : index
    %54 = vector.load %arg3[%c12, %c0_33, %c0_34] : memref<16x4x32xbf16, #tpu.memory_space<vmem>>, vector<1x4x32xbf16>
    %55 = vector.shape_cast %54 : vector<1x4x32xbf16> to vector<4x32xbf16>
    %cst_35 = arith.constant dense<0.000000e+00> : vector<256x32xf32>
    %56 = tpu.matmul %41, %55, %cst_35 {dimension_numbers = #tpu.dot_dimension_numbers<[1], [0], [0], [1], [0, 0, 1, 1], [], []>} : vector<256x4xbf16>, vector<4x32xbf16>, vector<256x32xf32> -> vector<256x32xf32>
    %57 = arith.addf %7, %56 : vector<256x32xf32>
    %58 = vector.extract_strided_slice %3 {offsets = [1, 2, 0], sizes = [16, 16, 4], strides = [1, 1, 1]} : vector<18x18x4xbf16> to vector<16x16x4xbf16>
    %59 = vector.shape_cast %58 : vector<16x16x4xbf16> to vector<256x4xbf16>
    %c7 = arith.constant 7 : index
    %c0_36 = arith.constant 0 : index
    %c0_37 = arith.constant 0 : index
    %60 = vector.load %arg3[%c7, %c0_36, %c0_37] : memref<16x4x32xbf16, #tpu.memory_space<vmem>>, vector<1x4x32xbf16>
    %61 = vector.shape_cast %60 : vector<1x4x32xbf16> to vector<4x32xbf16>
    %cst_38 = arith.constant dense<0.000000e+00> : vector<256x32xf32>
    %62 = tpu.matmul %59, %61, %cst_38 {dimension_numbers = #tpu.dot_dimension_numbers<[1], [0], [0], [1], [0, 0, 1, 1], [], []>} : vector<256x4xbf16>, vector<4x32xbf16>, vector<256x32xf32> -> vector<256x32xf32>
    %63 = arith.addf %49, %62 : vector<256x32xf32>
    %c13 = arith.constant 13 : index
    %c0_39 = arith.constant 0 : index
    %c0_40 = arith.constant 0 : index
    %64 = vector.load %arg3[%c13, %c0_39, %c0_40] : memref<16x4x32xbf16, #tpu.memory_space<vmem>>, vector<1x4x32xbf16>
    %65 = vector.shape_cast %64 : vector<1x4x32xbf16> to vector<4x32xbf16>
    %cst_41 = arith.constant dense<0.000000e+00> : vector<256x32xf32>
    %66 = tpu.matmul %59, %65, %cst_41 {dimension_numbers = #tpu.dot_dimension_numbers<[1], [0], [0], [1], [0, 0, 1, 1], [], []>} : vector<256x4xbf16>, vector<4x32xbf16>, vector<256x32xf32> -> vector<256x32xf32>
    %67 = arith.addf %57, %66 : vector<256x32xf32>
    %68 = vector.extract_strided_slice %3 {offsets = [2, 0, 0], sizes = [16, 16, 4], strides = [1, 1, 1]} : vector<18x18x4xbf16> to vector<16x16x4xbf16>
    %69 = vector.shape_cast %68 : vector<16x16x4xbf16> to vector<256x4xbf16>
    %c10 = arith.constant 10 : index
    %c0_42 = arith.constant 0 : index
    %c0_43 = arith.constant 0 : index
    %70 = vector.load %arg3[%c10, %c0_42, %c0_43] : memref<16x4x32xbf16, #tpu.memory_space<vmem>>, vector<1x4x32xbf16>
    %71 = vector.shape_cast %70 : vector<1x4x32xbf16> to vector<4x32xbf16>
    %cst_44 = arith.constant dense<0.000000e+00> : vector<256x32xf32>
    %72 = tpu.matmul %69, %71, %cst_44 {dimension_numbers = #tpu.dot_dimension_numbers<[1], [0], [0], [1], [0, 0, 1, 1], [], []>} : vector<256x4xbf16>, vector<4x32xbf16>, vector<256x32xf32> -> vector<256x32xf32>
    %73 = arith.addf %53, %72 : vector<256x32xf32>
    %74 = vector.extract_strided_slice %3 {offsets = [2, 1, 0], sizes = [16, 16, 4], strides = [1, 1, 1]} : vector<18x18x4xbf16> to vector<16x16x4xbf16>
    %75 = vector.shape_cast %74 : vector<16x16x4xbf16> to vector<256x4xbf16>
    %c11 = arith.constant 11 : index
    %c0_45 = arith.constant 0 : index
    %c0_46 = arith.constant 0 : index
    %76 = vector.load %arg3[%c11, %c0_45, %c0_46] : memref<16x4x32xbf16, #tpu.memory_space<vmem>>, vector<1x4x32xbf16>
    %77 = vector.shape_cast %76 : vector<1x4x32xbf16> to vector<4x32xbf16>
    %cst_47 = arith.constant dense<0.000000e+00> : vector<256x32xf32>
    %78 = tpu.matmul %75, %77, %cst_47 {dimension_numbers = #tpu.dot_dimension_numbers<[1], [0], [0], [1], [0, 0, 1, 1], [], []>} : vector<256x4xbf16>, vector<4x32xbf16>, vector<256x32xf32> -> vector<256x32xf32>
    %79 = arith.addf %73, %78 : vector<256x32xf32>
    %c14 = arith.constant 14 : index
    %c0_48 = arith.constant 0 : index
    %c0_49 = arith.constant 0 : index
    %80 = vector.load %arg3[%c14, %c0_48, %c0_49] : memref<16x4x32xbf16, #tpu.memory_space<vmem>>, vector<1x4x32xbf16>
    %81 = vector.shape_cast %80 : vector<1x4x32xbf16> to vector<4x32xbf16>
    %cst_50 = arith.constant dense<0.000000e+00> : vector<256x32xf32>
    %82 = tpu.matmul %75, %81, %cst_50 {dimension_numbers = #tpu.dot_dimension_numbers<[1], [0], [0], [1], [0, 0, 1, 1], [], []>} : vector<256x4xbf16>, vector<4x32xbf16>, vector<256x32xf32> -> vector<256x32xf32>
    %83 = arith.addf %67, %82 : vector<256x32xf32>
    %84 = vector.extract_strided_slice %3 {offsets = [2, 2, 0], sizes = [16, 16, 4], strides = [1, 1, 1]} : vector<18x18x4xbf16> to vector<16x16x4xbf16>
    %85 = vector.shape_cast %84 : vector<16x16x4xbf16> to vector<256x4xbf16>
    %c15 = arith.constant 15 : index
    %c0_51 = arith.constant 0 : index
    %c0_52 = arith.constant 0 : index
    %86 = vector.load %arg3[%c15, %c0_51, %c0_52] : memref<16x4x32xbf16, #tpu.memory_space<vmem>>, vector<1x4x32xbf16>
    %87 = vector.shape_cast %86 : vector<1x4x32xbf16> to vector<4x32xbf16>
    %cst_53 = arith.constant dense<0.000000e+00> : vector<256x32xf32>
    %88 = tpu.matmul %85, %87, %cst_53 {dimension_numbers = #tpu.dot_dimension_numbers<[1], [0], [0], [1], [0, 0, 1, 1], [], []>} : vector<256x4xbf16>, vector<4x32xbf16>, vector<256x32xf32> -> vector<256x32xf32>
    %89 = arith.addf %83, %88 : vector<256x32xf32>
    %cst_54 = arith.constant 0.000000e+00 : f32
    %90 = vector.broadcast %cst_54 : f32 to vector<1x32xf32>
    %cst_55 = arith.constant 0.000000e+00 : f32
    %91 = vector.broadcast %cst_55 : f32 to vector<1x32xf32>
    %cst_56 = arith.constant dense<0.000000e+00> : vector<32xf32>
    %92 = vector.multi_reduction <add>, %45, %cst_56 [0] : vector<256x32xf32> to vector<32xf32>
    %93 = vector.shape_cast %92 : vector<32xf32> to vector<1x32xf32>
    %94 = arith.addf %90, %93 : vector<1x32xf32>
    %95 = arith.mulf %45, %45 : vector<256x32xf32>
    %cst_57 = arith.constant dense<0.000000e+00> : vector<32xf32>
    %96 = vector.multi_reduction <add>, %95, %cst_57 [0] : vector<256x32xf32> to vector<32xf32>
    %97 = vector.shape_cast %96 : vector<32xf32> to vector<1x32xf32>
    %98 = arith.addf %91, %97 : vector<1x32xf32>
    %cst_58 = arith.constant dense<0.000000e+00> : vector<32xf32>
    %99 = vector.multi_reduction <add>, %63, %cst_58 [0] : vector<256x32xf32> to vector<32xf32>
    %100 = vector.shape_cast %99 : vector<32xf32> to vector<1x32xf32>
    %101 = arith.addf %94, %100 : vector<1x32xf32>
    %102 = arith.mulf %63, %63 : vector<256x32xf32>
    %cst_59 = arith.constant dense<0.000000e+00> : vector<32xf32>
    %103 = vector.multi_reduction <add>, %102, %cst_59 [0] : vector<256x32xf32> to vector<32xf32>
    %104 = vector.shape_cast %103 : vector<32xf32> to vector<1x32xf32>
    %105 = arith.addf %98, %104 : vector<1x32xf32>
    %cst_60 = arith.constant dense<0.000000e+00> : vector<32xf32>
    %106 = vector.multi_reduction <add>, %79, %cst_60 [0] : vector<256x32xf32> to vector<32xf32>
    %107 = vector.shape_cast %106 : vector<32xf32> to vector<1x32xf32>
    %108 = arith.addf %101, %107 : vector<1x32xf32>
    %109 = arith.mulf %79, %79 : vector<256x32xf32>
    %cst_61 = arith.constant dense<0.000000e+00> : vector<32xf32>
    %110 = vector.multi_reduction <add>, %109, %cst_61 [0] : vector<256x32xf32> to vector<32xf32>
    %111 = vector.shape_cast %110 : vector<32xf32> to vector<1x32xf32>
    %112 = arith.addf %105, %111 : vector<1x32xf32>
    %cst_62 = arith.constant dense<0.000000e+00> : vector<32xf32>
    %113 = vector.multi_reduction <add>, %89, %cst_62 [0] : vector<256x32xf32> to vector<32xf32>
    %114 = vector.shape_cast %113 : vector<32xf32> to vector<1x32xf32>
    %115 = arith.addf %108, %114 : vector<1x32xf32>
    %116 = arith.mulf %89, %89 : vector<256x32xf32>
    %cst_63 = arith.constant dense<0.000000e+00> : vector<32xf32>
    %117 = vector.multi_reduction <add>, %116, %cst_63 [0] : vector<256x32xf32> to vector<32xf32>
    %118 = vector.shape_cast %117 : vector<32xf32> to vector<1x32xf32>
    %119 = arith.addf %112, %118 : vector<1x32xf32>
    %120 = vector.shape_cast %115 : vector<1x32xf32> to vector<1x32xf32>
    %121 = vector.broadcast %120 : vector<1x32xf32> to vector<8x32xf32>
    %c0_64 = arith.constant 0 : index
    %c0_65 = arith.constant 0 : index
    %122 = vector.load %arg4[%c0_64, %c0_65] : memref<8x32xf32, #tpu.memory_space<vmem>>, vector<8x32xf32>
    tpu.vector_store %arg4[%c0_64, %c0_65], %121 {strides = array<i32>} : memref<8x32xf32, #tpu.memory_space<vmem>>, vector<8x32xf32>,
    %123 = vector.shape_cast %119 : vector<1x32xf32> to vector<1x32xf32>
    %124 = vector.broadcast %123 : vector<1x32xf32> to vector<8x32xf32>
    %c0_66 = arith.constant 0 : index
    %c0_67 = arith.constant 0 : index
    %125 = vector.load %arg5[%c0_66, %c0_67] : memref<8x32xf32, #tpu.memory_space<vmem>>, vector<8x32xf32>
    tpu.vector_store %arg5[%c0_66, %c0_67], %124 {strides = array<i32>} : memref<8x32xf32, #tpu.memory_space<vmem>>, vector<8x32xf32>,
    return
  }
  func.func @transform_0(%arg0: i32, %arg1: i32) -> (i32, i32, i32, i32) {
    %c0_i32 = arith.constant 0 : i32
    %c0_i32_0 = arith.constant 0 : i32
    %c0_i32_1 = arith.constant 0 : i32
    %c0_i32_2 = arith.constant 0 : i32
    return %arg0, %c0_i32, %c0_i32_0, %c0_i32_1 : i32, i32, i32, i32
  }
  func.func @transform_1(%arg0: i32, %arg1: i32) -> (i32, i32, i32) {
    %c0_i32 = arith.constant 0 : i32
    %c0_i32_0 = arith.constant 0 : i32
    %c0_i32_1 = arith.constant 0 : i32
    %c0_i32_2 = arith.constant 0 : i32
    return %c0_i32, %c0_i32_0, %c0_i32_1 : i32, i32, i32
  }
  func.func @transform_2(%arg0: i32, %arg1: i32) -> (i32, i32) {
    %c1_i32 = arith.constant 1 : i32
    %0 = arith.muli %arg0, %c1_i32 : i32
    %1 = arith.addi %0, %arg1 : i32
    %c0_i32 = arith.constant 0 : i32
    %c0_i32_0 = arith.constant 0 : i32
    return %1, %c0_i32 : i32, i32
  }
  func.func @transform_3(%arg0: i32, %arg1: i32) -> (i32, i32) {
    %c1_i32 = arith.constant 1 : i32
    %0 = arith.muli %arg0, %c1_i32 : i32
    %1 = arith.addi %0, %arg1 : i32
    %c0_i32 = arith.constant 0 : i32
    %c0_i32_0 = arith.constant 0 : i32
    return %1, %c0_i32 : i32, i32
  }
}

module attributes {stable_mosaic.version = 11 : i64} {
  func.func @_conv_bn_relu_kernel(%arg0: i32, %arg1: i32, %arg2: memref<1x18x18x4xbf16, #tpu.memory_space<vmem>>, %arg3: memref<16x4x32xbf16, #tpu.memory_space<vmem>>, %arg4: memref<1x32xf32, #tpu.memory_space<vmem>>, %arg5: memref<1x32xf32, #tpu.memory_space<vmem>>, %arg6: memref<256x128xf32, #tpu.memory_space<vmem>>) attributes {dimension_semantics = [#tpu.dimension_semantics<parallel>, #tpu.dimension_semantics<parallel>], iteration_bounds = array<i64: 2, 1>, scalar_prefetch = 0 : i64, scratch_operands = 0 : i64, tpu.core_type = #tpu.core_type<tc>, window_params = [{transform_indices = @transform_0, window_bounds = array<i64: 1, 18, 18, 4>}, {pipeline_mode = #tpu.pipeline_mode<synchronous>, transform_indices = @transform_1, window_bounds = array<i64: 16, 4, 32>}, {pipeline_mode = #tpu.pipeline_mode<synchronous>, transform_indices = @transform_2, window_bounds = array<i64: 1, 32>}, {pipeline_mode = #tpu.pipeline_mode<synchronous>, transform_indices = @transform_3, window_bounds = array<i64: 1, 32>}, {transform_indices = @transform_4, window_bounds = array<i64: 256, 128>}]} {
    %c16_i32 = arith.constant 16 : i32
    %0 = arith.muli %arg1, %c16_i32 : i32
    %c0 = arith.constant 0 : index
    %1 = arith.index_cast %0 : i32 to index
    %c0_0 = arith.constant 0 : index
    %c0_1 = arith.constant 0 : index
    %2 = vector.load %arg2[%c0, %1, %c0_0, %c0_1] : memref<1x18x18x4xbf16, #tpu.memory_space<vmem>>, vector<1x18x18x4xbf16>
    %3 = vector.shape_cast %2 : vector<1x18x18x4xbf16> to vector<18x18x4xbf16>
    %cst = arith.constant 0.000000e+00 : f32
    %4 = vector.broadcast %cst : f32 to vector<256x32xf32>
    %cst_2 = arith.constant 0.000000e+00 : f32
    %5 = vector.broadcast %cst_2 : f32 to vector<256x32xf32>
    %cst_3 = arith.constant 0.000000e+00 : f32
    %6 = vector.broadcast %cst_3 : f32 to vector<256x32xf32>
    %cst_4 = arith.constant 0.000000e+00 : f32
    %7 = vector.broadcast %cst_4 : f32 to vector<256x32xf32>
    %8 = vector.extract_strided_slice %3 {offsets = [0, 0, 0], sizes = [16, 16, 4], strides = [1, 1, 1]} : vector<18x18x4xbf16> to vector<16x16x4xbf16>
    %9 = vector.shape_cast %8 : vector<16x16x4xbf16> to vector<256x4xbf16>
    %c0_5 = arith.constant 0 : index
    %c0_6 = arith.constant 0 : index
    %c0_7 = arith.constant 0 : index
    %10 = vector.load %arg3[%c0_5, %c0_6, %c0_7] : memref<16x4x32xbf16, #tpu.memory_space<vmem>>, vector<1x4x32xbf16>
    %11 = vector.shape_cast %10 : vector<1x4x32xbf16> to vector<4x32xbf16>
    %cst_8 = arith.constant dense<0.000000e+00> : vector<256x32xf32>
    %12 = tpu.matmul %9, %11, %cst_8 {dimension_numbers = #tpu.dot_dimension_numbers<[1], [0], [0], [1], [0, 0, 1, 1], [], []>} : vector<256x4xbf16>, vector<4x32xbf16>, vector<256x32xf32> -> vector<256x32xf32>
    %13 = arith.addf %4, %12 : vector<256x32xf32>
    %14 = vector.extract_strided_slice %3 {offsets = [0, 1, 0], sizes = [16, 16, 4], strides = [1, 1, 1]} : vector<18x18x4xbf16> to vector<16x16x4xbf16>
    %15 = vector.shape_cast %14 : vector<16x16x4xbf16> to vector<256x4xbf16>
    %c1 = arith.constant 1 : index
    %c0_9 = arith.constant 0 : index
    %c0_10 = arith.constant 0 : index
    %16 = vector.load %arg3[%c1, %c0_9, %c0_10] : memref<16x4x32xbf16, #tpu.memory_space<vmem>>, vector<1x4x32xbf16>
    %17 = vector.shape_cast %16 : vector<1x4x32xbf16> to vector<4x32xbf16>
    %cst_11 = arith.constant dense<0.000000e+00> : vector<256x32xf32>
    %18 = tpu.matmul %15, %17, %cst_11 {dimension_numbers = #tpu.dot_dimension_numbers<[1], [0], [0], [1], [0, 0, 1, 1], [], []>} : vector<256x4xbf16>, vector<4x32xbf16>, vector<256x32xf32> -> vector<256x32xf32>
    %19 = arith.addf %13, %18 : vector<256x32xf32>
    %c4 = arith.constant 4 : index
    %c0_12 = arith.constant 0 : index
    %c0_13 = arith.constant 0 : index
    %20 = vector.load %arg3[%c4, %c0_12, %c0_13] : memref<16x4x32xbf16, #tpu.memory_space<vmem>>, vector<1x4x32xbf16>
    %21 = vector.shape_cast %20 : vector<1x4x32xbf16> to vector<4x32xbf16>
    %cst_14 = arith.constant dense<0.000000e+00> : vector<256x32xf32>
    %22 = tpu.matmul %15, %21, %cst_14 {dimension_numbers = #tpu.dot_dimension_numbers<[1], [0], [0], [1], [0, 0, 1, 1], [], []>} : vector<256x4xbf16>, vector<4x32xbf16>, vector<256x32xf32> -> vector<256x32xf32>
    %23 = arith.addf %5, %22 : vector<256x32xf32>
    %24 = vector.extract_strided_slice %3 {offsets = [0, 2, 0], sizes = [16, 16, 4], strides = [1, 1, 1]} : vector<18x18x4xbf16> to vector<16x16x4xbf16>
    %25 = vector.shape_cast %24 : vector<16x16x4xbf16> to vector<256x4xbf16>
    %c5 = arith.constant 5 : index
    %c0_15 = arith.constant 0 : index
    %c0_16 = arith.constant 0 : index
    %26 = vector.load %arg3[%c5, %c0_15, %c0_16] : memref<16x4x32xbf16, #tpu.memory_space<vmem>>, vector<1x4x32xbf16>
    %27 = vector.shape_cast %26 : vector<1x4x32xbf16> to vector<4x32xbf16>
    %cst_17 = arith.constant dense<0.000000e+00> : vector<256x32xf32>
    %28 = tpu.matmul %25, %27, %cst_17 {dimension_numbers = #tpu.dot_dimension_numbers<[1], [0], [0], [1], [0, 0, 1, 1], [], []>} : vector<256x4xbf16>, vector<4x32xbf16>, vector<256x32xf32> -> vector<256x32xf32>
    %29 = arith.addf %23, %28 : vector<256x32xf32>
    %30 = vector.extract_strided_slice %3 {offsets = [1, 0, 0], sizes = [16, 16, 4], strides = [1, 1, 1]} : vector<18x18x4xbf16> to vector<16x16x4xbf16>
    %31 = vector.shape_cast %30 : vector<16x16x4xbf16> to vector<256x4xbf16>
    %c2 = arith.constant 2 : index
    %c0_18 = arith.constant 0 : index
    %c0_19 = arith.constant 0 : index
    %32 = vector.load %arg3[%c2, %c0_18, %c0_19] : memref<16x4x32xbf16, #tpu.memory_space<vmem>>, vector<1x4x32xbf16>
    %33 = vector.shape_cast %32 : vector<1x4x32xbf16> to vector<4x32xbf16>
    %cst_20 = arith.constant dense<0.000000e+00> : vector<256x32xf32>
    %34 = tpu.matmul %31, %33, %cst_20 {dimension_numbers = #tpu.dot_dimension_numbers<[1], [0], [0], [1], [0, 0, 1, 1], [], []>} : vector<256x4xbf16>, vector<4x32xbf16>, vector<256x32xf32> -> vector<256x32xf32>
    %35 = arith.addf %19, %34 : vector<256x32xf32>
    %c8 = arith.constant 8 : index
    %c0_21 = arith.constant 0 : index
    %c0_22 = arith.constant 0 : index
    %36 = vector.load %arg3[%c8, %c0_21, %c0_22] : memref<16x4x32xbf16, #tpu.memory_space<vmem>>, vector<1x4x32xbf16>
    %37 = vector.shape_cast %36 : vector<1x4x32xbf16> to vector<4x32xbf16>
    %cst_23 = arith.constant dense<0.000000e+00> : vector<256x32xf32>
    %38 = tpu.matmul %31, %37, %cst_23 {dimension_numbers = #tpu.dot_dimension_numbers<[1], [0], [0], [1], [0, 0, 1, 1], [], []>} : vector<256x4xbf16>, vector<4x32xbf16>, vector<256x32xf32> -> vector<256x32xf32>
    %39 = arith.addf %6, %38 : vector<256x32xf32>
    %40 = vector.extract_strided_slice %3 {offsets = [1, 1, 0], sizes = [16, 16, 4], strides = [1, 1, 1]} : vector<18x18x4xbf16> to vector<16x16x4xbf16>
    %41 = vector.shape_cast %40 : vector<16x16x4xbf16> to vector<256x4xbf16>
    %c3 = arith.constant 3 : index
    %c0_24 = arith.constant 0 : index
    %c0_25 = arith.constant 0 : index
    %42 = vector.load %arg3[%c3, %c0_24, %c0_25] : memref<16x4x32xbf16, #tpu.memory_space<vmem>>, vector<1x4x32xbf16>
    %43 = vector.shape_cast %42 : vector<1x4x32xbf16> to vector<4x32xbf16>
    %cst_26 = arith.constant dense<0.000000e+00> : vector<256x32xf32>
    %44 = tpu.matmul %41, %43, %cst_26 {dimension_numbers = #tpu.dot_dimension_numbers<[1], [0], [0], [1], [0, 0, 1, 1], [], []>} : vector<256x4xbf16>, vector<4x32xbf16>, vector<256x32xf32> -> vector<256x32xf32>
    %45 = arith.addf %35, %44 : vector<256x32xf32>
    %c6 = arith.constant 6 : index
    %c0_27 = arith.constant 0 : index
    %c0_28 = arith.constant 0 : index
    %46 = vector.load %arg3[%c6, %c0_27, %c0_28] : memref<16x4x32xbf16, #tpu.memory_space<vmem>>, vector<1x4x32xbf16>
    %47 = vector.shape_cast %46 : vector<1x4x32xbf16> to vector<4x32xbf16>
    %cst_29 = arith.constant dense<0.000000e+00> : vector<256x32xf32>
    %48 = tpu.matmul %41, %47, %cst_29 {dimension_numbers = #tpu.dot_dimension_numbers<[1], [0], [0], [1], [0, 0, 1, 1], [], []>} : vector<256x4xbf16>, vector<4x32xbf16>, vector<256x32xf32> -> vector<256x32xf32>
    %49 = arith.addf %29, %48 : vector<256x32xf32>
    %c9 = arith.constant 9 : index
    %c0_30 = arith.constant 0 : index
    %c0_31 = arith.constant 0 : index
    %50 = vector.load %arg3[%c9, %c0_30, %c0_31] : memref<16x4x32xbf16, #tpu.memory_space<vmem>>, vector<1x4x32xbf16>
    %51 = vector.shape_cast %50 : vector<1x4x32xbf16> to vector<4x32xbf16>
    %cst_32 = arith.constant dense<0.000000e+00> : vector<256x32xf32>
    %52 = tpu.matmul %41, %51, %cst_32 {dimension_numbers = #tpu.dot_dimension_numbers<[1], [0], [0], [1], [0, 0, 1, 1], [], []>} : vector<256x4xbf16>, vector<4x32xbf16>, vector<256x32xf32> -> vector<256x32xf32>
    %53 = arith.addf %39, %52 : vector<256x32xf32>
    %c12 = arith.constant 12 : index
    %c0_33 = arith.constant 0 : index
    %c0_34 = arith.constant 0 : index
    %54 = vector.load %arg3[%c12, %c0_33, %c0_34] : memref<16x4x32xbf16, #tpu.memory_space<vmem>>, vector<1x4x32xbf16>
    %55 = vector.shape_cast %54 : vector<1x4x32xbf16> to vector<4x32xbf16>
    %cst_35 = arith.constant dense<0.000000e+00> : vector<256x32xf32>
    %56 = tpu.matmul %41, %55, %cst_35 {dimension_numbers = #tpu.dot_dimension_numbers<[1], [0], [0], [1], [0, 0, 1, 1], [], []>} : vector<256x4xbf16>, vector<4x32xbf16>, vector<256x32xf32> -> vector<256x32xf32>
    %57 = arith.addf %7, %56 : vector<256x32xf32>
    %58 = vector.extract_strided_slice %3 {offsets = [1, 2, 0], sizes = [16, 16, 4], strides = [1, 1, 1]} : vector<18x18x4xbf16> to vector<16x16x4xbf16>
    %59 = vector.shape_cast %58 : vector<16x16x4xbf16> to vector<256x4xbf16>
    %c7 = arith.constant 7 : index
    %c0_36 = arith.constant 0 : index
    %c0_37 = arith.constant 0 : index
    %60 = vector.load %arg3[%c7, %c0_36, %c0_37] : memref<16x4x32xbf16, #tpu.memory_space<vmem>>, vector<1x4x32xbf16>
    %61 = vector.shape_cast %60 : vector<1x4x32xbf16> to vector<4x32xbf16>
    %cst_38 = arith.constant dense<0.000000e+00> : vector<256x32xf32>
    %62 = tpu.matmul %59, %61, %cst_38 {dimension_numbers = #tpu.dot_dimension_numbers<[1], [0], [0], [1], [0, 0, 1, 1], [], []>} : vector<256x4xbf16>, vector<4x32xbf16>, vector<256x32xf32> -> vector<256x32xf32>
    %63 = arith.addf %49, %62 : vector<256x32xf32>
    %c13 = arith.constant 13 : index
    %c0_39 = arith.constant 0 : index
    %c0_40 = arith.constant 0 : index
    %64 = vector.load %arg3[%c13, %c0_39, %c0_40] : memref<16x4x32xbf16, #tpu.memory_space<vmem>>, vector<1x4x32xbf16>
    %65 = vector.shape_cast %64 : vector<1x4x32xbf16> to vector<4x32xbf16>
    %cst_41 = arith.constant dense<0.000000e+00> : vector<256x32xf32>
    %66 = tpu.matmul %59, %65, %cst_41 {dimension_numbers = #tpu.dot_dimension_numbers<[1], [0], [0], [1], [0, 0, 1, 1], [], []>} : vector<256x4xbf16>, vector<4x32xbf16>, vector<256x32xf32> -> vector<256x32xf32>
    %67 = arith.addf %57, %66 : vector<256x32xf32>
    %68 = vector.extract_strided_slice %3 {offsets = [2, 0, 0], sizes = [16, 16, 4], strides = [1, 1, 1]} : vector<18x18x4xbf16> to vector<16x16x4xbf16>
    %69 = vector.shape_cast %68 : vector<16x16x4xbf16> to vector<256x4xbf16>
    %c10 = arith.constant 10 : index
    %c0_42 = arith.constant 0 : index
    %c0_43 = arith.constant 0 : index
    %70 = vector.load %arg3[%c10, %c0_42, %c0_43] : memref<16x4x32xbf16, #tpu.memory_space<vmem>>, vector<1x4x32xbf16>
    %71 = vector.shape_cast %70 : vector<1x4x32xbf16> to vector<4x32xbf16>
    %cst_44 = arith.constant dense<0.000000e+00> : vector<256x32xf32>
    %72 = tpu.matmul %69, %71, %cst_44 {dimension_numbers = #tpu.dot_dimension_numbers<[1], [0], [0], [1], [0, 0, 1, 1], [], []>} : vector<256x4xbf16>, vector<4x32xbf16>, vector<256x32xf32> -> vector<256x32xf32>
    %73 = arith.addf %53, %72 : vector<256x32xf32>
    %74 = vector.extract_strided_slice %3 {offsets = [2, 1, 0], sizes = [16, 16, 4], strides = [1, 1, 1]} : vector<18x18x4xbf16> to vector<16x16x4xbf16>
    %75 = vector.shape_cast %74 : vector<16x16x4xbf16> to vector<256x4xbf16>
    %c11 = arith.constant 11 : index
    %c0_45 = arith.constant 0 : index
    %c0_46 = arith.constant 0 : index
    %76 = vector.load %arg3[%c11, %c0_45, %c0_46] : memref<16x4x32xbf16, #tpu.memory_space<vmem>>, vector<1x4x32xbf16>
    %77 = vector.shape_cast %76 : vector<1x4x32xbf16> to vector<4x32xbf16>
    %cst_47 = arith.constant dense<0.000000e+00> : vector<256x32xf32>
    %78 = tpu.matmul %75, %77, %cst_47 {dimension_numbers = #tpu.dot_dimension_numbers<[1], [0], [0], [1], [0, 0, 1, 1], [], []>} : vector<256x4xbf16>, vector<4x32xbf16>, vector<256x32xf32> -> vector<256x32xf32>
    %79 = arith.addf %73, %78 : vector<256x32xf32>
    %c14 = arith.constant 14 : index
    %c0_48 = arith.constant 0 : index
    %c0_49 = arith.constant 0 : index
    %80 = vector.load %arg3[%c14, %c0_48, %c0_49] : memref<16x4x32xbf16, #tpu.memory_space<vmem>>, vector<1x4x32xbf16>
    %81 = vector.shape_cast %80 : vector<1x4x32xbf16> to vector<4x32xbf16>
    %cst_50 = arith.constant dense<0.000000e+00> : vector<256x32xf32>
    %82 = tpu.matmul %75, %81, %cst_50 {dimension_numbers = #tpu.dot_dimension_numbers<[1], [0], [0], [1], [0, 0, 1, 1], [], []>} : vector<256x4xbf16>, vector<4x32xbf16>, vector<256x32xf32> -> vector<256x32xf32>
    %83 = arith.addf %67, %82 : vector<256x32xf32>
    %84 = vector.extract_strided_slice %3 {offsets = [2, 2, 0], sizes = [16, 16, 4], strides = [1, 1, 1]} : vector<18x18x4xbf16> to vector<16x16x4xbf16>
    %85 = vector.shape_cast %84 : vector<16x16x4xbf16> to vector<256x4xbf16>
    %c15 = arith.constant 15 : index
    %c0_51 = arith.constant 0 : index
    %c0_52 = arith.constant 0 : index
    %86 = vector.load %arg3[%c15, %c0_51, %c0_52] : memref<16x4x32xbf16, #tpu.memory_space<vmem>>, vector<1x4x32xbf16>
    %87 = vector.shape_cast %86 : vector<1x4x32xbf16> to vector<4x32xbf16>
    %cst_53 = arith.constant dense<0.000000e+00> : vector<256x32xf32>
    %88 = tpu.matmul %85, %87, %cst_53 {dimension_numbers = #tpu.dot_dimension_numbers<[1], [0], [0], [1], [0, 0, 1, 1], [], []>} : vector<256x4xbf16>, vector<4x32xbf16>, vector<256x32xf32> -> vector<256x32xf32>
    %89 = arith.addf %83, %88 : vector<256x32xf32>
    %c0_54 = arith.constant 0 : index
    %c0_55 = arith.constant 0 : index
    %90 = vector.load %arg4[%c0_54, %c0_55] : memref<1x32xf32, #tpu.memory_space<vmem>>, vector<1x32xf32>
    %c0_56 = arith.constant 0 : index
    %c0_57 = arith.constant 0 : index
    %91 = vector.load %arg5[%c0_56, %c0_57] : memref<1x32xf32, #tpu.memory_space<vmem>>, vector<1x32xf32>
    %92 = vector.broadcast %90 : vector<1x32xf32> to vector<256x32xf32>
    %93 = arith.mulf %45, %92 : vector<256x32xf32>
    %94 = vector.broadcast %91 : vector<1x32xf32> to vector<256x32xf32>
    %95 = arith.addf %93, %94 : vector<256x32xf32>
    %cst_58 = arith.constant 0.000000e+00 : f32
    %96 = vector.broadcast %cst_58 : f32 to vector<256x32xf32>
    %97 = arith.maximumf %95, %96 : vector<256x32xf32>
    %98 = vector.broadcast %90 : vector<1x32xf32> to vector<256x32xf32>
    %99 = arith.mulf %63, %98 : vector<256x32xf32>
    %100 = vector.broadcast %91 : vector<1x32xf32> to vector<256x32xf32>
    %101 = arith.addf %99, %100 : vector<256x32xf32>
    %cst_59 = arith.constant 0.000000e+00 : f32
    %102 = vector.broadcast %cst_59 : f32 to vector<256x32xf32>
    %103 = arith.maximumf %101, %102 : vector<256x32xf32>
    %104 = vector.broadcast %90 : vector<1x32xf32> to vector<256x32xf32>
    %105 = arith.mulf %79, %104 : vector<256x32xf32>
    %106 = vector.broadcast %91 : vector<1x32xf32> to vector<256x32xf32>
    %107 = arith.addf %105, %106 : vector<256x32xf32>
    %cst_60 = arith.constant 0.000000e+00 : f32
    %108 = vector.broadcast %cst_60 : f32 to vector<256x32xf32>
    %109 = arith.maximumf %107, %108 : vector<256x32xf32>
    %110 = vector.broadcast %90 : vector<1x32xf32> to vector<256x32xf32>
    %111 = arith.mulf %89, %110 : vector<256x32xf32>
    %112 = vector.broadcast %91 : vector<1x32xf32> to vector<256x32xf32>
    %113 = arith.addf %111, %112 : vector<256x32xf32>
    %cst_61 = arith.constant 0.000000e+00 : f32
    %114 = vector.broadcast %cst_61 : f32 to vector<256x32xf32>
    %115 = arith.maximumf %113, %114 : vector<256x32xf32>
    %116 = tpu.concatenate %97, %103, %109, %115 in 1 : vector<256x32xf32>, vector<256x32xf32>, vector<256x32xf32>, vector<256x32xf32> -> vector<256x128xf32>
    %c0_62 = arith.constant 0 : index
    %c0_63 = arith.constant 0 : index
    %117 = vector.load %arg6[%c0_62, %c0_63] : memref<256x128xf32, #tpu.memory_space<vmem>>, vector<256x128xf32>
    tpu.vector_store %arg6[%c0_62, %c0_63], %116 {strides = array<i32>} : memref<256x128xf32, #tpu.memory_space<vmem>>, vector<256x128xf32>,
    return
  }
  func.func @transform_0(%arg0: i32, %arg1: i32) -> (i32, i32, i32, i32) {
    %c0_i32 = arith.constant 0 : i32
    %c0_i32_0 = arith.constant 0 : i32
    %c0_i32_1 = arith.constant 0 : i32
    %c0_i32_2 = arith.constant 0 : i32
    return %arg0, %c0_i32, %c0_i32_0, %c0_i32_1 : i32, i32, i32, i32
  }
  func.func @transform_1(%arg0: i32, %arg1: i32) -> (i32, i32, i32) {
    %c0_i32 = arith.constant 0 : i32
    %c0_i32_0 = arith.constant 0 : i32
    %c0_i32_1 = arith.constant 0 : i32
    %c0_i32_2 = arith.constant 0 : i32
    return %c0_i32, %c0_i32_0, %c0_i32_1 : i32, i32, i32
  }
  func.func @transform_2(%arg0: i32, %arg1: i32) -> (i32, i32) {
    %c0_i32 = arith.constant 0 : i32
    %c0_i32_0 = arith.constant 0 : i32
    %c0_i32_1 = arith.constant 0 : i32
    return %c0_i32, %c0_i32_0 : i32, i32
  }
  func.func @transform_3(%arg0: i32, %arg1: i32) -> (i32, i32) {
    %c0_i32 = arith.constant 0 : i32
    %c0_i32_0 = arith.constant 0 : i32
    %c0_i32_1 = arith.constant 0 : i32
    return %c0_i32, %c0_i32_0 : i32, i32
  }
  func.func @transform_4(%arg0: i32, %arg1: i32) -> (i32, i32) {
    %c1_i32 = arith.constant 1 : i32
    %0 = arith.muli %arg0, %c1_i32 : i32
    %1 = arith.addi %0, %arg1 : i32
    %c0_i32 = arith.constant 0 : i32
    %c0_i32_0 = arith.constant 0 : i32
    return %1, %c0_i32 : i32, i32
  }
}

</mosaic_0001>

<llo_original>
// kernel: up_conv_forward.3
$region0: #{up_conv_forward.3}
  #allocation0 [shape = 'u32[]', space=smem, size = 0x4, offset = 0x4, fixed_abs, tag = 'smem constant byte address 0x4 - core index']
  #allocation1 [shape = 'u32[144,128]{1,0:T(1,128)}', space=vmem, size = 0x12000, scoped, tag = 'internal scratch']
  %s0 = inlined_call_operand.vmem [shape: bf16[2,18,18,4], index: 0, kind: input, shape index: {}]
  %s1 = inlined_call_operand.vmem [shape: bf16[16,4,32], index: 1, kind: input, shape index: {}]
  %s2 = inlined_call_operand.vmem [shape: f32[1,32], index: 2, kind: input, shape index: {}]
  %s3 = inlined_call_operand.vmem [shape: f32[1,32], index: 3, kind: input, shape index: {}]
  %s4 = inlined_call_operand.vmem [shape: f32[512,128], index: 4, kind: output, shape index: {}]
  %s5 = sld [smem:[#allocation0]]
  $region49: #{up_conv_forward.3} parent=0
    _
  %s7 = ssub.s32 1, %s5
  %s8 = scalar_select 0, %s7, %s5
  loop: start=0, step=1, limit=4
  $region2: #{up_conv_forward.3} parent=0 // loop_pre_header
    _
  $region3: #{up_conv_forward.3} parent=0 // loop_header
    %s10 = sphi 0, %s14
    %p11 = scmp.ge.s32.totalorder %s10, 4
    %s17 = sphi 0, %s29
    %s18 = sphi 0, %s25
    %s19 = sphi 0, %s17
    %s20 = sphi 0, %s18
    %s21 = sphi 0, %s19
    %s22 = sphi 0, %s20
    %s32 = sphi 0, %s34
    %s35 = sphi 0, %s32
    %s36 = sphi 0, %s35
    %s52 = sphi 0, %s36
    %s56 = sphi 0, %s56
    %s58 = sphi 0, %s56
    %s59 = sphi 0, %s58
    %s73 = sphi 0, %s59
    %s77 = sphi 0, %s77
    %s79 = sphi 0, %s77
    %s80 = sphi 0, %s79
    %s94 = sphi 0, %s80
    %s98 = sphi 0, %s98
    %s100 = sphi 0, %s98
    %s101 = sphi 0, %s100
    %s115 = sphi 0, %s101
    %s123 = sphi 0, %s125
    %s126 = sphi 0, %s123
    %s127 = sphi 0, %s126
    %s143 = sphi 0, %s127
  $region4: #{up_conv_forward.3} parent=0 // loop_header_branch
    %13 = sbr.rel (%p11) target = $region8
  $region5: #{up_conv_forward.3} parent=0 // loop_body
    %s15 = ssub.s32 %s10, 1
    %s16 = ssub.s32 %s10, 2
    %s23 = sadd.s32 1, %s18
    %p24 = scmp.ge.s32.totalorder %s23, 1
    %s25 = scalar_select %p24, 0, %s23
    %s26 = sadd.s32 1, %s17
    %s27 = scalar_select %p24, %s26, %s17
    %p28 = scmp.ge.s32.totalorder %s27, 2
    %s29 = scalar_select %p28, 0, %s27
    %s30 = ssub.s32 %s17, %s29
    %p31 = scmp.eq.s32.totalorder %s30, 0
    %s33 = sadd.s32 %s32, 1
    %s34 = scalar_select %p31, %s32, %s33
    %p37 = pneg %p31
    %p38 = scmp.eq.s32.totalorder %s10, 1
    %p39 = por %p37, %p38
    %p40 = scmp.ne.s32.totalorder %s32, %s35
    %p41 = scmp.eq.s32.totalorder %s10, 0
    %p42 = por %p40, %p41
    %p43 = scmp.ne.s32.totalorder %s32, %s35
    %p44 = scmp.eq.s32.totalorder %s15, 1
    %p45 = por %p43, %p44
    %p46 = scmp.ne.s32.totalorder %s35, %s36
    %p47 = scmp.eq.s32.totalorder %s15, 0
    %p48 = por %p46, %p47
    %p49 = scmp.ne.s32.totalorder %s35, %s36
    %p50 = scmp.eq.s32.totalorder %s16, 1
    %p51 = por %p49, %p50
    %p53 = scmp.ne.s32.totalorder %s36, %s52
    %p54 = scmp.eq.s32.totalorder %s16, 0
    %p55 = por %p53, %p54
    %s57 = sadd.s32 %s56, 1
    %p60 = scmp.eq.s32.totalorder %s10, 1
    %p61 = scmp.ne.s32.totalorder %s56, %s58
    %p62 = scmp.eq.s32.totalorder %s10, 0
    %p63 = por %p61, %p62
    %p64 = scmp.ne.s32.totalorder %s56, %s58
    %p65 = scmp.eq.s32.totalorder %s15, 1
    %p66 = por %p64, %p65
    %p67 = scmp.ne.s32.totalorder %s58, %s59
    %p68 = scmp.eq.s32.totalorder %s15, 0
    %p69 = por %p67, %p68
    %p70 = scmp.ne.s32.totalorder %s58, %s59
    %p71 = scmp.eq.s32.totalorder %s16, 1
    %p72 = por %p70, %p71
    %p74 = scmp.ne.s32.totalorder %s59, %s73
    %p75 = scmp.eq.s32.totalorder %s16, 0
    %p76 = por %p74, %p75
    %s78 = sadd.s32 %s77, 1
    %p81 = scmp.eq.s32.totalorder %s10, 1
    %p82 = scmp.ne.s32.totalorder %s77, %s79
    %p83 = scmp.eq.s32.totalorder %s10, 0
    %p84 = por %p82, %p83
    %p85 = scmp.ne.s32.totalorder %s77, %s79
    %p86 = scmp.eq.s32.totalorder %s15, 1
    %p87 = por %p85, %p86
    %p88 = scmp.ne.s32.totalorder %s79, %s80
    %p89 = scmp.eq.s32.totalorder %s15, 0
    %p90 = por %p88, %p89
    %p91 = scmp.ne.s32.totalorder %s79, %s80
    %p92 = scmp.eq.s32.totalorder %s16, 1
    %p93 = por %p91, %p92
    %p95 = scmp.ne.s32.totalorder %s80, %s94
    %p96 = scmp.eq.s32.totalorder %s16, 0
    %p97 = por %p95, %p96
    %s99 = sadd.s32 %s98, 1
    %p102 = scmp.eq.s32.totalorder %s10, 1
    %p103 = scmp.ne.s32.totalorder %s98, %s100
    %p104 = scmp.eq.s32.totalorder %s10, 0
    %p105 = por %p103, %p104
    %p106 = scmp.ne.s32.totalorder %s98, %s100
    %p107 = scmp.eq.s32.totalorder %s15, 1
    %p108 = por %p106, %p107
    %p109 = scmp.ne.s32.totalorder %s100, %s101
    %p110 = scmp.eq.s32.totalorder %s15, 0
    %p111 = por %p109, %p110
    %p112 = scmp.ne.s32.totalorder %s100, %s101
    %p113 = scmp.eq.s32.totalorder %s16, 1
    %p114 = por %p112, %p113
    %p116 = scmp.ne.s32.totalorder %s101, %s115
    %p117 = scmp.eq.s32.totalorder %s16, 0
    %p118 = por %p116, %p117
    %s119 = sadd.s32 %s17, %s18
    %s120 = sadd.s32 %s29, %s25
    %s121 = ssub.s32 %s119, %s120
    %p122 = scmp.eq.s32.totalorder %s121, 0
    %s124 = sadd.s32 %s123, 1
    %s125 = scalar_select %p122, %s123, %s124
    %p128 = pneg %p122
    %p129 = scmp.eq.s32.totalorder %s10, 1
    %p130 = por %p128, %p129
    %p131 = scmp.ne.s32.totalorder %s123, %s126
    %p132 = scmp.eq.s32.totalorder %s10, 0
    %p133 = por %p131, %p132
    %p134 = scmp.ne.s32.totalorder %s123, %s126
    %p135 = scmp.eq.s32.totalorder %s15, 1
    %p136 = por %p134, %p135
    %p137 = scmp.ne.s32.totalorder %s126, %s127
    %p138 = scmp.eq.s32.totalorder %s15, 0
    %p139 = por %p137, %p138
    %p140 = scmp.ne.s32.totalorder %s126, %s127
    %p141 = scmp.eq.s32.totalorder %s16, 1
    %p142 = por %p140, %p141
    %p144 = scmp.ne.s32.totalorder %s127, %s143
    %p145 = scmp.eq.s32.totalorder %s16, 0
    %p146 = por %p144, %p145
    %p147 = scmp.le.s32.totalorder 1, %s10
    %p148 = scmp.lt.s32.totalorder %s10, 3
    %p149 = pnand %p147, %p148
    %p150 = pneg %p149
    // Predicated region
    $region9: #{up_conv_forward.3} parent=5 // pred_check
      _
    $region10: #{up_conv_forward.3} parent=5 // pred_check_branch
      %152 = sbr.rel (%p149) target = $region12
    $region11: #{up_conv_forward.3} parent=5 // pred_region
      %s153 = ssub.s32 %s10, 1
      // Predicated region
      $region13: #{up_conv_forward.3} parent=11 // pred_check
        %p154 = pneg %p69
      $region14: #{up_conv_forward.3} parent=11 // pred_check_branch
        %156 = sbr.rel (%p154) target = $region16
      $region15: #{up_conv_forward.3} parent=11 // pred_region
        _
      $region16: #{up_conv_forward.3} parent=11 // pred_fallthru
        _
      // Predicated region
      $region17: #{up_conv_forward.3} parent=11 // pred_check
        %p157 = pneg %p90
      $region18: #{up_conv_forward.3} parent=11 // pred_check_branch
        %159 = sbr.rel (%p157) target = $region20
      $region19: #{up_conv_forward.3} parent=11 // pred_region
        _
      $region20: #{up_conv_forward.3} parent=11 // pred_fallthru
        _
      // Predicated region
      $region21: #{up_conv_forward.3} parent=11 // pred_check
        %p160 = pneg %p111
      $region22: #{up_conv_forward.3} parent=11 // pred_check_branch
        %162 = sbr.rel (%p160) target = $region24
      $region23: #{up_conv_forward.3} parent=11 // pred_region
        _
      $region24: #{up_conv_forward.3} parent=11 // pred_fallthru
        _
    $region12: #{up_conv_forward.3} parent=5 // pred_fallthru
      _
    %p163 = scmp.lt.s32.totalorder %s10, 2
    // Predicated region
    $region25: #{up_conv_forward.3} parent=5 // pred_check
      %p164 = pneg %p163
    $region26: #{up_conv_forward.3} parent=5 // pred_check_branch
      %166 = sbr.rel (%p164) target = $region28
    $region27: #{up_conv_forward.3} parent=5 // pred_region
      // Predicated region
      $region29: #{up_conv_forward.3} parent=27 // pred_check
        %p167 = pneg %p42
      $region30: #{up_conv_forward.3} parent=27 // pred_check_branch
        %169 = sbr.rel (%p167) target = $region32
      $region31: #{up_conv_forward.3} parent=27 // pred_region
        %p170 = scmp.lt.s32.totalorder %s17, 1
        %s171 = scalar_select %p170, %s17, 1
        %s172 = smul.addr %s171, 54
        %s173 = smul.addr %s172, 4
        %s174 = scalar_lea.vmem %s0, %s173
      $region32: #{up_conv_forward.3} parent=27 // pred_fallthru
        _
    $region28: #{up_conv_forward.3} parent=5 // pred_fallthru
      _
    %p175 = scmp.le.s32.totalorder 1, %s10
    %p176 = scmp.lt.s32.totalorder %s10, 3
    %p177 = pnand %p175, %p176
    %p178 = pneg %p177
    // Predicated region
    $region33: #{up_conv_forward.3} parent=5 // pred_check
      _
    $region34: #{up_conv_forward.3} parent=5 // pred_check_branch
      %180 = sbr.rel (%p177) target = $region36
    $region35: #{up_conv_forward.3} parent=5 // pred_region
      %s181 = ssub.s32 %s10, 1
      %p182 = scmp.lt.s32.totalorder %s19, 1
      %s183 = scalar_select %p182, %s19, 1
      %s184 = smul.addr %s183, 54
      %s185 = smul.addr %s184, 4
      %s186 = scalar_lea.vmem %s0, %s185
      %p187 = pneg %p48
      %p188 = pneg %p45
      %p189 = pneg %p69
      %p190 = pneg %p66
      %p191 = pneg %p90
      %p192 = pneg %p87
      %p193 = pneg %p111
      %p194 = pneg %p108
      %p195 = pneg %p139
      %p196 = pneg %p136
      %s197 = sadd.s32 %s19, %s20
      %s198 = smul.u32 32, %s197
      %p199 = scmp.lt.s32.totalorder %s198, 63
      %s200 = scalar_select %p199, %s198, 63
      %s201 = smul.addr %s200, 8
      %s202 = scalar_lea.vmem %s4, %s201
      %p203 = scmp.lt.s32.totalorder %s19, 1
      %s204 = scalar_select %p203, %s19, 1
      %s205 = smul.addr %s204, 54
      %s206 = smul.addr %s205, 4
      %s207 = scalar_lea.vmem %s0, %s206
      %s208 = sadd.s32 %s19, %s20
      %s209 = smul.u32 32, %s208
      %p210 = scmp.lt.s32.totalorder %s209, 63
      %s211 = scalar_select %p210, %s209, 63
      %s212 = smul.addr %s211, 8
      %s213 = scalar_lea.vmem %s4, %s212
      %s214 = sadd.s32 %s19, %s20
      %s215 = smul.u32 32, %s214
      %s217 = smul.u32 %s20, 16
      %s218 = smul.u32 %s217, 3
      %s219 = smul.addr %s218, 4
      %s220 = scalar_lea.vmem %s207, %s219
      %v221 = vld [vmem:[%s220] sm:$0xf]
      %v222 = vld [vmem:[%s220 + $0x4] sm:$0xf]
      %v223 = vld [vmem:[%s220 + $0x8] sm:$0x1]
      %v224 = vld [vmem:[%s220 + $0xc] sm:$0xf]
      %v225 = vld [vmem:[%s220 + $0x10] sm:$0xf]
      %v226 = vld [vmem:[%s220 + $0x14] sm:$0x1]
      %v227 = vld [vmem:[%s220 + $0x18] sm:$0xf]
      %v228 = vld [vmem:[%s220 + $0x1c] sm:$0xf]
      %v229 = vld [vmem:[%s220 + $0x20] sm:$0x1]
      %v230 = vld [vmem:[%s220 + $0x24] sm:$0xf]
      %v231 = vld [vmem:[%s220 + $0x28] sm:$0xf]
      %v232 = vld [vmem:[%s220 + $0x2c] sm:$0x1]
      %v233 = vld [vmem:[%s220 + $0x30] sm:$0xf]
      %v234 = vld [vmem:[%s220 + $0x34] sm:$0xf]
      %v235 = vld [vmem:[%s220 + $0x38] sm:$0x1]
      %v236 = vld [vmem:[%s220 + $0x3c] sm:$0xf]
      %v237 = vld [vmem:[%s220 + $0x40] sm:$0xf]
      %v238 = vld [vmem:[%s220 + $0x44] sm:$0x1]
      %v239 = vld [vmem:[%s220 + $0x48] sm:$0xf]
      %v240 = vld [vmem:[%s220 + $0x4c] sm:$0xf]
      %v241 = vld [vmem:[%s220 + $0x50] sm:$0x1]
      %v242 = vld [vmem:[%s220 + $0x54] sm:$0xf]
      %v243 = vld [vmem:[%s220 + $0x58] sm:$0xf]
      %v244 = vld [vmem:[%s220 + $0x5c] sm:$0x1]
      %v245 = vld [vmem:[%s220 + $0x60] sm:$0xf]
      %v246 = vld [vmem:[%s220 + $0x64] sm:$0xf]
      %v247 = vld [vmem:[%s220 + $0x68] sm:$0x1]
      %v248 = vld [vmem:[%s220 + $0x6c] sm:$0xf]
      %v249 = vld [vmem:[%s220 + $0x70] sm:$0xf]
      %v250 = vld [vmem:[%s220 + $0x74] sm:$0x1]
      %v251 = vld [vmem:[%s220 + $0x78] sm:$0xf]
      %v252 = vld [vmem:[%s220 + $0x7c] sm:$0xf]
      %v253 = vld [vmem:[%s220 + $0x80] sm:$0x1]
      %v254 = vld [vmem:[%s220 + $0x84] sm:$0xf]
      %v255 = vld [vmem:[%s220 + $0x88] sm:$0xf]
      %v256 = vld [vmem:[%s220 + $0x8c] sm:$0x1]
      %v257 = vld [vmem:[%s220 + $0x90] sm:$0xf]
      %v258 = vld [vmem:[%s220 + $0x94] sm:$0xf]
      %v259 = vld [vmem:[%s220 + $0x98] sm:$0x1]
      %v260 = vld [vmem:[%s220 + $0x9c] sm:$0xf]
      %v261 = vld [vmem:[%s220 + $0xa0] sm:$0xf]
      %v262 = vld [vmem:[%s220 + $0xa4] sm:$0x1]
      %v263 = vld [vmem:[%s220 + $0xa8] sm:$0xf]
      %v264 = vld [vmem:[%s220 + $0xac] sm:$0xf]
      %v265 = vld [vmem:[%s220 + $0xb0] sm:$0x1]
      %v266 = vld [vmem:[%s220 + $0xb4] sm:$0xf]
      %v267 = vld [vmem:[%s220 + $0xb8] sm:$0xf]
      %v268 = vld [vmem:[%s220 + $0xbc] sm:$0x1]
      %v269 = vld [vmem:[%s220 + $0xc0] sm:$0xf]
      %v270 = vld [vmem:[%s220 + $0xc4] sm:$0xf]
      %v271 = vld [vmem:[%s220 + $0xc8] sm:$0x1]
      %v272 = vld [vmem:[%s220 + $0xcc] sm:$0xf]
      %v273 = vld [vmem:[%s220 + $0xd0] sm:$0xf]
      %v274 = vld [vmem:[%s220 + $0xd4] sm:$0x1]
      %v275 = vld [vmem:[%s1] sm:$0x3]
      %vm276 = vsmask.f32 3328
      %vm277 = vsmask.f32 7440
      %vm278 = vmor %vm276, %vm277
      %v280 = vshrl.u32 %v221, 16
      %v282 = vrot.slane %v280, 4
      %v283 = vshll.u32 %v221, 16
      %v285 = vrot.slane %v283, 5
      %v286 = vor.u32 %v282, %v285
      %v287 = vrot.slane %v286, 4
      %v289 = vshll.u32 %v222, 16
      %v291 = vrot.slane %v289, 5
      %v292 = vsel %vm278, %v287, %v291
      %v293 = vshrl.u32 %v222, 16
      %v295 = vrot.slane %v293, 4
      %v296 = vor.u32 %v295, %v291
      %v297 = vrot.slane %v296, 4
      %v299 = vshll.u32 %v223, 16
      %v301 = vrot.slane %v299, 5
      %v302 = vsel %vm278, %v297, %v301
      %v304 = vshrl.u32 %v224, 16
      %v306 = vrot.slane %v304, 4
      %v307 = vshll.u32 %v224, 16
      %v309 = vrot.slane %v307, 5
      %v310 = vor.u32 %v306, %v309
      %v311 = vrot.slane %v310, 4
      %v313 = vshll.u32 %v225, 16
      %v315 = vrot.slane %v313, 5
      %v316 = vsel %vm278, %v311, %v315
      %v317 = vshrl.u32 %v225, 16
      %v319 = vrot.slane %v317, 4
      %v320 = vor.u32 %v319, %v315
      %v321 = vrot.slane %v320, 4
      %v323 = vshll.u32 %v226, 16
      %v325 = vrot.slane %v323, 5
      %v326 = vsel %vm278, %v321, %v325
      %v328 = vshrl.u32 %v227, 16
      %v330 = vrot.slane %v328, 4
      %v331 = vshll.u32 %v227, 16
      %v333 = vrot.slane %v331, 5
      %v334 = vor.u32 %v330, %v333
      %v335 = vrot.slane %v334, 4
      %v337 = vshll.u32 %v228, 16
      %v339 = vrot.slane %v337, 5
      %v340 = vsel %vm278, %v335, %v339
      %v341 = vshrl.u32 %v228, 16
      %v343 = vrot.slane %v341, 4
      %v344 = vor.u32 %v343, %v339
      %v345 = vrot.slane %v344, 4
      %v347 = vshll.u32 %v229, 16
      %v349 = vrot.slane %v347, 5
      %v350 = vsel %vm278, %v345, %v349
      %v352 = vshrl.u32 %v230, 16
      %v354 = vrot.slane %v352, 4
      %v355 = vshll.u32 %v230, 16
      %v357 = vrot.slane %v355, 5
      %v358 = vor.u32 %v354, %v357
      %v359 = vrot.slane %v358, 4
      %v361 = vshll.u32 %v231, 16
      %v363 = vrot.slane %v361, 5
      %v364 = vsel %vm278, %v359, %v363
      %v365 = vshrl.u32 %v231, 16
      %v367 = vrot.slane %v365, 4
      %v368 = vor.u32 %v367, %v363
      %v369 = vrot.slane %v368, 4
      %v371 = vshll.u32 %v232, 16
      %v373 = vrot.slane %v371, 5
      %v374 = vsel %vm278, %v369, %v373
      %v376 = vshrl.u32 %v233, 16
      %v378 = vrot.slane %v376, 4
      %v379 = vshll.u32 %v233, 16
      %v381 = vrot.slane %v379, 5
      %v382 = vor.u32 %v378, %v381
      %v383 = vrot.slane %v382, 4
      %v385 = vshll.u32 %v234, 16
      %v387 = vrot.slane %v385, 5
      %v388 = vsel %vm278, %v383, %v387
      %v389 = vshrl.u32 %v234, 16
      %v391 = vrot.slane %v389, 4
      %v392 = vor.u32 %v391, %v387
      %v393 = vrot.slane %v392, 4
      %v395 = vshll.u32 %v235, 16
      %v397 = vrot.slane %v395, 5
      %v398 = vsel %vm278, %v393, %v397
      %v400 = vshrl.u32 %v236, 16
      %v402 = vrot.slane %v400, 4
      %v403 = vshll.u32 %v236, 16
      %v405 = vrot.slane %v403, 5
      %v406 = vor.u32 %v402, %v405
      %v407 = vrot.slane %v406, 4
      %v409 = vshll.u32 %v237, 16
      %v411 = vrot.slane %v409, 5
      %v412 = vsel %vm278, %v407, %v411
      %v413 = vshrl.u32 %v237, 16
      %v415 = vrot.slane %v413, 4
      %v416 = vor.u32 %v415, %v411
      %v417 = vrot.slane %v416, 4
      %v419 = vshll.u32 %v238, 16
      %v421 = vrot.slane %v419, 5
      %v422 = vsel %vm278, %v417, %v421
      %v424 = vshrl.u32 %v239, 16
      %v426 = vrot.slane %v424, 4
      %v427 = vshll.u32 %v239, 16
      %v429 = vrot.slane %v427, 5
      %v430 = vor.u32 %v426, %v429
      %v431 = vrot.slane %v430, 4
      %v433 = vshll.u32 %v240, 16
      %v435 = vrot.slane %v433, 5
      %v436 = vsel %vm278, %v431, %v435
      %v437 = vshrl.u32 %v240, 16
      %v439 = vrot.slane %v437, 4
      %v440 = vor.u32 %v439, %v435
      %v441 = vrot.slane %v440, 4
      %v443 = vshll.u32 %v241, 16
      %v445 = vrot.slane %v443, 5
      %v446 = vsel %vm278, %v441, %v445
      %v448 = vshrl.u32 %v242, 16
      %v450 = vrot.slane %v448, 4
      %v451 = vshll.u32 %v242, 16
      %v453 = vrot.slane %v451, 5
      %v454 = vor.u32 %v450, %v453
      %v455 = vrot.slane %v454, 4
      %v457 = vshll.u32 %v243, 16
      %v459 = vrot.slane %v457, 5
      %v460 = vsel %vm278, %v455, %v459
      %v461 = vshrl.u32 %v243, 16
      %v463 = vrot.slane %v461, 4
      %v464 = vor.u32 %v463, %v459
      %v465 = vrot.slane %v464, 4
      %v467 = vshll.u32 %v244, 16
      %v469 = vrot.slane %v467, 5
      %v470 = vsel %vm278, %v465, %v469
      %v472 = vshrl.u32 %v245, 16
      %v474 = vrot.slane %v472, 4
      %v475 = vshll.u32 %v245, 16
      %v477 = vrot.slane %v475, 5
      %v478 = vor.u32 %v474, %v477
      %v479 = vrot.slane %v478, 4
      %v481 = vshll.u32 %v246, 16
      %v483 = vrot.slane %v481, 5
      %v484 = vsel %vm278, %v479, %v483
      %v485 = vshrl.u32 %v246, 16
      %v487 = vrot.slane %v485, 4
      %v488 = vor.u32 %v487, %v483
      %v489 = vrot.slane %v488, 4
      %v491 = vshll.u32 %v247, 16
      %v493 = vrot.slane %v491, 5
      %v494 = vsel %vm278, %v489, %v493
      %v496 = vshrl.u32 %v248, 16
      %v498 = vrot.slane %v496, 4
      %v499 = vshll.u32 %v248, 16
      %v501 = vrot.slane %v499, 5
      %v502 = vor.u32 %v498, %v501
      %v503 = vrot.slane %v502, 4
      %v505 = vshll.u32 %v249, 16
      %v507 = vrot.slane %v505, 5
      %v508 = vsel %vm278, %v503, %v507
      %v509 = vshrl.u32 %v249, 16
      %v511 = vrot.slane %v509, 4
      %v512 = vor.u32 %v511, %v507
      %v513 = vrot.slane %v512, 4
      %v515 = vshll.u32 %v250, 16
      %v517 = vrot.slane %v515, 5
      %v518 = vsel %vm278, %v513, %v517
      %v520 = vshrl.u32 %v251, 16
      %v522 = vrot.slane %v520, 4
      %v523 = vshll.u32 %v251, 16
      %v525 = vrot.slane %v523, 5
      %v526 = vor.u32 %v522, %v525
      %v527 = vrot.slane %v526, 4
      %v529 = vshll.u32 %v252, 16
      %v531 = vrot.slane %v529, 5
      %v532 = vsel %vm278, %v527, %v531
      %v533 = vshrl.u32 %v252, 16
      %v535 = vrot.slane %v533, 4
      %v536 = vor.u32 %v535, %v531
      %v537 = vrot.slane %v536, 4
      %v539 = vshll.u32 %v253, 16
      %v541 = vrot.slane %v539, 5
      %v542 = vsel %vm278, %v537, %v541
      %v544 = vshrl.u32 %v254, 16
      %v546 = vrot.slane %v544, 4
      %v547 = vshll.u32 %v254, 16
      %v549 = vrot.slane %v547, 5
      %v550 = vor.u32 %v546, %v549
      %v551 = vrot.slane %v550, 4
      %v553 = vshll.u32 %v255, 16
      %v555 = vrot.slane %v553, 5
      %v556 = vsel %vm278, %v551, %v555
      %v557 = vshrl.u32 %v255, 16
      %v559 = vrot.slane %v557, 4
      %v560 = vor.u32 %v559, %v555
      %v561 = vrot.slane %v560, 4
      %v563 = vshll.u32 %v256, 16
      %v565 = vrot.slane %v563, 5
      %v566 = vsel %vm278, %v561, %v565
      %v568 = vshrl.u32 %v257, 16
      %v570 = vrot.slane %v568, 4
      %v571 = vshll.u32 %v257, 16
      %v573 = vrot.slane %v571, 5
      %v574 = vor.u32 %v570, %v573
      %v575 = vrot.slane %v574, 4
      %v577 = vshll.u32 %v258, 16
      %v579 = vrot.slane %v577, 5
      %v580 = vsel %vm278, %v575, %v579
      %v581 = vshrl.u32 %v258, 16
      %v583 = vrot.slane %v581, 4
      %v584 = vor.u32 %v583, %v579
      %v585 = vrot.slane %v584, 4
      %v587 = vshll.u32 %v259, 16
      %v589 = vrot.slane %v587, 5
      %v590 = vsel %vm278, %v585, %v589
      %v592 = vshrl.u32 %v260, 16
      %v594 = vrot.slane %v592, 4
      %v595 = vshll.u32 %v260, 16
      %v597 = vrot.slane %v595, 5
      %v598 = vor.u32 %v594, %v597
      %v599 = vrot.slane %v598, 4
      %v601 = vshll.u32 %v261, 16
      %v603 = vrot.slane %v601, 5
      %v604 = vsel %vm278, %v599, %v603
      %v605 = vshrl.u32 %v261, 16
      %v607 = vrot.slane %v605, 4
      %v608 = vor.u32 %v607, %v603
      %v609 = vrot.slane %v608, 4
      %v611 = vshll.u32 %v262, 16
      %v613 = vrot.slane %v611, 5
      %v614 = vsel %vm278, %v609, %v613
      %v616 = vshrl.u32 %v263, 16
      %v618 = vrot.slane %v616, 4
      %v619 = vshll.u32 %v263, 16
      %v621 = vrot.slane %v619, 5
      %v622 = vor.u32 %v618, %v621
      %v623 = vrot.slane %v622, 4
      %v625 = vshll.u32 %v264, 16
      %v627 = vrot.slane %v625, 5
      %v628 = vsel %vm278, %v623, %v627
      %v629 = vshrl.u32 %v264, 16
      %v631 = vrot.slane %v629, 4
      %v632 = vor.u32 %v631, %v627
      %v633 = vrot.slane %v632, 4
      %v635 = vshll.u32 %v265, 16
      %v637 = vrot.slane %v635, 5
      %v638 = vsel %vm278, %v633, %v637
      %v640 = vshrl.u32 %v266, 16
      %v642 = vrot.slane %v640, 4
      %v643 = vshll.u32 %v266, 16
      %v645 = vrot.slane %v643, 5
      %v646 = vor.u32 %v642, %v645
      %v647 = vrot.slane %v646, 4
      %v649 = vshll.u32 %v267, 16
      %v651 = vrot.slane %v649, 5
      %v652 = vsel %vm278, %v647, %v651
      %v653 = vshrl.u32 %v267, 16
      %v655 = vrot.slane %v653, 4
      %v656 = vor.u32 %v655, %v651
      %v657 = vrot.slane %v656, 4
      %v659 = vshll.u32 %v268, 16
      %v661 = vrot.slane %v659, 5
      %v662 = vsel %vm278, %v657, %v661
      %s663 = scalar_lea.vmem %s1, 2
      %v664 = vld [vmem:[%s663] sm:$0x3]
      %v665 = vunpack.c.l.b16 %v292
      %v666 = vunpack.c.l.b16 %v302
      %v667 = vunpack.c.l.b16 %v316
      %v668 = vunpack.c.l.b16 %v326
      %v669 = vunpack.c.l.b16 %v340
      %v670 = vunpack.c.l.b16 %v350
      %v671 = vunpack.c.l.b16 %v364
      %v672 = vunpack.c.l.b16 %v374
      %v673 = vunpack.c.l.b16 %v388
      %v674 = vunpack.c.l.b16 %v398
      %v675 = vunpack.c.l.b16 %v412
      %v676 = vunpack.c.l.b16 %v422
      %v677 = vunpack.c.l.b16 %v436
      %v678 = vunpack.c.l.b16 %v446
      %v679 = vunpack.c.l.b16 %v460
      %v680 = vunpack.c.l.b16 %v470
      %v681 = vunpack.c.l.b16 %v484
      %v682 = vunpack.c.l.b16 %v494
      %v683 = vunpack.c.l.b16 %v508
      %v684 = vunpack.c.l.b16 %v518
      %v685 = vunpack.c.l.b16 %v532
      %v686 = vunpack.c.l.b16 %v542
      %v687 = vunpack.c.l.b16 %v556
      %v688 = vunpack.c.l.b16 %v566
      %v689 = vunpack.c.l.b16 %v580
      %v690 = vunpack.c.l.b16 %v590
      %v691 = vunpack.c.l.b16 %v604
      %v692 = vunpack.c.l.b16 %v614
      %v693 = vunpack.c.l.b16 %v628
      %v694 = vunpack.c.l.b16 %v638
      %v695 = vunpack.c.l.b16 %v652
      %v696 = vunpack.c.l.b16 %v662
      %v697 = vpack.c.b16 %v666, %v665
      %v698 = vpack.c.b16 %v668, %v667
      %v699 = vpack.c.b16 %v670, %v669
      %v700 = vpack.c.b16 %v672, %v671
      %v701 = vpack.c.b16 %v674, %v673
      %v702 = vpack.c.b16 %v676, %v675
      %v703 = vpack.c.b16 %v678, %v677
      %v704 = vpack.c.b16 %v680, %v679
      %v705 = vpack.c.b16 %v682, %v681
      %v706 = vpack.c.b16 %v684, %v683
      %v707 = vpack.c.b16 %v686, %v685
      %v708 = vpack.c.b16 %v688, %v687
      %v709 = vpack.c.b16 %v690, %v689
      %v710 = vpack.c.b16 %v692, %v691
      %v711 = vpack.c.b16 %v694, %v693
      %v712 = vpack.c.b16 %v696, %v695
      %vm713 = vcmask 31744
      %v715 = vsel %vm713, %v697, 0
      %v718 = vsel %vm713, %v698, 0
      %v721 = vsel %vm713, %v699, 0
      %v724 = vsel %vm713, %v700, 0
      %v727 = vsel %vm713, %v701, 0
      %v730 = vsel %vm713, %v702, 0
      %v733 = vsel %vm713, %v703, 0
      %v736 = vsel %vm713, %v704, 0
      %v739 = vsel %vm713, %v705, 0
      %v742 = vsel %vm713, %v706, 0
      %v745 = vsel %vm713, %v707, 0
      %v748 = vsel %vm713, %v708, 0
      %v751 = vsel %vm713, %v709, 0
      %v754 = vsel %vm713, %v710, 0
      %v757 = vsel %vm713, %v711, 0
      %v760 = vsel %vm713, %v712, 0
      %vm762 = vcmask 1041408
      %v764 = vsel %vm762, %v664, 0
      %766 = vmatprep.subr.bf16.mxu0 0
      %767 = vmatpush1.bf16.msra.mxu0 %v764
      %768 = vmatprep.subr.bf16.mxu0 0
      %769 = vmatpush1.bf16.msra.mxu0 0
      %770 = vmatprep.subr.bf16.mxu0 0
      %771 = vmatpush1.bf16.msra.mxu0 0
      %772 = vmatprep.subr.bf16.mxu0 0
      %773 = vmatpush1.bf16.msra.mxu0 0
      %774 = vmatprep.subr.bf16.mxu0 0
      %775 = vmatpush1.bf16.msra.mxu0 0
      %776 = vmatprep.subr.bf16.mxu0 0
      %777 = vmatpush1.bf16.msra.mxu0 0
      %778 = vmatprep.subr.bf16.mxu0 0
      %779 = vmatpush1.bf16.msra.mxu0 0
      %780 = vmatprep.subr.bf16.mxu0 0
      %781 = vmatpush1.bf16.msra.mxu0 0
      %782 = vmatprep.subr.bf16.mxu0 0
      %783 = vmatpush1.bf16.msra.mxu0 0
      %784 = vmatprep.subr.bf16.mxu0 0
      %785 = vmatpush1.bf16.msra.mxu0 0
      %786 = vmatprep.subr.bf16.mxu0 0
      %787 = vmatpush1.bf16.msra.mxu0 0
      %788 = vmatprep.subr.bf16.mxu0 0
      %789 = vmatpush1.bf16.msra.mxu0 0
      %790 = vmatprep.subr.bf16.mxu0 0
      %791 = vmatpush1.bf16.msra.mxu0 0
      %792 = vmatprep.subr.bf16.mxu0 0
      %793 = vmatpush1.bf16.msra.mxu0 0
      %794 = vmatprep.subr.bf16.mxu0 0
      %795 = vmatpush1.bf16.msra.mxu0 0
      %796 = vmatprep.subr.bf16.mxu0 0
      %797 = vmatpush1.bf16.msra.mxu0 0
      %798 = vmatprep.mubr.bf16.mxu0 0
      %799 = vmatmul.mubr.bf16.gmra.mrb[0].mxu0 %v715
      %v800 = vpop.f32.mrb[0].mxu0
      %v801 = vadd.f32 0.0, %v800
      %v802 = vpop.f32.mrb[0].mxu0
      %v803 = vpop.f32.mrb[0].mxu0
      %v804 = vadd.f32 0.0, %v803
      %v805 = vpop.f32.mrb[0].mxu0
      %806 = vmatprep.mubr.bf16.mxu0 0
      %807 = vmatmul.mubr.bf16.gmra.mrb[0].mxu0 %v718
      %v808 = vpop.f32.mrb[0].mxu0
      %v809 = vadd.f32 0.0, %v808
      %v810 = vpop.f32.mrb[0].mxu0
      %v811 = vpop.f32.mrb[0].mxu0
      %v812 = vadd.f32 0.0, %v811
      %v813 = vpop.f32.mrb[0].mxu0
      %814 = vmatprep.mubr.bf16.mxu0 0
      %815 = vmatmul.mubr.bf16.gmra.mrb[0].mxu0 %v721
      %v816 = vpop.f32.mrb[0].mxu0
      %v817 = vadd.f32 0.0, %v816
      %v818 = vpop.f32.mrb[0].mxu0
      %v819 = vpop.f32.mrb[0].mxu0
      %v820 = vadd.f32 0.0, %v819
      %v821 = vpop.f32.mrb[0].mxu0
      %822 = vmatprep.mubr.bf16.mxu0 0
      %823 = vmatmul.mubr.bf16.gmra.mrb[0].mxu0 %v724
      %v824 = vpop.f32.mrb[0].mxu0
      %v825 = vadd.f32 0.0, %v824
      %v826 = vpop.f32.mrb[0].mxu0
      %v827 = vpop.f32.mrb[0].mxu0
      %v828 = vadd.f32 0.0, %v827
      %v829 = vpop.f32.mrb[0].mxu0
      %830 = vmatprep.mubr.bf16.mxu0 0
      %831 = vmatmul.mubr.bf16.gmra.mrb[0].mxu0 %v727
      %v832 = vpop.f32.mrb[0].mxu0
      %v833 = vadd.f32 0.0, %v832
      %v834 = vpop.f32.mrb[0].mxu0
      %v835 = vpop.f32.mrb[0].mxu0
      %v836 = vadd.f32 0.0, %v835
      %v837 = vpop.f32.mrb[0].mxu0
      %838 = vmatprep.mubr.bf16.mxu0 0
      %839 = vmatmul.mubr.bf16.gmra.mrb[0].mxu0 %v730
      %v840 = vpop.f32.mrb[0].mxu0
      %v841 = vadd.f32 0.0, %v840
      %v842 = vpop.f32.mrb[0].mxu0
      %v843 = vpop.f32.mrb[0].mxu0
      %v844 = vadd.f32 0.0, %v843
      %v845 = vpop.f32.mrb[0].mxu0
      %846 = vmatprep.mubr.bf16.mxu0 0
      %847 = vmatmul.mubr.bf16.gmra.mrb[0].mxu0 %v733
      %v848 = vpop.f32.mrb[0].mxu0
      %v849 = vadd.f32 0.0, %v848
      %v850 = vpop.f32.mrb[0].mxu0
      %v851 = vpop.f32.mrb[0].mxu0
      %v852 = vadd.f32 0.0, %v851
      %v853 = vpop.f32.mrb[0].mxu0
      %854 = vmatprep.mubr.bf16.mxu0 0
      %855 = vmatmul.mubr.bf16.gmra.mrb[0].mxu0 %v736
      %v856 = vpop.f32.mrb[0].mxu0
      %v857 = vadd.f32 0.0, %v856
      %v858 = vpop.f32.mrb[0].mxu0
      %v859 = vpop.f32.mrb[0].mxu0
      %v860 = vadd.f32 0.0, %v859
      %v861 = vpop.f32.mrb[0].mxu0
      %862 = vmatprep.mubr.bf16.mxu0 0
      %863 = vmatmul.mubr.bf16.gmra.mrb[0].mxu0 %v739
      %v864 = vpop.f32.mrb[0].mxu0
      %v865 = vadd.f32 0.0, %v864
      %v866 = vpop.f32.mrb[0].mxu0
      %v867 = vpop.f32.mrb[0].mxu0
      %v868 = vadd.f32 0.0, %v867
      %v869 = vpop.f32.mrb[0].mxu0
      %870 = vmatprep.mubr.bf16.mxu0 0
      %871 = vmatmul.mubr.bf16.gmra.mrb[0].mxu0 %v742
      %v872 = vpop.f32.mrb[0].mxu0
      %v873 = vadd.f32 0.0, %v872
      %v874 = vpop.f32.mrb[0].mxu0
      %v875 = vpop.f32.mrb[0].mxu0
      %v876 = vadd.f32 0.0, %v875
      %v877 = vpop.f32.mrb[0].mxu0
      %878 = vmatprep.mubr.bf16.mxu0 0
      %879 = vmatmul.mubr.bf16.gmra.mrb[0].mxu0 %v745
      %v880 = vpop.f32.mrb[0].mxu0
      %v881 = vadd.f32 0.0, %v880
      %v882 = vpop.f32.mrb[0].mxu0
      %v883 = vpop.f32.mrb[0].mxu0
      %v884 = vadd.f32 0.0, %v883
      %v885 = vpop.f32.mrb[0].mxu0
      %886 = vmatprep.mubr.bf16.mxu0 0
      %887 = vmatmul.mubr.bf16.gmra.mrb[0].mxu0 %v748
      %v888 = vpop.f32.mrb[0].mxu0
      %v889 = vadd.f32 0.0, %v888
      %v890 = vpop.f32.mrb[0].mxu0
      %v891 = vpop.f32.mrb[0].mxu0
      %v892 = vadd.f32 0.0, %v891
      %v893 = vpop.f32.mrb[0].mxu0
      %894 = vmatprep.mubr.bf16.mxu0 0
      %895 = vmatmul.mubr.bf16.gmra.mrb[0].mxu0 %v751
      %v896 = vpop.f32.mrb[0].mxu0
      %v897 = vadd.f32 0.0, %v896
      %v898 = vpop.f32.mrb[0].mxu0
      %v899 = vpop.f32.mrb[0].mxu0
      %v900 = vadd.f32 0.0, %v899
      %v901 = vpop.f32.mrb[0].mxu0
      %902 = vmatprep.mubr.bf16.mxu0 0
      %903 = vmatmul.mubr.bf16.gmra.mrb[0].mxu0 %v754
      %v904 = vpop.f32.mrb[0].mxu0
      %v905 = vadd.f32 0.0, %v904
      %v906 = vpop.f32.mrb[0].mxu0
      %v907 = vpop.f32.mrb[0].mxu0
      %v908 = vadd.f32 0.0, %v907
      %v909 = vpop.f32.mrb[0].mxu0
      %910 = vmatprep.mubr.bf16.mxu0 0
      %911 = vmatmul.mubr.bf16.gmra.mrb[0].mxu0 %v757
      %v912 = vpop.f32.mrb[0].mxu0
      %v913 = vadd.f32 0.0, %v912
      %v914 = vpop.f32.mrb[0].mxu0
      %v915 = vpop.f32.mrb[0].mxu0
      %v916 = vadd.f32 0.0, %v915
      %v917 = vpop.f32.mrb[0].mxu0
      %918 = vmatprep.mubr.bf16.mxu0 0
      %919 = vmatmul.mubr.bf16.gmra.mrb[0].mxu0 %v760
      %v920 = vpop.f32.mrb[0].mxu0
      %v921 = vadd.f32 0.0, %v920
      %v922 = vpop.f32.mrb[0].mxu0
      %v923 = vpop.f32.mrb[0].mxu0
      %v924 = vadd.f32 0.0, %v923
      %v925 = vpop.f32.mrb[0].mxu0
      %926 = vdwg.mxu0
      %v959 = vunpack.c.l.b16 %v221
      %v960 = vunpack.c.l.b16 %v222
      %v961 = vunpack.c.l.b16 %v224
      %v962 = vunpack.c.l.b16 %v225
      %v963 = vunpack.c.l.b16 %v227
      %v964 = vunpack.c.l.b16 %v228
      %v965 = vunpack.c.l.b16 %v230
      %v966 = vunpack.c.l.b16 %v231
      %v967 = vunpack.c.l.b16 %v233
      %v968 = vunpack.c.l.b16 %v234
      %v969 = vunpack.c.l.b16 %v236
      %v970 = vunpack.c.l.b16 %v237
      %v971 = vunpack.c.l.b16 %v239
      %v972 = vunpack.c.l.b16 %v240
      %v973 = vunpack.c.l.b16 %v242
      %v974 = vunpack.c.l.b16 %v243
      %v975 = vunpack.c.l.b16 %v245
      %v976 = vunpack.c.l.b16 %v246
      %v977 = vunpack.c.l.b16 %v248
      %v978 = vunpack.c.l.b16 %v249
      %v979 = vunpack.c.l.b16 %v251
      %v980 = vunpack.c.l.b16 %v252
      %v981 = vunpack.c.l.b16 %v254
      %v982 = vunpack.c.l.b16 %v255
      %v983 = vunpack.c.l.b16 %v257
      %v984 = vunpack.c.l.b16 %v258
      %v985 = vunpack.c.l.b16 %v260
      %v986 = vunpack.c.l.b16 %v261
      %v987 = vunpack.c.l.b16 %v263
      %v988 = vunpack.c.l.b16 %v264
      %v989 = vunpack.c.l.b16 %v266
      %v990 = vunpack.c.l.b16 %v267
      %v991 = vpack.c.b16 %v960, %v959
      %v992 = vpack.c.b16 %v962, %v961
      %v993 = vpack.c.b16 %v964, %v963
      %v994 = vpack.c.b16 %v966, %v965
      %v995 = vpack.c.b16 %v968, %v967
      %v996 = vpack.c.b16 %v970, %v969
      %v997 = vpack.c.b16 %v972, %v971
      %v998 = vpack.c.b16 %v974, %v973
      %v999 = vpack.c.b16 %v976, %v975
      %v1000 = vpack.c.b16 %v978, %v977
      %v1001 = vpack.c.b16 %v980, %v979
      %v1002 = vpack.c.b16 %v982, %v981
      %v1003 = vpack.c.b16 %v984, %v983
      %v1004 = vpack.c.b16 %v986, %v985
      %v1005 = vpack.c.b16 %v988, %v987
      %v1006 = vpack.c.b16 %v990, %v989
      %v1008 = vsel %vm713, %v991, 0
      %v1011 = vsel %vm713, %v992, 0
      %v1014 = vsel %vm713, %v993, 0
      %v1017 = vsel %vm713, %v994, 0
      %v1020 = vsel %vm713, %v995, 0
      %v1023 = vsel %vm713, %v996, 0
      %v1026 = vsel %vm713, %v997, 0
      %v1029 = vsel %vm713, %v998, 0
      %v1032 = vsel %vm713, %v999, 0
      %v1035 = vsel %vm713, %v1000, 0
      %v1038 = vsel %vm713, %v1001, 0
      %v1041 = vsel %vm713, %v1002, 0
      %v1044 = vsel %vm713, %v1003, 0
      %v1047 = vsel %vm713, %v1004, 0
      %v1050 = vsel %vm713, %v1005, 0
      %v1053 = vsel %vm713, %v1006, 0
      %v1056 = vsel %vm762, %v275, 0
      %1058 = vmatprep.subr.bf16.mxu0 0
      %1059 = vmatpush1.bf16.msra.mxu0 %v1056
      %1060 = vmatprep.subr.bf16.mxu0 0
      %1061 = vmatpush1.bf16.msra.mxu0 0
      %1062 = vmatprep.subr.bf16.mxu0 0
      %1063 = vmatpush1.bf16.msra.mxu0 0
      %1064 = vmatprep.subr.bf16.mxu0 0
      %1065 = vmatpush1.bf16.msra.mxu0 0
      %1066 = vmatprep.subr.bf16.mxu0 0
      %1067 = vmatpush1.bf16.msra.mxu0 0
      %1068 = vmatprep.subr.bf16.mxu0 0
      %1069 = vmatpush1.bf16.msra.mxu0 0
      %1070 = vmatprep.subr.bf16.mxu0 0
      %1071 = vmatpush1.bf16.msra.mxu0 0
      %1072 = vmatprep.subr.bf16.mxu0 0
      %1073 = vmatpush1.bf16.msra.mxu0 0
      %1074 = vmatprep.subr.bf16.mxu0 0
      %1075 = vmatpush1.bf16.msra.mxu0 0
      %1076 = vmatprep.subr.bf16.mxu0 0
      %1077 = vmatpush1.bf16.msra.mxu0 0
      %1078 = vmatprep.subr.bf16.mxu0 0
      %1079 = vmatpush1.bf16.msra.mxu0 0
      %1080 = vmatprep.subr.bf16.mxu0 0
      %1081 = vmatpush1.bf16.msra.mxu0 0
      %1082 = vmatprep.subr.bf16.mxu0 0
      %1083 = vmatpush1.bf16.msra.mxu0 0
      %1084 = vmatprep.subr.bf16.mxu0 0
      %1085 = vmatpush1.bf16.msra.mxu0 0
      %1086 = vmatprep.subr.bf16.mxu0 0
      %1087 = vmatpush1.bf16.msra.mxu0 0
      %1088 = vmatprep.subr.bf16.mxu0 0
      %1089 = vmatpush1.bf16.msra.mxu0 0
      %1090 = vmatprep.mubr.bf16.mxu0 0
      %1091 = vmatmul.mubr.bf16.gmra.mrb[0].mxu0 %v1008
      %v1092 = vpop.f32.mrb[0].mxu0
      %v1093 = vadd.f32 %v801, %v1092
      %v1094 = vpop.f32.mrb[0].mxu0
      %v1095 = vpop.f32.mrb[0].mxu0
      %v1096 = vadd.f32 %v804, %v1095
      %v1097 = vpop.f32.mrb[0].mxu0
      %1098 = vmatprep.mubr.bf16.mxu0 0
      %1099 = vmatmul.mubr.bf16.gmra.mrb[0].mxu0 %v1011
      %v1100 = vpop.f32.mrb[0].mxu0
      %v1101 = vadd.f32 %v809, %v1100
      %v1102 = vpop.f32.mrb[0].mxu0
      %v1103 = vpop.f32.mrb[0].mxu0
      %v1104 = vadd.f32 %v812, %v1103
      %v1105 = vpop.f32.mrb[0].mxu0
      %1106 = vmatprep.mubr.bf16.mxu0 0
      %1107 = vmatmul.mubr.bf16.gmra.mrb[0].mxu0 %v1014
      %v1108 = vpop.f32.mrb[0].mxu0
      %v1109 = vadd.f32 %v817, %v1108
      %v1110 = vpop.f32.mrb[0].mxu0
      %v1111 = vpop.f32.mrb[0].mxu0
      %v1112 = vadd.f32 %v820, %v1111
      %v1113 = vpop.f32.mrb[0].mxu0
      %1114 = vmatprep.mubr.bf16.mxu0 0
      %1115 = vmatmul.mubr.bf16.gmra.mrb[0].mxu0 %v1017
      %v1116 = vpop.f32.mrb[0].mxu0
      %v1117 = vadd.f32 %v825, %v1116
      %v1118 = vpop.f32.mrb[0].mxu0
      %v1119 = vpop.f32.mrb[0].mxu0
      %v1120 = vadd.f32 %v828, %v1119
      %v1121 = vpop.f32.mrb[0].mxu0
      %1122 = vmatprep.mubr.bf16.mxu0 0
      %1123 = vmatmul.mubr.bf16.gmra.mrb[0].mxu0 %v1020
      %v1124 = vpop.f32.mrb[0].mxu0
      %v1125 = vadd.f32 %v833, %v1124
      %v1126 = vpop.f32.mrb[0].mxu0
      %v1127 = vpop.f32.mrb[0].mxu0
      %v1128 = vadd.f32 %v836, %v1127
      %v1129 = vpop.f32.mrb[0].mxu0
      %1130 = vmatprep.mubr.bf16.mxu0 0
      %1131 = vmatmul.mubr.bf16.gmra.mrb[0].mxu0 %v1023
      %v1132 = vpop.f32.mrb[0].mxu0
      %v1133 = vadd.f32 %v841, %v1132
      %v1134 = vpop.f32.mrb[0].mxu0
      %v1135 = vpop.f32.mrb[0].mxu0
      %v1136 = vadd.f32 %v844, %v1135
      %v1137 = vpop.f32.mrb[0].mxu0
      %1138 = vmatprep.mubr.bf16.mxu0 0
      %1139 = vmatmul.mubr.bf16.gmra.mrb[0].mxu0 %v1026
      %v1140 = vpop.f32.mrb[0].mxu0
      %v1141 = vadd.f32 %v849, %v1140
      %v1142 = vpop.f32.mrb[0].mxu0
      %v1143 = vpop.f32.mrb[0].mxu0
      %v1144 = vadd.f32 %v852, %v1143
      %v1145 = vpop.f32.mrb[0].mxu0
      %1146 = vmatprep.mubr.bf16.mxu0 0
      %1147 = vmatmul.mubr.bf16.gmra.mrb[0].mxu0 %v1029
      %v1148 = vpop.f32.mrb[0].mxu0
      %v1149 = vadd.f32 %v857, %v1148
      %v1150 = vpop.f32.mrb[0].mxu0
      %v1151 = vpop.f32.mrb[0].mxu0
      %v1152 = vadd.f32 %v860, %v1151
      %v1153 = vpop.f32.mrb[0].mxu0
      %1154 = vmatprep.mubr.bf16.mxu0 0
      %1155 = vmatmul.mubr.bf16.gmra.mrb[0].mxu0 %v1032
      %v1156 = vpop.f32.mrb[0].mxu0
      %v1157 = vadd.f32 %v865, %v1156
      %v1158 = vpop.f32.mrb[0].mxu0
      %v1159 = vpop.f32.mrb[0].mxu0
      %v1160 = vadd.f32 %v868, %v1159
      %v1161 = vpop.f32.mrb[0].mxu0
      %1162 = vmatprep.mubr.bf16.mxu0 0
      %1163 = vmatmul.mubr.bf16.gmra.mrb[0].mxu0 %v1035
      %v1164 = vpop.f32.mrb[0].mxu0
      %v1165 = vadd.f32 %v873, %v1164
      %v1166 = vpop.f32.mrb[0].mxu0
      %v1167 = vpop.f32.mrb[0].mxu0
      %v1168 = vadd.f32 %v876, %v1167
      %v1169 = vpop.f32.mrb[0].mxu0
      %1170 = vmatprep.mubr.bf16.mxu0 0
      %1171 = vmatmul.mubr.bf16.gmra.mrb[0].mxu0 %v1038
      %v1172 = vpop.f32.mrb[0].mxu0
      %v1173 = vadd.f32 %v881, %v1172
      %v1174 = vpop.f32.mrb[0].mxu0
      %v1175 = vpop.f32.mrb[0].mxu0
      %v1176 = vadd.f32 %v884, %v1175
      %v1177 = vpop.f32.mrb[0].mxu0
      %1178 = vmatprep.mubr.bf16.mxu0 0
      %1179 = vmatmul.mubr.bf16.gmra.mrb[0].mxu0 %v1041
      %v1180 = vpop.f32.mrb[0].mxu0
      %v1181 = vadd.f32 %v889, %v1180
      %v1182 = vpop.f32.mrb[0].mxu0
      %v1183 = vpop.f32.mrb[0].mxu0
      %v1184 = vadd.f32 %v892, %v1183
      %v1185 = vpop.f32.mrb[0].mxu0
      %1186 = vmatprep.mubr.bf16.mxu0 0
      %1187 = vmatmul.mubr.bf16.gmra.mrb[0].mxu0 %v1044
      %v1188 = vpop.f32.mrb[0].mxu0
      %v1189 = vadd.f32 %v897, %v1188
      %v1190 = vpop.f32.mrb[0].mxu0
      %v1191 = vpop.f32.mrb[0].mxu0
      %v1192 = vadd.f32 %v900, %v1191
      %v1193 = vpop.f32.mrb[0].mxu0
      %1194 = vmatprep.mubr.bf16.mxu0 0
      %1195 = vmatmul.mubr.bf16.gmra.mrb[0].mxu0 %v1047
      %v1196 = vpop.f32.mrb[0].mxu0
      %v1197 = vadd.f32 %v905, %v1196
      %v1198 = vpop.f32.mrb[0].mxu0
      %v1199 = vpop.f32.mrb[0].mxu0
      %v1200 = vadd.f32 %v908, %v1199
      %v1201 = vpop.f32.mrb[0].mxu0
      %1202 = vmatprep.mubr.bf16.mxu0 0
      %1203 = vmatmul.mubr.bf16.gmra.mrb[0].mxu0 %v1050
      %v1204 = vpop.f32.mrb[0].mxu0
      %v1205 = vadd.f32 %v913, %v1204
      %v1206 = vpop.f32.mrb[0].mxu0
      %v1207 = vpop.f32.mrb[0].mxu0
      %v1208 = vadd.f32 %v916, %v1207
      %v1209 = vpop.f32.mrb[0].mxu0
      %1210 = vmatprep.mubr.bf16.mxu0 0
      %1211 = vmatmul.mubr.bf16.gmra.mrb[0].mxu0 %v1053
      %v1212 = vpop.f32.mrb[0].mxu0
      %v1213 = vadd.f32 %v921, %v1212
      %v1214 = vpop.f32.mrb[0].mxu0
      %v1215 = vpop.f32.mrb[0].mxu0
      %v1216 = vadd.f32 %v924, %v1215
      %v1217 = vpop.f32.mrb[0].mxu0
      %1218 = vdwg.mxu0
      %s1219 = scalar_lea.vmem %s1, 8
      %v1220 = vld [vmem:[%s1219] sm:$0x3]
      %vm1237 = vcmask 1042432
      %vm1238 = vcmask 1046532
      %vm1239 = vmor %vm1237, %vm1238
      %v1240 = vrot.slane %v221, 5
      %v1241 = vrot.slane %v1240, 4
      %v1242 = vrot.slane %v222, 5
      %v1243 = vsel %vm1239, %v1241, %v1242
      %v1244 = vrot.slane %v1242, 4
      %v1245 = vrot.slane %v223, 5
      %v1246 = vsel %vm1239, %v1244, %v1245
      %v1247 = vrot.slane %v224, 5
      %v1248 = vrot.slane %v1247, 4
      %v1249 = vrot.slane %v225, 5
      %v1250 = vsel %vm1239, %v1248, %v1249
      %v1251 = vrot.slane %v1249, 4
      %v1252 = vrot.slane %v226, 5
      %v1253 = vsel %vm1239, %v1251, %v1252
      %v1254 = vrot.slane %v227, 5
      %v1255 = vrot.slane %v1254, 4
      %v1256 = vrot.slane %v228, 5
      %v1257 = vsel %vm1239, %v1255, %v1256
      %v1258 = vrot.slane %v1256, 4
      %v1259 = vrot.slane %v229, 5
      %v1260 = vsel %vm1239, %v1258, %v1259
      %v1261 = vrot.slane %v230, 5
      %v1262 = vrot.slane %v1261, 4
      %v1263 = vrot.slane %v231, 5
      %v1264 = vsel %vm1239, %v1262, %v1263
      %v1265 = vrot.slane %v1263, 4
      %v1266 = vrot.slane %v232, 5
      %v1267 = vsel %vm1239, %v1265, %v1266
      %v1268 = vrot.slane %v233, 5
      %v1269 = vrot.slane %v1268, 4
      %v1270 = vrot.slane %v234, 5
      %v1271 = vsel %vm1239, %v1269, %v1270
      %v1272 = vrot.slane %v1270, 4
      %v1273 = vrot.slane %v235, 5
      %v1274 = vsel %vm1239, %v1272, %v1273
      %v1275 = vrot.slane %v236, 5
      %v1276 = vrot.slane %v1275, 4
      %v1277 = vrot.slane %v237, 5
      %v1278 = vsel %vm1239, %v1276, %v1277
      %v1279 = vrot.slane %v1277, 4
      %v1280 = vrot.slane %v238, 5
      %v1281 = vsel %vm1239, %v1279, %v1280
      %v1282 = vrot.slane %v239, 5
      %v1283 = vrot.slane %v1282, 4
      %v1284 = vrot.slane %v240, 5
      %v1285 = vsel %vm1239, %v1283, %v1284
      %v1286 = vrot.slane %v1284, 4
      %v1287 = vrot.slane %v241, 5
      %v1288 = vsel %vm1239, %v1286, %v1287
      %v1289 = vrot.slane %v242, 5
      %v1290 = vrot.slane %v1289, 4
      %v1291 = vrot.slane %v243, 5
      %v1292 = vsel %vm1239, %v1290, %v1291
      %v1293 = vrot.slane %v1291, 4
      %v1294 = vrot.slane %v244, 5
      %v1295 = vsel %vm1239, %v1293, %v1294
      %v1296 = vrot.slane %v245, 5
      %v1297 = vrot.slane %v1296, 4
      %v1298 = vrot.slane %v246, 5
      %v1299 = vsel %vm1239, %v1297, %v1298
      %v1300 = vrot.slane %v1298, 4
      %v1301 = vrot.slane %v247, 5
      %v1302 = vsel %vm1239, %v1300, %v1301
      %v1303 = vrot.slane %v248, 5
      %v1304 = vrot.slane %v1303, 4
      %v1305 = vrot.slane %v249, 5
      %v1306 = vsel %vm1239, %v1304, %v1305
      %v1307 = vrot.slane %v1305, 4
      %v1308 = vrot.slane %v250, 5
      %v1309 = vsel %vm1239, %v1307, %v1308
      %v1310 = vrot.slane %v251, 5
      %v1311 = vrot.slane %v1310, 4
      %v1312 = vrot.slane %v252, 5
      %v1313 = vsel %vm1239, %v1311, %v1312
      %v1314 = vrot.slane %v1312, 4
      %v1315 = vrot.slane %v253, 5
      %v1316 = vsel %vm1239, %v1314, %v1315
      %v1317 = vrot.slane %v254, 5
      %v1318 = vrot.slane %v1317, 4
      %v1319 = vrot.slane %v255, 5
      %v1320 = vsel %vm1239, %v1318, %v1319
      %v1321 = vrot.slane %v1319, 4
      %v1322 = vrot.slane %v256, 5
      %v1323 = vsel %vm1239, %v1321, %v1322
      %v1324 = vrot.slane %v257, 5
      %v1325 = vrot.slane %v1324, 4
      %v1326 = vrot.slane %v258, 5
      %v1327 = vsel %vm1239, %v1325, %v1326
      %v1328 = vrot.slane %v1326, 4
      %v1329 = vrot.slane %v259, 5
      %v1330 = vsel %vm1239, %v1328, %v1329
      %v1331 = vrot.slane %v260, 5
      %v1332 = vrot.slane %v1331, 4
      %v1333 = vrot.slane %v261, 5
      %v1334 = vsel %vm1239, %v1332, %v1333
      %v1335 = vrot.slane %v1333, 4
      %v1336 = vrot.slane %v262, 5
      %v1337 = vsel %vm1239, %v1335, %v1336
      %v1338 = vrot.slane %v263, 5
      %v1339 = vrot.slane %v1338, 4
      %v1340 = vrot.slane %v264, 5
      %v1341 = vsel %vm1239, %v1339, %v1340
      %v1342 = vrot.slane %v1340, 4
      %v1343 = vrot.slane %v265, 5
      %v1344 = vsel %vm1239, %v1342, %v1343
      %v1345 = vrot.slane %v266, 5
      %v1346 = vrot.slane %v1345, 4
      %v1347 = vrot.slane %v267, 5
      %v1348 = vsel %vm1239, %v1346, %v1347
      %v1349 = vrot.slane %v1347, 4
      %v1350 = vrot.slane %v268, 5
      %v1351 = vsel %vm1239, %v1349, %v1350
      %s1352 = scalar_lea.vmem %s1, 10
      %v1353 = vld [vmem:[%s1352] sm:$0x3]
      %v1354 = vunpack.c.l.b16 %v1243
      %v1355 = vunpack.c.l.b16 %v1246
      %v1356 = vunpack.c.l.b16 %v1250
      %v1357 = vunpack.c.l.b16 %v1253
      %v1358 = vunpack.c.l.b16 %v1257
      %v1359 = vunpack.c.l.b16 %v1260
      %v1360 = vunpack.c.l.b16 %v1264
      %v1361 = vunpack.c.l.b16 %v1267
      %v1362 = vunpack.c.l.b16 %v1271
      %v1363 = vunpack.c.l.b16 %v1274
      %v1364 = vunpack.c.l.b16 %v1278
      %v1365 = vunpack.c.l.b16 %v1281
      %v1366 = vunpack.c.l.b16 %v1285
      %v1367 = vunpack.c.l.b16 %v1288
      %v1368 = vunpack.c.l.b16 %v1292
      %v1369 = vunpack.c.l.b16 %v1295
      %v1370 = vunpack.c.l.b16 %v1299
      %v1371 = vunpack.c.l.b16 %v1302
      %v1372 = vunpack.c.l.b16 %v1306
      %v1373 = vunpack.c.l.b16 %v1309
      %v1374 = vunpack.c.l.b16 %v1313
      %v1375 = vunpack.c.l.b16 %v1316
      %v1376 = vunpack.c.l.b16 %v1320
      %v1377 = vunpack.c.l.b16 %v1323
      %v1378 = vunpack.c.l.b16 %v1327
      %v1379 = vunpack.c.l.b16 %v1330
      %v1380 = vunpack.c.l.b16 %v1334
      %v1381 = vunpack.c.l.b16 %v1337
      %v1382 = vunpack.c.l.b16 %v1341
      %v1383 = vunpack.c.l.b16 %v1344
      %v1384 = vunpack.c.l.b16 %v1348
      %v1385 = vunpack.c.l.b16 %v1351
      %v1386 = vpack.c.b16 %v1355, %v1354
      %v1387 = vpack.c.b16 %v1357, %v1356
      %v1388 = vpack.c.b16 %v1359, %v1358
      %v1389 = vpack.c.b16 %v1361, %v1360
      %v1390 = vpack.c.b16 %v1363, %v1362
      %v1391 = vpack.c.b16 %v1365, %v1364
      %v1392 = vpack.c.b16 %v1367, %v1366
      %v1393 = vpack.c.b16 %v1369, %v1368
      %v1394 = vpack.c.b16 %v1371, %v1370
      %v1395 = vpack.c.b16 %v1373, %v1372
      %v1396 = vpack.c.b16 %v1375, %v1374
      %v1397 = vpack.c.b16 %v1377, %v1376
      %v1398 = vpack.c.b16 %v1379, %v1378
      %v1399 = vpack.c.b16 %v1381, %v1380
      %v1400 = vpack.c.b16 %v1383, %v1382
      %v1401 = vpack.c.b16 %v1385, %v1384
      %v1403 = vsel %vm713, %v1386, 0
      %v1406 = vsel %vm713, %v1387, 0
      %v1409 = vsel %vm713, %v1388, 0
      %v1412 = vsel %vm713, %v1389, 0
      %v1415 = vsel %vm713, %v1390, 0
      %v1418 = vsel %vm713, %v1391, 0
      %v1421 = vsel %vm713, %v1392, 0
      %v1424 = vsel %vm713, %v1393, 0
      %v1427 = vsel %vm713, %v1394, 0
      %v1430 = vsel %vm713, %v1395, 0
      %v1433 = vsel %vm713, %v1396, 0
      %v1436 = vsel %vm713, %v1397, 0
      %v1439 = vsel %vm713, %v1398, 0
      %v1442 = vsel %vm713, %v1399, 0
      %v1445 = vsel %vm713, %v1400, 0
      %v1448 = vsel %vm713, %v1401, 0
      %v1451 = vsel %vm762, %v1353, 0
      %1453 = vmatprep.subr.bf16.mxu0 0
      %1454 = vmatpush1.bf16.msra.mxu0 %v1451
      %1455 = vmatprep.subr.bf16.mxu0 0
      %1456 = vmatpush1.bf16.msra.mxu0 0
      %1457 = vmatprep.subr.bf16.mxu0 0
      %1458 = vmatpush1.bf16.msra.mxu0 0
      %1459 = vmatprep.subr.bf16.mxu0 0
      %1460 = vmatpush1.bf16.msra.mxu0 0
      %1461 = vmatprep.subr.bf16.mxu0 0
      %1462 = vmatpush1.bf16.msra.mxu0 0
      %1463 = vmatprep.subr.bf16.mxu0 0
      %1464 = vmatpush1.bf16.msra.mxu0 0
      %1465 = vmatprep.subr.bf16.mxu0 0
      %1466 = vmatpush1.bf16.msra.mxu0 0
      %1467 = vmatprep.subr.bf16.mxu0 0
      %1468 = vmatpush1.bf16.msra.mxu0 0
      %1469 = vmatprep.subr.bf16.mxu0 0
      %1470 = vmatpush1.bf16.msra.mxu0 0
      %1471 = vmatprep.subr.bf16.mxu0 0
      %1472 = vmatpush1.bf16.msra.mxu0 0
      %1473 = vmatprep.subr.bf16.mxu0 0
      %1474 = vmatpush1.bf16.msra.mxu0 0
      %1475 = vmatprep.subr.bf16.mxu0 0
      %1476 = vmatpush1.bf16.msra.mxu0 0
      %1477 = vmatprep.subr.bf16.mxu0 0
      %1478 = vmatpush1.bf16.msra.mxu0 0
      %1479 = vmatprep.subr.bf16.mxu0 0
      %1480 = vmatpush1.bf16.msra.mxu0 0
      %1481 = vmatprep.subr.bf16.mxu0 0
      %1482 = vmatpush1.bf16.msra.mxu0 0
      %1483 = vmatprep.subr.bf16.mxu0 0
      %1484 = vmatpush1.bf16.msra.mxu0 0
      %1485 = vmatprep.mubr.bf16.mxu0 0
      %1486 = vmatmul.mubr.bf16.gmra.mrb[0].mxu0 %v1403
      %v1487 = vpop.f32.mrb[0].mxu0
      %v1488 = vadd.f32 0.0, %v1487
      %v1489 = vpop.f32.mrb[0].mxu0
      %v1490 = vpop.f32.mrb[0].mxu0
      %v1491 = vadd.f32 0.0, %v1490
      %v1492 = vpop.f32.mrb[0].mxu0
      %1493 = vmatprep.mubr.bf16.mxu0 0
      %1494 = vmatmul.mubr.bf16.gmra.mrb[0].mxu0 %v1406
      %v1495 = vpop.f32.mrb[0].mxu0
      %v1496 = vadd.f32 0.0, %v1495
      %v1497 = vpop.f32.mrb[0].mxu0
      %v1498 = vpop.f32.mrb[0].mxu0
      %v1499 = vadd.f32 0.0, %v1498
      %v1500 = vpop.f32.mrb[0].mxu0
      %1501 = vmatprep.mubr.bf16.mxu0 0
      %1502 = vmatmul.mubr.bf16.gmra.mrb[0].mxu0 %v1409
      %v1503 = vpop.f32.mrb[0].mxu0
      %v1504 = vadd.f32 0.0, %v1503
      %v1505 = vpop.f32.mrb[0].mxu0
      %v1506 = vpop.f32.mrb[0].mxu0
      %v1507 = vadd.f32 0.0, %v1506
      %v1508 = vpop.f32.mrb[0].mxu0
      %1509 = vmatprep.mubr.bf16.mxu0 0
      %1510 = vmatmul.mubr.bf16.gmra.mrb[0].mxu0 %v1412
      %v1511 = vpop.f32.mrb[0].mxu0
      %v1512 = vadd.f32 0.0, %v1511
      %v1513 = vpop.f32.mrb[0].mxu0
      %v1514 = vpop.f32.mrb[0].mxu0
      %v1515 = vadd.f32 0.0, %v1514
      %v1516 = vpop.f32.mrb[0].mxu0
      %1517 = vmatprep.mubr.bf16.mxu0 0
      %1518 = vmatmul.mubr.bf16.gmra.mrb[0].mxu0 %v1415
      %v1519 = vpop.f32.mrb[0].mxu0
      %v1520 = vadd.f32 0.0, %v1519
      %v1521 = vpop.f32.mrb[0].mxu0
      %v1522 = vpop.f32.mrb[0].mxu0
      %v1523 = vadd.f32 0.0, %v1522
      %v1524 = vpop.f32.mrb[0].mxu0
      %1525 = vmatprep.mubr.bf16.mxu0 0
      %1526 = vmatmul.mubr.bf16.gmra.mrb[0].mxu0 %v1418
      %v1527 = vpop.f32.mrb[0].mxu0
      %v1528 = vadd.f32 0.0, %v1527
      %v1529 = vpop.f32.mrb[0].mxu0
      %v1530 = vpop.f32.mrb[0].mxu0
      %v1531 = vadd.f32 0.0, %v1530
      %v1532 = vpop.f32.mrb[0].mxu0
      %1533 = vmatprep.mubr.bf16.mxu0 0
      %1534 = vmatmul.mubr.bf16.gmra.mrb[0].mxu0 %v1421
      %v1535 = vpop.f32.mrb[0].mxu0
      %v1536 = vadd.f32 0.0, %v1535
      %v1537 = vpop.f32.mrb[0].mxu0
      %v1538 = vpop.f32.mrb[0].mxu0
      %v1539 = vadd.f32 0.0, %v1538
      %v1540 = vpop.f32.mrb[0].mxu0
      %1541 = vmatprep.mubr.bf16.mxu0 0
      %1542 = vmatmul.mubr.bf16.gmra.mrb[0].mxu0 %v1424
      %v1543 = vpop.f32.mrb[0].mxu0
      %v1544 = vadd.f32 0.0, %v1543
      %v1545 = vpop.f32.mrb[0].mxu0
      %v1546 = vpop.f32.mrb[0].mxu0
      %v1547 = vadd.f32 0.0, %v1546
      %v1548 = vpop.f32.mrb[0].mxu0
      %1549 = vmatprep.mubr.bf16.mxu0 0
      %1550 = vmatmul.mubr.bf16.gmra.mrb[0].mxu0 %v1427
      %v1551 = vpop.f32.mrb[0].mxu0
      %v1552 = vadd.f32 0.0, %v1551
      %v1553 = vpop.f32.mrb[0].mxu0
      %v1554 = vpop.f32.mrb[0].mxu0
      %v1555 = vadd.f32 0.0, %v1554
      %v1556 = vpop.f32.mrb[0].mxu0
      %1557 = vmatprep.mubr.bf16.mxu0 0
      %1558 = vmatmul.mubr.bf16.gmra.mrb[0].mxu0 %v1430
      %v1559 = vpop.f32.mrb[0].mxu0
      %v1560 = vadd.f32 0.0, %v1559
      %v1561 = vpop.f32.mrb[0].mxu0
      %v1562 = vpop.f32.mrb[0].mxu0
      %v1563 = vadd.f32 0.0, %v1562
      %v1564 = vpop.f32.mrb[0].mxu0
      %1565 = vmatprep.mubr.bf16.mxu0 0
      %1566 = vmatmul.mubr.bf16.gmra.mrb[0].mxu0 %v1433
      %v1567 = vpop.f32.mrb[0].mxu0
      %v1568 = vadd.f32 0.0, %v1567
      %v1569 = vpop.f32.mrb[0].mxu0
      %v1570 = vpop.f32.mrb[0].mxu0
      %v1571 = vadd.f32 0.0, %v1570
      %v1572 = vpop.f32.mrb[0].mxu0
      %1573 = vmatprep.mubr.bf16.mxu0 0
      %1574 = vmatmul.mubr.bf16.gmra.mrb[0].mxu0 %v1436
      %v1575 = vpop.f32.mrb[0].mxu0
      %v1576 = vadd.f32 0.0, %v1575
      %v1577 = vpop.f32.mrb[0].mxu0
      %v1578 = vpop.f32.mrb[0].mxu0
      %v1579 = vadd.f32 0.0, %v1578
      %v1580 = vpop.f32.mrb[0].mxu0
      %1581 = vmatprep.mubr.bf16.mxu0 0
      %1582 = vmatmul.mubr.bf16.gmra.mrb[0].mxu0 %v1439
      %v1583 = vpop.f32.mrb[0].mxu0
      %v1584 = vadd.f32 0.0, %v1583
      %v1585 = vpop.f32.mrb[0].mxu0
      %v1586 = vpop.f32.mrb[0].mxu0
      %v1587 = vadd.f32 0.0, %v1586
      %v1588 = vpop.f32.mrb[0].mxu0
      %1589 = vmatprep.mubr.bf16.mxu0 0
      %1590 = vmatmul.mubr.bf16.gmra.mrb[0].mxu0 %v1442
      %v1591 = vpop.f32.mrb[0].mxu0
      %v1592 = vadd.f32 0.0, %v1591
      %v1593 = vpop.f32.mrb[0].mxu0
      %v1594 = vpop.f32.mrb[0].mxu0
      %v1595 = vadd.f32 0.0, %v1594
      %v1596 = vpop.f32.mrb[0].mxu0
      %1597 = vmatprep.mubr.bf16.mxu0 0
      %1598 = vmatmul.mubr.bf16.gmra.mrb[0].mxu0 %v1445
      %v1599 = vpop.f32.mrb[0].mxu0
      %v1600 = vadd.f32 0.0, %v1599
      %v1601 = vpop.f32.mrb[0].mxu0
      %v1602 = vpop.f32.mrb[0].mxu0
      %v1603 = vadd.f32 0.0, %v1602
      %v1604 = vpop.f32.mrb[0].mxu0
      %1605 = vmatprep.mubr.bf16.mxu0 0
      %1606 = vmatmul.mubr.bf16.gmra.mrb[0].mxu0 %v1448
      %v1607 = vpop.f32.mrb[0].mxu0
      %v1608 = vadd.f32 0.0, %v1607
      %v1609 = vpop.f32.mrb[0].mxu0
      %v1610 = vpop.f32.mrb[0].mxu0
      %v1611 = vadd.f32 0.0, %v1610
      %v1612 = vpop.f32.mrb[0].mxu0
      %1613 = vdwg.mxu0
      %v1615 = vsel %vm762, %v1220, 0
      %1617 = vmatprep.subr.bf16.mxu0 0
      %1618 = vmatpush1.bf16.msra.mxu0 %v1615
      %1619 = vmatprep.subr.bf16.mxu0 0
      %1620 = vmatpush1.bf16.msra.mxu0 0
      %1621 = vmatprep.subr.bf16.mxu0 0
      %1622 = vmatpush1.bf16.msra.mxu0 0
      %1623 = vmatprep.subr.bf16.mxu0 0
      %1624 = vmatpush1.bf16.msra.mxu0 0
      %1625 = vmatprep.subr.bf16.mxu0 0
      %1626 = vmatpush1.bf16.msra.mxu0 0
      %1627 = vmatprep.subr.bf16.mxu0 0
      %1628 = vmatpush1.bf16.msra.mxu0 0
      %1629 = vmatprep.subr.bf16.mxu0 0
      %1630 = vmatpush1.bf16.msra.mxu0 0
      %1631 = vmatprep.subr.bf16.mxu0 0
      %1632 = vmatpush1.bf16.msra.mxu0 0
      %1633 = vmatprep.subr.bf16.mxu0 0
      %1634 = vmatpush1.bf16.msra.mxu0 0
      %1635 = vmatprep.subr.bf16.mxu0 0
      %1636 = vmatpush1.bf16.msra.mxu0 0
      %1637 = vmatprep.subr.bf16.mxu0 0
      %1638 = vmatpush1.bf16.msra.mxu0 0
      %1639 = vmatprep.subr.bf16.mxu0 0
      %1640 = vmatpush1.bf16.msra.mxu0 0
      %1641 = vmatprep.subr.bf16.mxu0 0
      %1642 = vmatpush1.bf16.msra.mxu0 0
      %1643 = vmatprep.subr.bf16.mxu0 0
      %1644 = vmatpush1.bf16.msra.mxu0 0
      %1645 = vmatprep.subr.bf16.mxu0 0
      %1646 = vmatpush1.bf16.msra.mxu0 0
      %1647 = vmatprep.subr.bf16.mxu0 0
      %1648 = vmatpush1.bf16.msra.mxu0 0
      %1649 = vmatprep.mubr.bf16.mxu0 0
      %1650 = vmatmul.mubr.bf16.gmra.mrb[0].mxu0 %v715
      %v1651 = vpop.f32.mrb[0].mxu0
      %v1652 = vadd.f32 %v1488, %v1651
      %v1653 = vpop.f32.mrb[0].mxu0
      %v1654 = vpop.f32.mrb[0].mxu0
      %v1655 = vadd.f32 %v1491, %v1654
      %v1656 = vpop.f32.mrb[0].mxu0
      %1657 = vmatprep.mubr.bf16.mxu0 0
      %1658 = vmatmul.mubr.bf16.gmra.mrb[0].mxu0 %v718
      %v1659 = vpop.f32.mrb[0].mxu0
      %v1660 = vadd.f32 %v1496, %v1659
      %v1661 = vpop.f32.mrb[0].mxu0
      %v1662 = vpop.f32.mrb[0].mxu0
      %v1663 = vadd.f32 %v1499, %v1662
      %v1664 = vpop.f32.mrb[0].mxu0
      %1665 = vmatprep.mubr.bf16.mxu0 0
      %1666 = vmatmul.mubr.bf16.gmra.mrb[0].mxu0 %v721
      %v1667 = vpop.f32.mrb[0].mxu0
      %v1668 = vadd.f32 %v1504, %v1667
      %v1669 = vpop.f32.mrb[0].mxu0
      %v1670 = vpop.f32.mrb[0].mxu0
      %v1671 = vadd.f32 %v1507, %v1670
      %v1672 = vpop.f32.mrb[0].mxu0
      %1673 = vmatprep.mubr.bf16.mxu0 0
      %1674 = vmatmul.mubr.bf16.gmra.mrb[0].mxu0 %v724
      %v1675 = vpop.f32.mrb[0].mxu0
      %v1676 = vadd.f32 %v1512, %v1675
      %v1677 = vpop.f32.mrb[0].mxu0
      %v1678 = vpop.f32.mrb[0].mxu0
      %v1679 = vadd.f32 %v1515, %v1678
      %v1680 = vpop.f32.mrb[0].mxu0
      %1681 = vmatprep.mubr.bf16.mxu0 0
      %1682 = vmatmul.mubr.bf16.gmra.mrb[0].mxu0 %v727
      %v1683 = vpop.f32.mrb[0].mxu0
      %v1684 = vadd.f32 %v1520, %v1683
      %v1685 = vpop.f32.mrb[0].mxu0
      %v1686 = vpop.f32.mrb[0].mxu0
      %v1687 = vadd.f32 %v1523, %v1686
      %v1688 = vpop.f32.mrb[0].mxu0
      %1689 = vmatprep.mubr.bf16.mxu0 0
      %1690 = vmatmul.mubr.bf16.gmra.mrb[0].mxu0 %v730
      %v1691 = vpop.f32.mrb[0].mxu0
      %v1692 = vadd.f32 %v1528, %v1691
      %v1693 = vpop.f32.mrb[0].mxu0
      %v1694 = vpop.f32.mrb[0].mxu0
      %v1695 = vadd.f32 %v1531, %v1694
      %v1696 = vpop.f32.mrb[0].mxu0
      %1697 = vmatprep.mubr.bf16.mxu0 0
      %1698 = vmatmul.mubr.bf16.gmra.mrb[0].mxu0 %v733
      %v1699 = vpop.f32.mrb[0].mxu0
      %v1700 = vadd.f32 %v1536, %v1699
      %v1701 = vpop.f32.mrb[0].mxu0
      %v1702 = vpop.f32.mrb[0].mxu0
      %v1703 = vadd.f32 %v1539, %v1702
      %v1704 = vpop.f32.mrb[0].mxu0
      %1705 = vmatprep.mubr.bf16.mxu0 0
      %1706 = vmatmul.mubr.bf16.gmra.mrb[0].mxu0 %v736
      %v1707 = vpop.f32.mrb[0].mxu0
      %v1708 = vadd.f32 %v1544, %v1707
      %v1709 = vpop.f32.mrb[0].mxu0
      %v1710 = vpop.f32.mrb[0].mxu0
      %v1711 = vadd.f32 %v1547, %v1710
      %v1712 = vpop.f32.mrb[0].mxu0
      %1713 = vmatprep.mubr.bf16.mxu0 0
      %1714 = vmatmul.mubr.bf16.gmra.mrb[0].mxu0 %v739
      %v1715 = vpop.f32.mrb[0].mxu0
      %v1716 = vadd.f32 %v1552, %v1715
      %v1717 = vpop.f32.mrb[0].mxu0
      %v1718 = vpop.f32.mrb[0].mxu0
      %v1719 = vadd.f32 %v1555, %v1718
      %v1720 = vpop.f32.mrb[0].mxu0
      %1721 = vmatprep.mubr.bf16.mxu0 0
      %1722 = vmatmul.mubr.bf16.gmra.mrb[0].mxu0 %v742
      %v1723 = vpop.f32.mrb[0].mxu0
      %v1724 = vadd.f32 %v1560, %v1723
      %v1725 = vpop.f32.mrb[0].mxu0
      %v1726 = vpop.f32.mrb[0].mxu0
      %v1727 = vadd.f32 %v1563, %v1726
      %v1728 = vpop.f32.mrb[0].mxu0
      %1729 = vmatprep.mubr.bf16.mxu0 0
      %1730 = vmatmul.mubr.bf16.gmra.mrb[0].mxu0 %v745
      %v1731 = vpop.f32.mrb[0].mxu0
      %v1732 = vadd.f32 %v1568, %v1731
      %v1733 = vpop.f32.mrb[0].mxu0
      %v1734 = vpop.f32.mrb[0].mxu0
      %v1735 = vadd.f32 %v1571, %v1734
      %v1736 = vpop.f32.mrb[0].mxu0
      %1737 = vmatprep.mubr.bf16.mxu0 0
      %1738 = vmatmul.mubr.bf16.gmra.mrb[0].mxu0 %v748
      %v1739 = vpop.f32.mrb[0].mxu0
      %v1740 = vadd.f32 %v1576, %v1739
      %v1741 = vpop.f32.mrb[0].mxu0
      %v1742 = vpop.f32.mrb[0].mxu0
      %v1743 = vadd.f32 %v1579, %v1742
      %v1744 = vpop.f32.mrb[0].mxu0
      %1745 = vmatprep.mubr.bf16.mxu0 0
      %1746 = vmatmul.mubr.bf16.gmra.mrb[0].mxu0 %v751
      %v1747 = vpop.f32.mrb[0].mxu0
      %v1748 = vadd.f32 %v1584, %v1747
      %v1749 = vpop.f32.mrb[0].mxu0
      %v1750 = vpop.f32.mrb[0].mxu0
      %v1751 = vadd.f32 %v1587, %v1750
      %v1752 = vpop.f32.mrb[0].mxu0
      %1753 = vmatprep.mubr.bf16.mxu0 0
      %1754 = vmatmul.mubr.bf16.gmra.mrb[0].mxu0 %v754
      %v1755 = vpop.f32.mrb[0].mxu0
      %v1756 = vadd.f32 %v1592, %v1755
      %v1757 = vpop.f32.mrb[0].mxu0
      %v1758 = vpop.f32.mrb[0].mxu0
      %v1759 = vadd.f32 %v1595, %v1758
      %v1760 = vpop.f32.mrb[0].mxu0
      %1761 = vmatprep.mubr.bf16.mxu0 0
      %1762 = vmatmul.mubr.bf16.gmra.mrb[0].mxu0 %v757
      %v1763 = vpop.f32.mrb[0].mxu0
      %v1764 = vadd.f32 %v1600, %v1763
      %v1765 = vpop.f32.mrb[0].mxu0
      %v1766 = vpop.f32.mrb[0].mxu0
      %v1767 = vadd.f32 %v1603, %v1766
      %v1768 = vpop.f32.mrb[0].mxu0
      %1769 = vmatprep.mubr.bf16.mxu0 0
      %1770 = vmatmul.mubr.bf16.gmra.mrb[0].mxu0 %v760
      %v1771 = vpop.f32.mrb[0].mxu0
      %v1772 = vadd.f32 %v1608, %v1771
      %v1773 = vpop.f32.mrb[0].mxu0
      %v1774 = vpop.f32.mrb[0].mxu0
      %v1775 = vadd.f32 %v1611, %v1774
      %v1776 = vpop.f32.mrb[0].mxu0
      %1777 = vdwg.mxu0
      %s1778 = scalar_lea.vmem %s1, 4
      %v1779 = vld [vmem:[%s1778] sm:$0x3]
      %v1782 = vunpack.c.l.b16 %v269
      %v1783 = vunpack.c.l.b16 %v270
      %v1784 = vpack.c.b16 %v1783, %v1782
      %v1786 = vsel %vm713, %v1784, 0
      %v1789 = vsel %vm762, %v1779, 0
      %1791 = vmatprep.subr.bf16.mxu0 0
      %1792 = vmatpush1.bf16.msra.mxu0 %v1789
      %1793 = vmatprep.subr.bf16.mxu0 0
      %1794 = vmatpush1.bf16.msra.mxu0 0
      %1795 = vmatprep.subr.bf16.mxu0 0
      %1796 = vmatpush1.bf16.msra.mxu0 0
      %1797 = vmatprep.subr.bf16.mxu0 0
      %1798 = vmatpush1.bf16.msra.mxu0 0
      %1799 = vmatprep.subr.bf16.mxu0 0
      %1800 = vmatpush1.bf16.msra.mxu0 0
      %1801 = vmatprep.subr.bf16.mxu0 0
      %1802 = vmatpush1.bf16.msra.mxu0 0
      %1803 = vmatprep.subr.bf16.mxu0 0
      %1804 = vmatpush1.bf16.msra.mxu0 0
      %1805 = vmatprep.subr.bf16.mxu0 0
      %1806 = vmatpush1.bf16.msra.mxu0 0
      %1807 = vmatprep.subr.bf16.mxu0 0
      %1808 = vmatpush1.bf16.msra.mxu0 0
      %1809 = vmatprep.subr.bf16.mxu0 0
      %1810 = vmatpush1.bf16.msra.mxu0 0
      %1811 = vmatprep.subr.bf16.mxu0 0
      %1812 = vmatpush1.bf16.msra.mxu0 0
      %1813 = vmatprep.subr.bf16.mxu0 0
      %1814 = vmatpush1.bf16.msra.mxu0 0
      %1815 = vmatprep.subr.bf16.mxu0 0
      %1816 = vmatpush1.bf16.msra.mxu0 0
      %1817 = vmatprep.subr.bf16.mxu0 0
      %1818 = vmatpush1.bf16.msra.mxu0 0
      %1819 = vmatprep.subr.bf16.mxu0 0
      %1820 = vmatpush1.bf16.msra.mxu0 0
      %1821 = vmatprep.subr.bf16.mxu0 0
      %1822 = vmatpush1.bf16.msra.mxu0 0
      %1823 = vmatprep.mubr.bf16.mxu0 0
      %1824 = vmatmul.mubr.bf16.gmra.mrb[0].mxu0 %v1011
      %v1825 = vpop.f32.mrb[0].mxu0
      %v1826 = vadd.f32 0.0, %v1825
      %v1827 = vpop.f32.mrb[0].mxu0
      %v1828 = vpop.f32.mrb[0].mxu0
      %v1829 = vadd.f32 0.0, %v1828
      %v1830 = vpop.f32.mrb[0].mxu0
      %1831 = vmatprep.mubr.bf16.mxu0 0
      %1832 = vmatmul.mubr.bf16.gmra.mrb[0].mxu0 %v1014
      %v1833 = vpop.f32.mrb[0].mxu0
      %v1834 = vadd.f32 0.0, %v1833
      %v1835 = vpop.f32.mrb[0].mxu0
      %v1836 = vpop.f32.mrb[0].mxu0
      %v1837 = vadd.f32 0.0, %v1836
      %v1838 = vpop.f32.mrb[0].mxu0
      %1839 = vmatprep.mubr.bf16.mxu0 0
      %1840 = vmatmul.mubr.bf16.gmra.mrb[0].mxu0 %v1017
      %v1841 = vpop.f32.mrb[0].mxu0
      %v1842 = vadd.f32 0.0, %v1841
      %v1843 = vpop.f32.mrb[0].mxu0
      %v1844 = vpop.f32.mrb[0].mxu0
      %v1845 = vadd.f32 0.0, %v1844
      %v1846 = vpop.f32.mrb[0].mxu0
      %1847 = vmatprep.mubr.bf16.mxu0 0
      %1848 = vmatmul.mubr.bf16.gmra.mrb[0].mxu0 %v1020
      %v1849 = vpop.f32.mrb[0].mxu0
      %v1850 = vadd.f32 0.0, %v1849
      %v1851 = vpop.f32.mrb[0].mxu0
      %v1852 = vpop.f32.mrb[0].mxu0
      %v1853 = vadd.f32 0.0, %v1852
      %v1854 = vpop.f32.mrb[0].mxu0
      %1855 = vmatprep.mubr.bf16.mxu0 0
      %1856 = vmatmul.mubr.bf16.gmra.mrb[0].mxu0 %v1023
      %v1857 = vpop.f32.mrb[0].mxu0
      %v1858 = vadd.f32 0.0, %v1857
      %v1859 = vpop.f32.mrb[0].mxu0
      %v1860 = vpop.f32.mrb[0].mxu0
      %v1861 = vadd.f32 0.0, %v1860
      %v1862 = vpop.f32.mrb[0].mxu0
      %1863 = vmatprep.mubr.bf16.mxu0 0
      %1864 = vmatmul.mubr.bf16.gmra.mrb[0].mxu0 %v1026
      %v1865 = vpop.f32.mrb[0].mxu0
      %v1866 = vadd.f32 0.0, %v1865
      %v1867 = vpop.f32.mrb[0].mxu0
      %v1868 = vpop.f32.mrb[0].mxu0
      %v1869 = vadd.f32 0.0, %v1868
      %v1870 = vpop.f32.mrb[0].mxu0
      %1871 = vmatprep.mubr.bf16.mxu0 0
      %1872 = vmatmul.mubr.bf16.gmra.mrb[0].mxu0 %v1029
      %v1873 = vpop.f32.mrb[0].mxu0
      %v1874 = vadd.f32 0.0, %v1873
      %v1875 = vpop.f32.mrb[0].mxu0
      %v1876 = vpop.f32.mrb[0].mxu0
      %v1877 = vadd.f32 0.0, %v1876
      %v1878 = vpop.f32.mrb[0].mxu0
      %1879 = vmatprep.mubr.bf16.mxu0 0
      %1880 = vmatmul.mubr.bf16.gmra.mrb[0].mxu0 %v1032
      %v1881 = vpop.f32.mrb[0].mxu0
      %v1882 = vadd.f32 0.0, %v1881
      %v1883 = vpop.f32.mrb[0].mxu0
      %v1884 = vpop.f32.mrb[0].mxu0
      %v1885 = vadd.f32 0.0, %v1884
      %v1886 = vpop.f32.mrb[0].mxu0
      %1887 = vmatprep.mubr.bf16.mxu0 0
      %1888 = vmatmul.mubr.bf16.gmra.mrb[0].mxu0 %v1035
      %v1889 = vpop.f32.mrb[0].mxu0
      %v1890 = vadd.f32 0.0, %v1889
      %v1891 = vpop.f32.mrb[0].mxu0
      %v1892 = vpop.f32.mrb[0].mxu0
      %v1893 = vadd.f32 0.0, %v1892
      %v1894 = vpop.f32.mrb[0].mxu0
      %1895 = vmatprep.mubr.bf16.mxu0 0
      %1896 = vmatmul.mubr.bf16.gmra.mrb[0].mxu0 %v1038
      %v1897 = vpop.f32.mrb[0].mxu0
      %v1898 = vadd.f32 0.0, %v1897
      %v1899 = vpop.f32.mrb[0].mxu0
      %v1900 = vpop.f32.mrb[0].mxu0
      %v1901 = vadd.f32 0.0, %v1900
      %v1902 = vpop.f32.mrb[0].mxu0
      %1903 = vmatprep.mubr.bf16.mxu0 0
      %1904 = vmatmul.mubr.bf16.gmra.mrb[0].mxu0 %v1041
      %v1905 = vpop.f32.mrb[0].mxu0
      %v1906 = vadd.f32 0.0, %v1905
      %v1907 = vpop.f32.mrb[0].mxu0
      %v1908 = vpop.f32.mrb[0].mxu0
      %v1909 = vadd.f32 0.0, %v1908
      %v1910 = vpop.f32.mrb[0].mxu0
      %1911 = vmatprep.mubr.bf16.mxu0 0
      %1912 = vmatmul.mubr.bf16.gmra.mrb[0].mxu0 %v1044
      %v1913 = vpop.f32.mrb[0].mxu0
      %v1914 = vadd.f32 0.0, %v1913
      %v1915 = vpop.f32.mrb[0].mxu0
      %v1916 = vpop.f32.mrb[0].mxu0
      %v1917 = vadd.f32 0.0, %v1916
      %v1918 = vpop.f32.mrb[0].mxu0
      %1919 = vmatprep.mubr.bf16.mxu0 0
      %1920 = vmatmul.mubr.bf16.gmra.mrb[0].mxu0 %v1047
      %v1921 = vpop.f32.mrb[0].mxu0
      %v1922 = vadd.f32 0.0, %v1921
      %v1923 = vpop.f32.mrb[0].mxu0
      %v1924 = vpop.f32.mrb[0].mxu0
      %v1925 = vadd.f32 0.0, %v1924
      %v1926 = vpop.f32.mrb[0].mxu0
      %1927 = vmatprep.mubr.bf16.mxu0 0
      %1928 = vmatmul.mubr.bf16.gmra.mrb[0].mxu0 %v1050
      %v1929 = vpop.f32.mrb[0].mxu0
      %v1930 = vadd.f32 0.0, %v1929
      %v1931 = vpop.f32.mrb[0].mxu0
      %v1932 = vpop.f32.mrb[0].mxu0
      %v1933 = vadd.f32 0.0, %v1932
      %v1934 = vpop.f32.mrb[0].mxu0
      %1935 = vmatprep.mubr.bf16.mxu0 0
      %1936 = vmatmul.mubr.bf16.gmra.mrb[0].mxu0 %v1053
      %v1937 = vpop.f32.mrb[0].mxu0
      %v1938 = vadd.f32 0.0, %v1937
      %v1939 = vpop.f32.mrb[0].mxu0
      %v1940 = vpop.f32.mrb[0].mxu0
      %v1941 = vadd.f32 0.0, %v1940
      %v1942 = vpop.f32.mrb[0].mxu0
      %1943 = vmatprep.mubr.bf16.mxu0 0
      %1944 = vmatmul.mubr.bf16.gmra.mrb[0].mxu0 %v1786
      %v1945 = vpop.f32.mrb[0].mxu0
      %v1946 = vadd.f32 0.0, %v1945
      %v1947 = vpop.f32.mrb[0].mxu0
      %v1948 = vpop.f32.mrb[0].mxu0
      %v1949 = vadd.f32 0.0, %v1948
      %v1950 = vpop.f32.mrb[0].mxu0
      %1951 = vdwg.mxu0
      %v1952 = vadd.f32 %v1093, %v1826
      %v1953 = vadd.f32 %v1096, %v1829
      %v1954 = vadd.f32 %v1101, %v1834
      %v1955 = vadd.f32 %v1104, %v1837
      %v1956 = vadd.f32 %v1109, %v1842
      %v1957 = vadd.f32 %v1112, %v1845
      %v1958 = vadd.f32 %v1117, %v1850
      %v1959 = vadd.f32 %v1120, %v1853
      %v1960 = vadd.f32 %v1125, %v1858
      %v1961 = vadd.f32 %v1128, %v1861
      %v1962 = vadd.f32 %v1133, %v1866
      %v1963 = vadd.f32 %v1136, %v1869
      %v1964 = vadd.f32 %v1141, %v1874
      %v1965 = vadd.f32 %v1144, %v1877
      %v1966 = vadd.f32 %v1149, %v1882
      %v1967 = vadd.f32 %v1152, %v1885
      %v1968 = vadd.f32 %v1157, %v1890
      %v1969 = vadd.f32 %v1160, %v1893
      %v1970 = vadd.f32 %v1165, %v1898
      %v1971 = vadd.f32 %v1168, %v1901
      %v1972 = vadd.f32 %v1173, %v1906
      %v1973 = vadd.f32 %v1176, %v1909
      %v1974 = vadd.f32 %v1181, %v1914
      %v1975 = vadd.f32 %v1184, %v1917
      %v1976 = vadd.f32 %v1189, %v1922
      %v1977 = vadd.f32 %v1192, %v1925
      %v1978 = vadd.f32 %v1197, %v1930
      %v1979 = vadd.f32 %v1200, %v1933
      %v1980 = vadd.f32 %v1205, %v1938
      %v1981 = vadd.f32 %v1208, %v1941
      %v1982 = vadd.f32 %v1213, %v1946
      %v1983 = vadd.f32 %v1216, %v1949
      %s1984 = scalar_lea.vmem %s1, 16
      %v1985 = vld [vmem:[%s1984] sm:$0x3]
      %v1987 = vshrl.u32 %v269, 16
      %v1989 = vrot.slane %v1987, 4
      %v1990 = vshll.u32 %v269, 16
      %v1992 = vrot.slane %v1990, 5
      %v1993 = vor.u32 %v1989, %v1992
      %v1994 = vrot.slane %v1993, 4
      %v1996 = vshll.u32 %v270, 16
      %v1998 = vrot.slane %v1996, 5
      %v1999 = vsel %vm278, %v1994, %v1998
      %v2000 = vshrl.u32 %v270, 16
      %v2002 = vrot.slane %v2000, 4
      %v2003 = vor.u32 %v2002, %v1998
      %v2004 = vrot.slane %v2003, 4
      %v2006 = vshll.u32 %v271, 16
      %v2008 = vrot.slane %v2006, 5
      %v2009 = vsel %vm278, %v2004, %v2008
      %s2010 = scalar_lea.vmem %s1, 6
      %v2011 = vld [vmem:[%s2010] sm:$0x3]
      %v2012 = vunpack.c.l.b16 %v1999
      %v2013 = vunpack.c.l.b16 %v2009
      %v2014 = vpack.c.b16 %v2013, %v2012
      %v2016 = vsel %vm713, %v2014, 0
      %v2019 = vsel %vm762, %v2011, 0
      %2021 = vmatprep.subr.bf16.mxu0 0
      %2022 = vmatpush1.bf16.msra.mxu0 %v2019
      %2023 = vmatprep.subr.bf16.mxu0 0
      %2024 = vmatpush1.bf16.msra.mxu0 0
      %2025 = vmatprep.subr.bf16.mxu0 0
      %2026 = vmatpush1.bf16.msra.mxu0 0
      %2027 = vmatprep.subr.bf16.mxu0 0
      %2028 = vmatpush1.bf16.msra.mxu0 0
      %2029 = vmatprep.subr.bf16.mxu0 0
      %2030 = vmatpush1.bf16.msra.mxu0 0
      %2031 = vmatprep.subr.bf16.mxu0 0
      %2032 = vmatpush1.bf16.msra.mxu0 0
      %2033 = vmatprep.subr.bf16.mxu0 0
      %2034 = vmatpush1.bf16.msra.mxu0 0
      %2035 = vmatprep.subr.bf16.mxu0 0
      %2036 = vmatpush1.bf16.msra.mxu0 0
      %2037 = vmatprep.subr.bf16.mxu0 0
      %2038 = vmatpush1.bf16.msra.mxu0 0
      %2039 = vmatprep.subr.bf16.mxu0 0
      %2040 = vmatpush1.bf16.msra.mxu0 0
      %2041 = vmatprep.subr.bf16.mxu0 0
      %2042 = vmatpush1.bf16.msra.mxu0 0
      %2043 = vmatprep.subr.bf16.mxu0 0
      %2044 = vmatpush1.bf16.msra.mxu0 0
      %2045 = vmatprep.subr.bf16.mxu0 0
      %2046 = vmatpush1.bf16.msra.mxu0 0
      %2047 = vmatprep.subr.bf16.mxu0 0
      %2048 = vmatpush1.bf16.msra.mxu0 0
      %2049 = vmatprep.subr.bf16.mxu0 0
      %2050 = vmatpush1.bf16.msra.mxu0 0
      %2051 = vmatprep.subr.bf16.mxu0 0
      %2052 = vmatpush1.bf16.msra.mxu0 0
      %2053 = vmatprep.mubr.bf16.mxu0 0
      %2054 = vmatmul.mubr.bf16.gmra.mrb[0].mxu0 %v718
      %v2055 = vpop.f32.mrb[0].mxu0
      %v2056 = vadd.f32 0.0, %v2055
      %v2057 = vpop.f32.mrb[0].mxu0
      %v2058 = vpop.f32.mrb[0].mxu0
      %v2059 = vadd.f32 0.0, %v2058
      %v2060 = vpop.f32.mrb[0].mxu0
      %2061 = vmatprep.mubr.bf16.mxu0 0
      %2062 = vmatmul.mubr.bf16.gmra.mrb[0].mxu0 %v721
      %v2063 = vpop.f32.mrb[0].mxu0
      %v2064 = vadd.f32 0.0, %v2063
      %v2065 = vpop.f32.mrb[0].mxu0
      %v2066 = vpop.f32.mrb[0].mxu0
      %v2067 = vadd.f32 0.0, %v2066
      %v2068 = vpop.f32.mrb[0].mxu0
      %2069 = vmatprep.mubr.bf16.mxu0 0
      %2070 = vmatmul.mubr.bf16.gmra.mrb[0].mxu0 %v724
      %v2071 = vpop.f32.mrb[0].mxu0
      %v2072 = vadd.f32 0.0, %v2071
      %v2073 = vpop.f32.mrb[0].mxu0
      %v2074 = vpop.f32.mrb[0].mxu0
      %v2075 = vadd.f32 0.0, %v2074
      %v2076 = vpop.f32.mrb[0].mxu0
      %2077 = vmatprep.mubr.bf16.mxu0 0
      %2078 = vmatmul.mubr.bf16.gmra.mrb[0].mxu0 %v727
      %v2079 = vpop.f32.mrb[0].mxu0
      %v2080 = vadd.f32 0.0, %v2079
      %v2081 = vpop.f32.mrb[0].mxu0
      %v2082 = vpop.f32.mrb[0].mxu0
      %v2083 = vadd.f32 0.0, %v2082
      %v2084 = vpop.f32.mrb[0].mxu0
      %2085 = vmatprep.mubr.bf16.mxu0 0
      %2086 = vmatmul.mubr.bf16.gmra.mrb[0].mxu0 %v730
      %v2087 = vpop.f32.mrb[0].mxu0
      %v2088 = vadd.f32 0.0, %v2087
      %v2089 = vpop.f32.mrb[0].mxu0
      %v2090 = vpop.f32.mrb[0].mxu0
      %v2091 = vadd.f32 0.0, %v2090
      %v2092 = vpop.f32.mrb[0].mxu0
      %2093 = vmatprep.mubr.bf16.mxu0 0
      %2094 = vmatmul.mubr.bf16.gmra.mrb[0].mxu0 %v733
      %v2095 = vpop.f32.mrb[0].mxu0
      %v2096 = vadd.f32 0.0, %v2095
      %v2097 = vpop.f32.mrb[0].mxu0
      %v2098 = vpop.f32.mrb[0].mxu0
      %v2099 = vadd.f32 0.0, %v2098
      %v2100 = vpop.f32.mrb[0].mxu0
      %2101 = vmatprep.mubr.bf16.mxu0 0
      %2102 = vmatmul.mubr.bf16.gmra.mrb[0].mxu0 %v736
      %v2103 = vpop.f32.mrb[0].mxu0
      %v2104 = vadd.f32 0.0, %v2103
      %v2105 = vpop.f32.mrb[0].mxu0
      %v2106 = vpop.f32.mrb[0].mxu0
      %v2107 = vadd.f32 0.0, %v2106
      %v2108 = vpop.f32.mrb[0].mxu0
      %2109 = vmatprep.mubr.bf16.mxu0 0
      %2110 = vmatmul.mubr.bf16.gmra.mrb[0].mxu0 %v739
      %v2111 = vpop.f32.mrb[0].mxu0
      %v2112 = vadd.f32 0.0, %v2111
      %v2113 = vpop.f32.mrb[0].mxu0
      %v2114 = vpop.f32.mrb[0].mxu0
      %v2115 = vadd.f32 0.0, %v2114
      %v2116 = vpop.f32.mrb[0].mxu0
      %2117 = vmatprep.mubr.bf16.mxu0 0
      %2118 = vmatmul.mubr.bf16.gmra.mrb[0].mxu0 %v742
      %v2119 = vpop.f32.mrb[0].mxu0
      %v2120 = vadd.f32 0.0, %v2119
      %v2121 = vpop.f32.mrb[0].mxu0
      %v2122 = vpop.f32.mrb[0].mxu0
      %v2123 = vadd.f32 0.0, %v2122
      %v2124 = vpop.f32.mrb[0].mxu0
      %2125 = vmatprep.mubr.bf16.mxu0 0
      %2126 = vmatmul.mubr.bf16.gmra.mrb[0].mxu0 %v745
      %v2127 = vpop.f32.mrb[0].mxu0
      %v2128 = vadd.f32 0.0, %v2127
      %v2129 = vpop.f32.mrb[0].mxu0
      %v2130 = vpop.f32.mrb[0].mxu0
      %v2131 = vadd.f32 0.0, %v2130
      %v2132 = vpop.f32.mrb[0].mxu0
      %2133 = vmatprep.mubr.bf16.mxu0 0
      %2134 = vmatmul.mubr.bf16.gmra.mrb[0].mxu0 %v748
      %v2135 = vpop.f32.mrb[0].mxu0
      %v2136 = vadd.f32 0.0, %v2135
      %v2137 = vpop.f32.mrb[0].mxu0
      %v2138 = vpop.f32.mrb[0].mxu0
      %v2139 = vadd.f32 0.0, %v2138
      %v2140 = vpop.f32.mrb[0].mxu0
      %2141 = vmatprep.mubr.bf16.mxu0 0
      %2142 = vmatmul.mubr.bf16.gmra.mrb[0].mxu0 %v751
      %v2143 = vpop.f32.mrb[0].mxu0
      %v2144 = vadd.f32 0.0, %v2143
      %v2145 = vpop.f32.mrb[0].mxu0
      %v2146 = vpop.f32.mrb[0].mxu0
      %v2147 = vadd.f32 0.0, %v2146
      %v2148 = vpop.f32.mrb[0].mxu0
      %2149 = vmatprep.mubr.bf16.mxu0 0
      %2150 = vmatmul.mubr.bf16.gmra.mrb[0].mxu0 %v754
      %v2151 = vpop.f32.mrb[0].mxu0
      %v2152 = vadd.f32 0.0, %v2151
      %v2153 = vpop.f32.mrb[0].mxu0
      %v2154 = vpop.f32.mrb[0].mxu0
      %v2155 = vadd.f32 0.0, %v2154
      %v2156 = vpop.f32.mrb[0].mxu0
      %2157 = vmatprep.mubr.bf16.mxu0 0
      %2158 = vmatmul.mubr.bf16.gmra.mrb[0].mxu0 %v757
      %v2159 = vpop.f32.mrb[0].mxu0
      %v2160 = vadd.f32 0.0, %v2159
      %v2161 = vpop.f32.mrb[0].mxu0
      %v2162 = vpop.f32.mrb[0].mxu0
      %v2163 = vadd.f32 0.0, %v2162
      %v2164 = vpop.f32.mrb[0].mxu0
      %2165 = vmatprep.mubr.bf16.mxu0 0
      %2166 = vmatmul.mubr.bf16.gmra.mrb[0].mxu0 %v760
      %v2167 = vpop.f32.mrb[0].mxu0
      %v2168 = vadd.f32 0.0, %v2167
      %v2169 = vpop.f32.mrb[0].mxu0
      %v2170 = vpop.f32.mrb[0].mxu0
      %v2171 = vadd.f32 0.0, %v2170
      %v2172 = vpop.f32.mrb[0].mxu0
      %2173 = vmatprep.mubr.bf16.mxu0 0
      %2174 = vmatmul.mubr.bf16.gmra.mrb[0].mxu0 %v2016
      %v2175 = vpop.f32.mrb[0].mxu0
      %v2176 = vadd.f32 0.0, %v2175
      %v2177 = vpop.f32.mrb[0].mxu0
      %v2178 = vpop.f32.mrb[0].mxu0
      %v2179 = vadd.f32 0.0, %v2178
      %v2180 = vpop.f32.mrb[0].mxu0
      %2181 = vdwg.mxu0
      %v2182 = vadd.f32 %v1952, %v2056
      %v2183 = vadd.f32 %v1953, %v2059
      %v2184 = vadd.f32 %v1954, %v2064
      %v2185 = vadd.f32 %v1955, %v2067
      %v2186 = vadd.f32 %v1956, %v2072
      %v2187 = vadd.f32 %v1957, %v2075
      %v2188 = vadd.f32 %v1958, %v2080
      %v2189 = vadd.f32 %v1959, %v2083
      %v2190 = vadd.f32 %v1960, %v2088
      %v2191 = vadd.f32 %v1961, %v2091
      %v2192 = vadd.f32 %v1962, %v2096
      %v2193 = vadd.f32 %v1963, %v2099
      %v2194 = vadd.f32 %v1964, %v2104
      %v2195 = vadd.f32 %v1965, %v2107
      %v2196 = vadd.f32 %v1966, %v2112
      %v2197 = vadd.f32 %v1967, %v2115
      %v2198 = vadd.f32 %v1968, %v2120
      %v2199 = vadd.f32 %v1969, %v2123
      %v2200 = vadd.f32 %v1970, %v2128
      %v2201 = vadd.f32 %v1971, %v2131
      %v2202 = vadd.f32 %v1972, %v2136
      %v2203 = vadd.f32 %v1973, %v2139
      %v2204 = vadd.f32 %v1974, %v2144
      %v2205 = vadd.f32 %v1975, %v2147
      %v2206 = vadd.f32 %v1976, %v2152
      %v2207 = vadd.f32 %v1977, %v2155
      %v2208 = vadd.f32 %v1978, %v2160
      %v2209 = vadd.f32 %v1979, %v2163
      %v2210 = vadd.f32 %v1980, %v2168
      %v2211 = vadd.f32 %v1981, %v2171
      %v2212 = vadd.f32 %v1982, %v2176
      %v2213 = vadd.f32 %v1983, %v2179
      %s2214 = scalar_lea.vmem %s1, 12
      %v2215 = vld [vmem:[%s2214] sm:$0x3]
      %v2217 = vsel %vm762, %v2215, 0
      %2219 = vmatprep.subr.bf16.mxu0 0
      %2220 = vmatpush1.bf16.msra.mxu0 %v2217
      %2221 = vmatprep.subr.bf16.mxu0 0
      %2222 = vmatpush1.bf16.msra.mxu0 0
      %2223 = vmatprep.subr.bf16.mxu0 0
      %2224 = vmatpush1.bf16.msra.mxu0 0
      %2225 = vmatprep.subr.bf16.mxu0 0
      %2226 = vmatpush1.bf16.msra.mxu0 0
      %2227 = vmatprep.subr.bf16.mxu0 0
      %2228 = vmatpush1.bf16.msra.mxu0 0
      %2229 = vmatprep.subr.bf16.mxu0 0
      %2230 = vmatpush1.bf16.msra.mxu0 0
      %2231 = vmatprep.subr.bf16.mxu0 0
      %2232 = vmatpush1.bf16.msra.mxu0 0
      %2233 = vmatprep.subr.bf16.mxu0 0
      %2234 = vmatpush1.bf16.msra.mxu0 0
      %2235 = vmatprep.subr.bf16.mxu0 0
      %2236 = vmatpush1.bf16.msra.mxu0 0
      %2237 = vmatprep.subr.bf16.mxu0 0
      %2238 = vmatpush1.bf16.msra.mxu0 0
      %2239 = vmatprep.subr.bf16.mxu0 0
      %2240 = vmatpush1.bf16.msra.mxu0 0
      %2241 = vmatprep.subr.bf16.mxu0 0
      %2242 = vmatpush1.bf16.msra.mxu0 0
      %2243 = vmatprep.subr.bf16.mxu0 0
      %2244 = vmatpush1.bf16.msra.mxu0 0
      %2245 = vmatprep.subr.bf16.mxu0 0
      %2246 = vmatpush1.bf16.msra.mxu0 0
      %2247 = vmatprep.subr.bf16.mxu0 0
      %2248 = vmatpush1.bf16.msra.mxu0 0
      %2249 = vmatprep.subr.bf16.mxu0 0
      %2250 = vmatpush1.bf16.msra.mxu0 0
      %2251 = vmatprep.mubr.bf16.mxu0 0
      %2252 = vmatmul.mubr.bf16.gmra.mrb[0].mxu0 %v718
      %v2253 = vpop.f32.mrb[0].mxu0
      %v2254 = vadd.f32 0.0, %v2253
      %v2255 = vpop.f32.mrb[0].mxu0
      %v2256 = vpop.f32.mrb[0].mxu0
      %v2257 = vadd.f32 0.0, %v2256
      %v2258 = vpop.f32.mrb[0].mxu0
      %2259 = vmatprep.mubr.bf16.mxu0 0
      %2260 = vmatmul.mubr.bf16.gmra.mrb[0].mxu0 %v721
      %v2261 = vpop.f32.mrb[0].mxu0
      %v2262 = vadd.f32 0.0, %v2261
      %v2263 = vpop.f32.mrb[0].mxu0
      %v2264 = vpop.f32.mrb[0].mxu0
      %v2265 = vadd.f32 0.0, %v2264
      %v2266 = vpop.f32.mrb[0].mxu0
      %2267 = vmatprep.mubr.bf16.mxu0 0
      %2268 = vmatmul.mubr.bf16.gmra.mrb[0].mxu0 %v724
      %v2269 = vpop.f32.mrb[0].mxu0
      %v2270 = vadd.f32 0.0, %v2269
      %v2271 = vpop.f32.mrb[0].mxu0
      %v2272 = vpop.f32.mrb[0].mxu0
      %v2273 = vadd.f32 0.0, %v2272
      %v2274 = vpop.f32.mrb[0].mxu0
      %2275 = vmatprep.mubr.bf16.mxu0 0
      %2276 = vmatmul.mubr.bf16.gmra.mrb[0].mxu0 %v727
      %v2277 = vpop.f32.mrb[0].mxu0
      %v2278 = vadd.f32 0.0, %v2277
      %v2279 = vpop.f32.mrb[0].mxu0
      %v2280 = vpop.f32.mrb[0].mxu0
      %v2281 = vadd.f32 0.0, %v2280
      %v2282 = vpop.f32.mrb[0].mxu0
      %2283 = vmatprep.mubr.bf16.mxu0 0
      %2284 = vmatmul.mubr.bf16.gmra.mrb[0].mxu0 %v730
      %v2285 = vpop.f32.mrb[0].mxu0
      %v2286 = vadd.f32 0.0, %v2285
      %v2287 = vpop.f32.mrb[0].mxu0
      %v2288 = vpop.f32.mrb[0].mxu0
      %v2289 = vadd.f32 0.0, %v2288
      %v2290 = vpop.f32.mrb[0].mxu0
      %2291 = vmatprep.mubr.bf16.mxu0 0
      %2292 = vmatmul.mubr.bf16.gmra.mrb[0].mxu0 %v733
      %v2293 = vpop.f32.mrb[0].mxu0
      %v2294 = vadd.f32 0.0, %v2293
      %v2295 = vpop.f32.mrb[0].mxu0
      %v2296 = vpop.f32.mrb[0].mxu0
      %v2297 = vadd.f32 0.0, %v2296
      %v2298 = vpop.f32.mrb[0].mxu0
      %2299 = vmatprep.mubr.bf16.mxu0 0
      %2300 = vmatmul.mubr.bf16.gmra.mrb[0].mxu0 %v736
      %v2301 = vpop.f32.mrb[0].mxu0
      %v2302 = vadd.f32 0.0, %v2301
      %v2303 = vpop.f32.mrb[0].mxu0
      %v2304 = vpop.f32.mrb[0].mxu0
      %v2305 = vadd.f32 0.0, %v2304
      %v2306 = vpop.f32.mrb[0].mxu0
      %2307 = vmatprep.mubr.bf16.mxu0 0
      %2308 = vmatmul.mubr.bf16.gmra.mrb[0].mxu0 %v739
      %v2309 = vpop.f32.mrb[0].mxu0
      %v2310 = vadd.f32 0.0, %v2309
      %v2311 = vpop.f32.mrb[0].mxu0
      %v2312 = vpop.f32.mrb[0].mxu0
      %v2313 = vadd.f32 0.0, %v2312
      %v2314 = vpop.f32.mrb[0].mxu0
      %2315 = vmatprep.mubr.bf16.mxu0 0
      %2316 = vmatmul.mubr.bf16.gmra.mrb[0].mxu0 %v742
      %v2317 = vpop.f32.mrb[0].mxu0
      %v2318 = vadd.f32 0.0, %v2317
      %v2319 = vpop.f32.mrb[0].mxu0
      %v2320 = vpop.f32.mrb[0].mxu0
      %v2321 = vadd.f32 0.0, %v2320
      %v2322 = vpop.f32.mrb[0].mxu0
      %2323 = vmatprep.mubr.bf16.mxu0 0
      %2324 = vmatmul.mubr.bf16.gmra.mrb[0].mxu0 %v745
      %v2325 = vpop.f32.mrb[0].mxu0
      %v2326 = vadd.f32 0.0, %v2325
      %v2327 = vpop.f32.mrb[0].mxu0
      %v2328 = vpop.f32.mrb[0].mxu0
      %v2329 = vadd.f32 0.0, %v2328
      %v2330 = vpop.f32.mrb[0].mxu0
      %2331 = vmatprep.mubr.bf16.mxu0 0
      %2332 = vmatmul.mubr.bf16.gmra.mrb[0].mxu0 %v748
      %v2333 = vpop.f32.mrb[0].mxu0
      %v2334 = vadd.f32 0.0, %v2333
      %v2335 = vpop.f32.mrb[0].mxu0
      %v2336 = vpop.f32.mrb[0].mxu0
      %v2337 = vadd.f32 0.0, %v2336
      %v2338 = vpop.f32.mrb[0].mxu0
      %2339 = vmatprep.mubr.bf16.mxu0 0
      %2340 = vmatmul.mubr.bf16.gmra.mrb[0].mxu0 %v751
      %v2341 = vpop.f32.mrb[0].mxu0
      %v2342 = vadd.f32 0.0, %v2341
      %v2343 = vpop.f32.mrb[0].mxu0
      %v2344 = vpop.f32.mrb[0].mxu0
      %v2345 = vadd.f32 0.0, %v2344
      %v2346 = vpop.f32.mrb[0].mxu0
      %2347 = vmatprep.mubr.bf16.mxu0 0
      %2348 = vmatmul.mubr.bf16.gmra.mrb[0].mxu0 %v754
      %v2349 = vpop.f32.mrb[0].mxu0
      %v2350 = vadd.f32 0.0, %v2349
      %v2351 = vpop.f32.mrb[0].mxu0
      %v2352 = vpop.f32.mrb[0].mxu0
      %v2353 = vadd.f32 0.0, %v2352
      %v2354 = vpop.f32.mrb[0].mxu0
      %2355 = vmatprep.mubr.bf16.mxu0 0
      %2356 = vmatmul.mubr.bf16.gmra.mrb[0].mxu0 %v757
      %v2357 = vpop.f32.mrb[0].mxu0
      %v2358 = vadd.f32 0.0, %v2357
      %v2359 = vpop.f32.mrb[0].mxu0
      %v2360 = vpop.f32.mrb[0].mxu0
      %v2361 = vadd.f32 0.0, %v2360
      %v2362 = vpop.f32.mrb[0].mxu0
      %2363 = vmatprep.mubr.bf16.mxu0 0
      %2364 = vmatmul.mubr.bf16.gmra.mrb[0].mxu0 %v760
      %v2365 = vpop.f32.mrb[0].mxu0
      %v2366 = vadd.f32 0.0, %v2365
      %v2367 = vpop.f32.mrb[0].mxu0
      %v2368 = vpop.f32.mrb[0].mxu0
      %v2369 = vadd.f32 0.0, %v2368
      %v2370 = vpop.f32.mrb[0].mxu0
      %2371 = vmatprep.mubr.bf16.mxu0 0
      %2372 = vmatmul.mubr.bf16.gmra.mrb[0].mxu0 %v2016
      %v2373 = vpop.f32.mrb[0].mxu0
      %v2374 = vadd.f32 0.0, %v2373
      %v2375 = vpop.f32.mrb[0].mxu0
      %v2376 = vpop.f32.mrb[0].mxu0
      %v2377 = vadd.f32 0.0, %v2376
      %v2378 = vpop.f32.mrb[0].mxu0
      %2379 = vdwg.mxu0
      %v2380 = vadd.f32 %v1652, %v2254
      %v2381 = vadd.f32 %v1655, %v2257
      %v2382 = vadd.f32 %v1660, %v2262
      %v2383 = vadd.f32 %v1663, %v2265
      %v2384 = vadd.f32 %v1668, %v2270
      %v2385 = vadd.f32 %v1671, %v2273
      %v2386 = vadd.f32 %v1676, %v2278
      %v2387 = vadd.f32 %v1679, %v2281
      %v2388 = vadd.f32 %v1684, %v2286
      %v2389 = vadd.f32 %v1687, %v2289
      %v2390 = vadd.f32 %v1692, %v2294
      %v2391 = vadd.f32 %v1695, %v2297
      %v2392 = vadd.f32 %v1700, %v2302
      %v2393 = vadd.f32 %v1703, %v2305
      %v2394 = vadd.f32 %v1708, %v2310
      %v2395 = vadd.f32 %v1711, %v2313
      %v2396 = vadd.f32 %v1716, %v2318
      %v2397 = vadd.f32 %v1719, %v2321
      %v2398 = vadd.f32 %v1724, %v2326
      %v2399 = vadd.f32 %v1727, %v2329
      %v2400 = vadd.f32 %v1732, %v2334
      %v2401 = vadd.f32 %v1735, %v2337
      %v2402 = vadd.f32 %v1740, %v2342
      %v2403 = vadd.f32 %v1743, %v2345
      %v2404 = vadd.f32 %v1748, %v2350
      %v2405 = vadd.f32 %v1751, %v2353
      %v2406 = vadd.f32 %v1756, %v2358
      %v2407 = vadd.f32 %v1759, %v2361
      %v2408 = vadd.f32 %v1764, %v2366
      %v2409 = vadd.f32 %v1767, %v2369
      %v2410 = vadd.f32 %v1772, %v2374
      %v2411 = vadd.f32 %v1775, %v2377
      %s2412 = scalar_lea.vmem %s1, 18
      %v2413 = vld [vmem:[%s2412] sm:$0x3]
      %v2415 = vsel %vm762, %v2413, 0
      %2417 = vmatprep.subr.bf16.mxu0 0
      %2418 = vmatpush1.bf16.msra.mxu0 %v2415
      %2419 = vmatprep.subr.bf16.mxu0 0
      %2420 = vmatpush1.bf16.msra.mxu0 0
      %2421 = vmatprep.subr.bf16.mxu0 0
      %2422 = vmatpush1.bf16.msra.mxu0 0
      %2423 = vmatprep.subr.bf16.mxu0 0
      %2424 = vmatpush1.bf16.msra.mxu0 0
      %2425 = vmatprep.subr.bf16.mxu0 0
      %2426 = vmatpush1.bf16.msra.mxu0 0
      %2427 = vmatprep.subr.bf16.mxu0 0
      %2428 = vmatpush1.bf16.msra.mxu0 0
      %2429 = vmatprep.subr.bf16.mxu0 0
      %2430 = vmatpush1.bf16.msra.mxu0 0
      %2431 = vmatprep.subr.bf16.mxu0 0
      %2432 = vmatpush1.bf16.msra.mxu0 0
      %2433 = vmatprep.subr.bf16.mxu0 0
      %2434 = vmatpush1.bf16.msra.mxu0 0
      %2435 = vmatprep.subr.bf16.mxu0 0
      %2436 = vmatpush1.bf16.msra.mxu0 0
      %2437 = vmatprep.subr.bf16.mxu0 0
      %2438 = vmatpush1.bf16.msra.mxu0 0
      %2439 = vmatprep.subr.bf16.mxu0 0
      %2440 = vmatpush1.bf16.msra.mxu0 0
      %2441 = vmatprep.subr.bf16.mxu0 0
      %2442 = vmatpush1.bf16.msra.mxu0 0
      %2443 = vmatprep.subr.bf16.mxu0 0
      %2444 = vmatpush1.bf16.msra.mxu0 0
      %2445 = vmatprep.subr.bf16.mxu0 0
      %2446 = vmatpush1.bf16.msra.mxu0 0
      %2447 = vmatprep.subr.bf16.mxu0 0
      %2448 = vmatpush1.bf16.msra.mxu0 0
      %2449 = vmatprep.mubr.bf16.mxu0 0
      %2450 = vmatmul.mubr.bf16.gmra.mrb[0].mxu0 %v718
      %v2451 = vpop.f32.mrb[0].mxu0
      %v2452 = vadd.f32 0.0, %v2451
      %v2453 = vpop.f32.mrb[0].mxu0
      %v2454 = vpop.f32.mrb[0].mxu0
      %v2455 = vadd.f32 0.0, %v2454
      %v2456 = vpop.f32.mrb[0].mxu0
      %2457 = vmatprep.mubr.bf16.mxu0 0
      %2458 = vmatmul.mubr.bf16.gmra.mrb[0].mxu0 %v721
      %v2459 = vpop.f32.mrb[0].mxu0
      %v2460 = vadd.f32 0.0, %v2459
      %v2461 = vpop.f32.mrb[0].mxu0
      %v2462 = vpop.f32.mrb[0].mxu0
      %v2463 = vadd.f32 0.0, %v2462
      %v2464 = vpop.f32.mrb[0].mxu0
      %2465 = vmatprep.mubr.bf16.mxu0 0
      %2466 = vmatmul.mubr.bf16.gmra.mrb[0].mxu0 %v724
      %v2467 = vpop.f32.mrb[0].mxu0
      %v2468 = vadd.f32 0.0, %v2467
      %v2469 = vpop.f32.mrb[0].mxu0
      %v2470 = vpop.f32.mrb[0].mxu0
      %v2471 = vadd.f32 0.0, %v2470
      %v2472 = vpop.f32.mrb[0].mxu0
      %2473 = vmatprep.mubr.bf16.mxu0 0
      %2474 = vmatmul.mubr.bf16.gmra.mrb[0].mxu0 %v727
      %v2475 = vpop.f32.mrb[0].mxu0
      %v2476 = vadd.f32 0.0, %v2475
      %v2477 = vpop.f32.mrb[0].mxu0
      %v2478 = vpop.f32.mrb[0].mxu0
      %v2479 = vadd.f32 0.0, %v2478
      %v2480 = vpop.f32.mrb[0].mxu0
      %2481 = vmatprep.mubr.bf16.mxu0 0
      %2482 = vmatmul.mubr.bf16.gmra.mrb[0].mxu0 %v730
      %v2483 = vpop.f32.mrb[0].mxu0
      %v2484 = vadd.f32 0.0, %v2483
      %v2485 = vpop.f32.mrb[0].mxu0
      %v2486 = vpop.f32.mrb[0].mxu0
      %v2487 = vadd.f32 0.0, %v2486
      %v2488 = vpop.f32.mrb[0].mxu0
      %2489 = vmatprep.mubr.bf16.mxu0 0
      %2490 = vmatmul.mubr.bf16.gmra.mrb[0].mxu0 %v733
      %v2491 = vpop.f32.mrb[0].mxu0
      %v2492 = vadd.f32 0.0, %v2491
      %v2493 = vpop.f32.mrb[0].mxu0
      %v2494 = vpop.f32.mrb[0].mxu0
      %v2495 = vadd.f32 0.0, %v2494
      %v2496 = vpop.f32.mrb[0].mxu0
      %2497 = vmatprep.mubr.bf16.mxu0 0
      %2498 = vmatmul.mubr.bf16.gmra.mrb[0].mxu0 %v736
      %v2499 = vpop.f32.mrb[0].mxu0
      %v2500 = vadd.f32 0.0, %v2499
      %v2501 = vpop.f32.mrb[0].mxu0
      %v2502 = vpop.f32.mrb[0].mxu0
      %v2503 = vadd.f32 0.0, %v2502
      %v2504 = vpop.f32.mrb[0].mxu0
      %2505 = vmatprep.mubr.bf16.mxu0 0
      %2506 = vmatmul.mubr.bf16.gmra.mrb[0].mxu0 %v739
      %v2507 = vpop.f32.mrb[0].mxu0
      %v2508 = vadd.f32 0.0, %v2507
      %v2509 = vpop.f32.mrb[0].mxu0
      %v2510 = vpop.f32.mrb[0].mxu0
      %v2511 = vadd.f32 0.0, %v2510
      %v2512 = vpop.f32.mrb[0].mxu0
      %2513 = vmatprep.mubr.bf16.mxu0 0
      %2514 = vmatmul.mubr.bf16.gmra.mrb[0].mxu0 %v742
      %v2515 = vpop.f32.mrb[0].mxu0
      %v2516 = vadd.f32 0.0, %v2515
      %v2517 = vpop.f32.mrb[0].mxu0
      %v2518 = vpop.f32.mrb[0].mxu0
      %v2519 = vadd.f32 0.0, %v2518
      %v2520 = vpop.f32.mrb[0].mxu0
      %2521 = vmatprep.mubr.bf16.mxu0 0
      %2522 = vmatmul.mubr.bf16.gmra.mrb[0].mxu0 %v745
      %v2523 = vpop.f32.mrb[0].mxu0
      %v2524 = vadd.f32 0.0, %v2523
      %v2525 = vpop.f32.mrb[0].mxu0
      %v2526 = vpop.f32.mrb[0].mxu0
      %v2527 = vadd.f32 0.0, %v2526
      %v2528 = vpop.f32.mrb[0].mxu0
      %2529 = vmatprep.mubr.bf16.mxu0 0
      %2530 = vmatmul.mubr.bf16.gmra.mrb[0].mxu0 %v748
      %v2531 = vpop.f32.mrb[0].mxu0
      %v2532 = vadd.f32 0.0, %v2531
      %v2533 = vpop.f32.mrb[0].mxu0
      %v2534 = vpop.f32.mrb[0].mxu0
      %v2535 = vadd.f32 0.0, %v2534
      %v2536 = vpop.f32.mrb[0].mxu0
      %2537 = vmatprep.mubr.bf16.mxu0 0
      %2538 = vmatmul.mubr.bf16.gmra.mrb[0].mxu0 %v751
      %v2539 = vpop.f32.mrb[0].mxu0
      %v2540 = vadd.f32 0.0, %v2539
      %v2541 = vpop.f32.mrb[0].mxu0
      %v2542 = vpop.f32.mrb[0].mxu0
      %v2543 = vadd.f32 0.0, %v2542
      %v2544 = vpop.f32.mrb[0].mxu0
      %2545 = vmatprep.mubr.bf16.mxu0 0
      %2546 = vmatmul.mubr.bf16.gmra.mrb[0].mxu0 %v754
      %v2547 = vpop.f32.mrb[0].mxu0
      %v2548 = vadd.f32 0.0, %v2547
      %v2549 = vpop.f32.mrb[0].mxu0
      %v2550 = vpop.f32.mrb[0].mxu0
      %v2551 = vadd.f32 0.0, %v2550
      %v2552 = vpop.f32.mrb[0].mxu0
      %2553 = vmatprep.mubr.bf16.mxu0 0
      %2554 = vmatmul.mubr.bf16.gmra.mrb[0].mxu0 %v757
      %v2555 = vpop.f32.mrb[0].mxu0
      %v2556 = vadd.f32 0.0, %v2555
      %v2557 = vpop.f32.mrb[0].mxu0
      %v2558 = vpop.f32.mrb[0].mxu0
      %v2559 = vadd.f32 0.0, %v2558
      %v2560 = vpop.f32.mrb[0].mxu0
      %2561 = vmatprep.mubr.bf16.mxu0 0
      %2562 = vmatmul.mubr.bf16.gmra.mrb[0].mxu0 %v760
      %v2563 = vpop.f32.mrb[0].mxu0
      %v2564 = vadd.f32 0.0, %v2563
      %v2565 = vpop.f32.mrb[0].mxu0
      %v2566 = vpop.f32.mrb[0].mxu0
      %v2567 = vadd.f32 0.0, %v2566
      %v2568 = vpop.f32.mrb[0].mxu0
      %2569 = vmatprep.mubr.bf16.mxu0 0
      %2570 = vmatmul.mubr.bf16.gmra.mrb[0].mxu0 %v2016
      %v2571 = vpop.f32.mrb[0].mxu0
      %v2572 = vadd.f32 0.0, %v2571
      %v2573 = vpop.f32.mrb[0].mxu0
      %v2574 = vpop.f32.mrb[0].mxu0
      %v2575 = vadd.f32 0.0, %v2574
      %v2576 = vpop.f32.mrb[0].mxu0
      %2577 = vdwg.mxu0
      %v2579 = vsel %vm762, %v1985, 0
      %2581 = vmatprep.subr.bf16.mxu0 0
      %2582 = vmatpush1.bf16.msra.mxu0 %v2579
      %2583 = vmatprep.subr.bf16.mxu0 0
      %2584 = vmatpush1.bf16.msra.mxu0 0
      %2585 = vmatprep.subr.bf16.mxu0 0
      %2586 = vmatpush1.bf16.msra.mxu0 0
      %2587 = vmatprep.subr.bf16.mxu0 0
      %2588 = vmatpush1.bf16.msra.mxu0 0
      %2589 = vmatprep.subr.bf16.mxu0 0
      %2590 = vmatpush1.bf16.msra.mxu0 0
      %2591 = vmatprep.subr.bf16.mxu0 0
      %2592 = vmatpush1.bf16.msra.mxu0 0
      %2593 = vmatprep.subr.bf16.mxu0 0
      %2594 = vmatpush1.bf16.msra.mxu0 0
      %2595 = vmatprep.subr.bf16.mxu0 0
      %2596 = vmatpush1.bf16.msra.mxu0 0
      %2597 = vmatprep.subr.bf16.mxu0 0
      %2598 = vmatpush1.bf16.msra.mxu0 0
      %2599 = vmatprep.subr.bf16.mxu0 0
      %2600 = vmatpush1.bf16.msra.mxu0 0
      %2601 = vmatprep.subr.bf16.mxu0 0
      %2602 = vmatpush1.bf16.msra.mxu0 0
      %2603 = vmatprep.subr.bf16.mxu0 0
      %2604 = vmatpush1.bf16.msra.mxu0 0
      %2605 = vmatprep.subr.bf16.mxu0 0
      %2606 = vmatpush1.bf16.msra.mxu0 0
      %2607 = vmatprep.subr.bf16.mxu0 0
      %2608 = vmatpush1.bf16.msra.mxu0 0
      %2609 = vmatprep.subr.bf16.mxu0 0
      %2610 = vmatpush1.bf16.msra.mxu0 0
      %2611 = vmatprep.subr.bf16.mxu0 0
      %2612 = vmatpush1.bf16.msra.mxu0 0
      %2613 = vmatprep.mubr.bf16.mxu0 0
      %2614 = vmatmul.mubr.bf16.gmra.mrb[0].mxu0 %v1011
      %v2615 = vpop.f32.mrb[0].mxu0
      %v2616 = vadd.f32 %v2452, %v2615
      %v2617 = vpop.f32.mrb[0].mxu0
      %v2618 = vpop.f32.mrb[0].mxu0
      %v2619 = vadd.f32 %v2455, %v2618
      %v2620 = vpop.f32.mrb[0].mxu0
      %2621 = vmatprep.mubr.bf16.mxu0 0
      %2622 = vmatmul.mubr.bf16.gmra.mrb[0].mxu0 %v1014
      %v2623 = vpop.f32.mrb[0].mxu0
      %v2624 = vadd.f32 %v2460, %v2623
      %v2625 = vpop.f32.mrb[0].mxu0
      %v2626 = vpop.f32.mrb[0].mxu0
      %v2627 = vadd.f32 %v2463, %v2626
      %v2628 = vpop.f32.mrb[0].mxu0
      %2629 = vmatprep.mubr.bf16.mxu0 0
      %2630 = vmatmul.mubr.bf16.gmra.mrb[0].mxu0 %v1017
      %v2631 = vpop.f32.mrb[0].mxu0
      %v2632 = vadd.f32 %v2468, %v2631
      %v2633 = vpop.f32.mrb[0].mxu0
      %v2634 = vpop.f32.mrb[0].mxu0
      %v2635 = vadd.f32 %v2471, %v2634
      %v2636 = vpop.f32.mrb[0].mxu0
      %2637 = vmatprep.mubr.bf16.mxu0 0
      %2638 = vmatmul.mubr.bf16.gmra.mrb[0].mxu0 %v1020
      %v2639 = vpop.f32.mrb[0].mxu0
      %v2640 = vadd.f32 %v2476, %v2639
      %v2641 = vpop.f32.mrb[0].mxu0
      %v2642 = vpop.f32.mrb[0].mxu0
      %v2643 = vadd.f32 %v2479, %v2642
      %v2644 = vpop.f32.mrb[0].mxu0
      %2645 = vmatprep.mubr.bf16.mxu0 0
      %2646 = vmatmul.mubr.bf16.gmra.mrb[0].mxu0 %v1023
      %v2647 = vpop.f32.mrb[0].mxu0
      %v2648 = vadd.f32 %v2484, %v2647
      %v2649 = vpop.f32.mrb[0].mxu0
      %v2650 = vpop.f32.mrb[0].mxu0
      %v2651 = vadd.f32 %v2487, %v2650
      %v2652 = vpop.f32.mrb[0].mxu0
      %2653 = vmatprep.mubr.bf16.mxu0 0
      %2654 = vmatmul.mubr.bf16.gmra.mrb[0].mxu0 %v1026
      %v2655 = vpop.f32.mrb[0].mxu0
      %v2656 = vadd.f32 %v2492, %v2655
      %v2657 = vpop.f32.mrb[0].mxu0
      %v2658 = vpop.f32.mrb[0].mxu0
      %v2659 = vadd.f32 %v2495, %v2658
      %v2660 = vpop.f32.mrb[0].mxu0
      %2661 = vmatprep.mubr.bf16.mxu0 0
      %2662 = vmatmul.mubr.bf16.gmra.mrb[0].mxu0 %v1029
      %v2663 = vpop.f32.mrb[0].mxu0
      %v2664 = vadd.f32 %v2500, %v2663
      %v2665 = vpop.f32.mrb[0].mxu0
      %v2666 = vpop.f32.mrb[0].mxu0
      %v2667 = vadd.f32 %v2503, %v2666
      %v2668 = vpop.f32.mrb[0].mxu0
      %2669 = vmatprep.mubr.bf16.mxu0 0
      %2670 = vmatmul.mubr.bf16.gmra.mrb[0].mxu0 %v1032
      %v2671 = vpop.f32.mrb[0].mxu0
      %v2672 = vadd.f32 %v2508, %v2671
      %v2673 = vpop.f32.mrb[0].mxu0
      %v2674 = vpop.f32.mrb[0].mxu0
      %v2675 = vadd.f32 %v2511, %v2674
      %v2676 = vpop.f32.mrb[0].mxu0
      %2677 = vmatprep.mubr.bf16.mxu0 0
      %2678 = vmatmul.mubr.bf16.gmra.mrb[0].mxu0 %v1035
      %v2679 = vpop.f32.mrb[0].mxu0
      %v2680 = vadd.f32 %v2516, %v2679
      %v2681 = vpop.f32.mrb[0].mxu0
      %v2682 = vpop.f32.mrb[0].mxu0
      %v2683 = vadd.f32 %v2519, %v2682
      %v2684 = vpop.f32.mrb[0].mxu0
      %2685 = vmatprep.mubr.bf16.mxu0 0
      %2686 = vmatmul.mubr.bf16.gmra.mrb[0].mxu0 %v1038
      %v2687 = vpop.f32.mrb[0].mxu0
      %v2688 = vadd.f32 %v2524, %v2687
      %v2689 = vpop.f32.mrb[0].mxu0
      %v2690 = vpop.f32.mrb[0].mxu0
      %v2691 = vadd.f32 %v2527, %v2690
      %v2692 = vpop.f32.mrb[0].mxu0
      %2693 = vmatprep.mubr.bf16.mxu0 0
      %2694 = vmatmul.mubr.bf16.gmra.mrb[0].mxu0 %v1041
      %v2695 = vpop.f32.mrb[0].mxu0
      %v2696 = vadd.f32 %v2532, %v2695
      %v2697 = vpop.f32.mrb[0].mxu0
      %v2698 = vpop.f32.mrb[0].mxu0
      %v2699 = vadd.f32 %v2535, %v2698
      %v2700 = vpop.f32.mrb[0].mxu0
      %2701 = vmatprep.mubr.bf16.mxu0 0
      %2702 = vmatmul.mubr.bf16.gmra.mrb[0].mxu0 %v1044
      %v2703 = vpop.f32.mrb[0].mxu0
      %v2704 = vadd.f32 %v2540, %v2703
      %v2705 = vpop.f32.mrb[0].mxu0
      %v2706 = vpop.f32.mrb[0].mxu0
      %v2707 = vadd.f32 %v2543, %v2706
      %v2708 = vpop.f32.mrb[0].mxu0
      %2709 = vmatprep.mubr.bf16.mxu0 0
      %2710 = vmatmul.mubr.bf16.gmra.mrb[0].mxu0 %v1047
      %v2711 = vpop.f32.mrb[0].mxu0
      %v2712 = vadd.f32 %v2548, %v2711
      %v2713 = vpop.f32.mrb[0].mxu0
      %v2714 = vpop.f32.mrb[0].mxu0
      %v2715 = vadd.f32 %v2551, %v2714
      %v2716 = vpop.f32.mrb[0].mxu0
      %2717 = vmatprep.mubr.bf16.mxu0 0
      %2718 = vmatmul.mubr.bf16.gmra.mrb[0].mxu0 %v1050
      %v2719 = vpop.f32.mrb[0].mxu0
      %v2720 = vadd.f32 %v2556, %v2719
      %v2721 = vpop.f32.mrb[0].mxu0
      %v2722 = vpop.f32.mrb[0].mxu0
      %v2723 = vadd.f32 %v2559, %v2722
      %v2724 = vpop.f32.mrb[0].mxu0
      %2725 = vmatprep.mubr.bf16.mxu0 0
      %2726 = vmatmul.mubr.bf16.gmra.mrb[0].mxu0 %v1053
      %v2727 = vpop.f32.mrb[0].mxu0
      %v2728 = vadd.f32 %v2564, %v2727
      %v2729 = vpop.f32.mrb[0].mxu0
      %v2730 = vpop.f32.mrb[0].mxu0
      %v2731 = vadd.f32 %v2567, %v2730
      %v2732 = vpop.f32.mrb[0].mxu0
      %2733 = vmatprep.mubr.bf16.mxu0 0
      %2734 = vmatmul.mubr.bf16.gmra.mrb[0].mxu0 %v1786
      %v2735 = vpop.f32.mrb[0].mxu0
      %v2736 = vadd.f32 %v2572, %v2735
      %v2737 = vpop.f32.mrb[0].mxu0
      %v2738 = vpop.f32.mrb[0].mxu0
      %v2739 = vadd.f32 %v2575, %v2738
      %v2740 = vpop.f32.mrb[0].mxu0
      %2741 = vdwg.mxu0
      %s2742 = scalar_lea.vmem %s1, 24
      %v2743 = vld [vmem:[%s2742] sm:$0x3]
      %v2745 = vrot.slane %v269, 5
      %v2746 = vrot.slane %v2745, 4
      %v2747 = vrot.slane %v270, 5
      %v2748 = vsel %vm1239, %v2746, %v2747
      %v2749 = vrot.slane %v2747, 4
      %v2750 = vrot.slane %v271, 5
      %v2751 = vsel %vm1239, %v2749, %v2750
      %s2752 = scalar_lea.vmem %s1, 14
      %v2753 = vld [vmem:[%s2752] sm:$0x3]
      %v2754 = vunpack.c.l.b16 %v2748
      %v2755 = vunpack.c.l.b16 %v2751
      %v2756 = vpack.c.b16 %v2755, %v2754
      %v2758 = vsel %vm713, %v2756, 0
      %v2761 = vsel %vm762, %v2753, 0
      %2763 = vmatprep.subr.bf16.mxu0 0
      %2764 = vmatpush1.bf16.msra.mxu0 %v2761
      %2765 = vmatprep.subr.bf16.mxu0 0
      %2766 = vmatpush1.bf16.msra.mxu0 0
      %2767 = vmatprep.subr.bf16.mxu0 0
      %2768 = vmatpush1.bf16.msra.mxu0 0
      %2769 = vmatprep.subr.bf16.mxu0 0
      %2770 = vmatpush1.bf16.msra.mxu0 0
      %2771 = vmatprep.subr.bf16.mxu0 0
      %2772 = vmatpush1.bf16.msra.mxu0 0
      %2773 = vmatprep.subr.bf16.mxu0 0
      %2774 = vmatpush1.bf16.msra.mxu0 0
      %2775 = vmatprep.subr.bf16.mxu0 0
      %2776 = vmatpush1.bf16.msra.mxu0 0
      %2777 = vmatprep.subr.bf16.mxu0 0
      %2778 = vmatpush1.bf16.msra.mxu0 0
      %2779 = vmatprep.subr.bf16.mxu0 0
      %2780 = vmatpush1.bf16.msra.mxu0 0
      %2781 = vmatprep.subr.bf16.mxu0 0
      %2782 = vmatpush1.bf16.msra.mxu0 0
      %2783 = vmatprep.subr.bf16.mxu0 0
      %2784 = vmatpush1.bf16.msra.mxu0 0
      %2785 = vmatprep.subr.bf16.mxu0 0
      %2786 = vmatpush1.bf16.msra.mxu0 0
      %2787 = vmatprep.subr.bf16.mxu0 0
      %2788 = vmatpush1.bf16.msra.mxu0 0
      %2789 = vmatprep.subr.bf16.mxu0 0
      %2790 = vmatpush1.bf16.msra.mxu0 0
      %2791 = vmatprep.subr.bf16.mxu0 0
      %2792 = vmatpush1.bf16.msra.mxu0 0
      %2793 = vmatprep.subr.bf16.mxu0 0
      %2794 = vmatpush1.bf16.msra.mxu0 0
      %2795 = vmatprep.mubr.bf16.mxu0 0
      %2796 = vmatmul.mubr.bf16.gmra.mrb[0].mxu0 %v1406
      %v2797 = vpop.f32.mrb[0].mxu0
      %v2798 = vadd.f32 0.0, %v2797
      %v2799 = vpop.f32.mrb[0].mxu0
      %v2800 = vpop.f32.mrb[0].mxu0
      %v2801 = vadd.f32 0.0, %v2800
      %v2802 = vpop.f32.mrb[0].mxu0
      %2803 = vmatprep.mubr.bf16.mxu0 0
      %2804 = vmatmul.mubr.bf16.gmra.mrb[0].mxu0 %v1409
      %v2805 = vpop.f32.mrb[0].mxu0
      %v2806 = vadd.f32 0.0, %v2805
      %v2807 = vpop.f32.mrb[0].mxu0
      %v2808 = vpop.f32.mrb[0].mxu0
      %v2809 = vadd.f32 0.0, %v2808
      %v2810 = vpop.f32.mrb[0].mxu0
      %2811 = vmatprep.mubr.bf16.mxu0 0
      %2812 = vmatmul.mubr.bf16.gmra.mrb[0].mxu0 %v1412
      %v2813 = vpop.f32.mrb[0].mxu0
      %v2814 = vadd.f32 0.0, %v2813
      %v2815 = vpop.f32.mrb[0].mxu0
      %v2816 = vpop.f32.mrb[0].mxu0
      %v2817 = vadd.f32 0.0, %v2816
      %v2818 = vpop.f32.mrb[0].mxu0
      %2819 = vmatprep.mubr.bf16.mxu0 0
      %2820 = vmatmul.mubr.bf16.gmra.mrb[0].mxu0 %v1415
      %v2821 = vpop.f32.mrb[0].mxu0
      %v2822 = vadd.f32 0.0, %v2821
      %v2823 = vpop.f32.mrb[0].mxu0
      %v2824 = vpop.f32.mrb[0].mxu0
      %v2825 = vadd.f32 0.0, %v2824
      %v2826 = vpop.f32.mrb[0].mxu0
      %2827 = vmatprep.mubr.bf16.mxu0 0
      %2828 = vmatmul.mubr.bf16.gmra.mrb[0].mxu0 %v1418
      %v2829 = vpop.f32.mrb[0].mxu0
      %v2830 = vadd.f32 0.0, %v2829
      %v2831 = vpop.f32.mrb[0].mxu0
      %v2832 = vpop.f32.mrb[0].mxu0
      %v2833 = vadd.f32 0.0, %v2832
      %v2834 = vpop.f32.mrb[0].mxu0
      %2835 = vmatprep.mubr.bf16.mxu0 0
      %2836 = vmatmul.mubr.bf16.gmra.mrb[0].mxu0 %v1421
      %v2837 = vpop.f32.mrb[0].mxu0
      %v2838 = vadd.f32 0.0, %v2837
      %v2839 = vpop.f32.mrb[0].mxu0
      %v2840 = vpop.f32.mrb[0].mxu0
      %v2841 = vadd.f32 0.0, %v2840
      %v2842 = vpop.f32.mrb[0].mxu0
      %2843 = vmatprep.mubr.bf16.mxu0 0
      %2844 = vmatmul.mubr.bf16.gmra.mrb[0].mxu0 %v1424
      %v2845 = vpop.f32.mrb[0].mxu0
      %v2846 = vadd.f32 0.0, %v2845
      %v2847 = vpop.f32.mrb[0].mxu0
      %v2848 = vpop.f32.mrb[0].mxu0
      %v2849 = vadd.f32 0.0, %v2848
      %v2850 = vpop.f32.mrb[0].mxu0
      %2851 = vmatprep.mubr.bf16.mxu0 0
      %2852 = vmatmul.mubr.bf16.gmra.mrb[0].mxu0 %v1427
      %v2853 = vpop.f32.mrb[0].mxu0
      %v2854 = vadd.f32 0.0, %v2853
      %v2855 = vpop.f32.mrb[0].mxu0
      %v2856 = vpop.f32.mrb[0].mxu0
      %v2857 = vadd.f32 0.0, %v2856
      %v2858 = vpop.f32.mrb[0].mxu0
      %2859 = vmatprep.mubr.bf16.mxu0 0
      %2860 = vmatmul.mubr.bf16.gmra.mrb[0].mxu0 %v1430
      %v2861 = vpop.f32.mrb[0].mxu0
      %v2862 = vadd.f32 0.0, %v2861
      %v2863 = vpop.f32.mrb[0].mxu0
      %v2864 = vpop.f32.mrb[0].mxu0
      %v2865 = vadd.f32 0.0, %v2864
      %v2866 = vpop.f32.mrb[0].mxu0
      %2867 = vmatprep.mubr.bf16.mxu0 0
      %2868 = vmatmul.mubr.bf16.gmra.mrb[0].mxu0 %v1433
      %v2869 = vpop.f32.mrb[0].mxu0
      %v2870 = vadd.f32 0.0, %v2869
      %v2871 = vpop.f32.mrb[0].mxu0
      %v2872 = vpop.f32.mrb[0].mxu0
      %v2873 = vadd.f32 0.0, %v2872
      %v2874 = vpop.f32.mrb[0].mxu0
      %2875 = vmatprep.mubr.bf16.mxu0 0
      %2876 = vmatmul.mubr.bf16.gmra.mrb[0].mxu0 %v1436
      %v2877 = vpop.f32.mrb[0].mxu0
      %v2878 = vadd.f32 0.0, %v2877
      %v2879 = vpop.f32.mrb[0].mxu0
      %v2880 = vpop.f32.mrb[0].mxu0
      %v2881 = vadd.f32 0.0, %v2880
      %v2882 = vpop.f32.mrb[0].mxu0
      %2883 = vmatprep.mubr.bf16.mxu0 0
      %2884 = vmatmul.mubr.bf16.gmra.mrb[0].mxu0 %v1439
      %v2885 = vpop.f32.mrb[0].mxu0
      %v2886 = vadd.f32 0.0, %v2885
      %v2887 = vpop.f32.mrb[0].mxu0
      %v2888 = vpop.f32.mrb[0].mxu0
      %v2889 = vadd.f32 0.0, %v2888
      %v2890 = vpop.f32.mrb[0].mxu0
      %2891 = vmatprep.mubr.bf16.mxu0 0
      %2892 = vmatmul.mubr.bf16.gmra.mrb[0].mxu0 %v1442
      %v2893 = vpop.f32.mrb[0].mxu0
      %v2894 = vadd.f32 0.0, %v2893
      %v2895 = vpop.f32.mrb[0].mxu0
      %v2896 = vpop.f32.mrb[0].mxu0
      %v2897 = vadd.f32 0.0, %v2896
      %v2898 = vpop.f32.mrb[0].mxu0
      %2899 = vmatprep.mubr.bf16.mxu0 0
      %2900 = vmatmul.mubr.bf16.gmra.mrb[0].mxu0 %v1445
      %v2901 = vpop.f32.mrb[0].mxu0
      %v2902 = vadd.f32 0.0, %v2901
      %v2903 = vpop.f32.mrb[0].mxu0
      %v2904 = vpop.f32.mrb[0].mxu0
      %v2905 = vadd.f32 0.0, %v2904
      %v2906 = vpop.f32.mrb[0].mxu0
      %2907 = vmatprep.mubr.bf16.mxu0 0
      %2908 = vmatmul.mubr.bf16.gmra.mrb[0].mxu0 %v1448
      %v2909 = vpop.f32.mrb[0].mxu0
      %v2910 = vadd.f32 0.0, %v2909
      %v2911 = vpop.f32.mrb[0].mxu0
      %v2912 = vpop.f32.mrb[0].mxu0
      %v2913 = vadd.f32 0.0, %v2912
      %v2914 = vpop.f32.mrb[0].mxu0
      %2915 = vmatprep.mubr.bf16.mxu0 0
      %2916 = vmatmul.mubr.bf16.gmra.mrb[0].mxu0 %v2758
      %v2917 = vpop.f32.mrb[0].mxu0
      %v2918 = vadd.f32 0.0, %v2917
      %v2919 = vpop.f32.mrb[0].mxu0
      %v2920 = vpop.f32.mrb[0].mxu0
      %v2921 = vadd.f32 0.0, %v2920
      %v2922 = vpop.f32.mrb[0].mxu0
      %2923 = vdwg.mxu0
      %v2924 = vadd.f32 %v2380, %v2798
      %v2925 = vadd.f32 %v2381, %v2801
      %v2926 = vadd.f32 %v2382, %v2806
      %v2927 = vadd.f32 %v2383, %v2809
      %v2928 = vadd.f32 %v2384, %v2814
      %v2929 = vadd.f32 %v2385, %v2817
      %v2930 = vadd.f32 %v2386, %v2822
      %v2931 = vadd.f32 %v2387, %v2825
      %v2932 = vadd.f32 %v2388, %v2830
      %v2933 = vadd.f32 %v2389, %v2833
      %v2934 = vadd.f32 %v2390, %v2838
      %v2935 = vadd.f32 %v2391, %v2841
      %v2936 = vadd.f32 %v2392, %v2846
      %v2937 = vadd.f32 %v2393, %v2849
      %v2938 = vadd.f32 %v2394, %v2854
      %v2939 = vadd.f32 %v2395, %v2857
      %v2940 = vadd.f32 %v2396, %v2862
      %v2941 = vadd.f32 %v2397, %v2865
      %v2942 = vadd.f32 %v2398, %v2870
      %v2943 = vadd.f32 %v2399, %v2873
      %v2944 = vadd.f32 %v2400, %v2878
      %v2945 = vadd.f32 %v2401, %v2881
      %v2946 = vadd.f32 %v2402, %v2886
      %v2947 = vadd.f32 %v2403, %v2889
      %v2948 = vadd.f32 %v2404, %v2894
      %v2949 = vadd.f32 %v2405, %v2897
      %v2950 = vadd.f32 %v2406, %v2902
      %v2951 = vadd.f32 %v2407, %v2905
      %v2952 = vadd.f32 %v2408, %v2910
      %v2953 = vadd.f32 %v2409, %v2913
      %v2954 = vadd.f32 %v2410, %v2918
      %v2955 = vadd.f32 %v2411, %v2921
      %s2956 = scalar_lea.vmem %s1, 26
      %v2957 = vld [vmem:[%s2956] sm:$0x3]
      %v2959 = vsel %vm762, %v2957, 0
      %2961 = vmatprep.subr.bf16.mxu0 0
      %2962 = vmatpush1.bf16.msra.mxu0 %v2959
      %2963 = vmatprep.subr.bf16.mxu0 0
      %2964 = vmatpush1.bf16.msra.mxu0 0
      %2965 = vmatprep.subr.bf16.mxu0 0
      %2966 = vmatpush1.bf16.msra.mxu0 0
      %2967 = vmatprep.subr.bf16.mxu0 0
      %2968 = vmatpush1.bf16.msra.mxu0 0
      %2969 = vmatprep.subr.bf16.mxu0 0
      %2970 = vmatpush1.bf16.msra.mxu0 0
      %2971 = vmatprep.subr.bf16.mxu0 0
      %2972 = vmatpush1.bf16.msra.mxu0 0
      %2973 = vmatprep.subr.bf16.mxu0 0
      %2974 = vmatpush1.bf16.msra.mxu0 0
      %2975 = vmatprep.subr.bf16.mxu0 0
      %2976 = vmatpush1.bf16.msra.mxu0 0
      %2977 = vmatprep.subr.bf16.mxu0 0
      %2978 = vmatpush1.bf16.msra.mxu0 0
      %2979 = vmatprep.subr.bf16.mxu0 0
      %2980 = vmatpush1.bf16.msra.mxu0 0
      %2981 = vmatprep.subr.bf16.mxu0 0
      %2982 = vmatpush1.bf16.msra.mxu0 0
      %2983 = vmatprep.subr.bf16.mxu0 0
      %2984 = vmatpush1.bf16.msra.mxu0 0
      %2985 = vmatprep.subr.bf16.mxu0 0
      %2986 = vmatpush1.bf16.msra.mxu0 0
      %2987 = vmatprep.subr.bf16.mxu0 0
      %2988 = vmatpush1.bf16.msra.mxu0 0
      %2989 = vmatprep.subr.bf16.mxu0 0
      %2990 = vmatpush1.bf16.msra.mxu0 0
      %2991 = vmatprep.subr.bf16.mxu0 0
      %2992 = vmatpush1.bf16.msra.mxu0 0
      %2993 = vmatprep.mubr.bf16.mxu0 0
      %2994 = vmatmul.mubr.bf16.gmra.mrb[0].mxu0 %v1406
      %v2995 = vpop.f32.mrb[0].mxu0
      %v2996 = vadd.f32 0.0, %v2995
      %v2997 = vpop.f32.mrb[0].mxu0
      %v2998 = vpop.f32.mrb[0].mxu0
      %v2999 = vadd.f32 0.0, %v2998
      %v3000 = vpop.f32.mrb[0].mxu0
      %3001 = vmatprep.mubr.bf16.mxu0 0
      %3002 = vmatmul.mubr.bf16.gmra.mrb[0].mxu0 %v1409
      %v3003 = vpop.f32.mrb[0].mxu0
      %v3004 = vadd.f32 0.0, %v3003
      %v3005 = vpop.f32.mrb[0].mxu0
      %v3006 = vpop.f32.mrb[0].mxu0
      %v3007 = vadd.f32 0.0, %v3006
      %v3008 = vpop.f32.mrb[0].mxu0
      %3009 = vmatprep.mubr.bf16.mxu0 0
      %3010 = vmatmul.mubr.bf16.gmra.mrb[0].mxu0 %v1412
      %v3011 = vpop.f32.mrb[0].mxu0
      %v3012 = vadd.f32 0.0, %v3011
      %v3013 = vpop.f32.mrb[0].mxu0
      %v3014 = vpop.f32.mrb[0].mxu0
      %v3015 = vadd.f32 0.0, %v3014
      %v3016 = vpop.f32.mrb[0].mxu0
      %3017 = vmatprep.mubr.bf16.mxu0 0
      %3018 = vmatmul.mubr.bf16.gmra.mrb[0].mxu0 %v1415
      %v3019 = vpop.f32.mrb[0].mxu0
      %v3020 = vadd.f32 0.0, %v3019
      %v3021 = vpop.f32.mrb[0].mxu0
      %v3022 = vpop.f32.mrb[0].mxu0
      %v3023 = vadd.f32 0.0, %v3022
      %v3024 = vpop.f32.mrb[0].mxu0
      %3025 = vmatprep.mubr.bf16.mxu0 0
      %3026 = vmatmul.mubr.bf16.gmra.mrb[0].mxu0 %v1418
      %v3027 = vpop.f32.mrb[0].mxu0
      %v3028 = vadd.f32 0.0, %v3027
      %v3029 = vpop.f32.mrb[0].mxu0
      %v3030 = vpop.f32.mrb[0].mxu0
      %v3031 = vadd.f32 0.0, %v3030
      %v3032 = vpop.f32.mrb[0].mxu0
      %3033 = vmatprep.mubr.bf16.mxu0 0
      %3034 = vmatmul.mubr.bf16.gmra.mrb[0].mxu0 %v1421
      %v3035 = vpop.f32.mrb[0].mxu0
      %v3036 = vadd.f32 0.0, %v3035
      %v3037 = vpop.f32.mrb[0].mxu0
      %v3038 = vpop.f32.mrb[0].mxu0
      %v3039 = vadd.f32 0.0, %v3038
      %v3040 = vpop.f32.mrb[0].mxu0
      %3041 = vmatprep.mubr.bf16.mxu0 0
      %3042 = vmatmul.mubr.bf16.gmra.mrb[0].mxu0 %v1424
      %v3043 = vpop.f32.mrb[0].mxu0
      %v3044 = vadd.f32 0.0, %v3043
      %v3045 = vpop.f32.mrb[0].mxu0
      %v3046 = vpop.f32.mrb[0].mxu0
      %v3047 = vadd.f32 0.0, %v3046
      %v3048 = vpop.f32.mrb[0].mxu0
      %3049 = vmatprep.mubr.bf16.mxu0 0
      %3050 = vmatmul.mubr.bf16.gmra.mrb[0].mxu0 %v1427
      %v3051 = vpop.f32.mrb[0].mxu0
      %v3052 = vadd.f32 0.0, %v3051
      %v3053 = vpop.f32.mrb[0].mxu0
      %v3054 = vpop.f32.mrb[0].mxu0
      %v3055 = vadd.f32 0.0, %v3054
      %v3056 = vpop.f32.mrb[0].mxu0
      %3057 = vmatprep.mubr.bf16.mxu0 0
      %3058 = vmatmul.mubr.bf16.gmra.mrb[0].mxu0 %v1430
      %v3059 = vpop.f32.mrb[0].mxu0
      %v3060 = vadd.f32 0.0, %v3059
      %v3061 = vpop.f32.mrb[0].mxu0
      %v3062 = vpop.f32.mrb[0].mxu0
      %v3063 = vadd.f32 0.0, %v3062
      %v3064 = vpop.f32.mrb[0].mxu0
      %3065 = vmatprep.mubr.bf16.mxu0 0
      %3066 = vmatmul.mubr.bf16.gmra.mrb[0].mxu0 %v1433
      %v3067 = vpop.f32.mrb[0].mxu0
      %v3068 = vadd.f32 0.0, %v3067
      %v3069 = vpop.f32.mrb[0].mxu0
      %v3070 = vpop.f32.mrb[0].mxu0
      %v3071 = vadd.f32 0.0, %v3070
      %v3072 = vpop.f32.mrb[0].mxu0
      %3073 = vmatprep.mubr.bf16.mxu0 0
      %3074 = vmatmul.mubr.bf16.gmra.mrb[0].mxu0 %v1436
      %v3075 = vpop.f32.mrb[0].mxu0
      %v3076 = vadd.f32 0.0, %v3075
      %v3077 = vpop.f32.mrb[0].mxu0
      %v3078 = vpop.f32.mrb[0].mxu0
      %v3079 = vadd.f32 0.0, %v3078
      %v3080 = vpop.f32.mrb[0].mxu0
      %3081 = vmatprep.mubr.bf16.mxu0 0
      %3082 = vmatmul.mubr.bf16.gmra.mrb[0].mxu0 %v1439
      %v3083 = vpop.f32.mrb[0].mxu0
      %v3084 = vadd.f32 0.0, %v3083
      %v3085 = vpop.f32.mrb[0].mxu0
      %v3086 = vpop.f32.mrb[0].mxu0
      %v3087 = vadd.f32 0.0, %v3086
      %v3088 = vpop.f32.mrb[0].mxu0
      %3089 = vmatprep.mubr.bf16.mxu0 0
      %3090 = vmatmul.mubr.bf16.gmra.mrb[0].mxu0 %v1442
      %v3091 = vpop.f32.mrb[0].mxu0
      %v3092 = vadd.f32 0.0, %v3091
      %v3093 = vpop.f32.mrb[0].mxu0
      %v3094 = vpop.f32.mrb[0].mxu0
      %v3095 = vadd.f32 0.0, %v3094
      %v3096 = vpop.f32.mrb[0].mxu0
      %3097 = vmatprep.mubr.bf16.mxu0 0
      %3098 = vmatmul.mubr.bf16.gmra.mrb[0].mxu0 %v1445
      %v3099 = vpop.f32.mrb[0].mxu0
      %v3100 = vadd.f32 0.0, %v3099
      %v3101 = vpop.f32.mrb[0].mxu0
      %v3102 = vpop.f32.mrb[0].mxu0
      %v3103 = vadd.f32 0.0, %v3102
      %v3104 = vpop.f32.mrb[0].mxu0
      %3105 = vmatprep.mubr.bf16.mxu0 0
      %3106 = vmatmul.mubr.bf16.gmra.mrb[0].mxu0 %v1448
      %v3107 = vpop.f32.mrb[0].mxu0
      %v3108 = vadd.f32 0.0, %v3107
      %v3109 = vpop.f32.mrb[0].mxu0
      %v3110 = vpop.f32.mrb[0].mxu0
      %v3111 = vadd.f32 0.0, %v3110
      %v3112 = vpop.f32.mrb[0].mxu0
      %3113 = vmatprep.mubr.bf16.mxu0 0
      %3114 = vmatmul.mubr.bf16.gmra.mrb[0].mxu0 %v2758
      %v3115 = vpop.f32.mrb[0].mxu0
      %v3116 = vadd.f32 0.0, %v3115
      %v3117 = vpop.f32.mrb[0].mxu0
      %v3118 = vpop.f32.mrb[0].mxu0
      %v3119 = vadd.f32 0.0, %v3118
      %v3120 = vpop.f32.mrb[0].mxu0
      %3121 = vdwg.mxu0
      %v3123 = vsel %vm762, %v2743, 0
      %3125 = vmatprep.subr.bf16.mxu0 0
      %3126 = vmatpush1.bf16.msra.mxu0 %v3123
      %3127 = vmatprep.subr.bf16.mxu0 0
      %3128 = vmatpush1.bf16.msra.mxu0 0
      %3129 = vmatprep.subr.bf16.mxu0 0
      %3130 = vmatpush1.bf16.msra.mxu0 0
      %3131 = vmatprep.subr.bf16.mxu0 0
      %3132 = vmatpush1.bf16.msra.mxu0 0
      %3133 = vmatprep.subr.bf16.mxu0 0
      %3134 = vmatpush1.bf16.msra.mxu0 0
      %3135 = vmatprep.subr.bf16.mxu0 0
      %3136 = vmatpush1.bf16.msra.mxu0 0
      %3137 = vmatprep.subr.bf16.mxu0 0
      %3138 = vmatpush1.bf16.msra.mxu0 0
      %3139 = vmatprep.subr.bf16.mxu0 0
      %3140 = vmatpush1.bf16.msra.mxu0 0
      %3141 = vmatprep.subr.bf16.mxu0 0
      %3142 = vmatpush1.bf16.msra.mxu0 0
      %3143 = vmatprep.subr.bf16.mxu0 0
      %3144 = vmatpush1.bf16.msra.mxu0 0
      %3145 = vmatprep.subr.bf16.mxu0 0
      %3146 = vmatpush1.bf16.msra.mxu0 0
      %3147 = vmatprep.subr.bf16.mxu0 0
      %3148 = vmatpush1.bf16.msra.mxu0 0
      %3149 = vmatprep.subr.bf16.mxu0 0
      %3150 = vmatpush1.bf16.msra.mxu0 0
      %3151 = vmatprep.subr.bf16.mxu0 0
      %3152 = vmatpush1.bf16.msra.mxu0 0
      %3153 = vmatprep.subr.bf16.mxu0 0
      %3154 = vmatpush1.bf16.msra.mxu0 0
      %3155 = vmatprep.subr.bf16.mxu0 0
      %3156 = vmatpush1.bf16.msra.mxu0 0
      %3157 = vmatprep.mubr.bf16.mxu0 0
      %3158 = vmatmul.mubr.bf16.gmra.mrb[0].mxu0 %v718
      %v3159 = vpop.f32.mrb[0].mxu0
      %v3160 = vadd.f32 %v2996, %v3159
      %v3161 = vpop.f32.mrb[0].mxu0
      %v3162 = vpop.f32.mrb[0].mxu0
      %v3163 = vadd.f32 %v2999, %v3162
      %v3164 = vpop.f32.mrb[0].mxu0
      %3165 = vmatprep.mubr.bf16.mxu0 0
      %3166 = vmatmul.mubr.bf16.gmra.mrb[0].mxu0 %v721
      %v3167 = vpop.f32.mrb[0].mxu0
      %v3168 = vadd.f32 %v3004, %v3167
      %v3169 = vpop.f32.mrb[0].mxu0
      %v3170 = vpop.f32.mrb[0].mxu0
      %v3171 = vadd.f32 %v3007, %v3170
      %v3172 = vpop.f32.mrb[0].mxu0
      %3173 = vmatprep.mubr.bf16.mxu0 0
      %3174 = vmatmul.mubr.bf16.gmra.mrb[0].mxu0 %v724
      %v3175 = vpop.f32.mrb[0].mxu0
      %v3176 = vadd.f32 %v3012, %v3175
      %v3177 = vpop.f32.mrb[0].mxu0
      %v3178 = vpop.f32.mrb[0].mxu0
      %v3179 = vadd.f32 %v3015, %v3178
      %v3180 = vpop.f32.mrb[0].mxu0
      %3181 = vmatprep.mubr.bf16.mxu0 0
      %3182 = vmatmul.mubr.bf16.gmra.mrb[0].mxu0 %v727
      %v3183 = vpop.f32.mrb[0].mxu0
      %v3184 = vadd.f32 %v3020, %v3183
      %v3185 = vpop.f32.mrb[0].mxu0
      %v3186 = vpop.f32.mrb[0].mxu0
      %v3187 = vadd.f32 %v3023, %v3186
      %v3188 = vpop.f32.mrb[0].mxu0
      %3189 = vmatprep.mubr.bf16.mxu0 0
      %3190 = vmatmul.mubr.bf16.gmra.mrb[0].mxu0 %v730
      %v3191 = vpop.f32.mrb[0].mxu0
      %v3192 = vadd.f32 %v3028, %v3191
      %v3193 = vpop.f32.mrb[0].mxu0
      %v3194 = vpop.f32.mrb[0].mxu0
      %v3195 = vadd.f32 %v3031, %v3194
      %v3196 = vpop.f32.mrb[0].mxu0
      %3197 = vmatprep.mubr.bf16.mxu0 0
      %3198 = vmatmul.mubr.bf16.gmra.mrb[0].mxu0 %v733
      %v3199 = vpop.f32.mrb[0].mxu0
      %v3200 = vadd.f32 %v3036, %v3199
      %v3201 = vpop.f32.mrb[0].mxu0
      %v3202 = vpop.f32.mrb[0].mxu0
      %v3203 = vadd.f32 %v3039, %v3202
      %v3204 = vpop.f32.mrb[0].mxu0
      %3205 = vmatprep.mubr.bf16.mxu0 0
      %3206 = vmatmul.mubr.bf16.gmra.mrb[0].mxu0 %v736
      %v3207 = vpop.f32.mrb[0].mxu0
      %v3208 = vadd.f32 %v3044, %v3207
      %v3209 = vpop.f32.mrb[0].mxu0
      %v3210 = vpop.f32.mrb[0].mxu0
      %v3211 = vadd.f32 %v3047, %v3210
      %v3212 = vpop.f32.mrb[0].mxu0
      %3213 = vmatprep.mubr.bf16.mxu0 0
      %3214 = vmatmul.mubr.bf16.gmra.mrb[0].mxu0 %v739
      %v3215 = vpop.f32.mrb[0].mxu0
      %v3216 = vadd.f32 %v3052, %v3215
      %v3217 = vpop.f32.mrb[0].mxu0
      %v3218 = vpop.f32.mrb[0].mxu0
      %v3219 = vadd.f32 %v3055, %v3218
      %v3220 = vpop.f32.mrb[0].mxu0
      %3221 = vmatprep.mubr.bf16.mxu0 0
      %3222 = vmatmul.mubr.bf16.gmra.mrb[0].mxu0 %v742
      %v3223 = vpop.f32.mrb[0].mxu0
      %v3224 = vadd.f32 %v3060, %v3223
      %v3225 = vpop.f32.mrb[0].mxu0
      %v3226 = vpop.f32.mrb[0].mxu0
      %v3227 = vadd.f32 %v3063, %v3226
      %v3228 = vpop.f32.mrb[0].mxu0
      %3229 = vmatprep.mubr.bf16.mxu0 0
      %3230 = vmatmul.mubr.bf16.gmra.mrb[0].mxu0 %v745
      %v3231 = vpop.f32.mrb[0].mxu0
      %v3232 = vadd.f32 %v3068, %v3231
      %v3233 = vpop.f32.mrb[0].mxu0
      %v3234 = vpop.f32.mrb[0].mxu0
      %v3235 = vadd.f32 %v3071, %v3234
      %v3236 = vpop.f32.mrb[0].mxu0
      %3237 = vmatprep.mubr.bf16.mxu0 0
      %3238 = vmatmul.mubr.bf16.gmra.mrb[0].mxu0 %v748
      %v3239 = vpop.f32.mrb[0].mxu0
      %v3240 = vadd.f32 %v3076, %v3239
      %v3241 = vpop.f32.mrb[0].mxu0
      %v3242 = vpop.f32.mrb[0].mxu0
      %v3243 = vadd.f32 %v3079, %v3242
      %v3244 = vpop.f32.mrb[0].mxu0
      %3245 = vmatprep.mubr.bf16.mxu0 0
      %3246 = vmatmul.mubr.bf16.gmra.mrb[0].mxu0 %v751
      %v3247 = vpop.f32.mrb[0].mxu0
      %v3248 = vadd.f32 %v3084, %v3247
      %v3249 = vpop.f32.mrb[0].mxu0
      %v3250 = vpop.f32.mrb[0].mxu0
      %v3251 = vadd.f32 %v3087, %v3250
      %v3252 = vpop.f32.mrb[0].mxu0
      %3253 = vmatprep.mubr.bf16.mxu0 0
      %3254 = vmatmul.mubr.bf16.gmra.mrb[0].mxu0 %v754
      %v3255 = vpop.f32.mrb[0].mxu0
      %v3256 = vadd.f32 %v3092, %v3255
      %v3257 = vpop.f32.mrb[0].mxu0
      %v3258 = vpop.f32.mrb[0].mxu0
      %v3259 = vadd.f32 %v3095, %v3258
      %v3260 = vpop.f32.mrb[0].mxu0
      %3261 = vmatprep.mubr.bf16.mxu0 0
      %3262 = vmatmul.mubr.bf16.gmra.mrb[0].mxu0 %v757
      %v3263 = vpop.f32.mrb[0].mxu0
      %v3264 = vadd.f32 %v3100, %v3263
      %v3265 = vpop.f32.mrb[0].mxu0
      %v3266 = vpop.f32.mrb[0].mxu0
      %v3267 = vadd.f32 %v3103, %v3266
      %v3268 = vpop.f32.mrb[0].mxu0
      %3269 = vmatprep.mubr.bf16.mxu0 0
      %3270 = vmatmul.mubr.bf16.gmra.mrb[0].mxu0 %v760
      %v3271 = vpop.f32.mrb[0].mxu0
      %v3272 = vadd.f32 %v3108, %v3271
      %v3273 = vpop.f32.mrb[0].mxu0
      %v3274 = vpop.f32.mrb[0].mxu0
      %v3275 = vadd.f32 %v3111, %v3274
      %v3276 = vpop.f32.mrb[0].mxu0
      %3277 = vmatprep.mubr.bf16.mxu0 0
      %3278 = vmatmul.mubr.bf16.gmra.mrb[0].mxu0 %v2016
      %v3279 = vpop.f32.mrb[0].mxu0
      %v3280 = vadd.f32 %v3116, %v3279
      %v3281 = vpop.f32.mrb[0].mxu0
      %v3282 = vpop.f32.mrb[0].mxu0
      %v3283 = vadd.f32 %v3119, %v3282
      %v3284 = vpop.f32.mrb[0].mxu0
      %3285 = vdwg.mxu0
      %s3286 = scalar_lea.vmem %s1, 20
      %v3287 = vld [vmem:[%s3286] sm:$0x3]
      %v3290 = vunpack.c.l.b16 %v272
      %v3291 = vunpack.c.l.b16 %v273
      %v3292 = vpack.c.b16 %v3291, %v3290
      %v3294 = vsel %vm713, %v3292, 0
      %v3297 = vsel %vm762, %v3287, 0
      %3299 = vmatprep.subr.bf16.mxu0 0
      %3300 = vmatpush1.bf16.msra.mxu0 %v3297
      %3301 = vmatprep.subr.bf16.mxu0 0
      %3302 = vmatpush1.bf16.msra.mxu0 0
      %3303 = vmatprep.subr.bf16.mxu0 0
      %3304 = vmatpush1.bf16.msra.mxu0 0
      %3305 = vmatprep.subr.bf16.mxu0 0
      %3306 = vmatpush1.bf16.msra.mxu0 0
      %3307 = vmatprep.subr.bf16.mxu0 0
      %3308 = vmatpush1.bf16.msra.mxu0 0
      %3309 = vmatprep.subr.bf16.mxu0 0
      %3310 = vmatpush1.bf16.msra.mxu0 0
      %3311 = vmatprep.subr.bf16.mxu0 0
      %3312 = vmatpush1.bf16.msra.mxu0 0
      %3313 = vmatprep.subr.bf16.mxu0 0
      %3314 = vmatpush1.bf16.msra.mxu0 0
      %3315 = vmatprep.subr.bf16.mxu0 0
      %3316 = vmatpush1.bf16.msra.mxu0 0
      %3317 = vmatprep.subr.bf16.mxu0 0
      %3318 = vmatpush1.bf16.msra.mxu0 0
      %3319 = vmatprep.subr.bf16.mxu0 0
      %3320 = vmatpush1.bf16.msra.mxu0 0
      %3321 = vmatprep.subr.bf16.mxu0 0
      %3322 = vmatpush1.bf16.msra.mxu0 0
      %3323 = vmatprep.subr.bf16.mxu0 0
      %3324 = vmatpush1.bf16.msra.mxu0 0
      %3325 = vmatprep.subr.bf16.mxu0 0
      %3326 = vmatpush1.bf16.msra.mxu0 0
      %3327 = vmatprep.subr.bf16.mxu0 0
      %3328 = vmatpush1.bf16.msra.mxu0 0
      %3329 = vmatprep.subr.bf16.mxu0 0
      %3330 = vmatpush1.bf16.msra.mxu0 0
      %3331 = vmatprep.mubr.bf16.mxu0 0
      %3332 = vmatmul.mubr.bf16.gmra.mrb[0].mxu0 %v1014
      %v3333 = vpop.f32.mrb[0].mxu0
      %v3334 = vadd.f32 0.0, %v3333
      %v3335 = vpop.f32.mrb[0].mxu0
      %v3336 = vpop.f32.mrb[0].mxu0
      %v3337 = vadd.f32 0.0, %v3336
      %v3338 = vpop.f32.mrb[0].mxu0
      %3339 = vmatprep.mubr.bf16.mxu0 0
      %3340 = vmatmul.mubr.bf16.gmra.mrb[0].mxu0 %v1017
      %v3341 = vpop.f32.mrb[0].mxu0
      %v3342 = vadd.f32 0.0, %v3341
      %v3343 = vpop.f32.mrb[0].mxu0
      %v3344 = vpop.f32.mrb[0].mxu0
      %v3345 = vadd.f32 0.0, %v3344
      %v3346 = vpop.f32.mrb[0].mxu0
      %3347 = vmatprep.mubr.bf16.mxu0 0
      %3348 = vmatmul.mubr.bf16.gmra.mrb[0].mxu0 %v1020
      %v3349 = vpop.f32.mrb[0].mxu0
      %v3350 = vadd.f32 0.0, %v3349
      %v3351 = vpop.f32.mrb[0].mxu0
      %v3352 = vpop.f32.mrb[0].mxu0
      %v3353 = vadd.f32 0.0, %v3352
      %v3354 = vpop.f32.mrb[0].mxu0
      %3355 = vmatprep.mubr.bf16.mxu0 0
      %3356 = vmatmul.mubr.bf16.gmra.mrb[0].mxu0 %v1023
      %v3357 = vpop.f32.mrb[0].mxu0
      %v3358 = vadd.f32 0.0, %v3357
      %v3359 = vpop.f32.mrb[0].mxu0
      %v3360 = vpop.f32.mrb[0].mxu0
      %v3361 = vadd.f32 0.0, %v3360
      %v3362 = vpop.f32.mrb[0].mxu0
      %3363 = vmatprep.mubr.bf16.mxu0 0
      %3364 = vmatmul.mubr.bf16.gmra.mrb[0].mxu0 %v1026
      %v3365 = vpop.f32.mrb[0].mxu0
      %v3366 = vadd.f32 0.0, %v3365
      %v3367 = vpop.f32.mrb[0].mxu0
      %v3368 = vpop.f32.mrb[0].mxu0
      %v3369 = vadd.f32 0.0, %v3368
      %v3370 = vpop.f32.mrb[0].mxu0
      %3371 = vmatprep.mubr.bf16.mxu0 0
      %3372 = vmatmul.mubr.bf16.gmra.mrb[0].mxu0 %v1029
      %v3373 = vpop.f32.mrb[0].mxu0
      %v3374 = vadd.f32 0.0, %v3373
      %v3375 = vpop.f32.mrb[0].mxu0
      %v3376 = vpop.f32.mrb[0].mxu0
      %v3377 = vadd.f32 0.0, %v3376
      %v3378 = vpop.f32.mrb[0].mxu0
      %3379 = vmatprep.mubr.bf16.mxu0 0
      %3380 = vmatmul.mubr.bf16.gmra.mrb[0].mxu0 %v1032
      %v3381 = vpop.f32.mrb[0].mxu0
      %v3382 = vadd.f32 0.0, %v3381
      %v3383 = vpop.f32.mrb[0].mxu0
      %v3384 = vpop.f32.mrb[0].mxu0
      %v3385 = vadd.f32 0.0, %v3384
      %v3386 = vpop.f32.mrb[0].mxu0
      %3387 = vmatprep.mubr.bf16.mxu0 0
      %3388 = vmatmul.mubr.bf16.gmra.mrb[0].mxu0 %v1035
      %v3389 = vpop.f32.mrb[0].mxu0
      %v3390 = vadd.f32 0.0, %v3389
      %v3391 = vpop.f32.mrb[0].mxu0
      %v3392 = vpop.f32.mrb[0].mxu0
      %v3393 = vadd.f32 0.0, %v3392
      %v3394 = vpop.f32.mrb[0].mxu0
      %3395 = vmatprep.mubr.bf16.mxu0 0
      %3396 = vmatmul.mubr.bf16.gmra.mrb[0].mxu0 %v1038
      %v3397 = vpop.f32.mrb[0].mxu0
      %v3398 = vadd.f32 0.0, %v3397
      %v3399 = vpop.f32.mrb[0].mxu0
      %v3400 = vpop.f32.mrb[0].mxu0
      %v3401 = vadd.f32 0.0, %v3400
      %v3402 = vpop.f32.mrb[0].mxu0
      %3403 = vmatprep.mubr.bf16.mxu0 0
      %3404 = vmatmul.mubr.bf16.gmra.mrb[0].mxu0 %v1041
      %v3405 = vpop.f32.mrb[0].mxu0
      %v3406 = vadd.f32 0.0, %v3405
      %v3407 = vpop.f32.mrb[0].mxu0
      %v3408 = vpop.f32.mrb[0].mxu0
      %v3409 = vadd.f32 0.0, %v3408
      %v3410 = vpop.f32.mrb[0].mxu0
      %3411 = vmatprep.mubr.bf16.mxu0 0
      %3412 = vmatmul.mubr.bf16.gmra.mrb[0].mxu0 %v1044
      %v3413 = vpop.f32.mrb[0].mxu0
      %v3414 = vadd.f32 0.0, %v3413
      %v3415 = vpop.f32.mrb[0].mxu0
      %v3416 = vpop.f32.mrb[0].mxu0
      %v3417 = vadd.f32 0.0, %v3416
      %v3418 = vpop.f32.mrb[0].mxu0
      %3419 = vmatprep.mubr.bf16.mxu0 0
      %3420 = vmatmul.mubr.bf16.gmra.mrb[0].mxu0 %v1047
      %v3421 = vpop.f32.mrb[0].mxu0
      %v3422 = vadd.f32 0.0, %v3421
      %v3423 = vpop.f32.mrb[0].mxu0
      %v3424 = vpop.f32.mrb[0].mxu0
      %v3425 = vadd.f32 0.0, %v3424
      %v3426 = vpop.f32.mrb[0].mxu0
      %3427 = vmatprep.mubr.bf16.mxu0 0
      %3428 = vmatmul.mubr.bf16.gmra.mrb[0].mxu0 %v1050
      %v3429 = vpop.f32.mrb[0].mxu0
      %v3430 = vadd.f32 0.0, %v3429
      %v3431 = vpop.f32.mrb[0].mxu0
      %v3432 = vpop.f32.mrb[0].mxu0
      %v3433 = vadd.f32 0.0, %v3432
      %v3434 = vpop.f32.mrb[0].mxu0
      %3435 = vmatprep.mubr.bf16.mxu0 0
      %3436 = vmatmul.mubr.bf16.gmra.mrb[0].mxu0 %v1053
      %v3437 = vpop.f32.mrb[0].mxu0
      %v3438 = vadd.f32 0.0, %v3437
      %v3439 = vpop.f32.mrb[0].mxu0
      %v3440 = vpop.f32.mrb[0].mxu0
      %v3441 = vadd.f32 0.0, %v3440
      %v3442 = vpop.f32.mrb[0].mxu0
      %3443 = vmatprep.mubr.bf16.mxu0 0
      %3444 = vmatmul.mubr.bf16.gmra.mrb[0].mxu0 %v1786
      %v3445 = vpop.f32.mrb[0].mxu0
      %v3446 = vadd.f32 0.0, %v3445
      %v3447 = vpop.f32.mrb[0].mxu0
      %v3448 = vpop.f32.mrb[0].mxu0
      %v3449 = vadd.f32 0.0, %v3448
      %v3450 = vpop.f32.mrb[0].mxu0
      %3451 = vmatprep.mubr.bf16.mxu0 0
      %3452 = vmatmul.mubr.bf16.gmra.mrb[0].mxu0 %v3294
      %v3453 = vpop.f32.mrb[0].mxu0
      %v3454 = vadd.f32 0.0, %v3453
      %v3455 = vpop.f32.mrb[0].mxu0
      %v3456 = vpop.f32.mrb[0].mxu0
      %v3457 = vadd.f32 0.0, %v3456
      %v3458 = vpop.f32.mrb[0].mxu0
      %3459 = vdwg.mxu0
      %v3460 = vadd.f32 %v2616, %v3334
      %v3461 = vadd.f32 %v2619, %v3337
      %v3462 = vadd.f32 %v2624, %v3342
      %v3463 = vadd.f32 %v2627, %v3345
      %v3464 = vadd.f32 %v2632, %v3350
      %v3465 = vadd.f32 %v2635, %v3353
      %v3466 = vadd.f32 %v2640, %v3358
      %v3467 = vadd.f32 %v2643, %v3361
      %v3468 = vadd.f32 %v2648, %v3366
      %v3469 = vadd.f32 %v2651, %v3369
      %v3470 = vadd.f32 %v2656, %v3374
      %v3471 = vadd.f32 %v2659, %v3377
      %v3472 = vadd.f32 %v2664, %v3382
      %v3473 = vadd.f32 %v2667, %v3385
      %v3474 = vadd.f32 %v2672, %v3390
      %v3475 = vadd.f32 %v2675, %v3393
      %v3476 = vadd.f32 %v2680, %v3398
      %v3477 = vadd.f32 %v2683, %v3401
      %v3478 = vadd.f32 %v2688, %v3406
      %v3479 = vadd.f32 %v2691, %v3409
      %v3480 = vadd.f32 %v2696, %v3414
      %v3481 = vadd.f32 %v2699, %v3417
      %v3482 = vadd.f32 %v2704, %v3422
      %v3483 = vadd.f32 %v2707, %v3425
      %v3484 = vadd.f32 %v2712, %v3430
      %v3485 = vadd.f32 %v2715, %v3433
      %v3486 = vadd.f32 %v2720, %v3438
      %v3487 = vadd.f32 %v2723, %v3441
      %v3488 = vadd.f32 %v2728, %v3446
      %v3489 = vadd.f32 %v2731, %v3449
      %v3490 = vadd.f32 %v2736, %v3454
      %v3491 = vadd.f32 %v2739, %v3457
      %v3493 = vshrl.u32 %v272, 16
      %v3495 = vrot.slane %v3493, 4
      %v3496 = vshll.u32 %v272, 16
      %v3498 = vrot.slane %v3496, 5
      %v3499 = vor.u32 %v3495, %v3498
      %v3500 = vrot.slane %v3499, 4
      %v3502 = vshll.u32 %v273, 16
      %v3504 = vrot.slane %v3502, 5
      %v3505 = vsel %vm278, %v3500, %v3504
      %v3506 = vshrl.u32 %v273, 16
      %v3508 = vrot.slane %v3506, 4
      %v3509 = vor.u32 %v3508, %v3504
      %v3510 = vrot.slane %v3509, 4
      %v3512 = vshll.u32 %v274, 16
      %v3514 = vrot.slane %v3512, 5
      %v3515 = vsel %vm278, %v3510, %v3514
      %s3516 = scalar_lea.vmem %s1, 22
      %v3517 = vld [vmem:[%s3516] sm:$0x3]
      %v3518 = vunpack.c.l.b16 %v3505
      %v3519 = vunpack.c.l.b16 %v3515
      %v3520 = vpack.c.b16 %v3519, %v3518
      %v3522 = vsel %vm713, %v3520, 0
      %v3525 = vsel %vm762, %v3517, 0
      %3527 = vmatprep.subr.bf16.mxu0 0
      %3528 = vmatpush1.bf16.msra.mxu0 %v3525
      %3529 = vmatprep.subr.bf16.mxu0 0
      %3530 = vmatpush1.bf16.msra.mxu0 0
      %3531 = vmatprep.subr.bf16.mxu0 0
      %3532 = vmatpush1.bf16.msra.mxu0 0
      %3533 = vmatprep.subr.bf16.mxu0 0
      %3534 = vmatpush1.bf16.msra.mxu0 0
      %3535 = vmatprep.subr.bf16.mxu0 0
      %3536 = vmatpush1.bf16.msra.mxu0 0
      %3537 = vmatprep.subr.bf16.mxu0 0
      %3538 = vmatpush1.bf16.msra.mxu0 0
      %3539 = vmatprep.subr.bf16.mxu0 0
      %3540 = vmatpush1.bf16.msra.mxu0 0
      %3541 = vmatprep.subr.bf16.mxu0 0
      %3542 = vmatpush1.bf16.msra.mxu0 0
      %3543 = vmatprep.subr.bf16.mxu0 0
      %3544 = vmatpush1.bf16.msra.mxu0 0
      %3545 = vmatprep.subr.bf16.mxu0 0
      %3546 = vmatpush1.bf16.msra.mxu0 0
      %3547 = vmatprep.subr.bf16.mxu0 0
      %3548 = vmatpush1.bf16.msra.mxu0 0
      %3549 = vmatprep.subr.bf16.mxu0 0
      %3550 = vmatpush1.bf16.msra.mxu0 0
      %3551 = vmatprep.subr.bf16.mxu0 0
      %3552 = vmatpush1.bf16.msra.mxu0 0
      %3553 = vmatprep.subr.bf16.mxu0 0
      %3554 = vmatpush1.bf16.msra.mxu0 0
      %3555 = vmatprep.subr.bf16.mxu0 0
      %3556 = vmatpush1.bf16.msra.mxu0 0
      %3557 = vmatprep.subr.bf16.mxu0 0
      %3558 = vmatpush1.bf16.msra.mxu0 0
      %3559 = vmatprep.mubr.bf16.mxu0 0
      %3560 = vmatmul.mubr.bf16.gmra.mrb[0].mxu0 %v721
      %v3561 = vpop.f32.mrb[0].mxu0
      %v3562 = vadd.f32 0.0, %v3561
      %v3563 = vpop.f32.mrb[0].mxu0
      %v3564 = vpop.f32.mrb[0].mxu0
      %v3565 = vadd.f32 0.0, %v3564
      %v3566 = vpop.f32.mrb[0].mxu0
      %3567 = vmatprep.mubr.bf16.mxu0 0
      %3568 = vmatmul.mubr.bf16.gmra.mrb[0].mxu0 %v724
      %v3569 = vpop.f32.mrb[0].mxu0
      %v3570 = vadd.f32 0.0, %v3569
      %v3571 = vpop.f32.mrb[0].mxu0
      %v3572 = vpop.f32.mrb[0].mxu0
      %v3573 = vadd.f32 0.0, %v3572
      %v3574 = vpop.f32.mrb[0].mxu0
      %3575 = vmatprep.mubr.bf16.mxu0 0
      %3576 = vmatmul.mubr.bf16.gmra.mrb[0].mxu0 %v727
      %v3577 = vpop.f32.mrb[0].mxu0
      %v3578 = vadd.f32 0.0, %v3577
      %v3579 = vpop.f32.mrb[0].mxu0
      %v3580 = vpop.f32.mrb[0].mxu0
      %v3581 = vadd.f32 0.0, %v3580
      %v3582 = vpop.f32.mrb[0].mxu0
      %3583 = vmatprep.mubr.bf16.mxu0 0
      %3584 = vmatmul.mubr.bf16.gmra.mrb[0].mxu0 %v730
      %v3585 = vpop.f32.mrb[0].mxu0
      %v3586 = vadd.f32 0.0, %v3585
      %v3587 = vpop.f32.mrb[0].mxu0
      %v3588 = vpop.f32.mrb[0].mxu0
      %v3589 = vadd.f32 0.0, %v3588
      %v3590 = vpop.f32.mrb[0].mxu0
      %3591 = vmatprep.mubr.bf16.mxu0 0
      %3592 = vmatmul.mubr.bf16.gmra.mrb[0].mxu0 %v733
      %v3593 = vpop.f32.mrb[0].mxu0
      %v3594 = vadd.f32 0.0, %v3593
      %v3595 = vpop.f32.mrb[0].mxu0
      %v3596 = vpop.f32.mrb[0].mxu0
      %v3597 = vadd.f32 0.0, %v3596
      %v3598 = vpop.f32.mrb[0].mxu0
      %3599 = vmatprep.mubr.bf16.mxu0 0
      %3600 = vmatmul.mubr.bf16.gmra.mrb[0].mxu0 %v736
      %v3601 = vpop.f32.mrb[0].mxu0
      %v3602 = vadd.f32 0.0, %v3601
      %v3603 = vpop.f32.mrb[0].mxu0
      %v3604 = vpop.f32.mrb[0].mxu0
      %v3605 = vadd.f32 0.0, %v3604
      %v3606 = vpop.f32.mrb[0].mxu0
      %3607 = vmatprep.mubr.bf16.mxu0 0
      %3608 = vmatmul.mubr.bf16.gmra.mrb[0].mxu0 %v739
      %v3609 = vpop.f32.mrb[0].mxu0
      %v3610 = vadd.f32 0.0, %v3609
      %v3611 = vpop.f32.mrb[0].mxu0
      %v3612 = vpop.f32.mrb[0].mxu0
      %v3613 = vadd.f32 0.0, %v3612
      %v3614 = vpop.f32.mrb[0].mxu0
      %3615 = vmatprep.mubr.bf16.mxu0 0
      %3616 = vmatmul.mubr.bf16.gmra.mrb[0].mxu0 %v742
      %v3617 = vpop.f32.mrb[0].mxu0
      %v3618 = vadd.f32 0.0, %v3617
      %v3619 = vpop.f32.mrb[0].mxu0
      %v3620 = vpop.f32.mrb[0].mxu0
      %v3621 = vadd.f32 0.0, %v3620
      %v3622 = vpop.f32.mrb[0].mxu0
      %3623 = vmatprep.mubr.bf16.mxu0 0
      %3624 = vmatmul.mubr.bf16.gmra.mrb[0].mxu0 %v745
      %v3625 = vpop.f32.mrb[0].mxu0
      %v3626 = vadd.f32 0.0, %v3625
      %v3627 = vpop.f32.mrb[0].mxu0
      %v3628 = vpop.f32.mrb[0].mxu0
      %v3629 = vadd.f32 0.0, %v3628
      %v3630 = vpop.f32.mrb[0].mxu0
      %3631 = vmatprep.mubr.bf16.mxu0 0
      %3632 = vmatmul.mubr.bf16.gmra.mrb[0].mxu0 %v748
      %v3633 = vpop.f32.mrb[0].mxu0
      %v3634 = vadd.f32 0.0, %v3633
      %v3635 = vpop.f32.mrb[0].mxu0
      %v3636 = vpop.f32.mrb[0].mxu0
      %v3637 = vadd.f32 0.0, %v3636
      %v3638 = vpop.f32.mrb[0].mxu0
      %3639 = vmatprep.mubr.bf16.mxu0 0
      %3640 = vmatmul.mubr.bf16.gmra.mrb[0].mxu0 %v751
      %v3641 = vpop.f32.mrb[0].mxu0
      %v3642 = vadd.f32 0.0, %v3641
      %v3643 = vpop.f32.mrb[0].mxu0
      %v3644 = vpop.f32.mrb[0].mxu0
      %v3645 = vadd.f32 0.0, %v3644
      %v3646 = vpop.f32.mrb[0].mxu0
      %3647 = vmatprep.mubr.bf16.mxu0 0
      %3648 = vmatmul.mubr.bf16.gmra.mrb[0].mxu0 %v754
      %v3649 = vpop.f32.mrb[0].mxu0
      %v3650 = vadd.f32 0.0, %v3649
      %v3651 = vpop.f32.mrb[0].mxu0
      %v3652 = vpop.f32.mrb[0].mxu0
      %v3653 = vadd.f32 0.0, %v3652
      %v3654 = vpop.f32.mrb[0].mxu0
      %3655 = vmatprep.mubr.bf16.mxu0 0
      %3656 = vmatmul.mubr.bf16.gmra.mrb[0].mxu0 %v757
      %v3657 = vpop.f32.mrb[0].mxu0
      %v3658 = vadd.f32 0.0, %v3657
      %v3659 = vpop.f32.mrb[0].mxu0
      %v3660 = vpop.f32.mrb[0].mxu0
      %v3661 = vadd.f32 0.0, %v3660
      %v3662 = vpop.f32.mrb[0].mxu0
      %3663 = vmatprep.mubr.bf16.mxu0 0
      %3664 = vmatmul.mubr.bf16.gmra.mrb[0].mxu0 %v760
      %v3665 = vpop.f32.mrb[0].mxu0
      %v3666 = vadd.f32 0.0, %v3665
      %v3667 = vpop.f32.mrb[0].mxu0
      %v3668 = vpop.f32.mrb[0].mxu0
      %v3669 = vadd.f32 0.0, %v3668
      %v3670 = vpop.f32.mrb[0].mxu0
      %3671 = vmatprep.mubr.bf16.mxu0 0
      %3672 = vmatmul.mubr.bf16.gmra.mrb[0].mxu0 %v2016
      %v3673 = vpop.f32.mrb[0].mxu0
      %v3674 = vadd.f32 0.0, %v3673
      %v3675 = vpop.f32.mrb[0].mxu0
      %v3676 = vpop.f32.mrb[0].mxu0
      %v3677 = vadd.f32 0.0, %v3676
      %v3678 = vpop.f32.mrb[0].mxu0
      %3679 = vmatprep.mubr.bf16.mxu0 0
      %3680 = vmatmul.mubr.bf16.gmra.mrb[0].mxu0 %v3522
      %v3681 = vpop.f32.mrb[0].mxu0
      %v3682 = vadd.f32 0.0, %v3681
      %v3683 = vpop.f32.mrb[0].mxu0
      %v3684 = vpop.f32.mrb[0].mxu0
      %v3685 = vadd.f32 0.0, %v3684
      %v3686 = vpop.f32.mrb[0].mxu0
      %3687 = vdwg.mxu0
      %v3688 = vadd.f32 %v3460, %v3562
      %v3689 = vadd.f32 %v3461, %v3565
      %v3690 = vadd.f32 %v3462, %v3570
      %v3691 = vadd.f32 %v3463, %v3573
      %v3692 = vadd.f32 %v3464, %v3578
      %v3693 = vadd.f32 %v3465, %v3581
      %v3694 = vadd.f32 %v3466, %v3586
      %v3695 = vadd.f32 %v3467, %v3589
      %v3696 = vadd.f32 %v3468, %v3594
      %v3697 = vadd.f32 %v3469, %v3597
      %v3698 = vadd.f32 %v3470, %v3602
      %v3699 = vadd.f32 %v3471, %v3605
      %v3700 = vadd.f32 %v3472, %v3610
      %v3701 = vadd.f32 %v3473, %v3613
      %v3702 = vadd.f32 %v3474, %v3618
      %v3703 = vadd.f32 %v3475, %v3621
      %v3704 = vadd.f32 %v3476, %v3626
      %v3705 = vadd.f32 %v3477, %v3629
      %v3706 = vadd.f32 %v3478, %v3634
      %v3707 = vadd.f32 %v3479, %v3637
      %v3708 = vadd.f32 %v3480, %v3642
      %v3709 = vadd.f32 %v3481, %v3645
      %v3710 = vadd.f32 %v3482, %v3650
      %v3711 = vadd.f32 %v3483, %v3653
      %v3712 = vadd.f32 %v3484, %v3658
      %v3713 = vadd.f32 %v3485, %v3661
      %v3714 = vadd.f32 %v3486, %v3666
      %v3715 = vadd.f32 %v3487, %v3669
      %v3716 = vadd.f32 %v3488, %v3674
      %v3717 = vadd.f32 %v3489, %v3677
      %v3718 = vadd.f32 %v3490, %v3682
      %v3719 = vadd.f32 %v3491, %v3685
      %s3720 = scalar_lea.vmem %s1, 28
      %v3721 = vld [vmem:[%s3720] sm:$0x3]
      %v3723 = vsel %vm762, %v3721, 0
      %3725 = vmatprep.subr.bf16.mxu0 0
      %3726 = vmatpush1.bf16.msra.mxu0 %v3723
      %3727 = vmatprep.subr.bf16.mxu0 0
      %3728 = vmatpush1.bf16.msra.mxu0 0
      %3729 = vmatprep.subr.bf16.mxu0 0
      %3730 = vmatpush1.bf16.msra.mxu0 0
      %3731 = vmatprep.subr.bf16.mxu0 0
      %3732 = vmatpush1.bf16.msra.mxu0 0
      %3733 = vmatprep.subr.bf16.mxu0 0
      %3734 = vmatpush1.bf16.msra.mxu0 0
      %3735 = vmatprep.subr.bf16.mxu0 0
      %3736 = vmatpush1.bf16.msra.mxu0 0
      %3737 = vmatprep.subr.bf16.mxu0 0
      %3738 = vmatpush1.bf16.msra.mxu0 0
      %3739 = vmatprep.subr.bf16.mxu0 0
      %3740 = vmatpush1.bf16.msra.mxu0 0
      %3741 = vmatprep.subr.bf16.mxu0 0
      %3742 = vmatpush1.bf16.msra.mxu0 0
      %3743 = vmatprep.subr.bf16.mxu0 0
      %3744 = vmatpush1.bf16.msra.mxu0 0
      %3745 = vmatprep.subr.bf16.mxu0 0
      %3746 = vmatpush1.bf16.msra.mxu0 0
      %3747 = vmatprep.subr.bf16.mxu0 0
      %3748 = vmatpush1.bf16.msra.mxu0 0
      %3749 = vmatprep.subr.bf16.mxu0 0
      %3750 = vmatpush1.bf16.msra.mxu0 0
      %3751 = vmatprep.subr.bf16.mxu0 0
      %3752 = vmatpush1.bf16.msra.mxu0 0
      %3753 = vmatprep.subr.bf16.mxu0 0
      %3754 = vmatpush1.bf16.msra.mxu0 0
      %3755 = vmatprep.subr.bf16.mxu0 0
      %3756 = vmatpush1.bf16.msra.mxu0 0
      %3757 = vmatprep.mubr.bf16.mxu0 0
      %3758 = vmatmul.mubr.bf16.gmra.mrb[0].mxu0 %v721
      %v3759 = vpop.f32.mrb[0].mxu0
      %v3760 = vadd.f32 0.0, %v3759
      %v3761 = vpop.f32.mrb[0].mxu0
      %v3762 = vpop.f32.mrb[0].mxu0
      %v3763 = vadd.f32 0.0, %v3762
      %v3764 = vpop.f32.mrb[0].mxu0
      %3765 = vmatprep.mubr.bf16.mxu0 0
      %3766 = vmatmul.mubr.bf16.gmra.mrb[0].mxu0 %v724
      %v3767 = vpop.f32.mrb[0].mxu0
      %v3768 = vadd.f32 0.0, %v3767
      %v3769 = vpop.f32.mrb[0].mxu0
      %v3770 = vpop.f32.mrb[0].mxu0
      %v3771 = vadd.f32 0.0, %v3770
      %v3772 = vpop.f32.mrb[0].mxu0
      %3773 = vmatprep.mubr.bf16.mxu0 0
      %3774 = vmatmul.mubr.bf16.gmra.mrb[0].mxu0 %v727
      %v3775 = vpop.f32.mrb[0].mxu0
      %v3776 = vadd.f32 0.0, %v3775
      %v3777 = vpop.f32.mrb[0].mxu0
      %v3778 = vpop.f32.mrb[0].mxu0
      %v3779 = vadd.f32 0.0, %v3778
      %v3780 = vpop.f32.mrb[0].mxu0
      %3781 = vmatprep.mubr.bf16.mxu0 0
      %3782 = vmatmul.mubr.bf16.gmra.mrb[0].mxu0 %v730
      %v3783 = vpop.f32.mrb[0].mxu0
      %v3784 = vadd.f32 0.0, %v3783
      %v3785 = vpop.f32.mrb[0].mxu0
      %v3786 = vpop.f32.mrb[0].mxu0
      %v3787 = vadd.f32 0.0, %v3786
      %v3788 = vpop.f32.mrb[0].mxu0
      %3789 = vmatprep.mubr.bf16.mxu0 0
      %3790 = vmatmul.mubr.bf16.gmra.mrb[0].mxu0 %v733
      %v3791 = vpop.f32.mrb[0].mxu0
      %v3792 = vadd.f32 0.0, %v3791
      %v3793 = vpop.f32.mrb[0].mxu0
      %v3794 = vpop.f32.mrb[0].mxu0
      %v3795 = vadd.f32 0.0, %v3794
      %v3796 = vpop.f32.mrb[0].mxu0
      %3797 = vmatprep.mubr.bf16.mxu0 0
      %3798 = vmatmul.mubr.bf16.gmra.mrb[0].mxu0 %v736
      %v3799 = vpop.f32.mrb[0].mxu0
      %v3800 = vadd.f32 0.0, %v3799
      %v3801 = vpop.f32.mrb[0].mxu0
      %v3802 = vpop.f32.mrb[0].mxu0
      %v3803 = vadd.f32 0.0, %v3802
      %v3804 = vpop.f32.mrb[0].mxu0
      %3805 = vmatprep.mubr.bf16.mxu0 0
      %3806 = vmatmul.mubr.bf16.gmra.mrb[0].mxu0 %v739
      %v3807 = vpop.f32.mrb[0].mxu0
      %v3808 = vadd.f32 0.0, %v3807
      %v3809 = vpop.f32.mrb[0].mxu0
      %v3810 = vpop.f32.mrb[0].mxu0
      %v3811 = vadd.f32 0.0, %v3810
      %v3812 = vpop.f32.mrb[0].mxu0
      %3813 = vmatprep.mubr.bf16.mxu0 0
      %3814 = vmatmul.mubr.bf16.gmra.mrb[0].mxu0 %v742
      %v3815 = vpop.f32.mrb[0].mxu0
      %v3816 = vadd.f32 0.0, %v3815
      %v3817 = vpop.f32.mrb[0].mxu0
      %v3818 = vpop.f32.mrb[0].mxu0
      %v3819 = vadd.f32 0.0, %v3818
      %v3820 = vpop.f32.mrb[0].mxu0
      %3821 = vmatprep.mubr.bf16.mxu0 0
      %3822 = vmatmul.mubr.bf16.gmra.mrb[0].mxu0 %v745
      %v3823 = vpop.f32.mrb[0].mxu0
      %v3824 = vadd.f32 0.0, %v3823
      %v3825 = vpop.f32.mrb[0].mxu0
      %v3826 = vpop.f32.mrb[0].mxu0
      %v3827 = vadd.f32 0.0, %v3826
      %v3828 = vpop.f32.mrb[0].mxu0
      %3829 = vmatprep.mubr.bf16.mxu0 0
      %3830 = vmatmul.mubr.bf16.gmra.mrb[0].mxu0 %v748
      %v3831 = vpop.f32.mrb[0].mxu0
      %v3832 = vadd.f32 0.0, %v3831
      %v3833 = vpop.f32.mrb[0].mxu0
      %v3834 = vpop.f32.mrb[0].mxu0
      %v3835 = vadd.f32 0.0, %v3834
      %v3836 = vpop.f32.mrb[0].mxu0
      %3837 = vmatprep.mubr.bf16.mxu0 0
      %3838 = vmatmul.mubr.bf16.gmra.mrb[0].mxu0 %v751
      %v3839 = vpop.f32.mrb[0].mxu0
      %v3840 = vadd.f32 0.0, %v3839
      %v3841 = vpop.f32.mrb[0].mxu0
      %v3842 = vpop.f32.mrb[0].mxu0
      %v3843 = vadd.f32 0.0, %v3842
      %v3844 = vpop.f32.mrb[0].mxu0
      %3845 = vmatprep.mubr.bf16.mxu0 0
      %3846 = vmatmul.mubr.bf16.gmra.mrb[0].mxu0 %v754
      %v3847 = vpop.f32.mrb[0].mxu0
      %v3848 = vadd.f32 0.0, %v3847
      %v3849 = vpop.f32.mrb[0].mxu0
      %v3850 = vpop.f32.mrb[0].mxu0
      %v3851 = vadd.f32 0.0, %v3850
      %v3852 = vpop.f32.mrb[0].mxu0
      %3853 = vmatprep.mubr.bf16.mxu0 0
      %3854 = vmatmul.mubr.bf16.gmra.mrb[0].mxu0 %v757
      %v3855 = vpop.f32.mrb[0].mxu0
      %v3856 = vadd.f32 0.0, %v3855
      %v3857 = vpop.f32.mrb[0].mxu0
      %v3858 = vpop.f32.mrb[0].mxu0
      %v3859 = vadd.f32 0.0, %v3858
      %v3860 = vpop.f32.mrb[0].mxu0
      %3861 = vmatprep.mubr.bf16.mxu0 0
      %3862 = vmatmul.mubr.bf16.gmra.mrb[0].mxu0 %v760
      %v3863 = vpop.f32.mrb[0].mxu0
      %v3864 = vadd.f32 0.0, %v3863
      %v3865 = vpop.f32.mrb[0].mxu0
      %v3866 = vpop.f32.mrb[0].mxu0
      %v3867 = vadd.f32 0.0, %v3866
      %v3868 = vpop.f32.mrb[0].mxu0
      %3869 = vmatprep.mubr.bf16.mxu0 0
      %3870 = vmatmul.mubr.bf16.gmra.mrb[0].mxu0 %v2016
      %v3871 = vpop.f32.mrb[0].mxu0
      %v3872 = vadd.f32 0.0, %v3871
      %v3873 = vpop.f32.mrb[0].mxu0
      %v3874 = vpop.f32.mrb[0].mxu0
      %v3875 = vadd.f32 0.0, %v3874
      %v3876 = vpop.f32.mrb[0].mxu0
      %3877 = vmatprep.mubr.bf16.mxu0 0
      %3878 = vmatmul.mubr.bf16.gmra.mrb[0].mxu0 %v3522
      %v3879 = vpop.f32.mrb[0].mxu0
      %v3880 = vadd.f32 0.0, %v3879
      %v3881 = vpop.f32.mrb[0].mxu0
      %v3882 = vpop.f32.mrb[0].mxu0
      %v3883 = vadd.f32 0.0, %v3882
      %v3884 = vpop.f32.mrb[0].mxu0
      %3885 = vdwg.mxu0
      %v3886 = vadd.f32 %v3160, %v3760
      %v3887 = vadd.f32 %v3163, %v3763
      %v3888 = vadd.f32 %v3168, %v3768
      %v3889 = vadd.f32 %v3171, %v3771
      %v3890 = vadd.f32 %v3176, %v3776
      %v3891 = vadd.f32 %v3179, %v3779
      %v3892 = vadd.f32 %v3184, %v3784
      %v3893 = vadd.f32 %v3187, %v3787
      %v3894 = vadd.f32 %v3192, %v3792
      %v3895 = vadd.f32 %v3195, %v3795
      %v3896 = vadd.f32 %v3200, %v3800
      %v3897 = vadd.f32 %v3203, %v3803
      %v3898 = vadd.f32 %v3208, %v3808
      %v3899 = vadd.f32 %v3211, %v3811
      %v3900 = vadd.f32 %v3216, %v3816
      %v3901 = vadd.f32 %v3219, %v3819
      %v3902 = vadd.f32 %v3224, %v3824
      %v3903 = vadd.f32 %v3227, %v3827
      %v3904 = vadd.f32 %v3232, %v3832
      %v3905 = vadd.f32 %v3235, %v3835
      %v3906 = vadd.f32 %v3240, %v3840
      %v3907 = vadd.f32 %v3243, %v3843
      %v3908 = vadd.f32 %v3248, %v3848
      %v3909 = vadd.f32 %v3251, %v3851
      %v3910 = vadd.f32 %v3256, %v3856
      %v3911 = vadd.f32 %v3259, %v3859
      %v3912 = vadd.f32 %v3264, %v3864
      %v3913 = vadd.f32 %v3267, %v3867
      %v3914 = vadd.f32 %v3272, %v3872
      %v3915 = vadd.f32 %v3275, %v3875
      %v3916 = vadd.f32 %v3280, %v3880
      %v3917 = vadd.f32 %v3283, %v3883
      %v3919 = vrot.slane %v272, 5
      %v3920 = vrot.slane %v3919, 4
      %v3921 = vrot.slane %v273, 5
      %v3922 = vsel %vm1239, %v3920, %v3921
      %v3923 = vrot.slane %v3921, 4
      %v3924 = vrot.slane %v274, 5
      %v3925 = vsel %vm1239, %v3923, %v3924
      %s3926 = scalar_lea.vmem %s1, 30
      %v3927 = vld [vmem:[%s3926] sm:$0x3]
      %v3928 = vunpack.c.l.b16 %v3922
      %v3929 = vunpack.c.l.b16 %v3925
      %v3930 = vpack.c.b16 %v3929, %v3928
      %v3932 = vsel %vm713, %v3930, 0
      %v3935 = vsel %vm762, %v3927, 0
      %3937 = vmatprep.subr.bf16.mxu0 0
      %3938 = vmatpush1.bf16.msra.mxu0 %v3935
      %3939 = vmatprep.subr.bf16.mxu0 0
      %3940 = vmatpush1.bf16.msra.mxu0 0
      %3941 = vmatprep.subr.bf16.mxu0 0
      %3942 = vmatpush1.bf16.msra.mxu0 0
      %3943 = vmatprep.subr.bf16.mxu0 0
      %3944 = vmatpush1.bf16.msra.mxu0 0
      %3945 = vmatprep.subr.bf16.mxu0 0
      %3946 = vmatpush1.bf16.msra.mxu0 0
      %3947 = vmatprep.subr.bf16.mxu0 0
      %3948 = vmatpush1.bf16.msra.mxu0 0
      %3949 = vmatprep.subr.bf16.mxu0 0
      %3950 = vmatpush1.bf16.msra.mxu0 0
      %3951 = vmatprep.subr.bf16.mxu0 0
      %3952 = vmatpush1.bf16.msra.mxu0 0
      %3953 = vmatprep.subr.bf16.mxu0 0
      %3954 = vmatpush1.bf16.msra.mxu0 0
      %3955 = vmatprep.subr.bf16.mxu0 0
      %3956 = vmatpush1.bf16.msra.mxu0 0
      %3957 = vmatprep.subr.bf16.mxu0 0
      %3958 = vmatpush1.bf16.msra.mxu0 0
      %3959 = vmatprep.subr.bf16.mxu0 0
      %3960 = vmatpush1.bf16.msra.mxu0 0
      %3961 = vmatprep.subr.bf16.mxu0 0
      %3962 = vmatpush1.bf16.msra.mxu0 0
      %3963 = vmatprep.subr.bf16.mxu0 0
      %3964 = vmatpush1.bf16.msra.mxu0 0
      %3965 = vmatprep.subr.bf16.mxu0 0
      %3966 = vmatpush1.bf16.msra.mxu0 0
      %3967 = vmatprep.subr.bf16.mxu0 0
      %3968 = vmatpush1.bf16.msra.mxu0 0
      %3969 = vmatprep.mubr.bf16.mxu0 0
      %3970 = vmatmul.mubr.bf16.gmra.mrb[0].mxu0 %v1409
      %v3971 = vpop.f32.mrb[0].mxu0
      %v3972 = vadd.f32 0.0, %v3971
      %v3973 = vpop.f32.mrb[0].mxu0
      %v3974 = vpop.f32.mrb[0].mxu0
      %v3975 = vadd.f32 0.0, %v3974
      %v3976 = vpop.f32.mrb[0].mxu0
      %3977 = vmatprep.mubr.bf16.mxu0 0
      %3978 = vmatmul.mubr.bf16.gmra.mrb[0].mxu0 %v1412
      %v3979 = vpop.f32.mrb[0].mxu0
      %v3980 = vadd.f32 0.0, %v3979
      %v3981 = vpop.f32.mrb[0].mxu0
      %v3982 = vpop.f32.mrb[0].mxu0
      %v3983 = vadd.f32 0.0, %v3982
      %v3984 = vpop.f32.mrb[0].mxu0
      %3985 = vmatprep.mubr.bf16.mxu0 0
      %3986 = vmatmul.mubr.bf16.gmra.mrb[0].mxu0 %v1415
      %v3987 = vpop.f32.mrb[0].mxu0
      %v3988 = vadd.f32 0.0, %v3987
      %v3989 = vpop.f32.mrb[0].mxu0
      %v3990 = vpop.f32.mrb[0].mxu0
      %v3991 = vadd.f32 0.0, %v3990
      %v3992 = vpop.f32.mrb[0].mxu0
      %3993 = vmatprep.mubr.bf16.mxu0 0
      %3994 = vmatmul.mubr.bf16.gmra.mrb[0].mxu0 %v1418
      %v3995 = vpop.f32.mrb[0].mxu0
      %v3996 = vadd.f32 0.0, %v3995
      %v3997 = vpop.f32.mrb[0].mxu0
      %v3998 = vpop.f32.mrb[0].mxu0
      %v3999 = vadd.f32 0.0, %v3998
      %v4000 = vpop.f32.mrb[0].mxu0
      %4001 = vmatprep.mubr.bf16.mxu0 0
      %4002 = vmatmul.mubr.bf16.gmra.mrb[0].mxu0 %v1421
      %v4003 = vpop.f32.mrb[0].mxu0
      %v4004 = vadd.f32 0.0, %v4003
      %v4005 = vpop.f32.mrb[0].mxu0
      %v4006 = vpop.f32.mrb[0].mxu0
      %v4007 = vadd.f32 0.0, %v4006
      %v4008 = vpop.f32.mrb[0].mxu0
      %4009 = vmatprep.mubr.bf16.mxu0 0
      %4010 = vmatmul.mubr.bf16.gmra.mrb[0].mxu0 %v1424
      %v4011 = vpop.f32.mrb[0].mxu0
      %v4012 = vadd.f32 0.0, %v4011
      %v4013 = vpop.f32.mrb[0].mxu0
      %v4014 = vpop.f32.mrb[0].mxu0
      %v4015 = vadd.f32 0.0, %v4014
      %v4016 = vpop.f32.mrb[0].mxu0
      %4017 = vmatprep.mubr.bf16.mxu0 0
      %4018 = vmatmul.mubr.bf16.gmra.mrb[0].mxu0 %v1427
      %v4019 = vpop.f32.mrb[0].mxu0
      %v4020 = vadd.f32 0.0, %v4019
      %v4021 = vpop.f32.mrb[0].mxu0
      %v4022 = vpop.f32.mrb[0].mxu0
      %v4023 = vadd.f32 0.0, %v4022
      %v4024 = vpop.f32.mrb[0].mxu0
      %4025 = vmatprep.mubr.bf16.mxu0 0
      %4026 = vmatmul.mubr.bf16.gmra.mrb[0].mxu0 %v1430
      %v4027 = vpop.f32.mrb[0].mxu0
      %v4028 = vadd.f32 0.0, %v4027
      %v4029 = vpop.f32.mrb[0].mxu0
      %v4030 = vpop.f32.mrb[0].mxu0
      %v4031 = vadd.f32 0.0, %v4030
      %v4032 = vpop.f32.mrb[0].mxu0
      %4033 = vmatprep.mubr.bf16.mxu0 0
      %4034 = vmatmul.mubr.bf16.gmra.mrb[0].mxu0 %v1433
      %v4035 = vpop.f32.mrb[0].mxu0
      %v4036 = vadd.f32 0.0, %v4035
      %v4037 = vpop.f32.mrb[0].mxu0
      %v4038 = vpop.f32.mrb[0].mxu0
      %v4039 = vadd.f32 0.0, %v4038
      %v4040 = vpop.f32.mrb[0].mxu0
      %4041 = vmatprep.mubr.bf16.mxu0 0
      %4042 = vmatmul.mubr.bf16.gmra.mrb[0].mxu0 %v1436
      %v4043 = vpop.f32.mrb[0].mxu0
      %v4044 = vadd.f32 0.0, %v4043
      %v4045 = vpop.f32.mrb[0].mxu0
      %v4046 = vpop.f32.mrb[0].mxu0
      %v4047 = vadd.f32 0.0, %v4046
      %v4048 = vpop.f32.mrb[0].mxu0
      %4049 = vmatprep.mubr.bf16.mxu0 0
      %4050 = vmatmul.mubr.bf16.gmra.mrb[0].mxu0 %v1439
      %v4051 = vpop.f32.mrb[0].mxu0
      %v4052 = vadd.f32 0.0, %v4051
      %v4053 = vpop.f32.mrb[0].mxu0
      %v4054 = vpop.f32.mrb[0].mxu0
      %v4055 = vadd.f32 0.0, %v4054
      %v4056 = vpop.f32.mrb[0].mxu0
      %4057 = vmatprep.mubr.bf16.mxu0 0
      %4058 = vmatmul.mubr.bf16.gmra.mrb[0].mxu0 %v1442
      %v4059 = vpop.f32.mrb[0].mxu0
      %v4060 = vadd.f32 0.0, %v4059
      %v4061 = vpop.f32.mrb[0].mxu0
      %v4062 = vpop.f32.mrb[0].mxu0
      %v4063 = vadd.f32 0.0, %v4062
      %v4064 = vpop.f32.mrb[0].mxu0
      %4065 = vmatprep.mubr.bf16.mxu0 0
      %4066 = vmatmul.mubr.bf16.gmra.mrb[0].mxu0 %v1445
      %v4067 = vpop.f32.mrb[0].mxu0
      %v4068 = vadd.f32 0.0, %v4067
      %v4069 = vpop.f32.mrb[0].mxu0
      %v4070 = vpop.f32.mrb[0].mxu0
      %v4071 = vadd.f32 0.0, %v4070
      %v4072 = vpop.f32.mrb[0].mxu0
      %4073 = vmatprep.mubr.bf16.mxu0 0
      %4074 = vmatmul.mubr.bf16.gmra.mrb[0].mxu0 %v1448
      %v4075 = vpop.f32.mrb[0].mxu0
      %v4076 = vadd.f32 0.0, %v4075
      %v4077 = vpop.f32.mrb[0].mxu0
      %v4078 = vpop.f32.mrb[0].mxu0
      %v4079 = vadd.f32 0.0, %v4078
      %v4080 = vpop.f32.mrb[0].mxu0
      %4081 = vmatprep.mubr.bf16.mxu0 0
      %4082 = vmatmul.mubr.bf16.gmra.mrb[0].mxu0 %v2758
      %v4083 = vpop.f32.mrb[0].mxu0
      %v4084 = vadd.f32 0.0, %v4083
      %v4085 = vpop.f32.mrb[0].mxu0
      %v4086 = vpop.f32.mrb[0].mxu0
      %v4087 = vadd.f32 0.0, %v4086
      %v4088 = vpop.f32.mrb[0].mxu0
      %4089 = vmatprep.mubr.bf16.mxu0 0
      %4090 = vmatmul.mubr.bf16.gmra.mrb[0].mxu0 %v3932
      %v4091 = vpop.f32.mrb[0].mxu0
      %v4092 = vadd.f32 0.0, %v4091
      %v4093 = vpop.f32.mrb[0].mxu0
      %v4094 = vpop.f32.mrb[0].mxu0
      %v4095 = vadd.f32 0.0, %v4094
      %v4096 = vpop.f32.mrb[0].mxu0
      %4097 = vdwg.mxu0
      %v4098 = vadd.f32 %v3886, %v3972
      %v4099 = vadd.f32 %v3887, %v3975
      %v4100 = vadd.f32 %v3888, %v3980
      %v4101 = vadd.f32 %v3889, %v3983
      %v4102 = vadd.f32 %v3890, %v3988
      %v4103 = vadd.f32 %v3891, %v3991
      %v4104 = vadd.f32 %v3892, %v3996
      %v4105 = vadd.f32 %v3893, %v3999
      %v4106 = vadd.f32 %v3894, %v4004
      %v4107 = vadd.f32 %v3895, %v4007
      %v4108 = vadd.f32 %v3896, %v4012
      %v4109 = vadd.f32 %v3897, %v4015
      %v4110 = vadd.f32 %v3898, %v4020
      %v4111 = vadd.f32 %v3899, %v4023
      %v4112 = vadd.f32 %v3900, %v4028
      %v4113 = vadd.f32 %v3901, %v4031
      %v4114 = vadd.f32 %v3902, %v4036
      %v4115 = vadd.f32 %v3903, %v4039
      %v4116 = vadd.f32 %v3904, %v4044
      %v4117 = vadd.f32 %v3905, %v4047
      %v4118 = vadd.f32 %v3906, %v4052
      %v4119 = vadd.f32 %v3907, %v4055
      %v4120 = vadd.f32 %v3908, %v4060
      %v4121 = vadd.f32 %v3909, %v4063
      %v4122 = vadd.f32 %v3910, %v4068
      %v4123 = vadd.f32 %v3911, %v4071
      %v4124 = vadd.f32 %v3912, %v4076
      %v4125 = vadd.f32 %v3913, %v4079
      %v4126 = vadd.f32 %v3914, %v4084
      %v4127 = vadd.f32 %v3915, %v4087
      %v4128 = vadd.f32 %v3916, %v4092
      %v4129 = vadd.f32 %v3917, %v4095
      %v4130 = vld [vmem:[%s2] sm:$0x1]
      %v4131 = vld [vmem:[%s3] sm:$0x1]
      %v4133 = vlaneseq
      %v4134 = vshrl.u32 %v4133, 7
      %v4135 = vsub.s32 0, %v4134
      %v4136 = vrot.slane %v4130, %v4135
      %v4138 = vmul.f32 %v2182, %v4136
      %v4139 = vmul.f32 %v2183, %v4136
      %v4140 = vmul.f32 %v2184, %v4136
      %v4141 = vmul.f32 %v2185, %v4136
      %v4142 = vmul.f32 %v2186, %v4136
      %v4143 = vmul.f32 %v2187, %v4136
      %v4144 = vmul.f32 %v2188, %v4136
      %v4145 = vmul.f32 %v2189, %v4136
      %v4146 = vmul.f32 %v2190, %v4136
      %v4147 = vmul.f32 %v2191, %v4136
      %v4148 = vmul.f32 %v2192, %v4136
      %v4149 = vmul.f32 %v2193, %v4136
      %v4150 = vmul.f32 %v2194, %v4136
      %v4151 = vmul.f32 %v2195, %v4136
      %v4152 = vmul.f32 %v2196, %v4136
      %v4153 = vmul.f32 %v2197, %v4136
      %v4154 = vmul.f32 %v2198, %v4136
      %v4155 = vmul.f32 %v2199, %v4136
      %v4156 = vmul.f32 %v2200, %v4136
      %v4157 = vmul.f32 %v2201, %v4136
      %v4158 = vmul.f32 %v2202, %v4136
      %v4159 = vmul.f32 %v2203, %v4136
      %v4160 = vmul.f32 %v2204, %v4136
      %v4161 = vmul.f32 %v2205, %v4136
      %v4162 = vmul.f32 %v2206, %v4136
      %v4163 = vmul.f32 %v2207, %v4136
      %v4164 = vmul.f32 %v2208, %v4136
      %v4165 = vmul.f32 %v2209, %v4136
      %v4166 = vmul.f32 %v2210, %v4136
      %v4167 = vmul.f32 %v2211, %v4136
      %v4168 = vmul.f32 %v2212, %v4136
      %v4169 = vmul.f32 %v2213, %v4136
      %v4171 = vlaneseq
      %v4172 = vshrl.u32 %v4171, 7
      %v4173 = vsub.s32 0, %v4172
      %v4174 = vrot.slane %v4131, %v4173
      %v4176 = vadd.f32 %v4138, %v4174
      %v4177 = vadd.f32 %v4139, %v4174
      %v4178 = vadd.f32 %v4140, %v4174
      %v4179 = vadd.f32 %v4141, %v4174
      %v4180 = vadd.f32 %v4142, %v4174
      %v4181 = vadd.f32 %v4143, %v4174
      %v4182 = vadd.f32 %v4144, %v4174
      %v4183 = vadd.f32 %v4145, %v4174
      %v4184 = vadd.f32 %v4146, %v4174
      %v4185 = vadd.f32 %v4147, %v4174
      %v4186 = vadd.f32 %v4148, %v4174
      %v4187 = vadd.f32 %v4149, %v4174
      %v4188 = vadd.f32 %v4150, %v4174
      %v4189 = vadd.f32 %v4151, %v4174
      %v4190 = vadd.f32 %v4152, %v4174
      %v4191 = vadd.f32 %v4153, %v4174
      %v4192 = vadd.f32 %v4154, %v4174
      %v4193 = vadd.f32 %v4155, %v4174
      %v4194 = vadd.f32 %v4156, %v4174
      %v4195 = vadd.f32 %v4157, %v4174
      %v4196 = vadd.f32 %v4158, %v4174
      %v4197 = vadd.f32 %v4159, %v4174
      %v4198 = vadd.f32 %v4160, %v4174
      %v4199 = vadd.f32 %v4161, %v4174
      %v4200 = vadd.f32 %v4162, %v4174
      %v4201 = vadd.f32 %v4163, %v4174
      %v4202 = vadd.f32 %v4164, %v4174
      %v4203 = vadd.f32 %v4165, %v4174
      %v4204 = vadd.f32 %v4166, %v4174
      %v4205 = vadd.f32 %v4167, %v4174
      %v4206 = vadd.f32 %v4168, %v4174
      %v4207 = vadd.f32 %v4169, %v4174
      %v4208 = vmax.f32 %v4176, 0.0
      %v4209 = vmax.f32 %v4177, 0.0
      %v4210 = vmax.f32 %v4178, 0.0
      %v4211 = vmax.f32 %v4179, 0.0
      %v4212 = vmax.f32 %v4180, 0.0
      %v4213 = vmax.f32 %v4181, 0.0
      %v4214 = vmax.f32 %v4182, 0.0
      %v4215 = vmax.f32 %v4183, 0.0
      %v4216 = vmax.f32 %v4184, 0.0
      %v4217 = vmax.f32 %v4185, 0.0
      %v4218 = vmax.f32 %v4186, 0.0
      %v4219 = vmax.f32 %v4187, 0.0
      %v4220 = vmax.f32 %v4188, 0.0
      %v4221 = vmax.f32 %v4189, 0.0
      %v4222 = vmax.f32 %v4190, 0.0
      %v4223 = vmax.f32 %v4191, 0.0
      %v4224 = vmax.f32 %v4192, 0.0
      %v4225 = vmax.f32 %v4193, 0.0
      %v4226 = vmax.f32 %v4194, 0.0
      %v4227 = vmax.f32 %v4195, 0.0
      %v4228 = vmax.f32 %v4196, 0.0
      %v4229 = vmax.f32 %v4197, 0.0
      %v4230 = vmax.f32 %v4198, 0.0
      %v4231 = vmax.f32 %v4199, 0.0
      %v4232 = vmax.f32 %v4200, 0.0
      %v4233 = vmax.f32 %v4201, 0.0
      %v4234 = vmax.f32 %v4202, 0.0
      %v4235 = vmax.f32 %v4203, 0.0
      %v4236 = vmax.f32 %v4204, 0.0
      %v4237 = vmax.f32 %v4205, 0.0
      %v4238 = vmax.f32 %v4206, 0.0
      %v4239 = vmax.f32 %v4207, 0.0
      %v4240 = vmul.f32 %v2924, %v4136
      %v4241 = vmul.f32 %v2925, %v4136
      %v4242 = vmul.f32 %v2926, %v4136
      %v4243 = vmul.f32 %v2927, %v4136
      %v4244 = vmul.f32 %v2928, %v4136
      %v4245 = vmul.f32 %v2929, %v4136
      %v4246 = vmul.f32 %v2930, %v4136
      %v4247 = vmul.f32 %v2931, %v4136
      %v4248 = vmul.f32 %v2932, %v4136
      %v4249 = vmul.f32 %v2933, %v4136
      %v4250 = vmul.f32 %v2934, %v4136
      %v4251 = vmul.f32 %v2935, %v4136
      %v4252 = vmul.f32 %v2936, %v4136
      %v4253 = vmul.f32 %v2937, %v4136
      %v4254 = vmul.f32 %v2938, %v4136
      %v4255 = vmul.f32 %v2939, %v4136
      %v4256 = vmul.f32 %v2940, %v4136
      %v4257 = vmul.f32 %v2941, %v4136
      %v4258 = vmul.f32 %v2942, %v4136
      %v4259 = vmul.f32 %v2943, %v4136
      %v4260 = vmul.f32 %v2944, %v4136
      %v4261 = vmul.f32 %v2945, %v4136
      %v4262 = vmul.f32 %v2946, %v4136
      %v4263 = vmul.f32 %v2947, %v4136
      %v4264 = vmul.f32 %v2948, %v4136
      %v4265 = vmul.f32 %v2949, %v4136
      %v4266 = vmul.f32 %v2950, %v4136
      %v4267 = vmul.f32 %v2951, %v4136
      %v4268 = vmul.f32 %v2952, %v4136
      %v4269 = vmul.f32 %v2953, %v4136
      %v4270 = vmul.f32 %v2954, %v4136
      %v4271 = vmul.f32 %v2955, %v4136
      %v4272 = vadd.f32 %v4240, %v4174
      %v4273 = vadd.f32 %v4241, %v4174
      %v4274 = vadd.f32 %v4242, %v4174
      %v4275 = vadd.f32 %v4243, %v4174
      %v4276 = vadd.f32 %v4244, %v4174
      %v4277 = vadd.f32 %v4245, %v4174
      %v4278 = vadd.f32 %v4246, %v4174
      %v4279 = vadd.f32 %v4247, %v4174
      %v4280 = vadd.f32 %v4248, %v4174
      %v4281 = vadd.f32 %v4249, %v4174
      %v4282 = vadd.f32 %v4250, %v4174
      %v4283 = vadd.f32 %v4251, %v4174
      %v4284 = vadd.f32 %v4252, %v4174
      %v4285 = vadd.f32 %v4253, %v4174
      %v4286 = vadd.f32 %v4254, %v4174
      %v4287 = vadd.f32 %v4255, %v4174
      %v4288 = vadd.f32 %v4256, %v4174
      %v4289 = vadd.f32 %v4257, %v4174
      %v4290 = vadd.f32 %v4258, %v4174
      %v4291 = vadd.f32 %v4259, %v4174
      %v4292 = vadd.f32 %v4260, %v4174
      %v4293 = vadd.f32 %v4261, %v4174
      %v4294 = vadd.f32 %v4262, %v4174
      %v4295 = vadd.f32 %v4263, %v4174
      %v4296 = vadd.f32 %v4264, %v4174
      %v4297 = vadd.f32 %v4265, %v4174
      %v4298 = vadd.f32 %v4266, %v4174
      %v4299 = vadd.f32 %v4267, %v4174
      %v4300 = vadd.f32 %v4268, %v4174
      %v4301 = vadd.f32 %v4269, %v4174
      %v4302 = vadd.f32 %v4270, %v4174
      %v4303 = vadd.f32 %v4271, %v4174
      %v4304 = vmax.f32 %v4272, 0.0
      %v4305 = vmax.f32 %v4273, 0.0
      %v4306 = vmax.f32 %v4274, 0.0
      %v4307 = vmax.f32 %v4275, 0.0
      %v4308 = vmax.f32 %v4276, 0.0
      %v4309 = vmax.f32 %v4277, 0.0
      %v4310 = vmax.f32 %v4278, 0.0
      %v4311 = vmax.f32 %v4279, 0.0
      %v4312 = vmax.f32 %v4280, 0.0
      %v4313 = vmax.f32 %v4281, 0.0
      %v4314 = vmax.f32 %v4282, 0.0
      %v4315 = vmax.f32 %v4283, 0.0
      %v4316 = vmax.f32 %v4284, 0.0
      %v4317 = vmax.f32 %v4285, 0.0
      %v4318 = vmax.f32 %v4286, 0.0
      %v4319 = vmax.f32 %v4287, 0.0
      %v4320 = vmax.f32 %v4288, 0.0
      %v4321 = vmax.f32 %v4289, 0.0
      %v4322 = vmax.f32 %v4290, 0.0
      %v4323 = vmax.f32 %v4291, 0.0
      %v4324 = vmax.f32 %v4292, 0.0
      %v4325 = vmax.f32 %v4293, 0.0
      %v4326 = vmax.f32 %v4294, 0.0
      %v4327 = vmax.f32 %v4295, 0.0
      %v4328 = vmax.f32 %v4296, 0.0
      %v4329 = vmax.f32 %v4297, 0.0
      %v4330 = vmax.f32 %v4298, 0.0
      %v4331 = vmax.f32 %v4299, 0.0
      %v4332 = vmax.f32 %v4300, 0.0
      %v4333 = vmax.f32 %v4301, 0.0
      %v4334 = vmax.f32 %v4302, 0.0
      %v4335 = vmax.f32 %v4303, 0.0
      %v4336 = vmul.f32 %v3688, %v4136
      %v4337 = vmul.f32 %v3689, %v4136
      %v4338 = vmul.f32 %v3690, %v4136
      %v4339 = vmul.f32 %v3691, %v4136
      %v4340 = vmul.f32 %v3692, %v4136
      %v4341 = vmul.f32 %v3693, %v4136
      %v4342 = vmul.f32 %v3694, %v4136
      %v4343 = vmul.f32 %v3695, %v4136
      %v4344 = vmul.f32 %v3696, %v4136
      %v4345 = vmul.f32 %v3697, %v4136
      %v4346 = vmul.f32 %v3698, %v4136
      %v4347 = vmul.f32 %v3699, %v4136
      %v4348 = vmul.f32 %v3700, %v4136
      %v4349 = vmul.f32 %v3701, %v4136
      %v4350 = vmul.f32 %v3702, %v4136
      %v4351 = vmul.f32 %v3703, %v4136
      %v4352 = vmul.f32 %v3704, %v4136
      %v4353 = vmul.f32 %v3705, %v4136
      %v4354 = vmul.f32 %v3706, %v4136
      %v4355 = vmul.f32 %v3707, %v4136
      %v4356 = vmul.f32 %v3708, %v4136
      %v4357 = vmul.f32 %v3709, %v4136
      %v4358 = vmul.f32 %v3710, %v4136
      %v4359 = vmul.f32 %v3711, %v4136
      %v4360 = vmul.f32 %v3712, %v4136
      %v4361 = vmul.f32 %v3713, %v4136
      %v4362 = vmul.f32 %v3714, %v4136
      %v4363 = vmul.f32 %v3715, %v4136
      %v4364 = vmul.f32 %v3716, %v4136
      %v4365 = vmul.f32 %v3717, %v4136
      %v4366 = vmul.f32 %v3718, %v4136
      %v4367 = vmul.f32 %v3719, %v4136
      %v4368 = vadd.f32 %v4336, %v4174
      %v4369 = vadd.f32 %v4337, %v4174
      %v4370 = vadd.f32 %v4338, %v4174
      %v4371 = vadd.f32 %v4339, %v4174
      %v4372 = vadd.f32 %v4340, %v4174
      %v4373 = vadd.f32 %v4341, %v4174
      %v4374 = vadd.f32 %v4342, %v4174
      %v4375 = vadd.f32 %v4343, %v4174
      %v4376 = vadd.f32 %v4344, %v4174
      %v4377 = vadd.f32 %v4345, %v4174
      %v4378 = vadd.f32 %v4346, %v4174
      %v4379 = vadd.f32 %v4347, %v4174
      %v4380 = vadd.f32 %v4348, %v4174
      %v4381 = vadd.f32 %v4349, %v4174
      %v4382 = vadd.f32 %v4350, %v4174
      %v4383 = vadd.f32 %v4351, %v4174
      %v4384 = vadd.f32 %v4352, %v4174
      %v4385 = vadd.f32 %v4353, %v4174
      %v4386 = vadd.f32 %v4354, %v4174
      %v4387 = vadd.f32 %v4355, %v4174
      %v4388 = vadd.f32 %v4356, %v4174
      %v4389 = vadd.f32 %v4357, %v4174
      %v4390 = vadd.f32 %v4358, %v4174
      %v4391 = vadd.f32 %v4359, %v4174
      %v4392 = vadd.f32 %v4360, %v4174
      %v4393 = vadd.f32 %v4361, %v4174
      %v4394 = vadd.f32 %v4362, %v4174
      %v4395 = vadd.f32 %v4363, %v4174
      %v4396 = vadd.f32 %v4364, %v4174
      %v4397 = vadd.f32 %v4365, %v4174
      %v4398 = vadd.f32 %v4366, %v4174
      %v4399 = vadd.f32 %v4367, %v4174
      %v4400 = vmax.f32 %v4368, 0.0
      %v4401 = vmax.f32 %v4369, 0.0
      %v4402 = vmax.f32 %v4370, 0.0
      %v4403 = vmax.f32 %v4371, 0.0
      %v4404 = vmax.f32 %v4372, 0.0
      %v4405 = vmax.f32 %v4373, 0.0
      %v4406 = vmax.f32 %v4374, 0.0
      %v4407 = vmax.f32 %v4375, 0.0
      %v4408 = vmax.f32 %v4376, 0.0
      %v4409 = vmax.f32 %v4377, 0.0
      %v4410 = vmax.f32 %v4378, 0.0
      %v4411 = vmax.f32 %v4379, 0.0
      %v4412 = vmax.f32 %v4380, 0.0
      %v4413 = vmax.f32 %v4381, 0.0
      %v4414 = vmax.f32 %v4382, 0.0
      %v4415 = vmax.f32 %v4383, 0.0
      %v4416 = vmax.f32 %v4384, 0.0
      %v4417 = vmax.f32 %v4385, 0.0
      %v4418 = vmax.f32 %v4386, 0.0
      %v4419 = vmax.f32 %v4387, 0.0
      %v4420 = vmax.f32 %v4388, 0.0
      %v4421 = vmax.f32 %v4389, 0.0
      %v4422 = vmax.f32 %v4390, 0.0
      %v4423 = vmax.f32 %v4391, 0.0
      %v4424 = vmax.f32 %v4392, 0.0
      %v4425 = vmax.f32 %v4393, 0.0
      %v4426 = vmax.f32 %v4394, 0.0
      %v4427 = vmax.f32 %v4395, 0.0
      %v4428 = vmax.f32 %v4396, 0.0
      %v4429 = vmax.f32 %v4397, 0.0
      %v4430 = vmax.f32 %v4398, 0.0
      %v4431 = vmax.f32 %v4399, 0.0
      %v4432 = vmul.f32 %v4098, %v4136
      %v4433 = vmul.f32 %v4099, %v4136
      %v4434 = vmul.f32 %v4100, %v4136
      %v4435 = vmul.f32 %v4101, %v4136
      %v4436 = vmul.f32 %v4102, %v4136
      %v4437 = vmul.f32 %v4103, %v4136
      %v4438 = vmul.f32 %v4104, %v4136
      %v4439 = vmul.f32 %v4105, %v4136
      %v4440 = vmul.f32 %v4106, %v4136
      %v4441 = vmul.f32 %v4107, %v4136
      %v4442 = vmul.f32 %v4108, %v4136
      %v4443 = vmul.f32 %v4109, %v4136
      %v4444 = vmul.f32 %v4110, %v4136
      %v4445 = vmul.f32 %v4111, %v4136
      %v4446 = vmul.f32 %v4112, %v4136
      %v4447 = vmul.f32 %v4113, %v4136
      %v4448 = vmul.f32 %v4114, %v4136
      %v4449 = vmul.f32 %v4115, %v4136
      %v4450 = vmul.f32 %v4116, %v4136
      %v4451 = vmul.f32 %v4117, %v4136
      %v4452 = vmul.f32 %v4118, %v4136
      %v4453 = vmul.f32 %v4119, %v4136
      %v4454 = vmul.f32 %v4120, %v4136
      %v4455 = vmul.f32 %v4121, %v4136
      %v4456 = vmul.f32 %v4122, %v4136
      %v4457 = vmul.f32 %v4123, %v4136
      %v4458 = vmul.f32 %v4124, %v4136
      %v4459 = vmul.f32 %v4125, %v4136
      %v4460 = vmul.f32 %v4126, %v4136
      %v4461 = vmul.f32 %v4127, %v4136
      %v4462 = vmul.f32 %v4128, %v4136
      %v4463 = vmul.f32 %v4129, %v4136
      %v4464 = vadd.f32 %v4432, %v4174
      %v4465 = vadd.f32 %v4433, %v4174
      %v4466 = vadd.f32 %v4434, %v4174
      %v4467 = vadd.f32 %v4435, %v4174
      %v4468 = vadd.f32 %v4436, %v4174
      %v4469 = vadd.f32 %v4437, %v4174
      %v4470 = vadd.f32 %v4438, %v4174
      %v4471 = vadd.f32 %v4439, %v4174
      %v4472 = vadd.f32 %v4440, %v4174
      %v4473 = vadd.f32 %v4441, %v4174
      %v4474 = vadd.f32 %v4442, %v4174
      %v4475 = vadd.f32 %v4443, %v4174
      %v4476 = vadd.f32 %v4444, %v4174
      %v4477 = vadd.f32 %v4445, %v4174
      %v4478 = vadd.f32 %v4446, %v4174
      %v4479 = vadd.f32 %v4447, %v4174
      %v4480 = vadd.f32 %v4448, %v4174
      %v4481 = vadd.f32 %v4449, %v4174
      %v4482 = vadd.f32 %v4450, %v4174
      %v4483 = vadd.f32 %v4451, %v4174
      %v4484 = vadd.f32 %v4452, %v4174
      %v4485 = vadd.f32 %v4453, %v4174
      %v4486 = vadd.f32 %v4454, %v4174
      %v4487 = vadd.f32 %v4455, %v4174
      %v4488 = vadd.f32 %v4456, %v4174
      %v4489 = vadd.f32 %v4457, %v4174
      %v4490 = vadd.f32 %v4458, %v4174
      %v4491 = vadd.f32 %v4459, %v4174
      %v4492 = vadd.f32 %v4460, %v4174
      %v4493 = vadd.f32 %v4461, %v4174
      %v4494 = vadd.f32 %v4462, %v4174
      %v4495 = vadd.f32 %v4463, %v4174
      %v4496 = vmax.f32 %v4464, 0.0
      %v4497 = vmax.f32 %v4465, 0.0
      %v4498 = vmax.f32 %v4466, 0.0
      %v4499 = vmax.f32 %v4467, 0.0
      %v4500 = vmax.f32 %v4468, 0.0
      %v4501 = vmax.f32 %v4469, 0.0
      %v4502 = vmax.f32 %v4470, 0.0
      %v4503 = vmax.f32 %v4471, 0.0
      %v4504 = vmax.f32 %v4472, 0.0
      %v4505 = vmax.f32 %v4473, 0.0
      %v4506 = vmax.f32 %v4474, 0.0
      %v4507 = vmax.f32 %v4475, 0.0
      %v4508 = vmax.f32 %v4476, 0.0
      %v4509 = vmax.f32 %v4477, 0.0
      %v4510 = vmax.f32 %v4478, 0.0
      %v4511 = vmax.f32 %v4479, 0.0
      %v4512 = vmax.f32 %v4480, 0.0
      %v4513 = vmax.f32 %v4481, 0.0
      %v4514 = vmax.f32 %v4482, 0.0
      %v4515 = vmax.f32 %v4483, 0.0
      %v4516 = vmax.f32 %v4484, 0.0
      %v4517 = vmax.f32 %v4485, 0.0
      %v4518 = vmax.f32 %v4486, 0.0
      %v4519 = vmax.f32 %v4487, 0.0
      %v4520 = vmax.f32 %v4488, 0.0
      %v4521 = vmax.f32 %v4489, 0.0
      %v4522 = vmax.f32 %v4490, 0.0
      %v4523 = vmax.f32 %v4491, 0.0
      %v4524 = vmax.f32 %v4492, 0.0
      %v4525 = vmax.f32 %v4493, 0.0
      %v4526 = vmax.f32 %v4494, 0.0
      %v4527 = vmax.f32 %v4495, 0.0
      %4560 = vrot.lane.b32.xlu0 %v4304, 32
      %v4561 = vpop.permute.xlu0 %4560
      %4562 = vrot.lane.b32.xlu0 %v4305, 32
      %v4563 = vpop.permute.xlu0 %4562
      %4564 = vrot.lane.b32.xlu0 %v4306, 32
      %v4565 = vpop.permute.xlu0 %4564
      %4566 = vrot.lane.b32.xlu0 %v4307, 32
      %v4567 = vpop.permute.xlu0 %4566
      %4568 = vrot.lane.b32.xlu0 %v4308, 32
      %v4569 = vpop.permute.xlu0 %4568
      %4570 = vrot.lane.b32.xlu0 %v4309, 32
      %v4571 = vpop.permute.xlu0 %4570
      %4572 = vrot.lane.b32.xlu0 %v4310, 32
      %v4573 = vpop.permute.xlu0 %4572
      %4574 = vrot.lane.b32.xlu0 %v4311, 32
      %v4575 = vpop.permute.xlu0 %4574
      %4576 = vrot.lane.b32.xlu0 %v4312, 32
      %v4577 = vpop.permute.xlu0 %4576
      %4578 = vrot.lane.b32.xlu0 %v4313, 32
      %v4579 = vpop.permute.xlu0 %4578
      %4580 = vrot.lane.b32.xlu0 %v4314, 32
      %v4581 = vpop.permute.xlu0 %4580
      %4582 = vrot.lane.b32.xlu0 %v4315, 32
      %v4583 = vpop.permute.xlu0 %4582
      %4584 = vrot.lane.b32.xlu0 %v4316, 32
      %v4585 = vpop.permute.xlu0 %4584
      %4586 = vrot.lane.b32.xlu0 %v4317, 32
      %v4587 = vpop.permute.xlu0 %4586
      %4588 = vrot.lane.b32.xlu0 %v4318, 32
      %v4589 = vpop.permute.xlu0 %4588
      %4590 = vrot.lane.b32.xlu0 %v4319, 32
      %v4591 = vpop.permute.xlu0 %4590
      %4592 = vrot.lane.b32.xlu0 %v4320, 32
      %v4593 = vpop.permute.xlu0 %4592
      %4594 = vrot.lane.b32.xlu0 %v4321, 32
      %v4595 = vpop.permute.xlu0 %4594
      %4596 = vrot.lane.b32.xlu0 %v4322, 32
      %v4597 = vpop.permute.xlu0 %4596
      %4598 = vrot.lane.b32.xlu0 %v4323, 32
      %v4599 = vpop.permute.xlu0 %4598
      %4600 = vrot.lane.b32.xlu0 %v4324, 32
      %v4601 = vpop.permute.xlu0 %4600
      %4602 = vrot.lane.b32.xlu0 %v4325, 32
      %v4603 = vpop.permute.xlu0 %4602
      %4604 = vrot.lane.b32.xlu0 %v4326, 32
      %v4605 = vpop.permute.xlu0 %4604
      %4606 = vrot.lane.b32.xlu0 %v4327, 32
      %v4607 = vpop.permute.xlu0 %4606
      %4608 = vrot.lane.b32.xlu0 %v4328, 32
      %v4609 = vpop.permute.xlu0 %4608
      %4610 = vrot.lane.b32.xlu0 %v4329, 32
      %v4611 = vpop.permute.xlu0 %4610
      %4612 = vrot.lane.b32.xlu0 %v4330, 32
      %v4613 = vpop.permute.xlu0 %4612
      %4614 = vrot.lane.b32.xlu0 %v4331, 32
      %v4615 = vpop.permute.xlu0 %4614
      %4616 = vrot.lane.b32.xlu0 %v4332, 32
      %v4617 = vpop.permute.xlu0 %4616
      %4618 = vrot.lane.b32.xlu0 %v4333, 32
      %v4619 = vpop.permute.xlu0 %4618
      %4620 = vrot.lane.b32.xlu0 %v4334, 32
      %v4621 = vpop.permute.xlu0 %4620
      %4622 = vrot.lane.b32.xlu0 %v4335, 32
      %v4623 = vpop.permute.xlu0 %4622
      %4688 = vrot.lane.b32.xlu0 %v4400, 64
      %v4689 = vpop.permute.xlu0 %4688
      %4690 = vrot.lane.b32.xlu0 %v4401, 64
      %v4691 = vpop.permute.xlu0 %4690
      %4692 = vrot.lane.b32.xlu0 %v4402, 64
      %v4693 = vpop.permute.xlu0 %4692
      %4694 = vrot.lane.b32.xlu0 %v4403, 64
      %v4695 = vpop.permute.xlu0 %4694
      %4696 = vrot.lane.b32.xlu0 %v4404, 64
      %v4697 = vpop.permute.xlu0 %4696
      %4698 = vrot.lane.b32.xlu0 %v4405, 64
      %v4699 = vpop.permute.xlu0 %4698
      %4700 = vrot.lane.b32.xlu0 %v4406, 64
      %v4701 = vpop.permute.xlu0 %4700
      %4702 = vrot.lane.b32.xlu0 %v4407, 64
      %v4703 = vpop.permute.xlu0 %4702
      %4704 = vrot.lane.b32.xlu0 %v4408, 64
      %v4705 = vpop.permute.xlu0 %4704
      %4706 = vrot.lane.b32.xlu0 %v4409, 64
      %v4707 = vpop.permute.xlu0 %4706
      %4708 = vrot.lane.b32.xlu0 %v4410, 64
      %v4709 = vpop.permute.xlu0 %4708
      %4710 = vrot.lane.b32.xlu0 %v4411, 64
      %v4711 = vpop.permute.xlu0 %4710
      %4712 = vrot.lane.b32.xlu0 %v4412, 64
      %v4713 = vpop.permute.xlu0 %4712
      %4714 = vrot.lane.b32.xlu0 %v4413, 64
      %v4715 = vpop.permute.xlu0 %4714
      %4716 = vrot.lane.b32.xlu0 %v4414, 64
      %v4717 = vpop.permute.xlu0 %4716
      %4718 = vrot.lane.b32.xlu0 %v4415, 64
      %v4719 = vpop.permute.xlu0 %4718
      %4720 = vrot.lane.b32.xlu0 %v4416, 64
      %v4721 = vpop.permute.xlu0 %4720
      %4722 = vrot.lane.b32.xlu0 %v4417, 64
      %v4723 = vpop.permute.xlu0 %4722
      %4724 = vrot.lane.b32.xlu0 %v4418, 64
      %v4725 = vpop.permute.xlu0 %4724
      %4726 = vrot.lane.b32.xlu0 %v4419, 64
      %v4727 = vpop.permute.xlu0 %4726
      %4728 = vrot.lane.b32.xlu0 %v4420, 64
      %v4729 = vpop.permute.xlu0 %4728
      %4730 = vrot.lane.b32.xlu0 %v4421, 64
      %v4731 = vpop.permute.xlu0 %4730
      %4732 = vrot.lane.b32.xlu0 %v4422, 64
      %v4733 = vpop.permute.xlu0 %4732
      %4734 = vrot.lane.b32.xlu0 %v4423, 64
      %v4735 = vpop.permute.xlu0 %4734
      %4736 = vrot.lane.b32.xlu0 %v4424, 64
      %v4737 = vpop.permute.xlu0 %4736
      %4738 = vrot.lane.b32.xlu0 %v4425, 64
      %v4739 = vpop.permute.xlu0 %4738
      %4740 = vrot.lane.b32.xlu0 %v4426, 64
      %v4741 = vpop.permute.xlu0 %4740
      %4742 = vrot.lane.b32.xlu0 %v4427, 64
      %v4743 = vpop.permute.xlu0 %4742
      %4744 = vrot.lane.b32.xlu0 %v4428, 64
      %v4745 = vpop.permute.xlu0 %4744
      %4746 = vrot.lane.b32.xlu0 %v4429, 64
      %v4747 = vpop.permute.xlu0 %4746
      %4748 = vrot.lane.b32.xlu0 %v4430, 64
      %v4749 = vpop.permute.xlu0 %4748
      %4750 = vrot.lane.b32.xlu0 %v4431, 64
      %v4751 = vpop.permute.xlu0 %4750
      %4816 = vrot.lane.b32.xlu0 %v4496, 96
      %v4817 = vpop.permute.xlu0 %4816
      %4818 = vrot.lane.b32.xlu0 %v4497, 96
      %v4819 = vpop.permute.xlu0 %4818
      %4820 = vrot.lane.b32.xlu0 %v4498, 96
      %v4821 = vpop.permute.xlu0 %4820
      %4822 = vrot.lane.b32.xlu0 %v4499, 96
      %v4823 = vpop.permute.xlu0 %4822
      %4824 = vrot.lane.b32.xlu0 %v4500, 96
      %v4825 = vpop.permute.xlu0 %4824
      %4826 = vrot.lane.b32.xlu0 %v4501, 96
      %v4827 = vpop.permute.xlu0 %4826
      %4828 = vrot.lane.b32.xlu0 %v4502, 96
      %v4829 = vpop.permute.xlu0 %4828
      %4830 = vrot.lane.b32.xlu0 %v4503, 96
      %v4831 = vpop.permute.xlu0 %4830
      %4832 = vrot.lane.b32.xlu0 %v4504, 96
      %v4833 = vpop.permute.xlu0 %4832
      %4834 = vrot.lane.b32.xlu0 %v4505, 96
      %v4835 = vpop.permute.xlu0 %4834
      %4836 = vrot.lane.b32.xlu0 %v4506, 96
      %v4837 = vpop.permute.xlu0 %4836
      %4838 = vrot.lane.b32.xlu0 %v4507, 96
      %v4839 = vpop.permute.xlu0 %4838
      %4840 = vrot.lane.b32.xlu0 %v4508, 96
      %v4841 = vpop.permute.xlu0 %4840
      %4842 = vrot.lane.b32.xlu0 %v4509, 96
      %v4843 = vpop.permute.xlu0 %4842
      %4844 = vrot.lane.b32.xlu0 %v4510, 96
      %v4845 = vpop.permute.xlu0 %4844
      %4846 = vrot.lane.b32.xlu0 %v4511, 96
      %v4847 = vpop.permute.xlu0 %4846
      %4848 = vrot.lane.b32.xlu0 %v4512, 96
      %v4849 = vpop.permute.xlu0 %4848
      %4850 = vrot.lane.b32.xlu0 %v4513, 96
      %v4851 = vpop.permute.xlu0 %4850
      %4852 = vrot.lane.b32.xlu0 %v4514, 96
      %v4853 = vpop.permute.xlu0 %4852
      %4854 = vrot.lane.b32.xlu0 %v4515, 96
      %v4855 = vpop.permute.xlu0 %4854
      %4856 = vrot.lane.b32.xlu0 %v4516, 96
      %v4857 = vpop.permute.xlu0 %4856
      %4858 = vrot.lane.b32.xlu0 %v4517, 96
      %v4859 = vpop.permute.xlu0 %4858
      %4860 = vrot.lane.b32.xlu0 %v4518, 96
      %v4861 = vpop.permute.xlu0 %4860
      %4862 = vrot.lane.b32.xlu0 %v4519, 96
      %v4863 = vpop.permute.xlu0 %4862
      %4864 = vrot.lane.b32.xlu0 %v4520, 96
      %v4865 = vpop.permute.xlu0 %4864
      %4866 = vrot.lane.b32.xlu0 %v4521, 96
      %v4867 = vpop.permute.xlu0 %4866
      %4868 = vrot.lane.b32.xlu0 %v4522, 96
      %v4869 = vpop.permute.xlu0 %4868
      %4870 = vrot.lane.b32.xlu0 %v4523, 96
      %v4871 = vpop.permute.xlu0 %4870
      %4872 = vrot.lane.b32.xlu0 %v4524, 96
      %v4873 = vpop.permute.xlu0 %4872
      %4874 = vrot.lane.b32.xlu0 %v4525, 96
      %v4875 = vpop.permute.xlu0 %4874
      %4876 = vrot.lane.b32.xlu0 %v4526, 96
      %v4877 = vpop.permute.xlu0 %4876
      %4878 = vrot.lane.b32.xlu0 %v4527, 96
      %v4879 = vpop.permute.xlu0 %4878
      %vm4912 = vcmask 261120
      %v4913 = vsel %vm4912, %v4208, %v4561
      %v4914 = vsel %vm4912, %v4209, %v4563
      %v4915 = vsel %vm4912, %v4210, %v4565
      %v4916 = vsel %vm4912, %v4211, %v4567
      %v4917 = vsel %vm4912, %v4212, %v4569
      %v4918 = vsel %vm4912, %v4213, %v4571
      %v4919 = vsel %vm4912, %v4214, %v4573
      %v4920 = vsel %vm4912, %v4215, %v4575
      %v4921 = vsel %vm4912, %v4216, %v4577
      %v4922 = vsel %vm4912, %v4217, %v4579
      %v4923 = vsel %vm4912, %v4218, %v4581
      %v4924 = vsel %vm4912, %v4219, %v4583
      %v4925 = vsel %vm4912, %v4220, %v4585
      %v4926 = vsel %vm4912, %v4221, %v4587
      %v4927 = vsel %vm4912, %v4222, %v4589
      %v4928 = vsel %vm4912, %v4223, %v4591
      %v4929 = vsel %vm4912, %v4224, %v4593
      %v4930 = vsel %vm4912, %v4225, %v4595
      %v4931 = vsel %vm4912, %v4226, %v4597
      %v4932 = vsel %vm4912, %v4227, %v4599
      %v4933 = vsel %vm4912, %v4228, %v4601
      %v4934 = vsel %vm4912, %v4229, %v4603
      %v4935 = vsel %vm4912, %v4230, %v4605
      %v4936 = vsel %vm4912, %v4231, %v4607
      %v4937 = vsel %vm4912, %v4232, %v4609
      %v4938 = vsel %vm4912, %v4233, %v4611
      %v4939 = vsel %vm4912, %v4234, %v4613
      %v4940 = vsel %vm4912, %v4235, %v4615
      %v4941 = vsel %vm4912, %v4236, %v4617
      %v4942 = vsel %vm4912, %v4237, %v4619
      %v4943 = vsel %vm4912, %v4238, %v4621
      %v4944 = vsel %vm4912, %v4239, %v4623
      %vm4945 = vcmask 523264
      %v4946 = vsel %vm4945, %v4913, %v4689
      %v4947 = vsel %vm4945, %v4914, %v4691
      %v4948 = vsel %vm4945, %v4915, %v4693
      %v4949 = vsel %vm4945, %v4916, %v4695
      %v4950 = vsel %vm4945, %v4917, %v4697
      %v4951 = vsel %vm4945, %v4918, %v4699
      %v4952 = vsel %vm4945, %v4919, %v4701
      %v4953 = vsel %vm4945, %v4920, %v4703
      %v4954 = vsel %vm4945, %v4921, %v4705
      %v4955 = vsel %vm4945, %v4922, %v4707
      %v4956 = vsel %vm4945, %v4923, %v4709
      %v4957 = vsel %vm4945, %v4924, %v4711
      %v4958 = vsel %vm4945, %v4925, %v4713
      %v4959 = vsel %vm4945, %v4926, %v4715
      %v4960 = vsel %vm4945, %v4927, %v4717
      %v4961 = vsel %vm4945, %v4928, %v4719
      %v4962 = vsel %vm4945, %v4929, %v4721
      %v4963 = vsel %vm4945, %v4930, %v4723
      %v4964 = vsel %vm4945, %v4931, %v4725
      %v4965 = vsel %vm4945, %v4932, %v4727
      %v4966 = vsel %vm4945, %v4933, %v4729
      %v4967 = vsel %vm4945, %v4934, %v4731
      %v4968 = vsel %vm4945, %v4935, %v4733
      %v4969 = vsel %vm4945, %v4936, %v4735
      %v4970 = vsel %vm4945, %v4937, %v4737
      %v4971 = vsel %vm4945, %v4938, %v4739
      %v4972 = vsel %vm4945, %v4939, %v4741
      %v4973 = vsel %vm4945, %v4940, %v4743
      %v4974 = vsel %vm4945, %v4941, %v4745
      %v4975 = vsel %vm4945, %v4942, %v4747
      %v4976 = vsel %vm4945, %v4943, %v4749
      %v4977 = vsel %vm4945, %v4944, %v4751
      %vm4978 = vcmask 785408
      %v4979 = vsel %vm4978, %v4946, %v4817
      %v4980 = vsel %vm4978, %v4947, %v4819
      %v4981 = vsel %vm4978, %v4948, %v4821
      %v4982 = vsel %vm4978, %v4949, %v4823
      %v4983 = vsel %vm4978, %v4950, %v4825
      %v4984 = vsel %vm4978, %v4951, %v4827
      %v4985 = vsel %vm4978, %v4952, %v4829
      %v4986 = vsel %vm4978, %v4953, %v4831
      %v4987 = vsel %vm4978, %v4954, %v4833
      %v4988 = vsel %vm4978, %v4955, %v4835
      %v4989 = vsel %vm4978, %v4956, %v4837
      %v4990 = vsel %vm4978, %v4957, %v4839
      %v4991 = vsel %vm4978, %v4958, %v4841
      %v4992 = vsel %vm4978, %v4959, %v4843
      %v4993 = vsel %vm4978, %v4960, %v4845
      %v4994 = vsel %vm4978, %v4961, %v4847
      %v4995 = vsel %vm4978, %v4962, %v4849
      %v4996 = vsel %vm4978, %v4963, %v4851
      %v4997 = vsel %vm4978, %v4964, %v4853
      %v4998 = vsel %vm4978, %v4965, %v4855
      %v4999 = vsel %vm4978, %v4966, %v4857
      %v5000 = vsel %vm4978, %v4967, %v4859
      %v5001 = vsel %vm4978, %v4968, %v4861
      %v5002 = vsel %vm4978, %v4969, %v4863
      %v5003 = vsel %vm4978, %v4970, %v4865
      %v5004 = vsel %vm4978, %v4971, %v4867
      %v5005 = vsel %vm4978, %v4972, %v4869
      %v5006 = vsel %vm4978, %v4973, %v4871
      %v5007 = vsel %vm4978, %v4974, %v4873
      %v5008 = vsel %vm4978, %v4975, %v4875
      %v5009 = vsel %vm4978, %v4976, %v4877
      %v5010 = vsel %vm4978, %v4977, %v4879
      %5011 = vst [vmem:[%s213] sm:$0xff] %v4979
      %5012 = vst [vmem:[%s213 + $0x8] sm:$0xff] %v4980
      %5013 = vst [vmem:[%s213 + $0x10] sm:$0xff] %v4981
      %5014 = vst [vmem:[%s213 + $0x18] sm:$0xff] %v4982
      %5015 = vst [vmem:[%s213 + $0x20] sm:$0xff] %v4983
      %5016 = vst [vmem:[%s213 + $0x28] sm:$0xff] %v4984
      %5017 = vst [vmem:[%s213 + $0x30] sm:$0xff] %v4985
      %5018 = vst [vmem:[%s213 + $0x38] sm:$0xff] %v4986
      %5019 = vst [vmem:[%s213 + $0x40] sm:$0xff] %v4987
      %5020 = vst [vmem:[%s213 + $0x48] sm:$0xff] %v4988
      %5021 = vst [vmem:[%s213 + $0x50] sm:$0xff] %v4989
      %5022 = vst [vmem:[%s213 + $0x58] sm:$0xff] %v4990
      %5023 = vst [vmem:[%s213 + $0x60] sm:$0xff] %v4991
      %5024 = vst [vmem:[%s213 + $0x68] sm:$0xff] %v4992
      %5025 = vst [vmem:[%s213 + $0x70] sm:$0xff] %v4993
      %5026 = vst [vmem:[%s213 + $0x78] sm:$0xff] %v4994
      %5027 = vst [vmem:[%s213 + $0x80] sm:$0xff] %v4995
      %5028 = vst [vmem:[%s213 + $0x88] sm:$0xff] %v4996
      %5029 = vst [vmem:[%s213 + $0x90] sm:$0xff] %v4997
      %5030 = vst [vmem:[%s213 + $0x98] sm:$0xff] %v4998
      %5031 = vst [vmem:[%s213 + $0xa0] sm:$0xff] %v4999
      %5032 = vst [vmem:[%s213 + $0xa8] sm:$0xff] %v5000
      %5033 = vst [vmem:[%s213 + $0xb0] sm:$0xff] %v5001
      %5034 = vst [vmem:[%s213 + $0xb8] sm:$0xff] %v5002
      %5035 = vst [vmem:[%s213 + $0xc0] sm:$0xff] %v5003
      %5036 = vst [vmem:[%s213 + $0xc8] sm:$0xff] %v5004
      %5037 = vst [vmem:[%s213 + $0xd0] sm:$0xff] %v5005
      %5038 = vst [vmem:[%s213 + $0xd8] sm:$0xff] %v5006
      %5039 = vst [vmem:[%s213 + $0xe0] sm:$0xff] %v5007
      %5040 = vst [vmem:[%s213 + $0xe8] sm:$0xff] %v5008
      %5041 = vst [vmem:[%s213 + $0xf0] sm:$0xff] %v5009
      %5042 = vst [vmem:[%s213 + $0xf8] sm:$0xff] %v5010
      %s5043 = sadd.s32 %s19, %s20
      %s5044 = smul.u32 32, %s5043
      %p5045 = scmp.lt.s32.totalorder %s5044, 63
      %s5046 = scalar_select %p5045, %s5044, 63
      %s5047 = smul.addr %s5046, 8
      %s5048 = scalar_lea.vmem %s4, %s5047
      // Predicated region
      $region37: #{up_conv_forward.3} parent=35 // pred_check
        %p5049 = pneg %p136
      $region38: #{up_conv_forward.3} parent=35 // pred_check_branch
        %5051 = sbr.rel (%p5049) target = $region40
      $region39: #{up_conv_forward.3} parent=35 // pred_region
        %s5052 = sadd.s32 %s19, %s20
        %s5053 = smul.u32 32, %s5052
      $region40: #{up_conv_forward.3} parent=35 // pred_fallthru
        _
    $region36: #{up_conv_forward.3} parent=5 // pred_fallthru
      _
    %p5054 = scmp.le.s32.totalorder 2, %s10
    // Predicated region
    $region41: #{up_conv_forward.3} parent=5 // pred_check
      %p5055 = pneg %p5054
    $region42: #{up_conv_forward.3} parent=5 // pred_check_branch
      %5057 = sbr.rel (%p5055) target = $region44
    $region43: #{up_conv_forward.3} parent=5 // pred_region
      %s5058 = ssub.s32 %s10, 2
      // Predicated region
      $region45: #{up_conv_forward.3} parent=43 // pred_check
        %p5059 = pneg %p142
      $region46: #{up_conv_forward.3} parent=43 // pred_check_branch
        %5061 = sbr.rel (%p5059) target = $region48
      $region47: #{up_conv_forward.3} parent=43 // pred_region
        %s5062 = sadd.s32 %s21, %s22
        %s5063 = smul.u32 32, %s5062
        %p5064 = scmp.lt.s32.totalorder %s5063, 63
        %s5065 = scalar_select %p5064, %s5063, 63
        %s5066 = smul.addr %s5065, 8
        %s5067 = scalar_lea.vmem %s4, %s5066
      $region48: #{up_conv_forward.3} parent=43 // pred_fallthru
        _
    $region44: #{up_conv_forward.3} parent=5 // pred_fallthru
      _
  $region6: #{up_conv_forward.3} parent=0 // loop_footer
    %s14 = sadd.s32 1, %s10
  $region7: #{up_conv_forward.3} parent=0 // loop_footer_branch
    %9 = sbr.rel target = $region3
  $region8: #{up_conv_forward.3} parent=0 // loop_exit
    _

// kernel: up_conv_forward.2
$region0: #{up_conv_forward.2}
  #allocation0 [shape = 'u32[]', space=smem, size = 0x4, offset = 0x4, fixed_abs, tag = 'smem constant byte address 0x4 - core index']
  #allocation1 [shape = 'u32[144,128]{1,0:T(1,128)}', space=vmem, size = 0x12000, scoped, tag = 'internal scratch']
  %s0 = inlined_call_operand.vmem [shape: bf16[2,18,18,4], index: 0, kind: input, shape index: {}]
  %s1 = inlined_call_operand.vmem [shape: bf16[16,4,32], index: 1, kind: input, shape index: {}]
  %s2 = inlined_call_operand.vmem [shape: f32[16,32], index: 2, kind: output, shape index: {0}]
  %s3 = inlined_call_operand.vmem [shape: f32[16,32], index: 3, kind: output, shape index: {1}]
  %4 = xla_tuple %s2, %s3
  %s5 = sld [smem:[#allocation0]]
  $region49: #{up_conv_forward.2} parent=0
    _
  %s7 = ssub.s32 1, %s5
  %s8 = scalar_select 0, %s7, %s5
  loop: start=0, step=1, limit=4
  $region2: #{up_conv_forward.2} parent=0 // loop_pre_header
    _
  $region3: #{up_conv_forward.2} parent=0 // loop_header
    %s10 = sphi 0, %s14
    %p11 = scmp.ge.s32.totalorder %s10, 4
    %s17 = sphi 0, %s29
    %s18 = sphi 0, %s25
    %s19 = sphi 0, %s17
    %s20 = sphi 0, %s18
    %s21 = sphi 0, %s19
    %s22 = sphi 0, %s20
    %s32 = sphi 0, %s34
    %s35 = sphi 0, %s32
    %s36 = sphi 0, %s35
    %s52 = sphi 0, %s36
    %s56 = sphi 0, %s56
    %s58 = sphi 0, %s56
    %s59 = sphi 0, %s58
    %s73 = sphi 0, %s59
    %s81 = sphi 0, %s83
    %s84 = sphi 0, %s81
    %s85 = sphi 0, %s84
    %s101 = sphi 0, %s85
    %s109 = sphi 0, %s111
    %s112 = sphi 0, %s109
    %s113 = sphi 0, %s112
    %s129 = sphi 0, %s113
  $region4: #{up_conv_forward.2} parent=0 // loop_header_branch
    %13 = sbr.rel (%p11) target = $region8
  $region5: #{up_conv_forward.2} parent=0 // loop_body
    %s15 = ssub.s32 %s10, 1
    %s16 = ssub.s32 %s10, 2
    %s23 = sadd.s32 1, %s18
    %p24 = scmp.ge.s32.totalorder %s23, 1
    %s25 = scalar_select %p24, 0, %s23
    %s26 = sadd.s32 1, %s17
    %s27 = scalar_select %p24, %s26, %s17
    %p28 = scmp.ge.s32.totalorder %s27, 2
    %s29 = scalar_select %p28, 0, %s27
    %s30 = ssub.s32 %s17, %s29
    %p31 = scmp.eq.s32.totalorder %s30, 0
    %s33 = sadd.s32 %s32, 1
    %s34 = scalar_select %p31, %s32, %s33
    %p37 = pneg %p31
    %p38 = scmp.eq.s32.totalorder %s10, 1
    %p39 = por %p37, %p38
    %p40 = scmp.ne.s32.totalorder %s32, %s35
    %p41 = scmp.eq.s32.totalorder %s10, 0
    %p42 = por %p40, %p41
    %p43 = scmp.ne.s32.totalorder %s32, %s35
    %p44 = scmp.eq.s32.totalorder %s15, 1
    %p45 = por %p43, %p44
    %p46 = scmp.ne.s32.totalorder %s35, %s36
    %p47 = scmp.eq.s32.totalorder %s15, 0
    %p48 = por %p46, %p47
    %p49 = scmp.ne.s32.totalorder %s35, %s36
    %p50 = scmp.eq.s32.totalorder %s16, 1
    %p51 = por %p49, %p50
    %p53 = scmp.ne.s32.totalorder %s36, %s52
    %p54 = scmp.eq.s32.totalorder %s16, 0
    %p55 = por %p53, %p54
    %s57 = sadd.s32 %s56, 1
    %p60 = scmp.eq.s32.totalorder %s10, 1
    %p61 = scmp.ne.s32.totalorder %s56, %s58
    %p62 = scmp.eq.s32.totalorder %s10, 0
    %p63 = por %p61, %p62
    %p64 = scmp.ne.s32.totalorder %s56, %s58
    %p65 = scmp.eq.s32.totalorder %s15, 1
    %p66 = por %p64, %p65
    %p67 = scmp.ne.s32.totalorder %s58, %s59
    %p68 = scmp.eq.s32.totalorder %s15, 0
    %p69 = por %p67, %p68
    %p70 = scmp.ne.s32.totalorder %s58, %s59
    %p71 = scmp.eq.s32.totalorder %s16, 1
    %p72 = por %p70, %p71
    %p74 = scmp.ne.s32.totalorder %s59, %s73
    %p75 = scmp.eq.s32.totalorder %s16, 0
    %p76 = por %p74, %p75
    %s77 = sadd.s32 %s17, %s18
    %s78 = sadd.s32 %s29, %s25
    %s79 = ssub.s32 %s77, %s78
    %p80 = scmp.eq.s32.totalorder %s79, 0
    %s82 = sadd.s32 %s81, 1
    %s83 = scalar_select %p80, %s81, %s82
    %p86 = pneg %p80
    %p87 = scmp.eq.s32.totalorder %s10, 1
    %p88 = por %p86, %p87
    %p89 = scmp.ne.s32.totalorder %s81, %s84
    %p90 = scmp.eq.s32.totalorder %s10, 0
    %p91 = por %p89, %p90
    %p92 = scmp.ne.s32.totalorder %s81, %s84
    %p93 = scmp.eq.s32.totalorder %s15, 1
    %p94 = por %p92, %p93
    %p95 = scmp.ne.s32.totalorder %s84, %s85
    %p96 = scmp.eq.s32.totalorder %s15, 0
    %p97 = por %p95, %p96
    %p98 = scmp.ne.s32.totalorder %s84, %s85
    %p99 = scmp.eq.s32.totalorder %s16, 1
    %p100 = por %p98, %p99
    %p102 = scmp.ne.s32.totalorder %s85, %s101
    %p103 = scmp.eq.s32.totalorder %s16, 0
    %p104 = por %p102, %p103
    %s105 = sadd.s32 %s17, %s18
    %s106 = sadd.s32 %s29, %s25
    %s107 = ssub.s32 %s105, %s106
    %p108 = scmp.eq.s32.totalorder %s107, 0
    %s110 = sadd.s32 %s109, 1
    %s111 = scalar_select %p108, %s109, %s110
    %p114 = pneg %p108
    %p115 = scmp.eq.s32.totalorder %s10, 1
    %p116 = por %p114, %p115
    %p117 = scmp.ne.s32.totalorder %s109, %s112
    %p118 = scmp.eq.s32.totalorder %s10, 0
    %p119 = por %p117, %p118
    %p120 = scmp.ne.s32.totalorder %s109, %s112
    %p121 = scmp.eq.s32.totalorder %s15, 1
    %p122 = por %p120, %p121
    %p123 = scmp.ne.s32.totalorder %s112, %s113
    %p124 = scmp.eq.s32.totalorder %s15, 0
    %p125 = por %p123, %p124
    %p126 = scmp.ne.s32.totalorder %s112, %s113
    %p127 = scmp.eq.s32.totalorder %s16, 1
    %p128 = por %p126, %p127
    %p130 = scmp.ne.s32.totalorder %s113, %s129
    %p131 = scmp.eq.s32.totalorder %s16, 0
    %p132 = por %p130, %p131
    %p133 = scmp.le.s32.totalorder 1, %s10
    %p134 = scmp.lt.s32.totalorder %s10, 3
    %p135 = pnand %p133, %p134
    %p136 = pneg %p135
    // Predicated region
    $region9: #{up_conv_forward.2} parent=5 // pred_check
      _
    $region10: #{up_conv_forward.2} parent=5 // pred_check_branch
      %138 = sbr.rel (%p135) target = $region12
    $region11: #{up_conv_forward.2} parent=5 // pred_region
      %s139 = ssub.s32 %s10, 1
      // Predicated region
      $region13: #{up_conv_forward.2} parent=11 // pred_check
        %p140 = pneg %p69
      $region14: #{up_conv_forward.2} parent=11 // pred_check_branch
        %142 = sbr.rel (%p140) target = $region16
      $region15: #{up_conv_forward.2} parent=11 // pred_region
        _
      $region16: #{up_conv_forward.2} parent=11 // pred_fallthru
        _
    $region12: #{up_conv_forward.2} parent=5 // pred_fallthru
      _
    %p143 = scmp.lt.s32.totalorder %s10, 2
    // Predicated region
    $region17: #{up_conv_forward.2} parent=5 // pred_check
      %p144 = pneg %p143
    $region18: #{up_conv_forward.2} parent=5 // pred_check_branch
      %146 = sbr.rel (%p144) target = $region20
    $region19: #{up_conv_forward.2} parent=5 // pred_region
      // Predicated region
      $region21: #{up_conv_forward.2} parent=19 // pred_check
        %p147 = pneg %p42
      $region22: #{up_conv_forward.2} parent=19 // pred_check_branch
        %149 = sbr.rel (%p147) target = $region24
      $region23: #{up_conv_forward.2} parent=19 // pred_region
        %p150 = scmp.lt.s32.totalorder %s17, 1
        %s151 = scalar_select %p150, %s17, 1
        %s152 = smul.addr %s151, 54
        %s153 = smul.addr %s152, 4
        %s154 = scalar_lea.vmem %s0, %s153
      $region24: #{up_conv_forward.2} parent=19 // pred_fallthru
        _
    $region20: #{up_conv_forward.2} parent=5 // pred_fallthru
      _
    %p155 = scmp.le.s32.totalorder 1, %s10
    %p156 = scmp.lt.s32.totalorder %s10, 3
    %p157 = pnand %p155, %p156
    %p158 = pneg %p157
    // Predicated region
    $region25: #{up_conv_forward.2} parent=5 // pred_check
      _
    $region26: #{up_conv_forward.2} parent=5 // pred_check_branch
      %160 = sbr.rel (%p157) target = $region28
    $region27: #{up_conv_forward.2} parent=5 // pred_region
      %s161 = ssub.s32 %s10, 1
      %p162 = scmp.lt.s32.totalorder %s19, 1
      %s163 = scalar_select %p162, %s19, 1
      %s164 = smul.addr %s163, 54
      %s165 = smul.addr %s164, 4
      %s166 = scalar_lea.vmem %s0, %s165
      %p167 = pneg %p48
      %p168 = pneg %p45
      %p169 = pneg %p69
      %p170 = pneg %p66
      %p171 = pneg %p97
      %p172 = pneg %p94
      %s173 = sadd.s32 %s19, %s20
      %p174 = scmp.lt.s32.totalorder %s173, 1
      %s175 = scalar_select %p174, %s173, 1
      %s176 = smul.addr %s175, 8
      %s177 = scalar_lea.vmem %s2, %s176
      %p178 = pneg %p125
      %p179 = pneg %p122
      %s180 = sadd.s32 %s19, %s20
      %p181 = scmp.lt.s32.totalorder %s180, 1
      %s182 = scalar_select %p181, %s180, 1
      %s183 = smul.addr %s182, 8
      %s184 = scalar_lea.vmem %s3, %s183
      %p185 = scmp.lt.s32.totalorder %s19, 1
      %s186 = scalar_select %p185, %s19, 1
      %s187 = smul.addr %s186, 54
      %s188 = smul.addr %s187, 4
      %s189 = scalar_lea.vmem %s0, %s188
      %s190 = sadd.s32 %s19, %s20
      %p191 = scmp.lt.s32.totalorder %s190, 1
      %s192 = scalar_select %p191, %s190, 1
      %s193 = smul.addr %s192, 8
      %s194 = scalar_lea.vmem %s2, %s193
      %s195 = sadd.s32 %s19, %s20
      %s196 = sadd.s32 %s19, %s20
      %p197 = scmp.lt.s32.totalorder %s196, 1
      %s198 = scalar_select %p197, %s196, 1
      %s199 = smul.addr %s198, 8
      %s200 = scalar_lea.vmem %s3, %s199
      %s201 = sadd.s32 %s19, %s20
      %s203 = smul.u32 %s20, 16
      %s204 = smul.u32 %s203, 3
      %s205 = smul.addr %s204, 4
      %s206 = scalar_lea.vmem %s189, %s205
      %v207 = vld [vmem:[%s206] sm:$0xf]
      %v208 = vld [vmem:[%s206 + $0x4] sm:$0xf]
      %v209 = vld [vmem:[%s206 + $0x8] sm:$0x1]
      %v210 = vld [vmem:[%s206 + $0xc] sm:$0xf]
      %v211 = vld [vmem:[%s206 + $0x10] sm:$0xf]
      %v212 = vld [vmem:[%s206 + $0x14] sm:$0x1]
      %v213 = vld [vmem:[%s206 + $0x18] sm:$0xf]
      %v214 = vld [vmem:[%s206 + $0x1c] sm:$0xf]
      %v215 = vld [vmem:[%s206 + $0x20] sm:$0x1]
      %v216 = vld [vmem:[%s206 + $0x24] sm:$0xf]
      %v217 = vld [vmem:[%s206 + $0x28] sm:$0xf]
      %v218 = vld [vmem:[%s206 + $0x2c] sm:$0x1]
      %v219 = vld [vmem:[%s206 + $0x30] sm:$0xf]
      %v220 = vld [vmem:[%s206 + $0x34] sm:$0xf]
      %v221 = vld [vmem:[%s206 + $0x38] sm:$0x1]
      %v222 = vld [vmem:[%s206 + $0x3c] sm:$0xf]
      %v223 = vld [vmem:[%s206 + $0x40] sm:$0xf]
      %v224 = vld [vmem:[%s206 + $0x44] sm:$0x1]
      %v225 = vld [vmem:[%s206 + $0x48] sm:$0xf]
      %v226 = vld [vmem:[%s206 + $0x4c] sm:$0xf]
      %v227 = vld [vmem:[%s206 + $0x50] sm:$0x1]
      %v228 = vld [vmem:[%s206 + $0x54] sm:$0xf]
      %v229 = vld [vmem:[%s206 + $0x58] sm:$0xf]
      %v230 = vld [vmem:[%s206 + $0x5c] sm:$0x1]
      %v231 = vld [vmem:[%s206 + $0x60] sm:$0xf]
      %v232 = vld [vmem:[%s206 + $0x64] sm:$0xf]
      %v233 = vld [vmem:[%s206 + $0x68] sm:$0x1]
      %v234 = vld [vmem:[%s206 + $0x6c] sm:$0xf]
      %v235 = vld [vmem:[%s206 + $0x70] sm:$0xf]
      %v236 = vld [vmem:[%s206 + $0x74] sm:$0x1]
      %v237 = vld [vmem:[%s206 + $0x78] sm:$0xf]
      %v238 = vld [vmem:[%s206 + $0x7c] sm:$0xf]
      %v239 = vld [vmem:[%s206 + $0x80] sm:$0x1]
      %v240 = vld [vmem:[%s206 + $0x84] sm:$0xf]
      %v241 = vld [vmem:[%s206 + $0x88] sm:$0xf]
      %v242 = vld [vmem:[%s206 + $0x8c] sm:$0x1]
      %v243 = vld [vmem:[%s206 + $0x90] sm:$0xf]
      %v244 = vld [vmem:[%s206 + $0x94] sm:$0xf]
      %v245 = vld [vmem:[%s206 + $0x98] sm:$0x1]
      %v246 = vld [vmem:[%s206 + $0x9c] sm:$0xf]
      %v247 = vld [vmem:[%s206 + $0xa0] sm:$0xf]
      %v248 = vld [vmem:[%s206 + $0xa4] sm:$0x1]
      %v249 = vld [vmem:[%s206 + $0xa8] sm:$0xf]
      %v250 = vld [vmem:[%s206 + $0xac] sm:$0xf]
      %v251 = vld [vmem:[%s206 + $0xb0] sm:$0x1]
      %v252 = vld [vmem:[%s206 + $0xb4] sm:$0xf]
      %v253 = vld [vmem:[%s206 + $0xb8] sm:$0xf]
      %v254 = vld [vmem:[%s206 + $0xbc] sm:$0x1]
      %v255 = vld [vmem:[%s206 + $0xc0] sm:$0xf]
      %v256 = vld [vmem:[%s206 + $0xc4] sm:$0xf]
      %v257 = vld [vmem:[%s206 + $0xc8] sm:$0x1]
      %v258 = vld [vmem:[%s206 + $0xcc] sm:$0xf]
      %v259 = vld [vmem:[%s206 + $0xd0] sm:$0xf]
      %v260 = vld [vmem:[%s206 + $0xd4] sm:$0x1]
      %v261 = vld [vmem:[%s1] sm:$0x3]
      %vm262 = vsmask.f32 3328
      %vm263 = vsmask.f32 7440
      %vm264 = vmor %vm262, %vm263
      %v266 = vshrl.u32 %v207, 16
      %v268 = vrot.slane %v266, 4
      %v269 = vshll.u32 %v207, 16
      %v271 = vrot.slane %v269, 5
      %v272 = vor.u32 %v268, %v271
      %v273 = vrot.slane %v272, 4
      %v275 = vshll.u32 %v208, 16
      %v277 = vrot.slane %v275, 5
      %v278 = vsel %vm264, %v273, %v277
      %v279 = vshrl.u32 %v208, 16
      %v281 = vrot.slane %v279, 4
      %v282 = vor.u32 %v281, %v277
      %v283 = vrot.slane %v282, 4
      %v285 = vshll.u32 %v209, 16
      %v287 = vrot.slane %v285, 5
      %v288 = vsel %vm264, %v283, %v287
      %v290 = vshrl.u32 %v210, 16
      %v292 = vrot.slane %v290, 4
      %v293 = vshll.u32 %v210, 16
      %v295 = vrot.slane %v293, 5
      %v296 = vor.u32 %v292, %v295
      %v297 = vrot.slane %v296, 4
      %v299 = vshll.u32 %v211, 16
      %v301 = vrot.slane %v299, 5
      %v302 = vsel %vm264, %v297, %v301
      %v303 = vshrl.u32 %v211, 16
      %v305 = vrot.slane %v303, 4
      %v306 = vor.u32 %v305, %v301
      %v307 = vrot.slane %v306, 4
      %v309 = vshll.u32 %v212, 16
      %v311 = vrot.slane %v309, 5
      %v312 = vsel %vm264, %v307, %v311
      %v314 = vshrl.u32 %v213, 16
      %v316 = vrot.slane %v314, 4
      %v317 = vshll.u32 %v213, 16
      %v319 = vrot.slane %v317, 5
      %v320 = vor.u32 %v316, %v319
      %v321 = vrot.slane %v320, 4
      %v323 = vshll.u32 %v214, 16
      %v325 = vrot.slane %v323, 5
      %v326 = vsel %vm264, %v321, %v325
      %v327 = vshrl.u32 %v214, 16
      %v329 = vrot.slane %v327, 4
      %v330 = vor.u32 %v329, %v325
      %v331 = vrot.slane %v330, 4
      %v333 = vshll.u32 %v215, 16
      %v335 = vrot.slane %v333, 5
      %v336 = vsel %vm264, %v331, %v335
      %v338 = vshrl.u32 %v216, 16
      %v340 = vrot.slane %v338, 4
      %v341 = vshll.u32 %v216, 16
      %v343 = vrot.slane %v341, 5
      %v344 = vor.u32 %v340, %v343
      %v345 = vrot.slane %v344, 4
      %v347 = vshll.u32 %v217, 16
      %v349 = vrot.slane %v347, 5
      %v350 = vsel %vm264, %v345, %v349
      %v351 = vshrl.u32 %v217, 16
      %v353 = vrot.slane %v351, 4
      %v354 = vor.u32 %v353, %v349
      %v355 = vrot.slane %v354, 4
      %v357 = vshll.u32 %v218, 16
      %v359 = vrot.slane %v357, 5
      %v360 = vsel %vm264, %v355, %v359
      %v362 = vshrl.u32 %v219, 16
      %v364 = vrot.slane %v362, 4
      %v365 = vshll.u32 %v219, 16
      %v367 = vrot.slane %v365, 5
      %v368 = vor.u32 %v364, %v367
      %v369 = vrot.slane %v368, 4
      %v371 = vshll.u32 %v220, 16
      %v373 = vrot.slane %v371, 5
      %v374 = vsel %vm264, %v369, %v373
      %v375 = vshrl.u32 %v220, 16
      %v377 = vrot.slane %v375, 4
      %v378 = vor.u32 %v377, %v373
      %v379 = vrot.slane %v378, 4
      %v381 = vshll.u32 %v221, 16
      %v383 = vrot.slane %v381, 5
      %v384 = vsel %vm264, %v379, %v383
      %v386 = vshrl.u32 %v222, 16
      %v388 = vrot.slane %v386, 4
      %v389 = vshll.u32 %v222, 16
      %v391 = vrot.slane %v389, 5
      %v392 = vor.u32 %v388, %v391
      %v393 = vrot.slane %v392, 4
      %v395 = vshll.u32 %v223, 16
      %v397 = vrot.slane %v395, 5
      %v398 = vsel %vm264, %v393, %v397
      %v399 = vshrl.u32 %v223, 16
      %v401 = vrot.slane %v399, 4
      %v402 = vor.u32 %v401, %v397
      %v403 = vrot.slane %v402, 4
      %v405 = vshll.u32 %v224, 16
      %v407 = vrot.slane %v405, 5
      %v408 = vsel %vm264, %v403, %v407
      %v410 = vshrl.u32 %v225, 16
      %v412 = vrot.slane %v410, 4
      %v413 = vshll.u32 %v225, 16
      %v415 = vrot.slane %v413, 5
      %v416 = vor.u32 %v412, %v415
      %v417 = vrot.slane %v416, 4
      %v419 = vshll.u32 %v226, 16
      %v421 = vrot.slane %v419, 5
      %v422 = vsel %vm264, %v417, %v421
      %v423 = vshrl.u32 %v226, 16
      %v425 = vrot.slane %v423, 4
      %v426 = vor.u32 %v425, %v421
      %v427 = vrot.slane %v426, 4
      %v429 = vshll.u32 %v227, 16
      %v431 = vrot.slane %v429, 5
      %v432 = vsel %vm264, %v427, %v431
      %v434 = vshrl.u32 %v228, 16
      %v436 = vrot.slane %v434, 4
      %v437 = vshll.u32 %v228, 16
      %v439 = vrot.slane %v437, 5
      %v440 = vor.u32 %v436, %v439
      %v441 = vrot.slane %v440, 4
      %v443 = vshll.u32 %v229, 16
      %v445 = vrot.slane %v443, 5
      %v446 = vsel %vm264, %v441, %v445
      %v447 = vshrl.u32 %v229, 16
      %v449 = vrot.slane %v447, 4
      %v450 = vor.u32 %v449, %v445
      %v451 = vrot.slane %v450, 4
      %v453 = vshll.u32 %v230, 16
      %v455 = vrot.slane %v453, 5
      %v456 = vsel %vm264, %v451, %v455
      %v458 = vshrl.u32 %v231, 16
      %v460 = vrot.slane %v458, 4
      %v461 = vshll.u32 %v231, 16
      %v463 = vrot.slane %v461, 5
      %v464 = vor.u32 %v460, %v463
      %v465 = vrot.slane %v464, 4
      %v467 = vshll.u32 %v232, 16
      %v469 = vrot.slane %v467, 5
      %v470 = vsel %vm264, %v465, %v469
      %v471 = vshrl.u32 %v232, 16
      %v473 = vrot.slane %v471, 4
      %v474 = vor.u32 %v473, %v469
      %v475 = vrot.slane %v474, 4
      %v477 = vshll.u32 %v233, 16
      %v479 = vrot.slane %v477, 5
      %v480 = vsel %vm264, %v475, %v479
      %v482 = vshrl.u32 %v234, 16
      %v484 = vrot.slane %v482, 4
      %v485 = vshll.u32 %v234, 16
      %v487 = vrot.slane %v485, 5
      %v488 = vor.u32 %v484, %v487
      %v489 = vrot.slane %v488, 4
      %v491 = vshll.u32 %v235, 16
      %v493 = vrot.slane %v491, 5
      %v494 = vsel %vm264, %v489, %v493
      %v495 = vshrl.u32 %v235, 16
      %v497 = vrot.slane %v495, 4
      %v498 = vor.u32 %v497, %v493
      %v499 = vrot.slane %v498, 4
      %v501 = vshll.u32 %v236, 16
      %v503 = vrot.slane %v501, 5
      %v504 = vsel %vm264, %v499, %v503
      %v506 = vshrl.u32 %v237, 16
      %v508 = vrot.slane %v506, 4
      %v509 = vshll.u32 %v237, 16
      %v511 = vrot.slane %v509, 5
      %v512 = vor.u32 %v508, %v511
      %v513 = vrot.slane %v512, 4
      %v515 = vshll.u32 %v238, 16
      %v517 = vrot.slane %v515, 5
      %v518 = vsel %vm264, %v513, %v517
      %v519 = vshrl.u32 %v238, 16
      %v521 = vrot.slane %v519, 4
      %v522 = vor.u32 %v521, %v517
      %v523 = vrot.slane %v522, 4
      %v525 = vshll.u32 %v239, 16
      %v527 = vrot.slane %v525, 5
      %v528 = vsel %vm264, %v523, %v527
      %v530 = vshrl.u32 %v240, 16
      %v532 = vrot.slane %v530, 4
      %v533 = vshll.u32 %v240, 16
      %v535 = vrot.slane %v533, 5
      %v536 = vor.u32 %v532, %v535
      %v537 = vrot.slane %v536, 4
      %v539 = vshll.u32 %v241, 16
      %v541 = vrot.slane %v539, 5
      %v542 = vsel %vm264, %v537, %v541
      %v543 = vshrl.u32 %v241, 16
      %v545 = vrot.slane %v543, 4
      %v546 = vor.u32 %v545, %v541
      %v547 = vrot.slane %v546, 4
      %v549 = vshll.u32 %v242, 16
      %v551 = vrot.slane %v549, 5
      %v552 = vsel %vm264, %v547, %v551
      %v554 = vshrl.u32 %v243, 16
      %v556 = vrot.slane %v554, 4
      %v557 = vshll.u32 %v243, 16
      %v559 = vrot.slane %v557, 5
      %v560 = vor.u32 %v556, %v559
      %v561 = vrot.slane %v560, 4
      %v563 = vshll.u32 %v244, 16
      %v565 = vrot.slane %v563, 5
      %v566 = vsel %vm264, %v561, %v565
      %v567 = vshrl.u32 %v244, 16
      %v569 = vrot.slane %v567, 4
      %v570 = vor.u32 %v569, %v565
      %v571 = vrot.slane %v570, 4
      %v573 = vshll.u32 %v245, 16
      %v575 = vrot.slane %v573, 5
      %v576 = vsel %vm264, %v571, %v575
      %v578 = vshrl.u32 %v246, 16
      %v580 = vrot.slane %v578, 4
      %v581 = vshll.u32 %v246, 16
      %v583 = vrot.slane %v581, 5
      %v584 = vor.u32 %v580, %v583
      %v585 = vrot.slane %v584, 4
      %v587 = vshll.u32 %v247, 16
      %v589 = vrot.slane %v587, 5
      %v590 = vsel %vm264, %v585, %v589
      %v591 = vshrl.u32 %v247, 16
      %v593 = vrot.slane %v591, 4
      %v594 = vor.u32 %v593, %v589
      %v595 = vrot.slane %v594, 4
      %v597 = vshll.u32 %v248, 16
      %v599 = vrot.slane %v597, 5
      %v600 = vsel %vm264, %v595, %v599
      %v602 = vshrl.u32 %v249, 16
      %v604 = vrot.slane %v602, 4
      %v605 = vshll.u32 %v249, 16
      %v607 = vrot.slane %v605, 5
      %v608 = vor.u32 %v604, %v607
      %v609 = vrot.slane %v608, 4
      %v611 = vshll.u32 %v250, 16
      %v613 = vrot.slane %v611, 5
      %v614 = vsel %vm264, %v609, %v613
      %v615 = vshrl.u32 %v250, 16
      %v617 = vrot.slane %v615, 4
      %v618 = vor.u32 %v617, %v613
      %v619 = vrot.slane %v618, 4
      %v621 = vshll.u32 %v251, 16
      %v623 = vrot.slane %v621, 5
      %v624 = vsel %vm264, %v619, %v623
      %v626 = vshrl.u32 %v252, 16
      %v628 = vrot.slane %v626, 4
      %v629 = vshll.u32 %v252, 16
      %v631 = vrot.slane %v629, 5
      %v632 = vor.u32 %v628, %v631
      %v633 = vrot.slane %v632, 4
      %v635 = vshll.u32 %v253, 16
      %v637 = vrot.slane %v635, 5
      %v638 = vsel %vm264, %v633, %v637
      %v639 = vshrl.u32 %v253, 16
      %v641 = vrot.slane %v639, 4
      %v642 = vor.u32 %v641, %v637
      %v643 = vrot.slane %v642, 4
      %v645 = vshll.u32 %v254, 16
      %v647 = vrot.slane %v645, 5
      %v648 = vsel %vm264, %v643, %v647
      %s649 = scalar_lea.vmem %s1, 2
      %v650 = vld [vmem:[%s649] sm:$0x3]
      %v651 = vunpack.c.l.b16 %v278
      %v652 = vunpack.c.l.b16 %v288
      %v653 = vunpack.c.l.b16 %v302
      %v654 = vunpack.c.l.b16 %v312
      %v655 = vunpack.c.l.b16 %v326
      %v656 = vunpack.c.l.b16 %v336
      %v657 = vunpack.c.l.b16 %v350
      %v658 = vunpack.c.l.b16 %v360
      %v659 = vunpack.c.l.b16 %v374
      %v660 = vunpack.c.l.b16 %v384
      %v661 = vunpack.c.l.b16 %v398
      %v662 = vunpack.c.l.b16 %v408
      %v663 = vunpack.c.l.b16 %v422
      %v664 = vunpack.c.l.b16 %v432
      %v665 = vunpack.c.l.b16 %v446
      %v666 = vunpack.c.l.b16 %v456
      %v667 = vunpack.c.l.b16 %v470
      %v668 = vunpack.c.l.b16 %v480
      %v669 = vunpack.c.l.b16 %v494
      %v670 = vunpack.c.l.b16 %v504
      %v671 = vunpack.c.l.b16 %v518
      %v672 = vunpack.c.l.b16 %v528
      %v673 = vunpack.c.l.b16 %v542
      %v674 = vunpack.c.l.b16 %v552
      %v675 = vunpack.c.l.b16 %v566
      %v676 = vunpack.c.l.b16 %v576
      %v677 = vunpack.c.l.b16 %v590
      %v678 = vunpack.c.l.b16 %v600
      %v679 = vunpack.c.l.b16 %v614
      %v680 = vunpack.c.l.b16 %v624
      %v681 = vunpack.c.l.b16 %v638
      %v682 = vunpack.c.l.b16 %v648
      %v683 = vpack.c.b16 %v652, %v651
      %v684 = vpack.c.b16 %v654, %v653
      %v685 = vpack.c.b16 %v656, %v655
      %v686 = vpack.c.b16 %v658, %v657
      %v687 = vpack.c.b16 %v660, %v659
      %v688 = vpack.c.b16 %v662, %v661
      %v689 = vpack.c.b16 %v664, %v663
      %v690 = vpack.c.b16 %v666, %v665
      %v691 = vpack.c.b16 %v668, %v667
      %v692 = vpack.c.b16 %v670, %v669
      %v693 = vpack.c.b16 %v672, %v671
      %v694 = vpack.c.b16 %v674, %v673
      %v695 = vpack.c.b16 %v676, %v675
      %v696 = vpack.c.b16 %v678, %v677
      %v697 = vpack.c.b16 %v680, %v679
      %v698 = vpack.c.b16 %v682, %v681
      %vm699 = vcmask 31744
      %v701 = vsel %vm699, %v683, 0
      %v704 = vsel %vm699, %v684, 0
      %v707 = vsel %vm699, %v685, 0
      %v710 = vsel %vm699, %v686, 0
      %v713 = vsel %vm699, %v687, 0
      %v716 = vsel %vm699, %v688, 0
      %v719 = vsel %vm699, %v689, 0
      %v722 = vsel %vm699, %v690, 0
      %v725 = vsel %vm699, %v691, 0
      %v728 = vsel %vm699, %v692, 0
      %v731 = vsel %vm699, %v693, 0
      %v734 = vsel %vm699, %v694, 0
      %v737 = vsel %vm699, %v695, 0
      %v740 = vsel %vm699, %v696, 0
      %v743 = vsel %vm699, %v697, 0
      %v746 = vsel %vm699, %v698, 0
      %vm748 = vcmask 1041408
      %v750 = vsel %vm748, %v650, 0
      %752 = vmatprep.subr.bf16.mxu0 0
      %753 = vmatpush1.bf16.msra.mxu0 %v750
      %754 = vmatprep.subr.bf16.mxu0 0
      %755 = vmatpush1.bf16.msra.mxu0 0
      %756 = vmatprep.subr.bf16.mxu0 0
      %757 = vmatpush1.bf16.msra.mxu0 0
      %758 = vmatprep.subr.bf16.mxu0 0
      %759 = vmatpush1.bf16.msra.mxu0 0
      %760 = vmatprep.subr.bf16.mxu0 0
      %761 = vmatpush1.bf16.msra.mxu0 0
      %762 = vmatprep.subr.bf16.mxu0 0
      %763 = vmatpush1.bf16.msra.mxu0 0
      %764 = vmatprep.subr.bf16.mxu0 0
      %765 = vmatpush1.bf16.msra.mxu0 0
      %766 = vmatprep.subr.bf16.mxu0 0
      %767 = vmatpush1.bf16.msra.mxu0 0
      %768 = vmatprep.subr.bf16.mxu0 0
      %769 = vmatpush1.bf16.msra.mxu0 0
      %770 = vmatprep.subr.bf16.mxu0 0
      %771 = vmatpush1.bf16.msra.mxu0 0
      %772 = vmatprep.subr.bf16.mxu0 0
      %773 = vmatpush1.bf16.msra.mxu0 0
      %774 = vmatprep.subr.bf16.mxu0 0
      %775 = vmatpush1.bf16.msra.mxu0 0
      %776 = vmatprep.subr.bf16.mxu0 0
      %777 = vmatpush1.bf16.msra.mxu0 0
      %778 = vmatprep.subr.bf16.mxu0 0
      %779 = vmatpush1.bf16.msra.mxu0 0
      %780 = vmatprep.subr.bf16.mxu0 0
      %781 = vmatpush1.bf16.msra.mxu0 0
      %782 = vmatprep.subr.bf16.mxu0 0
      %783 = vmatpush1.bf16.msra.mxu0 0
      %784 = vmatprep.mubr.bf16.mxu0 0
      %785 = vmatmul.mubr.bf16.gmra.mrb[0].mxu0 %v701
      %v786 = vpop.f32.mrb[0].mxu0
      %v787 = vadd.f32 0.0, %v786
      %v788 = vpop.f32.mrb[0].mxu0
      %v789 = vpop.f32.mrb[0].mxu0
      %v790 = vadd.f32 0.0, %v789
      %v791 = vpop.f32.mrb[0].mxu0
      %792 = vmatprep.mubr.bf16.mxu0 0
      %793 = vmatmul.mubr.bf16.gmra.mrb[0].mxu0 %v704
      %v794 = vpop.f32.mrb[0].mxu0
      %v795 = vadd.f32 0.0, %v794
      %v796 = vpop.f32.mrb[0].mxu0
      %v797 = vpop.f32.mrb[0].mxu0
      %v798 = vadd.f32 0.0, %v797
      %v799 = vpop.f32.mrb[0].mxu0
      %800 = vmatprep.mubr.bf16.mxu0 0
      %801 = vmatmul.mubr.bf16.gmra.mrb[0].mxu0 %v707
      %v802 = vpop.f32.mrb[0].mxu0
      %v803 = vadd.f32 0.0, %v802
      %v804 = vpop.f32.mrb[0].mxu0
      %v805 = vpop.f32.mrb[0].mxu0
      %v806 = vadd.f32 0.0, %v805
      %v807 = vpop.f32.mrb[0].mxu0
      %808 = vmatprep.mubr.bf16.mxu0 0
      %809 = vmatmul.mubr.bf16.gmra.mrb[0].mxu0 %v710
      %v810 = vpop.f32.mrb[0].mxu0
      %v811 = vadd.f32 0.0, %v810
      %v812 = vpop.f32.mrb[0].mxu0
      %v813 = vpop.f32.mrb[0].mxu0
      %v814 = vadd.f32 0.0, %v813
      %v815 = vpop.f32.mrb[0].mxu0
      %816 = vmatprep.mubr.bf16.mxu0 0
      %817 = vmatmul.mubr.bf16.gmra.mrb[0].mxu0 %v713
      %v818 = vpop.f32.mrb[0].mxu0
      %v819 = vadd.f32 0.0, %v818
      %v820 = vpop.f32.mrb[0].mxu0
      %v821 = vpop.f32.mrb[0].mxu0
      %v822 = vadd.f32 0.0, %v821
      %v823 = vpop.f32.mrb[0].mxu0
      %824 = vmatprep.mubr.bf16.mxu0 0
      %825 = vmatmul.mubr.bf16.gmra.mrb[0].mxu0 %v716
      %v826 = vpop.f32.mrb[0].mxu0
      %v827 = vadd.f32 0.0, %v826
      %v828 = vpop.f32.mrb[0].mxu0
      %v829 = vpop.f32.mrb[0].mxu0
      %v830 = vadd.f32 0.0, %v829
      %v831 = vpop.f32.mrb[0].mxu0
      %832 = vmatprep.mubr.bf16.mxu0 0
      %833 = vmatmul.mubr.bf16.gmra.mrb[0].mxu0 %v719
      %v834 = vpop.f32.mrb[0].mxu0
      %v835 = vadd.f32 0.0, %v834
      %v836 = vpop.f32.mrb[0].mxu0
      %v837 = vpop.f32.mrb[0].mxu0
      %v838 = vadd.f32 0.0, %v837
      %v839 = vpop.f32.mrb[0].mxu0
      %840 = vmatprep.mubr.bf16.mxu0 0
      %841 = vmatmul.mubr.bf16.gmra.mrb[0].mxu0 %v722
      %v842 = vpop.f32.mrb[0].mxu0
      %v843 = vadd.f32 0.0, %v842
      %v844 = vpop.f32.mrb[0].mxu0
      %v845 = vpop.f32.mrb[0].mxu0
      %v846 = vadd.f32 0.0, %v845
      %v847 = vpop.f32.mrb[0].mxu0
      %848 = vmatprep.mubr.bf16.mxu0 0
      %849 = vmatmul.mubr.bf16.gmra.mrb[0].mxu0 %v725
      %v850 = vpop.f32.mrb[0].mxu0
      %v851 = vadd.f32 0.0, %v850
      %v852 = vpop.f32.mrb[0].mxu0
      %v853 = vpop.f32.mrb[0].mxu0
      %v854 = vadd.f32 0.0, %v853
      %v855 = vpop.f32.mrb[0].mxu0
      %856 = vmatprep.mubr.bf16.mxu0 0
      %857 = vmatmul.mubr.bf16.gmra.mrb[0].mxu0 %v728
      %v858 = vpop.f32.mrb[0].mxu0
      %v859 = vadd.f32 0.0, %v858
      %v860 = vpop.f32.mrb[0].mxu0
      %v861 = vpop.f32.mrb[0].mxu0
      %v862 = vadd.f32 0.0, %v861
      %v863 = vpop.f32.mrb[0].mxu0
      %864 = vmatprep.mubr.bf16.mxu0 0
      %865 = vmatmul.mubr.bf16.gmra.mrb[0].mxu0 %v731
      %v866 = vpop.f32.mrb[0].mxu0
      %v867 = vadd.f32 0.0, %v866
      %v868 = vpop.f32.mrb[0].mxu0
      %v869 = vpop.f32.mrb[0].mxu0
      %v870 = vadd.f32 0.0, %v869
      %v871 = vpop.f32.mrb[0].mxu0
      %872 = vmatprep.mubr.bf16.mxu0 0
      %873 = vmatmul.mubr.bf16.gmra.mrb[0].mxu0 %v734
      %v874 = vpop.f32.mrb[0].mxu0
      %v875 = vadd.f32 0.0, %v874
      %v876 = vpop.f32.mrb[0].mxu0
      %v877 = vpop.f32.mrb[0].mxu0
      %v878 = vadd.f32 0.0, %v877
      %v879 = vpop.f32.mrb[0].mxu0
      %880 = vmatprep.mubr.bf16.mxu0 0
      %881 = vmatmul.mubr.bf16.gmra.mrb[0].mxu0 %v737
      %v882 = vpop.f32.mrb[0].mxu0
      %v883 = vadd.f32 0.0, %v882
      %v884 = vpop.f32.mrb[0].mxu0
      %v885 = vpop.f32.mrb[0].mxu0
      %v886 = vadd.f32 0.0, %v885
      %v887 = vpop.f32.mrb[0].mxu0
      %888 = vmatprep.mubr.bf16.mxu0 0
      %889 = vmatmul.mubr.bf16.gmra.mrb[0].mxu0 %v740
      %v890 = vpop.f32.mrb[0].mxu0
      %v891 = vadd.f32 0.0, %v890
      %v892 = vpop.f32.mrb[0].mxu0
      %v893 = vpop.f32.mrb[0].mxu0
      %v894 = vadd.f32 0.0, %v893
      %v895 = vpop.f32.mrb[0].mxu0
      %896 = vmatprep.mubr.bf16.mxu0 0
      %897 = vmatmul.mubr.bf16.gmra.mrb[0].mxu0 %v743
      %v898 = vpop.f32.mrb[0].mxu0
      %v899 = vadd.f32 0.0, %v898
      %v900 = vpop.f32.mrb[0].mxu0
      %v901 = vpop.f32.mrb[0].mxu0
      %v902 = vadd.f32 0.0, %v901
      %v903 = vpop.f32.mrb[0].mxu0
      %904 = vmatprep.mubr.bf16.mxu0 0
      %905 = vmatmul.mubr.bf16.gmra.mrb[0].mxu0 %v746
      %v906 = vpop.f32.mrb[0].mxu0
      %v907 = vadd.f32 0.0, %v906
      %v908 = vpop.f32.mrb[0].mxu0
      %v909 = vpop.f32.mrb[0].mxu0
      %v910 = vadd.f32 0.0, %v909
      %v911 = vpop.f32.mrb[0].mxu0
      %912 = vdwg.mxu0
      %v945 = vunpack.c.l.b16 %v207
      %v946 = vunpack.c.l.b16 %v208
      %v947 = vunpack.c.l.b16 %v210
      %v948 = vunpack.c.l.b16 %v211
      %v949 = vunpack.c.l.b16 %v213
      %v950 = vunpack.c.l.b16 %v214
      %v951 = vunpack.c.l.b16 %v216
      %v952 = vunpack.c.l.b16 %v217
      %v953 = vunpack.c.l.b16 %v219
      %v954 = vunpack.c.l.b16 %v220
      %v955 = vunpack.c.l.b16 %v222
      %v956 = vunpack.c.l.b16 %v223
      %v957 = vunpack.c.l.b16 %v225
      %v958 = vunpack.c.l.b16 %v226
      %v959 = vunpack.c.l.b16 %v228
      %v960 = vunpack.c.l.b16 %v229
      %v961 = vunpack.c.l.b16 %v231
      %v962 = vunpack.c.l.b16 %v232
      %v963 = vunpack.c.l.b16 %v234
      %v964 = vunpack.c.l.b16 %v235
      %v965 = vunpack.c.l.b16 %v237
      %v966 = vunpack.c.l.b16 %v238
      %v967 = vunpack.c.l.b16 %v240
      %v968 = vunpack.c.l.b16 %v241
      %v969 = vunpack.c.l.b16 %v243
      %v970 = vunpack.c.l.b16 %v244
      %v971 = vunpack.c.l.b16 %v246
      %v972 = vunpack.c.l.b16 %v247
      %v973 = vunpack.c.l.b16 %v249
      %v974 = vunpack.c.l.b16 %v250
      %v975 = vunpack.c.l.b16 %v252
      %v976 = vunpack.c.l.b16 %v253
      %v977 = vpack.c.b16 %v946, %v945
      %v978 = vpack.c.b16 %v948, %v947
      %v979 = vpack.c.b16 %v950, %v949
      %v980 = vpack.c.b16 %v952, %v951
      %v981 = vpack.c.b16 %v954, %v953
      %v982 = vpack.c.b16 %v956, %v955
      %v983 = vpack.c.b16 %v958, %v957
      %v984 = vpack.c.b16 %v960, %v959
      %v985 = vpack.c.b16 %v962, %v961
      %v986 = vpack.c.b16 %v964, %v963
      %v987 = vpack.c.b16 %v966, %v965
      %v988 = vpack.c.b16 %v968, %v967
      %v989 = vpack.c.b16 %v970, %v969
      %v990 = vpack.c.b16 %v972, %v971
      %v991 = vpack.c.b16 %v974, %v973
      %v992 = vpack.c.b16 %v976, %v975
      %v994 = vsel %vm699, %v977, 0
      %v997 = vsel %vm699, %v978, 0
      %v1000 = vsel %vm699, %v979, 0
      %v1003 = vsel %vm699, %v980, 0
      %v1006 = vsel %vm699, %v981, 0
      %v1009 = vsel %vm699, %v982, 0
      %v1012 = vsel %vm699, %v983, 0
      %v1015 = vsel %vm699, %v984, 0
      %v1018 = vsel %vm699, %v985, 0
      %v1021 = vsel %vm699, %v986, 0
      %v1024 = vsel %vm699, %v987, 0
      %v1027 = vsel %vm699, %v988, 0
      %v1030 = vsel %vm699, %v989, 0
      %v1033 = vsel %vm699, %v990, 0
      %v1036 = vsel %vm699, %v991, 0
      %v1039 = vsel %vm699, %v992, 0
      %v1042 = vsel %vm748, %v261, 0
      %1044 = vmatprep.subr.bf16.mxu0 0
      %1045 = vmatpush1.bf16.msra.mxu0 %v1042
      %1046 = vmatprep.subr.bf16.mxu0 0
      %1047 = vmatpush1.bf16.msra.mxu0 0
      %1048 = vmatprep.subr.bf16.mxu0 0
      %1049 = vmatpush1.bf16.msra.mxu0 0
      %1050 = vmatprep.subr.bf16.mxu0 0
      %1051 = vmatpush1.bf16.msra.mxu0 0
      %1052 = vmatprep.subr.bf16.mxu0 0
      %1053 = vmatpush1.bf16.msra.mxu0 0
      %1054 = vmatprep.subr.bf16.mxu0 0
      %1055 = vmatpush1.bf16.msra.mxu0 0
      %1056 = vmatprep.subr.bf16.mxu0 0
      %1057 = vmatpush1.bf16.msra.mxu0 0
      %1058 = vmatprep.subr.bf16.mxu0 0
      %1059 = vmatpush1.bf16.msra.mxu0 0
      %1060 = vmatprep.subr.bf16.mxu0 0
      %1061 = vmatpush1.bf16.msra.mxu0 0
      %1062 = vmatprep.subr.bf16.mxu0 0
      %1063 = vmatpush1.bf16.msra.mxu0 0
      %1064 = vmatprep.subr.bf16.mxu0 0
      %1065 = vmatpush1.bf16.msra.mxu0 0
      %1066 = vmatprep.subr.bf16.mxu0 0
      %1067 = vmatpush1.bf16.msra.mxu0 0
      %1068 = vmatprep.subr.bf16.mxu0 0
      %1069 = vmatpush1.bf16.msra.mxu0 0
      %1070 = vmatprep.subr.bf16.mxu0 0
      %1071 = vmatpush1.bf16.msra.mxu0 0
      %1072 = vmatprep.subr.bf16.mxu0 0
      %1073 = vmatpush1.bf16.msra.mxu0 0
      %1074 = vmatprep.subr.bf16.mxu0 0
      %1075 = vmatpush1.bf16.msra.mxu0 0
      %1076 = vmatprep.mubr.bf16.mxu0 0
      %1077 = vmatmul.mubr.bf16.gmra.mrb[0].mxu0 %v994
      %v1078 = vpop.f32.mrb[0].mxu0
      %v1079 = vadd.f32 %v787, %v1078
      %v1080 = vpop.f32.mrb[0].mxu0
      %v1081 = vpop.f32.mrb[0].mxu0
      %v1082 = vadd.f32 %v790, %v1081
      %v1083 = vpop.f32.mrb[0].mxu0
      %1084 = vmatprep.mubr.bf16.mxu0 0
      %1085 = vmatmul.mubr.bf16.gmra.mrb[0].mxu0 %v997
      %v1086 = vpop.f32.mrb[0].mxu0
      %v1087 = vadd.f32 %v795, %v1086
      %v1088 = vpop.f32.mrb[0].mxu0
      %v1089 = vpop.f32.mrb[0].mxu0
      %v1090 = vadd.f32 %v798, %v1089
      %v1091 = vpop.f32.mrb[0].mxu0
      %1092 = vmatprep.mubr.bf16.mxu0 0
      %1093 = vmatmul.mubr.bf16.gmra.mrb[0].mxu0 %v1000
      %v1094 = vpop.f32.mrb[0].mxu0
      %v1095 = vadd.f32 %v803, %v1094
      %v1096 = vpop.f32.mrb[0].mxu0
      %v1097 = vpop.f32.mrb[0].mxu0
      %v1098 = vadd.f32 %v806, %v1097
      %v1099 = vpop.f32.mrb[0].mxu0
      %1100 = vmatprep.mubr.bf16.mxu0 0
      %1101 = vmatmul.mubr.bf16.gmra.mrb[0].mxu0 %v1003
      %v1102 = vpop.f32.mrb[0].mxu0
      %v1103 = vadd.f32 %v811, %v1102
      %v1104 = vpop.f32.mrb[0].mxu0
      %v1105 = vpop.f32.mrb[0].mxu0
      %v1106 = vadd.f32 %v814, %v1105
      %v1107 = vpop.f32.mrb[0].mxu0
      %1108 = vmatprep.mubr.bf16.mxu0 0
      %1109 = vmatmul.mubr.bf16.gmra.mrb[0].mxu0 %v1006
      %v1110 = vpop.f32.mrb[0].mxu0
      %v1111 = vadd.f32 %v819, %v1110
      %v1112 = vpop.f32.mrb[0].mxu0
      %v1113 = vpop.f32.mrb[0].mxu0
      %v1114 = vadd.f32 %v822, %v1113
      %v1115 = vpop.f32.mrb[0].mxu0
      %1116 = vmatprep.mubr.bf16.mxu0 0
      %1117 = vmatmul.mubr.bf16.gmra.mrb[0].mxu0 %v1009
      %v1118 = vpop.f32.mrb[0].mxu0
      %v1119 = vadd.f32 %v827, %v1118
      %v1120 = vpop.f32.mrb[0].mxu0
      %v1121 = vpop.f32.mrb[0].mxu0
      %v1122 = vadd.f32 %v830, %v1121
      %v1123 = vpop.f32.mrb[0].mxu0
      %1124 = vmatprep.mubr.bf16.mxu0 0
      %1125 = vmatmul.mubr.bf16.gmra.mrb[0].mxu0 %v1012
      %v1126 = vpop.f32.mrb[0].mxu0
      %v1127 = vadd.f32 %v835, %v1126
      %v1128 = vpop.f32.mrb[0].mxu0
      %v1129 = vpop.f32.mrb[0].mxu0
      %v1130 = vadd.f32 %v838, %v1129
      %v1131 = vpop.f32.mrb[0].mxu0
      %1132 = vmatprep.mubr.bf16.mxu0 0
      %1133 = vmatmul.mubr.bf16.gmra.mrb[0].mxu0 %v1015
      %v1134 = vpop.f32.mrb[0].mxu0
      %v1135 = vadd.f32 %v843, %v1134
      %v1136 = vpop.f32.mrb[0].mxu0
      %v1137 = vpop.f32.mrb[0].mxu0
      %v1138 = vadd.f32 %v846, %v1137
      %v1139 = vpop.f32.mrb[0].mxu0
      %1140 = vmatprep.mubr.bf16.mxu0 0
      %1141 = vmatmul.mubr.bf16.gmra.mrb[0].mxu0 %v1018
      %v1142 = vpop.f32.mrb[0].mxu0
      %v1143 = vadd.f32 %v851, %v1142
      %v1144 = vpop.f32.mrb[0].mxu0
      %v1145 = vpop.f32.mrb[0].mxu0
      %v1146 = vadd.f32 %v854, %v1145
      %v1147 = vpop.f32.mrb[0].mxu0
      %1148 = vmatprep.mubr.bf16.mxu0 0
      %1149 = vmatmul.mubr.bf16.gmra.mrb[0].mxu0 %v1021
      %v1150 = vpop.f32.mrb[0].mxu0
      %v1151 = vadd.f32 %v859, %v1150
      %v1152 = vpop.f32.mrb[0].mxu0
      %v1153 = vpop.f32.mrb[0].mxu0
      %v1154 = vadd.f32 %v862, %v1153
      %v1155 = vpop.f32.mrb[0].mxu0
      %1156 = vmatprep.mubr.bf16.mxu0 0
      %1157 = vmatmul.mubr.bf16.gmra.mrb[0].mxu0 %v1024
      %v1158 = vpop.f32.mrb[0].mxu0
      %v1159 = vadd.f32 %v867, %v1158
      %v1160 = vpop.f32.mrb[0].mxu0
      %v1161 = vpop.f32.mrb[0].mxu0
      %v1162 = vadd.f32 %v870, %v1161
      %v1163 = vpop.f32.mrb[0].mxu0
      %1164 = vmatprep.mubr.bf16.mxu0 0
      %1165 = vmatmul.mubr.bf16.gmra.mrb[0].mxu0 %v1027
      %v1166 = vpop.f32.mrb[0].mxu0
      %v1167 = vadd.f32 %v875, %v1166
      %v1168 = vpop.f32.mrb[0].mxu0
      %v1169 = vpop.f32.mrb[0].mxu0
      %v1170 = vadd.f32 %v878, %v1169
      %v1171 = vpop.f32.mrb[0].mxu0
      %1172 = vmatprep.mubr.bf16.mxu0 0
      %1173 = vmatmul.mubr.bf16.gmra.mrb[0].mxu0 %v1030
      %v1174 = vpop.f32.mrb[0].mxu0
      %v1175 = vadd.f32 %v883, %v1174
      %v1176 = vpop.f32.mrb[0].mxu0
      %v1177 = vpop.f32.mrb[0].mxu0
      %v1178 = vadd.f32 %v886, %v1177
      %v1179 = vpop.f32.mrb[0].mxu0
      %1180 = vmatprep.mubr.bf16.mxu0 0
      %1181 = vmatmul.mubr.bf16.gmra.mrb[0].mxu0 %v1033
      %v1182 = vpop.f32.mrb[0].mxu0
      %v1183 = vadd.f32 %v891, %v1182
      %v1184 = vpop.f32.mrb[0].mxu0
      %v1185 = vpop.f32.mrb[0].mxu0
      %v1186 = vadd.f32 %v894, %v1185
      %v1187 = vpop.f32.mrb[0].mxu0
      %1188 = vmatprep.mubr.bf16.mxu0 0
      %1189 = vmatmul.mubr.bf16.gmra.mrb[0].mxu0 %v1036
      %v1190 = vpop.f32.mrb[0].mxu0
      %v1191 = vadd.f32 %v899, %v1190
      %v1192 = vpop.f32.mrb[0].mxu0
      %v1193 = vpop.f32.mrb[0].mxu0
      %v1194 = vadd.f32 %v902, %v1193
      %v1195 = vpop.f32.mrb[0].mxu0
      %1196 = vmatprep.mubr.bf16.mxu0 0
      %1197 = vmatmul.mubr.bf16.gmra.mrb[0].mxu0 %v1039
      %v1198 = vpop.f32.mrb[0].mxu0
      %v1199 = vadd.f32 %v907, %v1198
      %v1200 = vpop.f32.mrb[0].mxu0
      %v1201 = vpop.f32.mrb[0].mxu0
      %v1202 = vadd.f32 %v910, %v1201
      %v1203 = vpop.f32.mrb[0].mxu0
      %1204 = vdwg.mxu0
      %s1205 = scalar_lea.vmem %s1, 8
      %v1206 = vld [vmem:[%s1205] sm:$0x3]
      %vm1223 = vcmask 1042432
      %vm1224 = vcmask 1046532
      %vm1225 = vmor %vm1223, %vm1224
      %v1226 = vrot.slane %v207, 5
      %v1227 = vrot.slane %v1226, 4
      %v1228 = vrot.slane %v208, 5
      %v1229 = vsel %vm1225, %v1227, %v1228
      %v1230 = vrot.slane %v1228, 4
      %v1231 = vrot.slane %v209, 5
      %v1232 = vsel %vm1225, %v1230, %v1231
      %v1233 = vrot.slane %v210, 5
      %v1234 = vrot.slane %v1233, 4
      %v1235 = vrot.slane %v211, 5
      %v1236 = vsel %vm1225, %v1234, %v1235
      %v1237 = vrot.slane %v1235, 4
      %v1238 = vrot.slane %v212, 5
      %v1239 = vsel %vm1225, %v1237, %v1238
      %v1240 = vrot.slane %v213, 5
      %v1241 = vrot.slane %v1240, 4
      %v1242 = vrot.slane %v214, 5
      %v1243 = vsel %vm1225, %v1241, %v1242
      %v1244 = vrot.slane %v1242, 4
      %v1245 = vrot.slane %v215, 5
      %v1246 = vsel %vm1225, %v1244, %v1245
      %v1247 = vrot.slane %v216, 5
      %v1248 = vrot.slane %v1247, 4
      %v1249 = vrot.slane %v217, 5
      %v1250 = vsel %vm1225, %v1248, %v1249
      %v1251 = vrot.slane %v1249, 4
      %v1252 = vrot.slane %v218, 5
      %v1253 = vsel %vm1225, %v1251, %v1252
      %v1254 = vrot.slane %v219, 5
      %v1255 = vrot.slane %v1254, 4
      %v1256 = vrot.slane %v220, 5
      %v1257 = vsel %vm1225, %v1255, %v1256
      %v1258 = vrot.slane %v1256, 4
      %v1259 = vrot.slane %v221, 5
      %v1260 = vsel %vm1225, %v1258, %v1259
      %v1261 = vrot.slane %v222, 5
      %v1262 = vrot.slane %v1261, 4
      %v1263 = vrot.slane %v223, 5
      %v1264 = vsel %vm1225, %v1262, %v1263
      %v1265 = vrot.slane %v1263, 4
      %v1266 = vrot.slane %v224, 5
      %v1267 = vsel %vm1225, %v1265, %v1266
      %v1268 = vrot.slane %v225, 5
      %v1269 = vrot.slane %v1268, 4
      %v1270 = vrot.slane %v226, 5
      %v1271 = vsel %vm1225, %v1269, %v1270
      %v1272 = vrot.slane %v1270, 4
      %v1273 = vrot.slane %v227, 5
      %v1274 = vsel %vm1225, %v1272, %v1273
      %v1275 = vrot.slane %v228, 5
      %v1276 = vrot.slane %v1275, 4
      %v1277 = vrot.slane %v229, 5
      %v1278 = vsel %vm1225, %v1276, %v1277
      %v1279 = vrot.slane %v1277, 4
      %v1280 = vrot.slane %v230, 5
      %v1281 = vsel %vm1225, %v1279, %v1280
      %v1282 = vrot.slane %v231, 5
      %v1283 = vrot.slane %v1282, 4
      %v1284 = vrot.slane %v232, 5
      %v1285 = vsel %vm1225, %v1283, %v1284
      %v1286 = vrot.slane %v1284, 4
      %v1287 = vrot.slane %v233, 5
      %v1288 = vsel %vm1225, %v1286, %v1287
      %v1289 = vrot.slane %v234, 5
      %v1290 = vrot.slane %v1289, 4
      %v1291 = vrot.slane %v235, 5
      %v1292 = vsel %vm1225, %v1290, %v1291
      %v1293 = vrot.slane %v1291, 4
      %v1294 = vrot.slane %v236, 5
      %v1295 = vsel %vm1225, %v1293, %v1294
      %v1296 = vrot.slane %v237, 5
      %v1297 = vrot.slane %v1296, 4
      %v1298 = vrot.slane %v238, 5
      %v1299 = vsel %vm1225, %v1297, %v1298
      %v1300 = vrot.slane %v1298, 4
      %v1301 = vrot.slane %v239, 5
      %v1302 = vsel %vm1225, %v1300, %v1301
      %v1303 = vrot.slane %v240, 5
      %v1304 = vrot.slane %v1303, 4
      %v1305 = vrot.slane %v241, 5
      %v1306 = vsel %vm1225, %v1304, %v1305
      %v1307 = vrot.slane %v1305, 4
      %v1308 = vrot.slane %v242, 5
      %v1309 = vsel %vm1225, %v1307, %v1308
      %v1310 = vrot.slane %v243, 5
      %v1311 = vrot.slane %v1310, 4
      %v1312 = vrot.slane %v244, 5
      %v1313 = vsel %vm1225, %v1311, %v1312
      %v1314 = vrot.slane %v1312, 4
      %v1315 = vrot.slane %v245, 5
      %v1316 = vsel %vm1225, %v1314, %v1315
      %v1317 = vrot.slane %v246, 5
      %v1318 = vrot.slane %v1317, 4
      %v1319 = vrot.slane %v247, 5
      %v1320 = vsel %vm1225, %v1318, %v1319
      %v1321 = vrot.slane %v1319, 4
      %v1322 = vrot.slane %v248, 5
      %v1323 = vsel %vm1225, %v1321, %v1322
      %v1324 = vrot.slane %v249, 5
      %v1325 = vrot.slane %v1324, 4
      %v1326 = vrot.slane %v250, 5
      %v1327 = vsel %vm1225, %v1325, %v1326
      %v1328 = vrot.slane %v1326, 4
      %v1329 = vrot.slane %v251, 5
      %v1330 = vsel %vm1225, %v1328, %v1329
      %v1331 = vrot.slane %v252, 5
      %v1332 = vrot.slane %v1331, 4
      %v1333 = vrot.slane %v253, 5
      %v1334 = vsel %vm1225, %v1332, %v1333
      %v1335 = vrot.slane %v1333, 4
      %v1336 = vrot.slane %v254, 5
      %v1337 = vsel %vm1225, %v1335, %v1336
      %s1338 = scalar_lea.vmem %s1, 10
      %v1339 = vld [vmem:[%s1338] sm:$0x3]
      %v1340 = vunpack.c.l.b16 %v1229
      %v1341 = vunpack.c.l.b16 %v1232
      %v1342 = vunpack.c.l.b16 %v1236
      %v1343 = vunpack.c.l.b16 %v1239
      %v1344 = vunpack.c.l.b16 %v1243
      %v1345 = vunpack.c.l.b16 %v1246
      %v1346 = vunpack.c.l.b16 %v1250
      %v1347 = vunpack.c.l.b16 %v1253
      %v1348 = vunpack.c.l.b16 %v1257
      %v1349 = vunpack.c.l.b16 %v1260
      %v1350 = vunpack.c.l.b16 %v1264
      %v1351 = vunpack.c.l.b16 %v1267
      %v1352 = vunpack.c.l.b16 %v1271
      %v1353 = vunpack.c.l.b16 %v1274
      %v1354 = vunpack.c.l.b16 %v1278
      %v1355 = vunpack.c.l.b16 %v1281
      %v1356 = vunpack.c.l.b16 %v1285
      %v1357 = vunpack.c.l.b16 %v1288
      %v1358 = vunpack.c.l.b16 %v1292
      %v1359 = vunpack.c.l.b16 %v1295
      %v1360 = vunpack.c.l.b16 %v1299
      %v1361 = vunpack.c.l.b16 %v1302
      %v1362 = vunpack.c.l.b16 %v1306
      %v1363 = vunpack.c.l.b16 %v1309
      %v1364 = vunpack.c.l.b16 %v1313
      %v1365 = vunpack.c.l.b16 %v1316
      %v1366 = vunpack.c.l.b16 %v1320
      %v1367 = vunpack.c.l.b16 %v1323
      %v1368 = vunpack.c.l.b16 %v1327
      %v1369 = vunpack.c.l.b16 %v1330
      %v1370 = vunpack.c.l.b16 %v1334
      %v1371 = vunpack.c.l.b16 %v1337
      %v1372 = vpack.c.b16 %v1341, %v1340
      %v1373 = vpack.c.b16 %v1343, %v1342
      %v1374 = vpack.c.b16 %v1345, %v1344
      %v1375 = vpack.c.b16 %v1347, %v1346
      %v1376 = vpack.c.b16 %v1349, %v1348
      %v1377 = vpack.c.b16 %v1351, %v1350
      %v1378 = vpack.c.b16 %v1353, %v1352
      %v1379 = vpack.c.b16 %v1355, %v1354
      %v1380 = vpack.c.b16 %v1357, %v1356
      %v1381 = vpack.c.b16 %v1359, %v1358
      %v1382 = vpack.c.b16 %v1361, %v1360
      %v1383 = vpack.c.b16 %v1363, %v1362
      %v1384 = vpack.c.b16 %v1365, %v1364
      %v1385 = vpack.c.b16 %v1367, %v1366
      %v1386 = vpack.c.b16 %v1369, %v1368
      %v1387 = vpack.c.b16 %v1371, %v1370
      %v1389 = vsel %vm699, %v1372, 0
      %v1392 = vsel %vm699, %v1373, 0
      %v1395 = vsel %vm699, %v1374, 0
      %v1398 = vsel %vm699, %v1375, 0
      %v1401 = vsel %vm699, %v1376, 0
      %v1404 = vsel %vm699, %v1377, 0
      %v1407 = vsel %vm699, %v1378, 0
      %v1410 = vsel %vm699, %v1379, 0
      %v1413 = vsel %vm699, %v1380, 0
      %v1416 = vsel %vm699, %v1381, 0
      %v1419 = vsel %vm699, %v1382, 0
      %v1422 = vsel %vm699, %v1383, 0
      %v1425 = vsel %vm699, %v1384, 0
      %v1428 = vsel %vm699, %v1385, 0
      %v1431 = vsel %vm699, %v1386, 0
      %v1434 = vsel %vm699, %v1387, 0
      %v1437 = vsel %vm748, %v1339, 0
      %1439 = vmatprep.subr.bf16.mxu0 0
      %1440 = vmatpush1.bf16.msra.mxu0 %v1437
      %1441 = vmatprep.subr.bf16.mxu0 0
      %1442 = vmatpush1.bf16.msra.mxu0 0
      %1443 = vmatprep.subr.bf16.mxu0 0
      %1444 = vmatpush1.bf16.msra.mxu0 0
      %1445 = vmatprep.subr.bf16.mxu0 0
      %1446 = vmatpush1.bf16.msra.mxu0 0
      %1447 = vmatprep.subr.bf16.mxu0 0
      %1448 = vmatpush1.bf16.msra.mxu0 0
      %1449 = vmatprep.subr.bf16.mxu0 0
      %1450 = vmatpush1.bf16.msra.mxu0 0
      %1451 = vmatprep.subr.bf16.mxu0 0
      %1452 = vmatpush1.bf16.msra.mxu0 0
      %1453 = vmatprep.subr.bf16.mxu0 0
      %1454 = vmatpush1.bf16.msra.mxu0 0
      %1455 = vmatprep.subr.bf16.mxu0 0
      %1456 = vmatpush1.bf16.msra.mxu0 0
      %1457 = vmatprep.subr.bf16.mxu0 0
      %1458 = vmatpush1.bf16.msra.mxu0 0
      %1459 = vmatprep.subr.bf16.mxu0 0
      %1460 = vmatpush1.bf16.msra.mxu0 0
      %1461 = vmatprep.subr.bf16.mxu0 0
      %1462 = vmatpush1.bf16.msra.mxu0 0
      %1463 = vmatprep.subr.bf16.mxu0 0
      %1464 = vmatpush1.bf16.msra.mxu0 0
      %1465 = vmatprep.subr.bf16.mxu0 0
      %1466 = vmatpush1.bf16.msra.mxu0 0
      %1467 = vmatprep.subr.bf16.mxu0 0
      %1468 = vmatpush1.bf16.msra.mxu0 0
      %1469 = vmatprep.subr.bf16.mxu0 0
      %1470 = vmatpush1.bf16.msra.mxu0 0
      %1471 = vmatprep.mubr.bf16.mxu0 0
      %1472 = vmatmul.mubr.bf16.gmra.mrb[0].mxu0 %v1389
      %v1473 = vpop.f32.mrb[0].mxu0
      %v1474 = vadd.f32 0.0, %v1473
      %v1475 = vpop.f32.mrb[0].mxu0
      %v1476 = vpop.f32.mrb[0].mxu0
      %v1477 = vadd.f32 0.0, %v1476
      %v1478 = vpop.f32.mrb[0].mxu0
      %1479 = vmatprep.mubr.bf16.mxu0 0
      %1480 = vmatmul.mubr.bf16.gmra.mrb[0].mxu0 %v1392
      %v1481 = vpop.f32.mrb[0].mxu0
      %v1482 = vadd.f32 0.0, %v1481
      %v1483 = vpop.f32.mrb[0].mxu0
      %v1484 = vpop.f32.mrb[0].mxu0
      %v1485 = vadd.f32 0.0, %v1484
      %v1486 = vpop.f32.mrb[0].mxu0
      %1487 = vmatprep.mubr.bf16.mxu0 0
      %1488 = vmatmul.mubr.bf16.gmra.mrb[0].mxu0 %v1395
      %v1489 = vpop.f32.mrb[0].mxu0
      %v1490 = vadd.f32 0.0, %v1489
      %v1491 = vpop.f32.mrb[0].mxu0
      %v1492 = vpop.f32.mrb[0].mxu0
      %v1493 = vadd.f32 0.0, %v1492
      %v1494 = vpop.f32.mrb[0].mxu0
      %1495 = vmatprep.mubr.bf16.mxu0 0
      %1496 = vmatmul.mubr.bf16.gmra.mrb[0].mxu0 %v1398
      %v1497 = vpop.f32.mrb[0].mxu0
      %v1498 = vadd.f32 0.0, %v1497
      %v1499 = vpop.f32.mrb[0].mxu0
      %v1500 = vpop.f32.mrb[0].mxu0
      %v1501 = vadd.f32 0.0, %v1500
      %v1502 = vpop.f32.mrb[0].mxu0
      %1503 = vmatprep.mubr.bf16.mxu0 0
      %1504 = vmatmul.mubr.bf16.gmra.mrb[0].mxu0 %v1401
      %v1505 = vpop.f32.mrb[0].mxu0
      %v1506 = vadd.f32 0.0, %v1505
      %v1507 = vpop.f32.mrb[0].mxu0
      %v1508 = vpop.f32.mrb[0].mxu0
      %v1509 = vadd.f32 0.0, %v1508
      %v1510 = vpop.f32.mrb[0].mxu0
      %1511 = vmatprep.mubr.bf16.mxu0 0
      %1512 = vmatmul.mubr.bf16.gmra.mrb[0].mxu0 %v1404
      %v1513 = vpop.f32.mrb[0].mxu0
      %v1514 = vadd.f32 0.0, %v1513
      %v1515 = vpop.f32.mrb[0].mxu0
      %v1516 = vpop.f32.mrb[0].mxu0
      %v1517 = vadd.f32 0.0, %v1516
      %v1518 = vpop.f32.mrb[0].mxu0
      %1519 = vmatprep.mubr.bf16.mxu0 0
      %1520 = vmatmul.mubr.bf16.gmra.mrb[0].mxu0 %v1407
      %v1521 = vpop.f32.mrb[0].mxu0
      %v1522 = vadd.f32 0.0, %v1521
      %v1523 = vpop.f32.mrb[0].mxu0
      %v1524 = vpop.f32.mrb[0].mxu0
      %v1525 = vadd.f32 0.0, %v1524
      %v1526 = vpop.f32.mrb[0].mxu0
      %1527 = vmatprep.mubr.bf16.mxu0 0
      %1528 = vmatmul.mubr.bf16.gmra.mrb[0].mxu0 %v1410
      %v1529 = vpop.f32.mrb[0].mxu0
      %v1530 = vadd.f32 0.0, %v1529
      %v1531 = vpop.f32.mrb[0].mxu0
      %v1532 = vpop.f32.mrb[0].mxu0
      %v1533 = vadd.f32 0.0, %v1532
      %v1534 = vpop.f32.mrb[0].mxu0
      %1535 = vmatprep.mubr.bf16.mxu0 0
      %1536 = vmatmul.mubr.bf16.gmra.mrb[0].mxu0 %v1413
      %v1537 = vpop.f32.mrb[0].mxu0
      %v1538 = vadd.f32 0.0, %v1537
      %v1539 = vpop.f32.mrb[0].mxu0
      %v1540 = vpop.f32.mrb[0].mxu0
      %v1541 = vadd.f32 0.0, %v1540
      %v1542 = vpop.f32.mrb[0].mxu0
      %1543 = vmatprep.mubr.bf16.mxu0 0
      %1544 = vmatmul.mubr.bf16.gmra.mrb[0].mxu0 %v1416
      %v1545 = vpop.f32.mrb[0].mxu0
      %v1546 = vadd.f32 0.0, %v1545
      %v1547 = vpop.f32.mrb[0].mxu0
      %v1548 = vpop.f32.mrb[0].mxu0
      %v1549 = vadd.f32 0.0, %v1548
      %v1550 = vpop.f32.mrb[0].mxu0
      %1551 = vmatprep.mubr.bf16.mxu0 0
      %1552 = vmatmul.mubr.bf16.gmra.mrb[0].mxu0 %v1419
      %v1553 = vpop.f32.mrb[0].mxu0
      %v1554 = vadd.f32 0.0, %v1553
      %v1555 = vpop.f32.mrb[0].mxu0
      %v1556 = vpop.f32.mrb[0].mxu0
      %v1557 = vadd.f32 0.0, %v1556
      %v1558 = vpop.f32.mrb[0].mxu0
      %1559 = vmatprep.mubr.bf16.mxu0 0
      %1560 = vmatmul.mubr.bf16.gmra.mrb[0].mxu0 %v1422
      %v1561 = vpop.f32.mrb[0].mxu0
      %v1562 = vadd.f32 0.0, %v1561
      %v1563 = vpop.f32.mrb[0].mxu0
      %v1564 = vpop.f32.mrb[0].mxu0
      %v1565 = vadd.f32 0.0, %v1564
      %v1566 = vpop.f32.mrb[0].mxu0
      %1567 = vmatprep.mubr.bf16.mxu0 0
      %1568 = vmatmul.mubr.bf16.gmra.mrb[0].mxu0 %v1425
      %v1569 = vpop.f32.mrb[0].mxu0
      %v1570 = vadd.f32 0.0, %v1569
      %v1571 = vpop.f32.mrb[0].mxu0
      %v1572 = vpop.f32.mrb[0].mxu0
      %v1573 = vadd.f32 0.0, %v1572
      %v1574 = vpop.f32.mrb[0].mxu0
      %1575 = vmatprep.mubr.bf16.mxu0 0
      %1576 = vmatmul.mubr.bf16.gmra.mrb[0].mxu0 %v1428
      %v1577 = vpop.f32.mrb[0].mxu0
      %v1578 = vadd.f32 0.0, %v1577
      %v1579 = vpop.f32.mrb[0].mxu0
      %v1580 = vpop.f32.mrb[0].mxu0
      %v1581 = vadd.f32 0.0, %v1580
      %v1582 = vpop.f32.mrb[0].mxu0
      %1583 = vmatprep.mubr.bf16.mxu0 0
      %1584 = vmatmul.mubr.bf16.gmra.mrb[0].mxu0 %v1431
      %v1585 = vpop.f32.mrb[0].mxu0
      %v1586 = vadd.f32 0.0, %v1585
      %v1587 = vpop.f32.mrb[0].mxu0
      %v1588 = vpop.f32.mrb[0].mxu0
      %v1589 = vadd.f32 0.0, %v1588
      %v1590 = vpop.f32.mrb[0].mxu0
      %1591 = vmatprep.mubr.bf16.mxu0 0
      %1592 = vmatmul.mubr.bf16.gmra.mrb[0].mxu0 %v1434
      %v1593 = vpop.f32.mrb[0].mxu0
      %v1594 = vadd.f32 0.0, %v1593
      %v1595 = vpop.f32.mrb[0].mxu0
      %v1596 = vpop.f32.mrb[0].mxu0
      %v1597 = vadd.f32 0.0, %v1596
      %v1598 = vpop.f32.mrb[0].mxu0
      %1599 = vdwg.mxu0
      %v1601 = vsel %vm748, %v1206, 0
      %1603 = vmatprep.subr.bf16.mxu0 0
      %1604 = vmatpush1.bf16.msra.mxu0 %v1601
      %1605 = vmatprep.subr.bf16.mxu0 0
      %1606 = vmatpush1.bf16.msra.mxu0 0
      %1607 = vmatprep.subr.bf16.mxu0 0
      %1608 = vmatpush1.bf16.msra.mxu0 0
      %1609 = vmatprep.subr.bf16.mxu0 0
      %1610 = vmatpush1.bf16.msra.mxu0 0
      %1611 = vmatprep.subr.bf16.mxu0 0
      %1612 = vmatpush1.bf16.msra.mxu0 0
      %1613 = vmatprep.subr.bf16.mxu0 0
      %1614 = vmatpush1.bf16.msra.mxu0 0
      %1615 = vmatprep.subr.bf16.mxu0 0
      %1616 = vmatpush1.bf16.msra.mxu0 0
      %1617 = vmatprep.subr.bf16.mxu0 0
      %1618 = vmatpush1.bf16.msra.mxu0 0
      %1619 = vmatprep.subr.bf16.mxu0 0
      %1620 = vmatpush1.bf16.msra.mxu0 0
      %1621 = vmatprep.subr.bf16.mxu0 0
      %1622 = vmatpush1.bf16.msra.mxu0 0
      %1623 = vmatprep.subr.bf16.mxu0 0
      %1624 = vmatpush1.bf16.msra.mxu0 0
      %1625 = vmatprep.subr.bf16.mxu0 0
      %1626 = vmatpush1.bf16.msra.mxu0 0
      %1627 = vmatprep.subr.bf16.mxu0 0
      %1628 = vmatpush1.bf16.msra.mxu0 0
      %1629 = vmatprep.subr.bf16.mxu0 0
      %1630 = vmatpush1.bf16.msra.mxu0 0
      %1631 = vmatprep.subr.bf16.mxu0 0
      %1632 = vmatpush1.bf16.msra.mxu0 0
      %1633 = vmatprep.subr.bf16.mxu0 0
      %1634 = vmatpush1.bf16.msra.mxu0 0
      %1635 = vmatprep.mubr.bf16.mxu0 0
      %1636 = vmatmul.mubr.bf16.gmra.mrb[0].mxu0 %v701
      %v1637 = vpop.f32.mrb[0].mxu0
      %v1638 = vadd.f32 %v1474, %v1637
      %v1639 = vpop.f32.mrb[0].mxu0
      %v1640 = vpop.f32.mrb[0].mxu0
      %v1641 = vadd.f32 %v1477, %v1640
      %v1642 = vpop.f32.mrb[0].mxu0
      %1643 = vmatprep.mubr.bf16.mxu0 0
      %1644 = vmatmul.mubr.bf16.gmra.mrb[0].mxu0 %v704
      %v1645 = vpop.f32.mrb[0].mxu0
      %v1646 = vadd.f32 %v1482, %v1645
      %v1647 = vpop.f32.mrb[0].mxu0
      %v1648 = vpop.f32.mrb[0].mxu0
      %v1649 = vadd.f32 %v1485, %v1648
      %v1650 = vpop.f32.mrb[0].mxu0
      %1651 = vmatprep.mubr.bf16.mxu0 0
      %1652 = vmatmul.mubr.bf16.gmra.mrb[0].mxu0 %v707
      %v1653 = vpop.f32.mrb[0].mxu0
      %v1654 = vadd.f32 %v1490, %v1653
      %v1655 = vpop.f32.mrb[0].mxu0
      %v1656 = vpop.f32.mrb[0].mxu0
      %v1657 = vadd.f32 %v1493, %v1656
      %v1658 = vpop.f32.mrb[0].mxu0
      %1659 = vmatprep.mubr.bf16.mxu0 0
      %1660 = vmatmul.mubr.bf16.gmra.mrb[0].mxu0 %v710
      %v1661 = vpop.f32.mrb[0].mxu0
      %v1662 = vadd.f32 %v1498, %v1661
      %v1663 = vpop.f32.mrb[0].mxu0
      %v1664 = vpop.f32.mrb[0].mxu0
      %v1665 = vadd.f32 %v1501, %v1664
      %v1666 = vpop.f32.mrb[0].mxu0
      %1667 = vmatprep.mubr.bf16.mxu0 0
      %1668 = vmatmul.mubr.bf16.gmra.mrb[0].mxu0 %v713
      %v1669 = vpop.f32.mrb[0].mxu0
      %v1670 = vadd.f32 %v1506, %v1669
      %v1671 = vpop.f32.mrb[0].mxu0
      %v1672 = vpop.f32.mrb[0].mxu0
      %v1673 = vadd.f32 %v1509, %v1672
      %v1674 = vpop.f32.mrb[0].mxu0
      %1675 = vmatprep.mubr.bf16.mxu0 0
      %1676 = vmatmul.mubr.bf16.gmra.mrb[0].mxu0 %v716
      %v1677 = vpop.f32.mrb[0].mxu0
      %v1678 = vadd.f32 %v1514, %v1677
      %v1679 = vpop.f32.mrb[0].mxu0
      %v1680 = vpop.f32.mrb[0].mxu0
      %v1681 = vadd.f32 %v1517, %v1680
      %v1682 = vpop.f32.mrb[0].mxu0
      %1683 = vmatprep.mubr.bf16.mxu0 0
      %1684 = vmatmul.mubr.bf16.gmra.mrb[0].mxu0 %v719
      %v1685 = vpop.f32.mrb[0].mxu0
      %v1686 = vadd.f32 %v1522, %v1685
      %v1687 = vpop.f32.mrb[0].mxu0
      %v1688 = vpop.f32.mrb[0].mxu0
      %v1689 = vadd.f32 %v1525, %v1688
      %v1690 = vpop.f32.mrb[0].mxu0
      %1691 = vmatprep.mubr.bf16.mxu0 0
      %1692 = vmatmul.mubr.bf16.gmra.mrb[0].mxu0 %v722
      %v1693 = vpop.f32.mrb[0].mxu0
      %v1694 = vadd.f32 %v1530, %v1693
      %v1695 = vpop.f32.mrb[0].mxu0
      %v1696 = vpop.f32.mrb[0].mxu0
      %v1697 = vadd.f32 %v1533, %v1696
      %v1698 = vpop.f32.mrb[0].mxu0
      %1699 = vmatprep.mubr.bf16.mxu0 0
      %1700 = vmatmul.mubr.bf16.gmra.mrb[0].mxu0 %v725
      %v1701 = vpop.f32.mrb[0].mxu0
      %v1702 = vadd.f32 %v1538, %v1701
      %v1703 = vpop.f32.mrb[0].mxu0
      %v1704 = vpop.f32.mrb[0].mxu0
      %v1705 = vadd.f32 %v1541, %v1704
      %v1706 = vpop.f32.mrb[0].mxu0
      %1707 = vmatprep.mubr.bf16.mxu0 0
      %1708 = vmatmul.mubr.bf16.gmra.mrb[0].mxu0 %v728
      %v1709 = vpop.f32.mrb[0].mxu0
      %v1710 = vadd.f32 %v1546, %v1709
      %v1711 = vpop.f32.mrb[0].mxu0
      %v1712 = vpop.f32.mrb[0].mxu0
      %v1713 = vadd.f32 %v1549, %v1712
      %v1714 = vpop.f32.mrb[0].mxu0
      %1715 = vmatprep.mubr.bf16.mxu0 0
      %1716 = vmatmul.mubr.bf16.gmra.mrb[0].mxu0 %v731
      %v1717 = vpop.f32.mrb[0].mxu0
      %v1718 = vadd.f32 %v1554, %v1717
      %v1719 = vpop.f32.mrb[0].mxu0
      %v1720 = vpop.f32.mrb[0].mxu0
      %v1721 = vadd.f32 %v1557, %v1720
      %v1722 = vpop.f32.mrb[0].mxu0
      %1723 = vmatprep.mubr.bf16.mxu0 0
      %1724 = vmatmul.mubr.bf16.gmra.mrb[0].mxu0 %v734
      %v1725 = vpop.f32.mrb[0].mxu0
      %v1726 = vadd.f32 %v1562, %v1725
      %v1727 = vpop.f32.mrb[0].mxu0
      %v1728 = vpop.f32.mrb[0].mxu0
      %v1729 = vadd.f32 %v1565, %v1728
      %v1730 = vpop.f32.mrb[0].mxu0
      %1731 = vmatprep.mubr.bf16.mxu0 0
      %1732 = vmatmul.mubr.bf16.gmra.mrb[0].mxu0 %v737
      %v1733 = vpop.f32.mrb[0].mxu0
      %v1734 = vadd.f32 %v1570, %v1733
      %v1735 = vpop.f32.mrb[0].mxu0
      %v1736 = vpop.f32.mrb[0].mxu0
      %v1737 = vadd.f32 %v1573, %v1736
      %v1738 = vpop.f32.mrb[0].mxu0
      %1739 = vmatprep.mubr.bf16.mxu0 0
      %1740 = vmatmul.mubr.bf16.gmra.mrb[0].mxu0 %v740
      %v1741 = vpop.f32.mrb[0].mxu0
      %v1742 = vadd.f32 %v1578, %v1741
      %v1743 = vpop.f32.mrb[0].mxu0
      %v1744 = vpop.f32.mrb[0].mxu0
      %v1745 = vadd.f32 %v1581, %v1744
      %v1746 = vpop.f32.mrb[0].mxu0
      %1747 = vmatprep.mubr.bf16.mxu0 0
      %1748 = vmatmul.mubr.bf16.gmra.mrb[0].mxu0 %v743
      %v1749 = vpop.f32.mrb[0].mxu0
      %v1750 = vadd.f32 %v1586, %v1749
      %v1751 = vpop.f32.mrb[0].mxu0
      %v1752 = vpop.f32.mrb[0].mxu0
      %v1753 = vadd.f32 %v1589, %v1752
      %v1754 = vpop.f32.mrb[0].mxu0
      %1755 = vmatprep.mubr.bf16.mxu0 0
      %1756 = vmatmul.mubr.bf16.gmra.mrb[0].mxu0 %v746
      %v1757 = vpop.f32.mrb[0].mxu0
      %v1758 = vadd.f32 %v1594, %v1757
      %v1759 = vpop.f32.mrb[0].mxu0
      %v1760 = vpop.f32.mrb[0].mxu0
      %v1761 = vadd.f32 %v1597, %v1760
      %v1762 = vpop.f32.mrb[0].mxu0
      %1763 = vdwg.mxu0
      %s1764 = scalar_lea.vmem %s1, 4
      %v1765 = vld [vmem:[%s1764] sm:$0x3]
      %v1768 = vunpack.c.l.b16 %v255
      %v1769 = vunpack.c.l.b16 %v256
      %v1770 = vpack.c.b16 %v1769, %v1768
      %v1772 = vsel %vm699, %v1770, 0
      %v1775 = vsel %vm748, %v1765, 0
      %1777 = vmatprep.subr.bf16.mxu0 0
      %1778 = vmatpush1.bf16.msra.mxu0 %v1775
      %1779 = vmatprep.subr.bf16.mxu0 0
      %1780 = vmatpush1.bf16.msra.mxu0 0
      %1781 = vmatprep.subr.bf16.mxu0 0
      %1782 = vmatpush1.bf16.msra.mxu0 0
      %1783 = vmatprep.subr.bf16.mxu0 0
      %1784 = vmatpush1.bf16.msra.mxu0 0
      %1785 = vmatprep.subr.bf16.mxu0 0
      %1786 = vmatpush1.bf16.msra.mxu0 0
      %1787 = vmatprep.subr.bf16.mxu0 0
      %1788 = vmatpush1.bf16.msra.mxu0 0
      %1789 = vmatprep.subr.bf16.mxu0 0
      %1790 = vmatpush1.bf16.msra.mxu0 0
      %1791 = vmatprep.subr.bf16.mxu0 0
      %1792 = vmatpush1.bf16.msra.mxu0 0
      %1793 = vmatprep.subr.bf16.mxu0 0
      %1794 = vmatpush1.bf16.msra.mxu0 0
      %1795 = vmatprep.subr.bf16.mxu0 0
      %1796 = vmatpush1.bf16.msra.mxu0 0
      %1797 = vmatprep.subr.bf16.mxu0 0
      %1798 = vmatpush1.bf16.msra.mxu0 0
      %1799 = vmatprep.subr.bf16.mxu0 0
      %1800 = vmatpush1.bf16.msra.mxu0 0
      %1801 = vmatprep.subr.bf16.mxu0 0
      %1802 = vmatpush1.bf16.msra.mxu0 0
      %1803 = vmatprep.subr.bf16.mxu0 0
      %1804 = vmatpush1.bf16.msra.mxu0 0
      %1805 = vmatprep.subr.bf16.mxu0 0
      %1806 = vmatpush1.bf16.msra.mxu0 0
      %1807 = vmatprep.subr.bf16.mxu0 0
      %1808 = vmatpush1.bf16.msra.mxu0 0
      %1809 = vmatprep.mubr.bf16.mxu0 0
      %1810 = vmatmul.mubr.bf16.gmra.mrb[0].mxu0 %v997
      %v1811 = vpop.f32.mrb[0].mxu0
      %v1812 = vadd.f32 0.0, %v1811
      %v1813 = vpop.f32.mrb[0].mxu0
      %v1814 = vpop.f32.mrb[0].mxu0
      %v1815 = vadd.f32 0.0, %v1814
      %v1816 = vpop.f32.mrb[0].mxu0
      %1817 = vmatprep.mubr.bf16.mxu0 0
      %1818 = vmatmul.mubr.bf16.gmra.mrb[0].mxu0 %v1000
      %v1819 = vpop.f32.mrb[0].mxu0
      %v1820 = vadd.f32 0.0, %v1819
      %v1821 = vpop.f32.mrb[0].mxu0
      %v1822 = vpop.f32.mrb[0].mxu0
      %v1823 = vadd.f32 0.0, %v1822
      %v1824 = vpop.f32.mrb[0].mxu0
      %1825 = vmatprep.mubr.bf16.mxu0 0
      %1826 = vmatmul.mubr.bf16.gmra.mrb[0].mxu0 %v1003
      %v1827 = vpop.f32.mrb[0].mxu0
      %v1828 = vadd.f32 0.0, %v1827
      %v1829 = vpop.f32.mrb[0].mxu0
      %v1830 = vpop.f32.mrb[0].mxu0
      %v1831 = vadd.f32 0.0, %v1830
      %v1832 = vpop.f32.mrb[0].mxu0
      %1833 = vmatprep.mubr.bf16.mxu0 0
      %1834 = vmatmul.mubr.bf16.gmra.mrb[0].mxu0 %v1006
      %v1835 = vpop.f32.mrb[0].mxu0
      %v1836 = vadd.f32 0.0, %v1835
      %v1837 = vpop.f32.mrb[0].mxu0
      %v1838 = vpop.f32.mrb[0].mxu0
      %v1839 = vadd.f32 0.0, %v1838
      %v1840 = vpop.f32.mrb[0].mxu0
      %1841 = vmatprep.mubr.bf16.mxu0 0
      %1842 = vmatmul.mubr.bf16.gmra.mrb[0].mxu0 %v1009
      %v1843 = vpop.f32.mrb[0].mxu0
      %v1844 = vadd.f32 0.0, %v1843
      %v1845 = vpop.f32.mrb[0].mxu0
      %v1846 = vpop.f32.mrb[0].mxu0
      %v1847 = vadd.f32 0.0, %v1846
      %v1848 = vpop.f32.mrb[0].mxu0
      %1849 = vmatprep.mubr.bf16.mxu0 0
      %1850 = vmatmul.mubr.bf16.gmra.mrb[0].mxu0 %v1012
      %v1851 = vpop.f32.mrb[0].mxu0
      %v1852 = vadd.f32 0.0, %v1851
      %v1853 = vpop.f32.mrb[0].mxu0
      %v1854 = vpop.f32.mrb[0].mxu0
      %v1855 = vadd.f32 0.0, %v1854
      %v1856 = vpop.f32.mrb[0].mxu0
      %1857 = vmatprep.mubr.bf16.mxu0 0
      %1858 = vmatmul.mubr.bf16.gmra.mrb[0].mxu0 %v1015
      %v1859 = vpop.f32.mrb[0].mxu0
      %v1860 = vadd.f32 0.0, %v1859
      %v1861 = vpop.f32.mrb[0].mxu0
      %v1862 = vpop.f32.mrb[0].mxu0
      %v1863 = vadd.f32 0.0, %v1862
      %v1864 = vpop.f32.mrb[0].mxu0
      %1865 = vmatprep.mubr.bf16.mxu0 0
      %1866 = vmatmul.mubr.bf16.gmra.mrb[0].mxu0 %v1018
      %v1867 = vpop.f32.mrb[0].mxu0
      %v1868 = vadd.f32 0.0, %v1867
      %v1869 = vpop.f32.mrb[0].mxu0
      %v1870 = vpop.f32.mrb[0].mxu0
      %v1871 = vadd.f32 0.0, %v1870
      %v1872 = vpop.f32.mrb[0].mxu0
      %1873 = vmatprep.mubr.bf16.mxu0 0
      %1874 = vmatmul.mubr.bf16.gmra.mrb[0].mxu0 %v1021
      %v1875 = vpop.f32.mrb[0].mxu0
      %v1876 = vadd.f32 0.0, %v1875
      %v1877 = vpop.f32.mrb[0].mxu0
      %v1878 = vpop.f32.mrb[0].mxu0
      %v1879 = vadd.f32 0.0, %v1878
      %v1880 = vpop.f32.mrb[0].mxu0
      %1881 = vmatprep.mubr.bf16.mxu0 0
      %1882 = vmatmul.mubr.bf16.gmra.mrb[0].mxu0 %v1024
      %v1883 = vpop.f32.mrb[0].mxu0
      %v1884 = vadd.f32 0.0, %v1883
      %v1885 = vpop.f32.mrb[0].mxu0
      %v1886 = vpop.f32.mrb[0].mxu0
      %v1887 = vadd.f32 0.0, %v1886
      %v1888 = vpop.f32.mrb[0].mxu0
      %1889 = vmatprep.mubr.bf16.mxu0 0
      %1890 = vmatmul.mubr.bf16.gmra.mrb[0].mxu0 %v1027
      %v1891 = vpop.f32.mrb[0].mxu0
      %v1892 = vadd.f32 0.0, %v1891
      %v1893 = vpop.f32.mrb[0].mxu0
      %v1894 = vpop.f32.mrb[0].mxu0
      %v1895 = vadd.f32 0.0, %v1894
      %v1896 = vpop.f32.mrb[0].mxu0
      %1897 = vmatprep.mubr.bf16.mxu0 0
      %1898 = vmatmul.mubr.bf16.gmra.mrb[0].mxu0 %v1030
      %v1899 = vpop.f32.mrb[0].mxu0
      %v1900 = vadd.f32 0.0, %v1899
      %v1901 = vpop.f32.mrb[0].mxu0
      %v1902 = vpop.f32.mrb[0].mxu0
      %v1903 = vadd.f32 0.0, %v1902
      %v1904 = vpop.f32.mrb[0].mxu0
      %1905 = vmatprep.mubr.bf16.mxu0 0
      %1906 = vmatmul.mubr.bf16.gmra.mrb[0].mxu0 %v1033
      %v1907 = vpop.f32.mrb[0].mxu0
      %v1908 = vadd.f32 0.0, %v1907
      %v1909 = vpop.f32.mrb[0].mxu0
      %v1910 = vpop.f32.mrb[0].mxu0
      %v1911 = vadd.f32 0.0, %v1910
      %v1912 = vpop.f32.mrb[0].mxu0
      %1913 = vmatprep.mubr.bf16.mxu0 0
      %1914 = vmatmul.mubr.bf16.gmra.mrb[0].mxu0 %v1036
      %v1915 = vpop.f32.mrb[0].mxu0
      %v1916 = vadd.f32 0.0, %v1915
      %v1917 = vpop.f32.mrb[0].mxu0
      %v1918 = vpop.f32.mrb[0].mxu0
      %v1919 = vadd.f32 0.0, %v1918
      %v1920 = vpop.f32.mrb[0].mxu0
      %1921 = vmatprep.mubr.bf16.mxu0 0
      %1922 = vmatmul.mubr.bf16.gmra.mrb[0].mxu0 %v1039
      %v1923 = vpop.f32.mrb[0].mxu0
      %v1924 = vadd.f32 0.0, %v1923
      %v1925 = vpop.f32.mrb[0].mxu0
      %v1926 = vpop.f32.mrb[0].mxu0
      %v1927 = vadd.f32 0.0, %v1926
      %v1928 = vpop.f32.mrb[0].mxu0
      %1929 = vmatprep.mubr.bf16.mxu0 0
      %1930 = vmatmul.mubr.bf16.gmra.mrb[0].mxu0 %v1772
      %v1931 = vpop.f32.mrb[0].mxu0
      %v1932 = vadd.f32 0.0, %v1931
      %v1933 = vpop.f32.mrb[0].mxu0
      %v1934 = vpop.f32.mrb[0].mxu0
      %v1935 = vadd.f32 0.0, %v1934
      %v1936 = vpop.f32.mrb[0].mxu0
      %1937 = vdwg.mxu0
      %v1938 = vadd.f32 %v1079, %v1812
      %v1939 = vadd.f32 %v1082, %v1815
      %v1940 = vadd.f32 %v1087, %v1820
      %v1941 = vadd.f32 %v1090, %v1823
      %v1942 = vadd.f32 %v1095, %v1828
      %v1943 = vadd.f32 %v1098, %v1831
      %v1944 = vadd.f32 %v1103, %v1836
      %v1945 = vadd.f32 %v1106, %v1839
      %v1946 = vadd.f32 %v1111, %v1844
      %v1947 = vadd.f32 %v1114, %v1847
      %v1948 = vadd.f32 %v1119, %v1852
      %v1949 = vadd.f32 %v1122, %v1855
      %v1950 = vadd.f32 %v1127, %v1860
      %v1951 = vadd.f32 %v1130, %v1863
      %v1952 = vadd.f32 %v1135, %v1868
      %v1953 = vadd.f32 %v1138, %v1871
      %v1954 = vadd.f32 %v1143, %v1876
      %v1955 = vadd.f32 %v1146, %v1879
      %v1956 = vadd.f32 %v1151, %v1884
      %v1957 = vadd.f32 %v1154, %v1887
      %v1958 = vadd.f32 %v1159, %v1892
      %v1959 = vadd.f32 %v1162, %v1895
      %v1960 = vadd.f32 %v1167, %v1900
      %v1961 = vadd.f32 %v1170, %v1903
      %v1962 = vadd.f32 %v1175, %v1908
      %v1963 = vadd.f32 %v1178, %v1911
      %v1964 = vadd.f32 %v1183, %v1916
      %v1965 = vadd.f32 %v1186, %v1919
      %v1966 = vadd.f32 %v1191, %v1924
      %v1967 = vadd.f32 %v1194, %v1927
      %v1968 = vadd.f32 %v1199, %v1932
      %v1969 = vadd.f32 %v1202, %v1935
      %s1970 = scalar_lea.vmem %s1, 16
      %v1971 = vld [vmem:[%s1970] sm:$0x3]
      %v1973 = vshrl.u32 %v255, 16
      %v1975 = vrot.slane %v1973, 4
      %v1976 = vshll.u32 %v255, 16
      %v1978 = vrot.slane %v1976, 5
      %v1979 = vor.u32 %v1975, %v1978
      %v1980 = vrot.slane %v1979, 4
      %v1982 = vshll.u32 %v256, 16
      %v1984 = vrot.slane %v1982, 5
      %v1985 = vsel %vm264, %v1980, %v1984
      %v1986 = vshrl.u32 %v256, 16
      %v1988 = vrot.slane %v1986, 4
      %v1989 = vor.u32 %v1988, %v1984
      %v1990 = vrot.slane %v1989, 4
      %v1992 = vshll.u32 %v257, 16
      %v1994 = vrot.slane %v1992, 5
      %v1995 = vsel %vm264, %v1990, %v1994
      %s1996 = scalar_lea.vmem %s1, 6
      %v1997 = vld [vmem:[%s1996] sm:$0x3]
      %v1998 = vunpack.c.l.b16 %v1985
      %v1999 = vunpack.c.l.b16 %v1995
      %v2000 = vpack.c.b16 %v1999, %v1998
      %v2002 = vsel %vm699, %v2000, 0
      %v2005 = vsel %vm748, %v1997, 0
      %2007 = vmatprep.subr.bf16.mxu0 0
      %2008 = vmatpush1.bf16.msra.mxu0 %v2005
      %2009 = vmatprep.subr.bf16.mxu0 0
      %2010 = vmatpush1.bf16.msra.mxu0 0
      %2011 = vmatprep.subr.bf16.mxu0 0
      %2012 = vmatpush1.bf16.msra.mxu0 0
      %2013 = vmatprep.subr.bf16.mxu0 0
      %2014 = vmatpush1.bf16.msra.mxu0 0
      %2015 = vmatprep.subr.bf16.mxu0 0
      %2016 = vmatpush1.bf16.msra.mxu0 0
      %2017 = vmatprep.subr.bf16.mxu0 0
      %2018 = vmatpush1.bf16.msra.mxu0 0
      %2019 = vmatprep.subr.bf16.mxu0 0
      %2020 = vmatpush1.bf16.msra.mxu0 0
      %2021 = vmatprep.subr.bf16.mxu0 0
      %2022 = vmatpush1.bf16.msra.mxu0 0
      %2023 = vmatprep.subr.bf16.mxu0 0
      %2024 = vmatpush1.bf16.msra.mxu0 0
      %2025 = vmatprep.subr.bf16.mxu0 0
      %2026 = vmatpush1.bf16.msra.mxu0 0
      %2027 = vmatprep.subr.bf16.mxu0 0
      %2028 = vmatpush1.bf16.msra.mxu0 0
      %2029 = vmatprep.subr.bf16.mxu0 0
      %2030 = vmatpush1.bf16.msra.mxu0 0
      %2031 = vmatprep.subr.bf16.mxu0 0
      %2032 = vmatpush1.bf16.msra.mxu0 0
      %2033 = vmatprep.subr.bf16.mxu0 0
      %2034 = vmatpush1.bf16.msra.mxu0 0
      %2035 = vmatprep.subr.bf16.mxu0 0
      %2036 = vmatpush1.bf16.msra.mxu0 0
      %2037 = vmatprep.subr.bf16.mxu0 0
      %2038 = vmatpush1.bf16.msra.mxu0 0
      %2039 = vmatprep.mubr.bf16.mxu0 0
      %2040 = vmatmul.mubr.bf16.gmra.mrb[0].mxu0 %v704
      %v2041 = vpop.f32.mrb[0].mxu0
      %v2042 = vadd.f32 0.0, %v2041
      %v2043 = vpop.f32.mrb[0].mxu0
      %v2044 = vpop.f32.mrb[0].mxu0
      %v2045 = vadd.f32 0.0, %v2044
      %v2046 = vpop.f32.mrb[0].mxu0
      %2047 = vmatprep.mubr.bf16.mxu0 0
      %2048 = vmatmul.mubr.bf16.gmra.mrb[0].mxu0 %v707
      %v2049 = vpop.f32.mrb[0].mxu0
      %v2050 = vadd.f32 0.0, %v2049
      %v2051 = vpop.f32.mrb[0].mxu0
      %v2052 = vpop.f32.mrb[0].mxu0
      %v2053 = vadd.f32 0.0, %v2052
      %v2054 = vpop.f32.mrb[0].mxu0
      %2055 = vmatprep.mubr.bf16.mxu0 0
      %2056 = vmatmul.mubr.bf16.gmra.mrb[0].mxu0 %v710
      %v2057 = vpop.f32.mrb[0].mxu0
      %v2058 = vadd.f32 0.0, %v2057
      %v2059 = vpop.f32.mrb[0].mxu0
      %v2060 = vpop.f32.mrb[0].mxu0
      %v2061 = vadd.f32 0.0, %v2060
      %v2062 = vpop.f32.mrb[0].mxu0
      %2063 = vmatprep.mubr.bf16.mxu0 0
      %2064 = vmatmul.mubr.bf16.gmra.mrb[0].mxu0 %v713
      %v2065 = vpop.f32.mrb[0].mxu0
      %v2066 = vadd.f32 0.0, %v2065
      %v2067 = vpop.f32.mrb[0].mxu0
      %v2068 = vpop.f32.mrb[0].mxu0
      %v2069 = vadd.f32 0.0, %v2068
      %v2070 = vpop.f32.mrb[0].mxu0
      %2071 = vmatprep.mubr.bf16.mxu0 0
      %2072 = vmatmul.mubr.bf16.gmra.mrb[0].mxu0 %v716
      %v2073 = vpop.f32.mrb[0].mxu0
      %v2074 = vadd.f32 0.0, %v2073
      %v2075 = vpop.f32.mrb[0].mxu0
      %v2076 = vpop.f32.mrb[0].mxu0
      %v2077 = vadd.f32 0.0, %v2076
      %v2078 = vpop.f32.mrb[0].mxu0
      %2079 = vmatprep.mubr.bf16.mxu0 0
      %2080 = vmatmul.mubr.bf16.gmra.mrb[0].mxu0 %v719
      %v2081 = vpop.f32.mrb[0].mxu0
      %v2082 = vadd.f32 0.0, %v2081
      %v2083 = vpop.f32.mrb[0].mxu0
      %v2084 = vpop.f32.mrb[0].mxu0
      %v2085 = vadd.f32 0.0, %v2084
      %v2086 = vpop.f32.mrb[0].mxu0
      %2087 = vmatprep.mubr.bf16.mxu0 0
      %2088 = vmatmul.mubr.bf16.gmra.mrb[0].mxu0 %v722
      %v2089 = vpop.f32.mrb[0].mxu0
      %v2090 = vadd.f32 0.0, %v2089
      %v2091 = vpop.f32.mrb[0].mxu0
      %v2092 = vpop.f32.mrb[0].mxu0
      %v2093 = vadd.f32 0.0, %v2092
      %v2094 = vpop.f32.mrb[0].mxu0
      %2095 = vmatprep.mubr.bf16.mxu0 0
      %2096 = vmatmul.mubr.bf16.gmra.mrb[0].mxu0 %v725
      %v2097 = vpop.f32.mrb[0].mxu0
      %v2098 = vadd.f32 0.0, %v2097
      %v2099 = vpop.f32.mrb[0].mxu0
      %v2100 = vpop.f32.mrb[0].mxu0
      %v2101 = vadd.f32 0.0, %v2100
      %v2102 = vpop.f32.mrb[0].mxu0
      %2103 = vmatprep.mubr.bf16.mxu0 0
      %2104 = vmatmul.mubr.bf16.gmra.mrb[0].mxu0 %v728
      %v2105 = vpop.f32.mrb[0].mxu0
      %v2106 = vadd.f32 0.0, %v2105
      %v2107 = vpop.f32.mrb[0].mxu0
      %v2108 = vpop.f32.mrb[0].mxu0
      %v2109 = vadd.f32 0.0, %v2108
      %v2110 = vpop.f32.mrb[0].mxu0
      %2111 = vmatprep.mubr.bf16.mxu0 0
      %2112 = vmatmul.mubr.bf16.gmra.mrb[0].mxu0 %v731
      %v2113 = vpop.f32.mrb[0].mxu0
      %v2114 = vadd.f32 0.0, %v2113
      %v2115 = vpop.f32.mrb[0].mxu0
      %v2116 = vpop.f32.mrb[0].mxu0
      %v2117 = vadd.f32 0.0, %v2116
      %v2118 = vpop.f32.mrb[0].mxu0
      %2119 = vmatprep.mubr.bf16.mxu0 0
      %2120 = vmatmul.mubr.bf16.gmra.mrb[0].mxu0 %v734
      %v2121 = vpop.f32.mrb[0].mxu0
      %v2122 = vadd.f32 0.0, %v2121
      %v2123 = vpop.f32.mrb[0].mxu0
      %v2124 = vpop.f32.mrb[0].mxu0
      %v2125 = vadd.f32 0.0, %v2124
      %v2126 = vpop.f32.mrb[0].mxu0
      %2127 = vmatprep.mubr.bf16.mxu0 0
      %2128 = vmatmul.mubr.bf16.gmra.mrb[0].mxu0 %v737
      %v2129 = vpop.f32.mrb[0].mxu0
      %v2130 = vadd.f32 0.0, %v2129
      %v2131 = vpop.f32.mrb[0].mxu0
      %v2132 = vpop.f32.mrb[0].mxu0
      %v2133 = vadd.f32 0.0, %v2132
      %v2134 = vpop.f32.mrb[0].mxu0
      %2135 = vmatprep.mubr.bf16.mxu0 0
      %2136 = vmatmul.mubr.bf16.gmra.mrb[0].mxu0 %v740
      %v2137 = vpop.f32.mrb[0].mxu0
      %v2138 = vadd.f32 0.0, %v2137
      %v2139 = vpop.f32.mrb[0].mxu0
      %v2140 = vpop.f32.mrb[0].mxu0
      %v2141 = vadd.f32 0.0, %v2140
      %v2142 = vpop.f32.mrb[0].mxu0
      %2143 = vmatprep.mubr.bf16.mxu0 0
      %2144 = vmatmul.mubr.bf16.gmra.mrb[0].mxu0 %v743
      %v2145 = vpop.f32.mrb[0].mxu0
      %v2146 = vadd.f32 0.0, %v2145
      %v2147 = vpop.f32.mrb[0].mxu0
      %v2148 = vpop.f32.mrb[0].mxu0
      %v2149 = vadd.f32 0.0, %v2148
      %v2150 = vpop.f32.mrb[0].mxu0
      %2151 = vmatprep.mubr.bf16.mxu0 0
      %2152 = vmatmul.mubr.bf16.gmra.mrb[0].mxu0 %v746
      %v2153 = vpop.f32.mrb[0].mxu0
      %v2154 = vadd.f32 0.0, %v2153
      %v2155 = vpop.f32.mrb[0].mxu0
      %v2156 = vpop.f32.mrb[0].mxu0
      %v2157 = vadd.f32 0.0, %v2156
      %v2158 = vpop.f32.mrb[0].mxu0
      %2159 = vmatprep.mubr.bf16.mxu0 0
      %2160 = vmatmul.mubr.bf16.gmra.mrb[0].mxu0 %v2002
      %v2161 = vpop.f32.mrb[0].mxu0
      %v2162 = vadd.f32 0.0, %v2161
      %v2163 = vpop.f32.mrb[0].mxu0
      %v2164 = vpop.f32.mrb[0].mxu0
      %v2165 = vadd.f32 0.0, %v2164
      %v2166 = vpop.f32.mrb[0].mxu0
      %2167 = vdwg.mxu0
      %v2168 = vadd.f32 %v1938, %v2042
      %v2169 = vadd.f32 %v1939, %v2045
      %v2170 = vadd.f32 %v1940, %v2050
      %v2171 = vadd.f32 %v1941, %v2053
      %v2172 = vadd.f32 %v1942, %v2058
      %v2173 = vadd.f32 %v1943, %v2061
      %v2174 = vadd.f32 %v1944, %v2066
      %v2175 = vadd.f32 %v1945, %v2069
      %v2176 = vadd.f32 %v1946, %v2074
      %v2177 = vadd.f32 %v1947, %v2077
      %v2178 = vadd.f32 %v1948, %v2082
      %v2179 = vadd.f32 %v1949, %v2085
      %v2180 = vadd.f32 %v1950, %v2090
      %v2181 = vadd.f32 %v1951, %v2093
      %v2182 = vadd.f32 %v1952, %v2098
      %v2183 = vadd.f32 %v1953, %v2101
      %v2184 = vadd.f32 %v1954, %v2106
      %v2185 = vadd.f32 %v1955, %v2109
      %v2186 = vadd.f32 %v1956, %v2114
      %v2187 = vadd.f32 %v1957, %v2117
      %v2188 = vadd.f32 %v1958, %v2122
      %v2189 = vadd.f32 %v1959, %v2125
      %v2190 = vadd.f32 %v1960, %v2130
      %v2191 = vadd.f32 %v1961, %v2133
      %v2192 = vadd.f32 %v1962, %v2138
      %v2193 = vadd.f32 %v1963, %v2141
      %v2194 = vadd.f32 %v1964, %v2146
      %v2195 = vadd.f32 %v1965, %v2149
      %v2196 = vadd.f32 %v1966, %v2154
      %v2197 = vadd.f32 %v1967, %v2157
      %v2198 = vadd.f32 %v1968, %v2162
      %v2199 = vadd.f32 %v1969, %v2165
      %s2200 = scalar_lea.vmem %s1, 12
      %v2201 = vld [vmem:[%s2200] sm:$0x3]
      %v2203 = vsel %vm748, %v2201, 0
      %2205 = vmatprep.subr.bf16.mxu0 0
      %2206 = vmatpush1.bf16.msra.mxu0 %v2203
      %2207 = vmatprep.subr.bf16.mxu0 0
      %2208 = vmatpush1.bf16.msra.mxu0 0
      %2209 = vmatprep.subr.bf16.mxu0 0
      %2210 = vmatpush1.bf16.msra.mxu0 0
      %2211 = vmatprep.subr.bf16.mxu0 0
      %2212 = vmatpush1.bf16.msra.mxu0 0
      %2213 = vmatprep.subr.bf16.mxu0 0
      %2214 = vmatpush1.bf16.msra.mxu0 0
      %2215 = vmatprep.subr.bf16.mxu0 0
      %2216 = vmatpush1.bf16.msra.mxu0 0
      %2217 = vmatprep.subr.bf16.mxu0 0
      %2218 = vmatpush1.bf16.msra.mxu0 0
      %2219 = vmatprep.subr.bf16.mxu0 0
      %2220 = vmatpush1.bf16.msra.mxu0 0
      %2221 = vmatprep.subr.bf16.mxu0 0
      %2222 = vmatpush1.bf16.msra.mxu0 0
      %2223 = vmatprep.subr.bf16.mxu0 0
      %2224 = vmatpush1.bf16.msra.mxu0 0
      %2225 = vmatprep.subr.bf16.mxu0 0
      %2226 = vmatpush1.bf16.msra.mxu0 0
      %2227 = vmatprep.subr.bf16.mxu0 0
      %2228 = vmatpush1.bf16.msra.mxu0 0
      %2229 = vmatprep.subr.bf16.mxu0 0
      %2230 = vmatpush1.bf16.msra.mxu0 0
      %2231 = vmatprep.subr.bf16.mxu0 0
      %2232 = vmatpush1.bf16.msra.mxu0 0
      %2233 = vmatprep.subr.bf16.mxu0 0
      %2234 = vmatpush1.bf16.msra.mxu0 0
      %2235 = vmatprep.subr.bf16.mxu0 0
      %2236 = vmatpush1.bf16.msra.mxu0 0
      %2237 = vmatprep.mubr.bf16.mxu0 0
      %2238 = vmatmul.mubr.bf16.gmra.mrb[0].mxu0 %v704
      %v2239 = vpop.f32.mrb[0].mxu0
      %v2240 = vadd.f32 0.0, %v2239
      %v2241 = vpop.f32.mrb[0].mxu0
      %v2242 = vpop.f32.mrb[0].mxu0
      %v2243 = vadd.f32 0.0, %v2242
      %v2244 = vpop.f32.mrb[0].mxu0
      %2245 = vmatprep.mubr.bf16.mxu0 0
      %2246 = vmatmul.mubr.bf16.gmra.mrb[0].mxu0 %v707
      %v2247 = vpop.f32.mrb[0].mxu0
      %v2248 = vadd.f32 0.0, %v2247
      %v2249 = vpop.f32.mrb[0].mxu0
      %v2250 = vpop.f32.mrb[0].mxu0
      %v2251 = vadd.f32 0.0, %v2250
      %v2252 = vpop.f32.mrb[0].mxu0
      %2253 = vmatprep.mubr.bf16.mxu0 0
      %2254 = vmatmul.mubr.bf16.gmra.mrb[0].mxu0 %v710
      %v2255 = vpop.f32.mrb[0].mxu0
      %v2256 = vadd.f32 0.0, %v2255
      %v2257 = vpop.f32.mrb[0].mxu0
      %v2258 = vpop.f32.mrb[0].mxu0
      %v2259 = vadd.f32 0.0, %v2258
      %v2260 = vpop.f32.mrb[0].mxu0
      %2261 = vmatprep.mubr.bf16.mxu0 0
      %2262 = vmatmul.mubr.bf16.gmra.mrb[0].mxu0 %v713
      %v2263 = vpop.f32.mrb[0].mxu0
      %v2264 = vadd.f32 0.0, %v2263
      %v2265 = vpop.f32.mrb[0].mxu0
      %v2266 = vpop.f32.mrb[0].mxu0
      %v2267 = vadd.f32 0.0, %v2266
      %v2268 = vpop.f32.mrb[0].mxu0
      %2269 = vmatprep.mubr.bf16.mxu0 0
      %2270 = vmatmul.mubr.bf16.gmra.mrb[0].mxu0 %v716
      %v2271 = vpop.f32.mrb[0].mxu0
      %v2272 = vadd.f32 0.0, %v2271
      %v2273 = vpop.f32.mrb[0].mxu0
      %v2274 = vpop.f32.mrb[0].mxu0
      %v2275 = vadd.f32 0.0, %v2274
      %v2276 = vpop.f32.mrb[0].mxu0
      %2277 = vmatprep.mubr.bf16.mxu0 0
      %2278 = vmatmul.mubr.bf16.gmra.mrb[0].mxu0 %v719
      %v2279 = vpop.f32.mrb[0].mxu0
      %v2280 = vadd.f32 0.0, %v2279
      %v2281 = vpop.f32.mrb[0].mxu0
      %v2282 = vpop.f32.mrb[0].mxu0
      %v2283 = vadd.f32 0.0, %v2282
      %v2284 = vpop.f32.mrb[0].mxu0
      %2285 = vmatprep.mubr.bf16.mxu0 0
      %2286 = vmatmul.mubr.bf16.gmra.mrb[0].mxu0 %v722
      %v2287 = vpop.f32.mrb[0].mxu0
      %v2288 = vadd.f32 0.0, %v2287
      %v2289 = vpop.f32.mrb[0].mxu0
      %v2290 = vpop.f32.mrb[0].mxu0
      %v2291 = vadd.f32 0.0, %v2290
      %v2292 = vpop.f32.mrb[0].mxu0
      %2293 = vmatprep.mubr.bf16.mxu0 0
      %2294 = vmatmul.mubr.bf16.gmra.mrb[0].mxu0 %v725
      %v2295 = vpop.f32.mrb[0].mxu0
      %v2296 = vadd.f32 0.0, %v2295
      %v2297 = vpop.f32.mrb[0].mxu0
      %v2298 = vpop.f32.mrb[0].mxu0
      %v2299 = vadd.f32 0.0, %v2298
      %v2300 = vpop.f32.mrb[0].mxu0
      %2301 = vmatprep.mubr.bf16.mxu0 0
      %2302 = vmatmul.mubr.bf16.gmra.mrb[0].mxu0 %v728
      %v2303 = vpop.f32.mrb[0].mxu0
      %v2304 = vadd.f32 0.0, %v2303
      %v2305 = vpop.f32.mrb[0].mxu0
      %v2306 = vpop.f32.mrb[0].mxu0
      %v2307 = vadd.f32 0.0, %v2306
      %v2308 = vpop.f32.mrb[0].mxu0
      %2309 = vmatprep.mubr.bf16.mxu0 0
      %2310 = vmatmul.mubr.bf16.gmra.mrb[0].mxu0 %v731
      %v2311 = vpop.f32.mrb[0].mxu0
      %v2312 = vadd.f32 0.0, %v2311
      %v2313 = vpop.f32.mrb[0].mxu0
      %v2314 = vpop.f32.mrb[0].mxu0
      %v2315 = vadd.f32 0.0, %v2314
      %v2316 = vpop.f32.mrb[0].mxu0
      %2317 = vmatprep.mubr.bf16.mxu0 0
      %2318 = vmatmul.mubr.bf16.gmra.mrb[0].mxu0 %v734
      %v2319 = vpop.f32.mrb[0].mxu0
      %v2320 = vadd.f32 0.0, %v2319
      %v2321 = vpop.f32.mrb[0].mxu0
      %v2322 = vpop.f32.mrb[0].mxu0
      %v2323 = vadd.f32 0.0, %v2322
      %v2324 = vpop.f32.mrb[0].mxu0
      %2325 = vmatprep.mubr.bf16.mxu0 0
      %2326 = vmatmul.mubr.bf16.gmra.mrb[0].mxu0 %v737
      %v2327 = vpop.f32.mrb[0].mxu0
      %v2328 = vadd.f32 0.0, %v2327
      %v2329 = vpop.f32.mrb[0].mxu0
      %v2330 = vpop.f32.mrb[0].mxu0
      %v2331 = vadd.f32 0.0, %v2330
      %v2332 = vpop.f32.mrb[0].mxu0
      %2333 = vmatprep.mubr.bf16.mxu0 0
      %2334 = vmatmul.mubr.bf16.gmra.mrb[0].mxu0 %v740
      %v2335 = vpop.f32.mrb[0].mxu0
      %v2336 = vadd.f32 0.0, %v2335
      %v2337 = vpop.f32.mrb[0].mxu0
      %v2338 = vpop.f32.mrb[0].mxu0
      %v2339 = vadd.f32 0.0, %v2338
      %v2340 = vpop.f32.mrb[0].mxu0
      %2341 = vmatprep.mubr.bf16.mxu0 0
      %2342 = vmatmul.mubr.bf16.gmra.mrb[0].mxu0 %v743
      %v2343 = vpop.f32.mrb[0].mxu0
      %v2344 = vadd.f32 0.0, %v2343
      %v2345 = vpop.f32.mrb[0].mxu0
      %v2346 = vpop.f32.mrb[0].mxu0
      %v2347 = vadd.f32 0.0, %v2346
      %v2348 = vpop.f32.mrb[0].mxu0
      %2349 = vmatprep.mubr.bf16.mxu0 0
      %2350 = vmatmul.mubr.bf16.gmra.mrb[0].mxu0 %v746
      %v2351 = vpop.f32.mrb[0].mxu0
      %v2352 = vadd.f32 0.0, %v2351
      %v2353 = vpop.f32.mrb[0].mxu0
      %v2354 = vpop.f32.mrb[0].mxu0
      %v2355 = vadd.f32 0.0, %v2354
      %v2356 = vpop.f32.mrb[0].mxu0
      %2357 = vmatprep.mubr.bf16.mxu0 0
      %2358 = vmatmul.mubr.bf16.gmra.mrb[0].mxu0 %v2002
      %v2359 = vpop.f32.mrb[0].mxu0
      %v2360 = vadd.f32 0.0, %v2359
      %v2361 = vpop.f32.mrb[0].mxu0
      %v2362 = vpop.f32.mrb[0].mxu0
      %v2363 = vadd.f32 0.0, %v2362
      %v2364 = vpop.f32.mrb[0].mxu0
      %2365 = vdwg.mxu0
      %v2366 = vadd.f32 %v1638, %v2240
      %v2367 = vadd.f32 %v1641, %v2243
      %v2368 = vadd.f32 %v1646, %v2248
      %v2369 = vadd.f32 %v1649, %v2251
      %v2370 = vadd.f32 %v1654, %v2256
      %v2371 = vadd.f32 %v1657, %v2259
      %v2372 = vadd.f32 %v1662, %v2264
      %v2373 = vadd.f32 %v1665, %v2267
      %v2374 = vadd.f32 %v1670, %v2272
      %v2375 = vadd.f32 %v1673, %v2275
      %v2376 = vadd.f32 %v1678, %v2280
      %v2377 = vadd.f32 %v1681, %v2283
      %v2378 = vadd.f32 %v1686, %v2288
      %v2379 = vadd.f32 %v1689, %v2291
      %v2380 = vadd.f32 %v1694, %v2296
      %v2381 = vadd.f32 %v1697, %v2299
      %v2382 = vadd.f32 %v1702, %v2304
      %v2383 = vadd.f32 %v1705, %v2307
      %v2384 = vadd.f32 %v1710, %v2312
      %v2385 = vadd.f32 %v1713, %v2315
      %v2386 = vadd.f32 %v1718, %v2320
      %v2387 = vadd.f32 %v1721, %v2323
      %v2388 = vadd.f32 %v1726, %v2328
      %v2389 = vadd.f32 %v1729, %v2331
      %v2390 = vadd.f32 %v1734, %v2336
      %v2391 = vadd.f32 %v1737, %v2339
      %v2392 = vadd.f32 %v1742, %v2344
      %v2393 = vadd.f32 %v1745, %v2347
      %v2394 = vadd.f32 %v1750, %v2352
      %v2395 = vadd.f32 %v1753, %v2355
      %v2396 = vadd.f32 %v1758, %v2360
      %v2397 = vadd.f32 %v1761, %v2363
      %s2398 = scalar_lea.vmem %s1, 18
      %v2399 = vld [vmem:[%s2398] sm:$0x3]
      %v2401 = vsel %vm748, %v2399, 0
      %2403 = vmatprep.subr.bf16.mxu0 0
      %2404 = vmatpush1.bf16.msra.mxu0 %v2401
      %2405 = vmatprep.subr.bf16.mxu0 0
      %2406 = vmatpush1.bf16.msra.mxu0 0
      %2407 = vmatprep.subr.bf16.mxu0 0
      %2408 = vmatpush1.bf16.msra.mxu0 0
      %2409 = vmatprep.subr.bf16.mxu0 0
      %2410 = vmatpush1.bf16.msra.mxu0 0
      %2411 = vmatprep.subr.bf16.mxu0 0
      %2412 = vmatpush1.bf16.msra.mxu0 0
      %2413 = vmatprep.subr.bf16.mxu0 0
      %2414 = vmatpush1.bf16.msra.mxu0 0
      %2415 = vmatprep.subr.bf16.mxu0 0
      %2416 = vmatpush1.bf16.msra.mxu0 0
      %2417 = vmatprep.subr.bf16.mxu0 0
      %2418 = vmatpush1.bf16.msra.mxu0 0
      %2419 = vmatprep.subr.bf16.mxu0 0
      %2420 = vmatpush1.bf16.msra.mxu0 0
      %2421 = vmatprep.subr.bf16.mxu0 0
      %2422 = vmatpush1.bf16.msra.mxu0 0
      %2423 = vmatprep.subr.bf16.mxu0 0
      %2424 = vmatpush1.bf16.msra.mxu0 0
      %2425 = vmatprep.subr.bf16.mxu0 0
      %2426 = vmatpush1.bf16.msra.mxu0 0
      %2427 = vmatprep.subr.bf16.mxu0 0
      %2428 = vmatpush1.bf16.msra.mxu0 0
      %2429 = vmatprep.subr.bf16.mxu0 0
      %2430 = vmatpush1.bf16.msra.mxu0 0
      %2431 = vmatprep.subr.bf16.mxu0 0
      %2432 = vmatpush1.bf16.msra.mxu0 0
      %2433 = vmatprep.subr.bf16.mxu0 0
      %2434 = vmatpush1.bf16.msra.mxu0 0
      %2435 = vmatprep.mubr.bf16.mxu0 0
      %2436 = vmatmul.mubr.bf16.gmra.mrb[0].mxu0 %v704
      %v2437 = vpop.f32.mrb[0].mxu0
      %v2438 = vadd.f32 0.0, %v2437
      %v2439 = vpop.f32.mrb[0].mxu0
      %v2440 = vpop.f32.mrb[0].mxu0
      %v2441 = vadd.f32 0.0, %v2440
      %v2442 = vpop.f32.mrb[0].mxu0
      %2443 = vmatprep.mubr.bf16.mxu0 0
      %2444 = vmatmul.mubr.bf16.gmra.mrb[0].mxu0 %v707
      %v2445 = vpop.f32.mrb[0].mxu0
      %v2446 = vadd.f32 0.0, %v2445
      %v2447 = vpop.f32.mrb[0].mxu0
      %v2448 = vpop.f32.mrb[0].mxu0
      %v2449 = vadd.f32 0.0, %v2448
      %v2450 = vpop.f32.mrb[0].mxu0
      %2451 = vmatprep.mubr.bf16.mxu0 0
      %2452 = vmatmul.mubr.bf16.gmra.mrb[0].mxu0 %v710
      %v2453 = vpop.f32.mrb[0].mxu0
      %v2454 = vadd.f32 0.0, %v2453
      %v2455 = vpop.f32.mrb[0].mxu0
      %v2456 = vpop.f32.mrb[0].mxu0
      %v2457 = vadd.f32 0.0, %v2456
      %v2458 = vpop.f32.mrb[0].mxu0
      %2459 = vmatprep.mubr.bf16.mxu0 0
      %2460 = vmatmul.mubr.bf16.gmra.mrb[0].mxu0 %v713
      %v2461 = vpop.f32.mrb[0].mxu0
      %v2462 = vadd.f32 0.0, %v2461
      %v2463 = vpop.f32.mrb[0].mxu0
      %v2464 = vpop.f32.mrb[0].mxu0
      %v2465 = vadd.f32 0.0, %v2464
      %v2466 = vpop.f32.mrb[0].mxu0
      %2467 = vmatprep.mubr.bf16.mxu0 0
      %2468 = vmatmul.mubr.bf16.gmra.mrb[0].mxu0 %v716
      %v2469 = vpop.f32.mrb[0].mxu0
      %v2470 = vadd.f32 0.0, %v2469
      %v2471 = vpop.f32.mrb[0].mxu0
      %v2472 = vpop.f32.mrb[0].mxu0
      %v2473 = vadd.f32 0.0, %v2472
      %v2474 = vpop.f32.mrb[0].mxu0
      %2475 = vmatprep.mubr.bf16.mxu0 0
      %2476 = vmatmul.mubr.bf16.gmra.mrb[0].mxu0 %v719
      %v2477 = vpop.f32.mrb[0].mxu0
      %v2478 = vadd.f32 0.0, %v2477
      %v2479 = vpop.f32.mrb[0].mxu0
      %v2480 = vpop.f32.mrb[0].mxu0
      %v2481 = vadd.f32 0.0, %v2480
      %v2482 = vpop.f32.mrb[0].mxu0
      %2483 = vmatprep.mubr.bf16.mxu0 0
      %2484 = vmatmul.mubr.bf16.gmra.mrb[0].mxu0 %v722
      %v2485 = vpop.f32.mrb[0].mxu0
      %v2486 = vadd.f32 0.0, %v2485
      %v2487 = vpop.f32.mrb[0].mxu0
      %v2488 = vpop.f32.mrb[0].mxu0
      %v2489 = vadd.f32 0.0, %v2488
      %v2490 = vpop.f32.mrb[0].mxu0
      %2491 = vmatprep.mubr.bf16.mxu0 0
      %2492 = vmatmul.mubr.bf16.gmra.mrb[0].mxu0 %v725
      %v2493 = vpop.f32.mrb[0].mxu0
      %v2494 = vadd.f32 0.0, %v2493
      %v2495 = vpop.f32.mrb[0].mxu0
      %v2496 = vpop.f32.mrb[0].mxu0
      %v2497 = vadd.f32 0.0, %v2496
      %v2498 = vpop.f32.mrb[0].mxu0
      %2499 = vmatprep.mubr.bf16.mxu0 0
      %2500 = vmatmul.mubr.bf16.gmra.mrb[0].mxu0 %v728
      %v2501 = vpop.f32.mrb[0].mxu0
      %v2502 = vadd.f32 0.0, %v2501
      %v2503 = vpop.f32.mrb[0].mxu0
      %v2504 = vpop.f32.mrb[0].mxu0
      %v2505 = vadd.f32 0.0, %v2504
      %v2506 = vpop.f32.mrb[0].mxu0
      %2507 = vmatprep.mubr.bf16.mxu0 0
      %2508 = vmatmul.mubr.bf16.gmra.mrb[0].mxu0 %v731
      %v2509 = vpop.f32.mrb[0].mxu0
      %v2510 = vadd.f32 0.0, %v2509
      %v2511 = vpop.f32.mrb[0].mxu0
      %v2512 = vpop.f32.mrb[0].mxu0
      %v2513 = vadd.f32 0.0, %v2512
      %v2514 = vpop.f32.mrb[0].mxu0
      %2515 = vmatprep.mubr.bf16.mxu0 0
      %2516 = vmatmul.mubr.bf16.gmra.mrb[0].mxu0 %v734
      %v2517 = vpop.f32.mrb[0].mxu0
      %v2518 = vadd.f32 0.0, %v2517
      %v2519 = vpop.f32.mrb[0].mxu0
      %v2520 = vpop.f32.mrb[0].mxu0
      %v2521 = vadd.f32 0.0, %v2520
      %v2522 = vpop.f32.mrb[0].mxu0
      %2523 = vmatprep.mubr.bf16.mxu0 0
      %2524 = vmatmul.mubr.bf16.gmra.mrb[0].mxu0 %v737
      %v2525 = vpop.f32.mrb[0].mxu0
      %v2526 = vadd.f32 0.0, %v2525
      %v2527 = vpop.f32.mrb[0].mxu0
      %v2528 = vpop.f32.mrb[0].mxu0
      %v2529 = vadd.f32 0.0, %v2528
      %v2530 = vpop.f32.mrb[0].mxu0
      %2531 = vmatprep.mubr.bf16.mxu0 0
      %2532 = vmatmul.mubr.bf16.gmra.mrb[0].mxu0 %v740
      %v2533 = vpop.f32.mrb[0].mxu0
      %v2534 = vadd.f32 0.0, %v2533
      %v2535 = vpop.f32.mrb[0].mxu0
      %v2536 = vpop.f32.mrb[0].mxu0
      %v2537 = vadd.f32 0.0, %v2536
      %v2538 = vpop.f32.mrb[0].mxu0
      %2539 = vmatprep.mubr.bf16.mxu0 0
      %2540 = vmatmul.mubr.bf16.gmra.mrb[0].mxu0 %v743
      %v2541 = vpop.f32.mrb[0].mxu0
      %v2542 = vadd.f32 0.0, %v2541
      %v2543 = vpop.f32.mrb[0].mxu0
      %v2544 = vpop.f32.mrb[0].mxu0
      %v2545 = vadd.f32 0.0, %v2544
      %v2546 = vpop.f32.mrb[0].mxu0
      %2547 = vmatprep.mubr.bf16.mxu0 0
      %2548 = vmatmul.mubr.bf16.gmra.mrb[0].mxu0 %v746
      %v2549 = vpop.f32.mrb[0].mxu0
      %v2550 = vadd.f32 0.0, %v2549
      %v2551 = vpop.f32.mrb[0].mxu0
      %v2552 = vpop.f32.mrb[0].mxu0
      %v2553 = vadd.f32 0.0, %v2552
      %v2554 = vpop.f32.mrb[0].mxu0
      %2555 = vmatprep.mubr.bf16.mxu0 0
      %2556 = vmatmul.mubr.bf16.gmra.mrb[0].mxu0 %v2002
      %v2557 = vpop.f32.mrb[0].mxu0
      %v2558 = vadd.f32 0.0, %v2557
      %v2559 = vpop.f32.mrb[0].mxu0
      %v2560 = vpop.f32.mrb[0].mxu0
      %v2561 = vadd.f32 0.0, %v2560
      %v2562 = vpop.f32.mrb[0].mxu0
      %2563 = vdwg.mxu0
      %v2565 = vsel %vm748, %v1971, 0
      %2567 = vmatprep.subr.bf16.mxu0 0
      %2568 = vmatpush1.bf16.msra.mxu0 %v2565
      %2569 = vmatprep.subr.bf16.mxu0 0
      %2570 = vmatpush1.bf16.msra.mxu0 0
      %2571 = vmatprep.subr.bf16.mxu0 0
      %2572 = vmatpush1.bf16.msra.mxu0 0
      %2573 = vmatprep.subr.bf16.mxu0 0
      %2574 = vmatpush1.bf16.msra.mxu0 0
      %2575 = vmatprep.subr.bf16.mxu0 0
      %2576 = vmatpush1.bf16.msra.mxu0 0
      %2577 = vmatprep.subr.bf16.mxu0 0
      %2578 = vmatpush1.bf16.msra.mxu0 0
      %2579 = vmatprep.subr.bf16.mxu0 0
      %2580 = vmatpush1.bf16.msra.mxu0 0
      %2581 = vmatprep.subr.bf16.mxu0 0
      %2582 = vmatpush1.bf16.msra.mxu0 0
      %2583 = vmatprep.subr.bf16.mxu0 0
      %2584 = vmatpush1.bf16.msra.mxu0 0
      %2585 = vmatprep.subr.bf16.mxu0 0
      %2586 = vmatpush1.bf16.msra.mxu0 0
      %2587 = vmatprep.subr.bf16.mxu0 0
      %2588 = vmatpush1.bf16.msra.mxu0 0
      %2589 = vmatprep.subr.bf16.mxu0 0
      %2590 = vmatpush1.bf16.msra.mxu0 0
      %2591 = vmatprep.subr.bf16.mxu0 0
      %2592 = vmatpush1.bf16.msra.mxu0 0
      %2593 = vmatprep.subr.bf16.mxu0 0
      %2594 = vmatpush1.bf16.msra.mxu0 0
      %2595 = vmatprep.subr.bf16.mxu0 0
      %2596 = vmatpush1.bf16.msra.mxu0 0
      %2597 = vmatprep.subr.bf16.mxu0 0
      %2598 = vmatpush1.bf16.msra.mxu0 0
      %2599 = vmatprep.mubr.bf16.mxu0 0
      %2600 = vmatmul.mubr.bf16.gmra.mrb[0].mxu0 %v997
      %v2601 = vpop.f32.mrb[0].mxu0
      %v2602 = vadd.f32 %v2438, %v2601
      %v2603 = vpop.f32.mrb[0].mxu0
      %v2604 = vpop.f32.mrb[0].mxu0
      %v2605 = vadd.f32 %v2441, %v2604
      %v2606 = vpop.f32.mrb[0].mxu0
      %2607 = vmatprep.mubr.bf16.mxu0 0
      %2608 = vmatmul.mubr.bf16.gmra.mrb[0].mxu0 %v1000
      %v2609 = vpop.f32.mrb[0].mxu0
      %v2610 = vadd.f32 %v2446, %v2609
      %v2611 = vpop.f32.mrb[0].mxu0
      %v2612 = vpop.f32.mrb[0].mxu0
      %v2613 = vadd.f32 %v2449, %v2612
      %v2614 = vpop.f32.mrb[0].mxu0
      %2615 = vmatprep.mubr.bf16.mxu0 0
      %2616 = vmatmul.mubr.bf16.gmra.mrb[0].mxu0 %v1003
      %v2617 = vpop.f32.mrb[0].mxu0
      %v2618 = vadd.f32 %v2454, %v2617
      %v2619 = vpop.f32.mrb[0].mxu0
      %v2620 = vpop.f32.mrb[0].mxu0
      %v2621 = vadd.f32 %v2457, %v2620
      %v2622 = vpop.f32.mrb[0].mxu0
      %2623 = vmatprep.mubr.bf16.mxu0 0
      %2624 = vmatmul.mubr.bf16.gmra.mrb[0].mxu0 %v1006
      %v2625 = vpop.f32.mrb[0].mxu0
      %v2626 = vadd.f32 %v2462, %v2625
      %v2627 = vpop.f32.mrb[0].mxu0
      %v2628 = vpop.f32.mrb[0].mxu0
      %v2629 = vadd.f32 %v2465, %v2628
      %v2630 = vpop.f32.mrb[0].mxu0
      %2631 = vmatprep.mubr.bf16.mxu0 0
      %2632 = vmatmul.mubr.bf16.gmra.mrb[0].mxu0 %v1009
      %v2633 = vpop.f32.mrb[0].mxu0
      %v2634 = vadd.f32 %v2470, %v2633
      %v2635 = vpop.f32.mrb[0].mxu0
      %v2636 = vpop.f32.mrb[0].mxu0
      %v2637 = vadd.f32 %v2473, %v2636
      %v2638 = vpop.f32.mrb[0].mxu0
      %2639 = vmatprep.mubr.bf16.mxu0 0
      %2640 = vmatmul.mubr.bf16.gmra.mrb[0].mxu0 %v1012
      %v2641 = vpop.f32.mrb[0].mxu0
      %v2642 = vadd.f32 %v2478, %v2641
      %v2643 = vpop.f32.mrb[0].mxu0
      %v2644 = vpop.f32.mrb[0].mxu0
      %v2645 = vadd.f32 %v2481, %v2644
      %v2646 = vpop.f32.mrb[0].mxu0
      %2647 = vmatprep.mubr.bf16.mxu0 0
      %2648 = vmatmul.mubr.bf16.gmra.mrb[0].mxu0 %v1015
      %v2649 = vpop.f32.mrb[0].mxu0
      %v2650 = vadd.f32 %v2486, %v2649
      %v2651 = vpop.f32.mrb[0].mxu0
      %v2652 = vpop.f32.mrb[0].mxu0
      %v2653 = vadd.f32 %v2489, %v2652
      %v2654 = vpop.f32.mrb[0].mxu0
      %2655 = vmatprep.mubr.bf16.mxu0 0
      %2656 = vmatmul.mubr.bf16.gmra.mrb[0].mxu0 %v1018
      %v2657 = vpop.f32.mrb[0].mxu0
      %v2658 = vadd.f32 %v2494, %v2657
      %v2659 = vpop.f32.mrb[0].mxu0
      %v2660 = vpop.f32.mrb[0].mxu0
      %v2661 = vadd.f32 %v2497, %v2660
      %v2662 = vpop.f32.mrb[0].mxu0
      %2663 = vmatprep.mubr.bf16.mxu0 0
      %2664 = vmatmul.mubr.bf16.gmra.mrb[0].mxu0 %v1021
      %v2665 = vpop.f32.mrb[0].mxu0
      %v2666 = vadd.f32 %v2502, %v2665
      %v2667 = vpop.f32.mrb[0].mxu0
      %v2668 = vpop.f32.mrb[0].mxu0
      %v2669 = vadd.f32 %v2505, %v2668
      %v2670 = vpop.f32.mrb[0].mxu0
      %2671 = vmatprep.mubr.bf16.mxu0 0
      %2672 = vmatmul.mubr.bf16.gmra.mrb[0].mxu0 %v1024
      %v2673 = vpop.f32.mrb[0].mxu0
      %v2674 = vadd.f32 %v2510, %v2673
      %v2675 = vpop.f32.mrb[0].mxu0
      %v2676 = vpop.f32.mrb[0].mxu0
      %v2677 = vadd.f32 %v2513, %v2676
      %v2678 = vpop.f32.mrb[0].mxu0
      %2679 = vmatprep.mubr.bf16.mxu0 0
      %2680 = vmatmul.mubr.bf16.gmra.mrb[0].mxu0 %v1027
      %v2681 = vpop.f32.mrb[0].mxu0
      %v2682 = vadd.f32 %v2518, %v2681
      %v2683 = vpop.f32.mrb[0].mxu0
      %v2684 = vpop.f32.mrb[0].mxu0
      %v2685 = vadd.f32 %v2521, %v2684
      %v2686 = vpop.f32.mrb[0].mxu0
      %2687 = vmatprep.mubr.bf16.mxu0 0
      %2688 = vmatmul.mubr.bf16.gmra.mrb[0].mxu0 %v1030
      %v2689 = vpop.f32.mrb[0].mxu0
      %v2690 = vadd.f32 %v2526, %v2689
      %v2691 = vpop.f32.mrb[0].mxu0
      %v2692 = vpop.f32.mrb[0].mxu0
      %v2693 = vadd.f32 %v2529, %v2692
      %v2694 = vpop.f32.mrb[0].mxu0
      %2695 = vmatprep.mubr.bf16.mxu0 0
      %2696 = vmatmul.mubr.bf16.gmra.mrb[0].mxu0 %v1033
      %v2697 = vpop.f32.mrb[0].mxu0
      %v2698 = vadd.f32 %v2534, %v2697
      %v2699 = vpop.f32.mrb[0].mxu0
      %v2700 = vpop.f32.mrb[0].mxu0
      %v2701 = vadd.f32 %v2537, %v2700
      %v2702 = vpop.f32.mrb[0].mxu0
      %2703 = vmatprep.mubr.bf16.mxu0 0
      %2704 = vmatmul.mubr.bf16.gmra.mrb[0].mxu0 %v1036
      %v2705 = vpop.f32.mrb[0].mxu0
      %v2706 = vadd.f32 %v2542, %v2705
      %v2707 = vpop.f32.mrb[0].mxu0
      %v2708 = vpop.f32.mrb[0].mxu0
      %v2709 = vadd.f32 %v2545, %v2708
      %v2710 = vpop.f32.mrb[0].mxu0
      %2711 = vmatprep.mubr.bf16.mxu0 0
      %2712 = vmatmul.mubr.bf16.gmra.mrb[0].mxu0 %v1039
      %v2713 = vpop.f32.mrb[0].mxu0
      %v2714 = vadd.f32 %v2550, %v2713
      %v2715 = vpop.f32.mrb[0].mxu0
      %v2716 = vpop.f32.mrb[0].mxu0
      %v2717 = vadd.f32 %v2553, %v2716
      %v2718 = vpop.f32.mrb[0].mxu0
      %2719 = vmatprep.mubr.bf16.mxu0 0
      %2720 = vmatmul.mubr.bf16.gmra.mrb[0].mxu0 %v1772
      %v2721 = vpop.f32.mrb[0].mxu0
      %v2722 = vadd.f32 %v2558, %v2721
      %v2723 = vpop.f32.mrb[0].mxu0
      %v2724 = vpop.f32.mrb[0].mxu0
      %v2725 = vadd.f32 %v2561, %v2724
      %v2726 = vpop.f32.mrb[0].mxu0
      %2727 = vdwg.mxu0
      %s2728 = scalar_lea.vmem %s1, 24
      %v2729 = vld [vmem:[%s2728] sm:$0x3]
      %v2731 = vrot.slane %v255, 5
      %v2732 = vrot.slane %v2731, 4
      %v2733 = vrot.slane %v256, 5
      %v2734 = vsel %vm1225, %v2732, %v2733
      %v2735 = vrot.slane %v2733, 4
      %v2736 = vrot.slane %v257, 5
      %v2737 = vsel %vm1225, %v2735, %v2736
      %s2738 = scalar_lea.vmem %s1, 14
      %v2739 = vld [vmem:[%s2738] sm:$0x3]
      %v2740 = vunpack.c.l.b16 %v2734
      %v2741 = vunpack.c.l.b16 %v2737
      %v2742 = vpack.c.b16 %v2741, %v2740
      %v2744 = vsel %vm699, %v2742, 0
      %v2747 = vsel %vm748, %v2739, 0
      %2749 = vmatprep.subr.bf16.mxu0 0
      %2750 = vmatpush1.bf16.msra.mxu0 %v2747
      %2751 = vmatprep.subr.bf16.mxu0 0
      %2752 = vmatpush1.bf16.msra.mxu0 0
      %2753 = vmatprep.subr.bf16.mxu0 0
      %2754 = vmatpush1.bf16.msra.mxu0 0
      %2755 = vmatprep.subr.bf16.mxu0 0
      %2756 = vmatpush1.bf16.msra.mxu0 0
      %2757 = vmatprep.subr.bf16.mxu0 0
      %2758 = vmatpush1.bf16.msra.mxu0 0
      %2759 = vmatprep.subr.bf16.mxu0 0
      %2760 = vmatpush1.bf16.msra.mxu0 0
      %2761 = vmatprep.subr.bf16.mxu0 0
      %2762 = vmatpush1.bf16.msra.mxu0 0
      %2763 = vmatprep.subr.bf16.mxu0 0
      %2764 = vmatpush1.bf16.msra.mxu0 0
      %2765 = vmatprep.subr.bf16.mxu0 0
      %2766 = vmatpush1.bf16.msra.mxu0 0
      %2767 = vmatprep.subr.bf16.mxu0 0
      %2768 = vmatpush1.bf16.msra.mxu0 0
      %2769 = vmatprep.subr.bf16.mxu0 0
      %2770 = vmatpush1.bf16.msra.mxu0 0
      %2771 = vmatprep.subr.bf16.mxu0 0
      %2772 = vmatpush1.bf16.msra.mxu0 0
      %2773 = vmatprep.subr.bf16.mxu0 0
      %2774 = vmatpush1.bf16.msra.mxu0 0
      %2775 = vmatprep.subr.bf16.mxu0 0
      %2776 = vmatpush1.bf16.msra.mxu0 0
      %2777 = vmatprep.subr.bf16.mxu0 0
      %2778 = vmatpush1.bf16.msra.mxu0 0
      %2779 = vmatprep.subr.bf16.mxu0 0
      %2780 = vmatpush1.bf16.msra.mxu0 0
      %2781 = vmatprep.mubr.bf16.mxu0 0
      %2782 = vmatmul.mubr.bf16.gmra.mrb[0].mxu0 %v1392
      %v2783 = vpop.f32.mrb[0].mxu0
      %v2784 = vadd.f32 0.0, %v2783
      %v2785 = vpop.f32.mrb[0].mxu0
      %v2786 = vpop.f32.mrb[0].mxu0
      %v2787 = vadd.f32 0.0, %v2786
      %v2788 = vpop.f32.mrb[0].mxu0
      %2789 = vmatprep.mubr.bf16.mxu0 0
      %2790 = vmatmul.mubr.bf16.gmra.mrb[0].mxu0 %v1395
      %v2791 = vpop.f32.mrb[0].mxu0
      %v2792 = vadd.f32 0.0, %v2791
      %v2793 = vpop.f32.mrb[0].mxu0
      %v2794 = vpop.f32.mrb[0].mxu0
      %v2795 = vadd.f32 0.0, %v2794
      %v2796 = vpop.f32.mrb[0].mxu0
      %2797 = vmatprep.mubr.bf16.mxu0 0
      %2798 = vmatmul.mubr.bf16.gmra.mrb[0].mxu0 %v1398
      %v2799 = vpop.f32.mrb[0].mxu0
      %v2800 = vadd.f32 0.0, %v2799
      %v2801 = vpop.f32.mrb[0].mxu0
      %v2802 = vpop.f32.mrb[0].mxu0
      %v2803 = vadd.f32 0.0, %v2802
      %v2804 = vpop.f32.mrb[0].mxu0
      %2805 = vmatprep.mubr.bf16.mxu0 0
      %2806 = vmatmul.mubr.bf16.gmra.mrb[0].mxu0 %v1401
      %v2807 = vpop.f32.mrb[0].mxu0
      %v2808 = vadd.f32 0.0, %v2807
      %v2809 = vpop.f32.mrb[0].mxu0
      %v2810 = vpop.f32.mrb[0].mxu0
      %v2811 = vadd.f32 0.0, %v2810
      %v2812 = vpop.f32.mrb[0].mxu0
      %2813 = vmatprep.mubr.bf16.mxu0 0
      %2814 = vmatmul.mubr.bf16.gmra.mrb[0].mxu0 %v1404
      %v2815 = vpop.f32.mrb[0].mxu0
      %v2816 = vadd.f32 0.0, %v2815
      %v2817 = vpop.f32.mrb[0].mxu0
      %v2818 = vpop.f32.mrb[0].mxu0
      %v2819 = vadd.f32 0.0, %v2818
      %v2820 = vpop.f32.mrb[0].mxu0
      %2821 = vmatprep.mubr.bf16.mxu0 0
      %2822 = vmatmul.mubr.bf16.gmra.mrb[0].mxu0 %v1407
      %v2823 = vpop.f32.mrb[0].mxu0
      %v2824 = vadd.f32 0.0, %v2823
      %v2825 = vpop.f32.mrb[0].mxu0
      %v2826 = vpop.f32.mrb[0].mxu0
      %v2827 = vadd.f32 0.0, %v2826
      %v2828 = vpop.f32.mrb[0].mxu0
      %2829 = vmatprep.mubr.bf16.mxu0 0
      %2830 = vmatmul.mubr.bf16.gmra.mrb[0].mxu0 %v1410
      %v2831 = vpop.f32.mrb[0].mxu0
      %v2832 = vadd.f32 0.0, %v2831
      %v2833 = vpop.f32.mrb[0].mxu0
      %v2834 = vpop.f32.mrb[0].mxu0
      %v2835 = vadd.f32 0.0, %v2834
      %v2836 = vpop.f32.mrb[0].mxu0
      %2837 = vmatprep.mubr.bf16.mxu0 0
      %2838 = vmatmul.mubr.bf16.gmra.mrb[0].mxu0 %v1413
      %v2839 = vpop.f32.mrb[0].mxu0
      %v2840 = vadd.f32 0.0, %v2839
      %v2841 = vpop.f32.mrb[0].mxu0
      %v2842 = vpop.f32.mrb[0].mxu0
      %v2843 = vadd.f32 0.0, %v2842
      %v2844 = vpop.f32.mrb[0].mxu0
      %2845 = vmatprep.mubr.bf16.mxu0 0
      %2846 = vmatmul.mubr.bf16.gmra.mrb[0].mxu0 %v1416
      %v2847 = vpop.f32.mrb[0].mxu0
      %v2848 = vadd.f32 0.0, %v2847
      %v2849 = vpop.f32.mrb[0].mxu0
      %v2850 = vpop.f32.mrb[0].mxu0
      %v2851 = vadd.f32 0.0, %v2850
      %v2852 = vpop.f32.mrb[0].mxu0
      %2853 = vmatprep.mubr.bf16.mxu0 0
      %2854 = vmatmul.mubr.bf16.gmra.mrb[0].mxu0 %v1419
      %v2855 = vpop.f32.mrb[0].mxu0
      %v2856 = vadd.f32 0.0, %v2855
      %v2857 = vpop.f32.mrb[0].mxu0
      %v2858 = vpop.f32.mrb[0].mxu0
      %v2859 = vadd.f32 0.0, %v2858
      %v2860 = vpop.f32.mrb[0].mxu0
      %2861 = vmatprep.mubr.bf16.mxu0 0
      %2862 = vmatmul.mubr.bf16.gmra.mrb[0].mxu0 %v1422
      %v2863 = vpop.f32.mrb[0].mxu0
      %v2864 = vadd.f32 0.0, %v2863
      %v2865 = vpop.f32.mrb[0].mxu0
      %v2866 = vpop.f32.mrb[0].mxu0
      %v2867 = vadd.f32 0.0, %v2866
      %v2868 = vpop.f32.mrb[0].mxu0
      %2869 = vmatprep.mubr.bf16.mxu0 0
      %2870 = vmatmul.mubr.bf16.gmra.mrb[0].mxu0 %v1425
      %v2871 = vpop.f32.mrb[0].mxu0
      %v2872 = vadd.f32 0.0, %v2871
      %v2873 = vpop.f32.mrb[0].mxu0
      %v2874 = vpop.f32.mrb[0].mxu0
      %v2875 = vadd.f32 0.0, %v2874
      %v2876 = vpop.f32.mrb[0].mxu0
      %2877 = vmatprep.mubr.bf16.mxu0 0
      %2878 = vmatmul.mubr.bf16.gmra.mrb[0].mxu0 %v1428
      %v2879 = vpop.f32.mrb[0].mxu0
      %v2880 = vadd.f32 0.0, %v2879
      %v2881 = vpop.f32.mrb[0].mxu0
      %v2882 = vpop.f32.mrb[0].mxu0
      %v2883 = vadd.f32 0.0, %v2882
      %v2884 = vpop.f32.mrb[0].mxu0
      %2885 = vmatprep.mubr.bf16.mxu0 0
      %2886 = vmatmul.mubr.bf16.gmra.mrb[0].mxu0 %v1431
      %v2887 = vpop.f32.mrb[0].mxu0
      %v2888 = vadd.f32 0.0, %v2887
      %v2889 = vpop.f32.mrb[0].mxu0
      %v2890 = vpop.f32.mrb[0].mxu0
      %v2891 = vadd.f32 0.0, %v2890
      %v2892 = vpop.f32.mrb[0].mxu0
      %2893 = vmatprep.mubr.bf16.mxu0 0
      %2894 = vmatmul.mubr.bf16.gmra.mrb[0].mxu0 %v1434
      %v2895 = vpop.f32.mrb[0].mxu0
      %v2896 = vadd.f32 0.0, %v2895
      %v2897 = vpop.f32.mrb[0].mxu0
      %v2898 = vpop.f32.mrb[0].mxu0
      %v2899 = vadd.f32 0.0, %v2898
      %v2900 = vpop.f32.mrb[0].mxu0
      %2901 = vmatprep.mubr.bf16.mxu0 0
      %2902 = vmatmul.mubr.bf16.gmra.mrb[0].mxu0 %v2744
      %v2903 = vpop.f32.mrb[0].mxu0
      %v2904 = vadd.f32 0.0, %v2903
      %v2905 = vpop.f32.mrb[0].mxu0
      %v2906 = vpop.f32.mrb[0].mxu0
      %v2907 = vadd.f32 0.0, %v2906
      %v2908 = vpop.f32.mrb[0].mxu0
      %2909 = vdwg.mxu0
      %v2910 = vadd.f32 %v2366, %v2784
      %v2911 = vadd.f32 %v2367, %v2787
      %v2912 = vadd.f32 %v2368, %v2792
      %v2913 = vadd.f32 %v2369, %v2795
      %v2914 = vadd.f32 %v2370, %v2800
      %v2915 = vadd.f32 %v2371, %v2803
      %v2916 = vadd.f32 %v2372, %v2808
      %v2917 = vadd.f32 %v2373, %v2811
      %v2918 = vadd.f32 %v2374, %v2816
      %v2919 = vadd.f32 %v2375, %v2819
      %v2920 = vadd.f32 %v2376, %v2824
      %v2921 = vadd.f32 %v2377, %v2827
      %v2922 = vadd.f32 %v2378, %v2832
      %v2923 = vadd.f32 %v2379, %v2835
      %v2924 = vadd.f32 %v2380, %v2840
      %v2925 = vadd.f32 %v2381, %v2843
      %v2926 = vadd.f32 %v2382, %v2848
      %v2927 = vadd.f32 %v2383, %v2851
      %v2928 = vadd.f32 %v2384, %v2856
      %v2929 = vadd.f32 %v2385, %v2859
      %v2930 = vadd.f32 %v2386, %v2864
      %v2931 = vadd.f32 %v2387, %v2867
      %v2932 = vadd.f32 %v2388, %v2872
      %v2933 = vadd.f32 %v2389, %v2875
      %v2934 = vadd.f32 %v2390, %v2880
      %v2935 = vadd.f32 %v2391, %v2883
      %v2936 = vadd.f32 %v2392, %v2888
      %v2937 = vadd.f32 %v2393, %v2891
      %v2938 = vadd.f32 %v2394, %v2896
      %v2939 = vadd.f32 %v2395, %v2899
      %v2940 = vadd.f32 %v2396, %v2904
      %v2941 = vadd.f32 %v2397, %v2907
      %s2942 = scalar_lea.vmem %s1, 26
      %v2943 = vld [vmem:[%s2942] sm:$0x3]
      %v2945 = vsel %vm748, %v2943, 0
      %2947 = vmatprep.subr.bf16.mxu0 0
      %2948 = vmatpush1.bf16.msra.mxu0 %v2945
      %2949 = vmatprep.subr.bf16.mxu0 0
      %2950 = vmatpush1.bf16.msra.mxu0 0
      %2951 = vmatprep.subr.bf16.mxu0 0
      %2952 = vmatpush1.bf16.msra.mxu0 0
      %2953 = vmatprep.subr.bf16.mxu0 0
      %2954 = vmatpush1.bf16.msra.mxu0 0
      %2955 = vmatprep.subr.bf16.mxu0 0
      %2956 = vmatpush1.bf16.msra.mxu0 0
      %2957 = vmatprep.subr.bf16.mxu0 0
      %2958 = vmatpush1.bf16.msra.mxu0 0
      %2959 = vmatprep.subr.bf16.mxu0 0
      %2960 = vmatpush1.bf16.msra.mxu0 0
      %2961 = vmatprep.subr.bf16.mxu0 0
      %2962 = vmatpush1.bf16.msra.mxu0 0
      %2963 = vmatprep.subr.bf16.mxu0 0
      %2964 = vmatpush1.bf16.msra.mxu0 0
      %2965 = vmatprep.subr.bf16.mxu0 0
      %2966 = vmatpush1.bf16.msra.mxu0 0
      %2967 = vmatprep.subr.bf16.mxu0 0
      %2968 = vmatpush1.bf16.msra.mxu0 0
      %2969 = vmatprep.subr.bf16.mxu0 0
      %2970 = vmatpush1.bf16.msra.mxu0 0
      %2971 = vmatprep.subr.bf16.mxu0 0
      %2972 = vmatpush1.bf16.msra.mxu0 0
      %2973 = vmatprep.subr.bf16.mxu0 0
      %2974 = vmatpush1.bf16.msra.mxu0 0
      %2975 = vmatprep.subr.bf16.mxu0 0
      %2976 = vmatpush1.bf16.msra.mxu0 0
      %2977 = vmatprep.subr.bf16.mxu0 0
      %2978 = vmatpush1.bf16.msra.mxu0 0
      %2979 = vmatprep.mubr.bf16.mxu0 0
      %2980 = vmatmul.mubr.bf16.gmra.mrb[0].mxu0 %v1392
      %v2981 = vpop.f32.mrb[0].mxu0
      %v2982 = vadd.f32 0.0, %v2981
      %v2983 = vpop.f32.mrb[0].mxu0
      %v2984 = vpop.f32.mrb[0].mxu0
      %v2985 = vadd.f32 0.0, %v2984
      %v2986 = vpop.f32.mrb[0].mxu0
      %2987 = vmatprep.mubr.bf16.mxu0 0
      %2988 = vmatmul.mubr.bf16.gmra.mrb[0].mxu0 %v1395
      %v2989 = vpop.f32.mrb[0].mxu0
      %v2990 = vadd.f32 0.0, %v2989
      %v2991 = vpop.f32.mrb[0].mxu0
      %v2992 = vpop.f32.mrb[0].mxu0
      %v2993 = vadd.f32 0.0, %v2992
      %v2994 = vpop.f32.mrb[0].mxu0
      %2995 = vmatprep.mubr.bf16.mxu0 0
      %2996 = vmatmul.mubr.bf16.gmra.mrb[0].mxu0 %v1398
      %v2997 = vpop.f32.mrb[0].mxu0
      %v2998 = vadd.f32 0.0, %v2997
      %v2999 = vpop.f32.mrb[0].mxu0
      %v3000 = vpop.f32.mrb[0].mxu0
      %v3001 = vadd.f32 0.0, %v3000
      %v3002 = vpop.f32.mrb[0].mxu0
      %3003 = vmatprep.mubr.bf16.mxu0 0
      %3004 = vmatmul.mubr.bf16.gmra.mrb[0].mxu0 %v1401
      %v3005 = vpop.f32.mrb[0].mxu0
      %v3006 = vadd.f32 0.0, %v3005
      %v3007 = vpop.f32.mrb[0].mxu0
      %v3008 = vpop.f32.mrb[0].mxu0
      %v3009 = vadd.f32 0.0, %v3008
      %v3010 = vpop.f32.mrb[0].mxu0
      %3011 = vmatprep.mubr.bf16.mxu0 0
      %3012 = vmatmul.mubr.bf16.gmra.mrb[0].mxu0 %v1404
      %v3013 = vpop.f32.mrb[0].mxu0
      %v3014 = vadd.f32 0.0, %v3013
      %v3015 = vpop.f32.mrb[0].mxu0
      %v3016 = vpop.f32.mrb[0].mxu0
      %v3017 = vadd.f32 0.0, %v3016
      %v3018 = vpop.f32.mrb[0].mxu0
      %3019 = vmatprep.mubr.bf16.mxu0 0
      %3020 = vmatmul.mubr.bf16.gmra.mrb[0].mxu0 %v1407
      %v3021 = vpop.f32.mrb[0].mxu0
      %v3022 = vadd.f32 0.0, %v3021
      %v3023 = vpop.f32.mrb[0].mxu0
      %v3024 = vpop.f32.mrb[0].mxu0
      %v3025 = vadd.f32 0.0, %v3024
      %v3026 = vpop.f32.mrb[0].mxu0
      %3027 = vmatprep.mubr.bf16.mxu0 0
      %3028 = vmatmul.mubr.bf16.gmra.mrb[0].mxu0 %v1410
      %v3029 = vpop.f32.mrb[0].mxu0
      %v3030 = vadd.f32 0.0, %v3029
      %v3031 = vpop.f32.mrb[0].mxu0
      %v3032 = vpop.f32.mrb[0].mxu0
      %v3033 = vadd.f32 0.0, %v3032
      %v3034 = vpop.f32.mrb[0].mxu0
      %3035 = vmatprep.mubr.bf16.mxu0 0
      %3036 = vmatmul.mubr.bf16.gmra.mrb[0].mxu0 %v1413
      %v3037 = vpop.f32.mrb[0].mxu0
      %v3038 = vadd.f32 0.0, %v3037
      %v3039 = vpop.f32.mrb[0].mxu0
      %v3040 = vpop.f32.mrb[0].mxu0
      %v3041 = vadd.f32 0.0, %v3040
      %v3042 = vpop.f32.mrb[0].mxu0
      %3043 = vmatprep.mubr.bf16.mxu0 0
      %3044 = vmatmul.mubr.bf16.gmra.mrb[0].mxu0 %v1416
      %v3045 = vpop.f32.mrb[0].mxu0
      %v3046 = vadd.f32 0.0, %v3045
      %v3047 = vpop.f32.mrb[0].mxu0
      %v3048 = vpop.f32.mrb[0].mxu0
      %v3049 = vadd.f32 0.0, %v3048
      %v3050 = vpop.f32.mrb[0].mxu0
      %3051 = vmatprep.mubr.bf16.mxu0 0
      %3052 = vmatmul.mubr.bf16.gmra.mrb[0].mxu0 %v1419
      %v3053 = vpop.f32.mrb[0].mxu0
      %v3054 = vadd.f32 0.0, %v3053
      %v3055 = vpop.f32.mrb[0].mxu0
      %v3056 = vpop.f32.mrb[0].mxu0
      %v3057 = vadd.f32 0.0, %v3056
      %v3058 = vpop.f32.mrb[0].mxu0
      %3059 = vmatprep.mubr.bf16.mxu0 0
      %3060 = vmatmul.mubr.bf16.gmra.mrb[0].mxu0 %v1422
      %v3061 = vpop.f32.mrb[0].mxu0
      %v3062 = vadd.f32 0.0, %v3061
      %v3063 = vpop.f32.mrb[0].mxu0
      %v3064 = vpop.f32.mrb[0].mxu0
      %v3065 = vadd.f32 0.0, %v3064
      %v3066 = vpop.f32.mrb[0].mxu0
      %3067 = vmatprep.mubr.bf16.mxu0 0
      %3068 = vmatmul.mubr.bf16.gmra.mrb[0].mxu0 %v1425
      %v3069 = vpop.f32.mrb[0].mxu0
      %v3070 = vadd.f32 0.0, %v3069
      %v3071 = vpop.f32.mrb[0].mxu0
      %v3072 = vpop.f32.mrb[0].mxu0
      %v3073 = vadd.f32 0.0, %v3072
      %v3074 = vpop.f32.mrb[0].mxu0
      %3075 = vmatprep.mubr.bf16.mxu0 0
      %3076 = vmatmul.mubr.bf16.gmra.mrb[0].mxu0 %v1428
      %v3077 = vpop.f32.mrb[0].mxu0
      %v3078 = vadd.f32 0.0, %v3077
      %v3079 = vpop.f32.mrb[0].mxu0
      %v3080 = vpop.f32.mrb[0].mxu0
      %v3081 = vadd.f32 0.0, %v3080
      %v3082 = vpop.f32.mrb[0].mxu0
      %3083 = vmatprep.mubr.bf16.mxu0 0
      %3084 = vmatmul.mubr.bf16.gmra.mrb[0].mxu0 %v1431
      %v3085 = vpop.f32.mrb[0].mxu0
      %v3086 = vadd.f32 0.0, %v3085
      %v3087 = vpop.f32.mrb[0].mxu0
      %v3088 = vpop.f32.mrb[0].mxu0
      %v3089 = vadd.f32 0.0, %v3088
      %v3090 = vpop.f32.mrb[0].mxu0
      %3091 = vmatprep.mubr.bf16.mxu0 0
      %3092 = vmatmul.mubr.bf16.gmra.mrb[0].mxu0 %v1434
      %v3093 = vpop.f32.mrb[0].mxu0
      %v3094 = vadd.f32 0.0, %v3093
      %v3095 = vpop.f32.mrb[0].mxu0
      %v3096 = vpop.f32.mrb[0].mxu0
      %v3097 = vadd.f32 0.0, %v3096
      %v3098 = vpop.f32.mrb[0].mxu0
      %3099 = vmatprep.mubr.bf16.mxu0 0
      %3100 = vmatmul.mubr.bf16.gmra.mrb[0].mxu0 %v2744
      %v3101 = vpop.f32.mrb[0].mxu0
      %v3102 = vadd.f32 0.0, %v3101
      %v3103 = vpop.f32.mrb[0].mxu0
      %v3104 = vpop.f32.mrb[0].mxu0
      %v3105 = vadd.f32 0.0, %v3104
      %v3106 = vpop.f32.mrb[0].mxu0
      %3107 = vdwg.mxu0
      %v3109 = vsel %vm748, %v2729, 0
      %3111 = vmatprep.subr.bf16.mxu0 0
      %3112 = vmatpush1.bf16.msra.mxu0 %v3109
      %3113 = vmatprep.subr.bf16.mxu0 0
      %3114 = vmatpush1.bf16.msra.mxu0 0
      %3115 = vmatprep.subr.bf16.mxu0 0
      %3116 = vmatpush1.bf16.msra.mxu0 0
      %3117 = vmatprep.subr.bf16.mxu0 0
      %3118 = vmatpush1.bf16.msra.mxu0 0
      %3119 = vmatprep.subr.bf16.mxu0 0
      %3120 = vmatpush1.bf16.msra.mxu0 0
      %3121 = vmatprep.subr.bf16.mxu0 0
      %3122 = vmatpush1.bf16.msra.mxu0 0
      %3123 = vmatprep.subr.bf16.mxu0 0
      %3124 = vmatpush1.bf16.msra.mxu0 0
      %3125 = vmatprep.subr.bf16.mxu0 0
      %3126 = vmatpush1.bf16.msra.mxu0 0
      %3127 = vmatprep.subr.bf16.mxu0 0
      %3128 = vmatpush1.bf16.msra.mxu0 0
      %3129 = vmatprep.subr.bf16.mxu0 0
      %3130 = vmatpush1.bf16.msra.mxu0 0
      %3131 = vmatprep.subr.bf16.mxu0 0
      %3132 = vmatpush1.bf16.msra.mxu0 0
      %3133 = vmatprep.subr.bf16.mxu0 0
      %3134 = vmatpush1.bf16.msra.mxu0 0
      %3135 = vmatprep.subr.bf16.mxu0 0
      %3136 = vmatpush1.bf16.msra.mxu0 0
      %3137 = vmatprep.subr.bf16.mxu0 0
      %3138 = vmatpush1.bf16.msra.mxu0 0
      %3139 = vmatprep.subr.bf16.mxu0 0
      %3140 = vmatpush1.bf16.msra.mxu0 0
      %3141 = vmatprep.subr.bf16.mxu0 0
      %3142 = vmatpush1.bf16.msra.mxu0 0
      %3143 = vmatprep.mubr.bf16.mxu0 0
      %3144 = vmatmul.mubr.bf16.gmra.mrb[0].mxu0 %v704
      %v3145 = vpop.f32.mrb[0].mxu0
      %v3146 = vadd.f32 %v2982, %v3145
      %v3147 = vpop.f32.mrb[0].mxu0
      %v3148 = vpop.f32.mrb[0].mxu0
      %v3149 = vadd.f32 %v2985, %v3148
      %v3150 = vpop.f32.mrb[0].mxu0
      %3151 = vmatprep.mubr.bf16.mxu0 0
      %3152 = vmatmul.mubr.bf16.gmra.mrb[0].mxu0 %v707
      %v3153 = vpop.f32.mrb[0].mxu0
      %v3154 = vadd.f32 %v2990, %v3153
      %v3155 = vpop.f32.mrb[0].mxu0
      %v3156 = vpop.f32.mrb[0].mxu0
      %v3157 = vadd.f32 %v2993, %v3156
      %v3158 = vpop.f32.mrb[0].mxu0
      %3159 = vmatprep.mubr.bf16.mxu0 0
      %3160 = vmatmul.mubr.bf16.gmra.mrb[0].mxu0 %v710
      %v3161 = vpop.f32.mrb[0].mxu0
      %v3162 = vadd.f32 %v2998, %v3161
      %v3163 = vpop.f32.mrb[0].mxu0
      %v3164 = vpop.f32.mrb[0].mxu0
      %v3165 = vadd.f32 %v3001, %v3164
      %v3166 = vpop.f32.mrb[0].mxu0
      %3167 = vmatprep.mubr.bf16.mxu0 0
      %3168 = vmatmul.mubr.bf16.gmra.mrb[0].mxu0 %v713
      %v3169 = vpop.f32.mrb[0].mxu0
      %v3170 = vadd.f32 %v3006, %v3169
      %v3171 = vpop.f32.mrb[0].mxu0
      %v3172 = vpop.f32.mrb[0].mxu0
      %v3173 = vadd.f32 %v3009, %v3172
      %v3174 = vpop.f32.mrb[0].mxu0
      %3175 = vmatprep.mubr.bf16.mxu0 0
      %3176 = vmatmul.mubr.bf16.gmra.mrb[0].mxu0 %v716
      %v3177 = vpop.f32.mrb[0].mxu0
      %v3178 = vadd.f32 %v3014, %v3177
      %v3179 = vpop.f32.mrb[0].mxu0
      %v3180 = vpop.f32.mrb[0].mxu0
      %v3181 = vadd.f32 %v3017, %v3180
      %v3182 = vpop.f32.mrb[0].mxu0
      %3183 = vmatprep.mubr.bf16.mxu0 0
      %3184 = vmatmul.mubr.bf16.gmra.mrb[0].mxu0 %v719
      %v3185 = vpop.f32.mrb[0].mxu0
      %v3186 = vadd.f32 %v3022, %v3185
      %v3187 = vpop.f32.mrb[0].mxu0
      %v3188 = vpop.f32.mrb[0].mxu0
      %v3189 = vadd.f32 %v3025, %v3188
      %v3190 = vpop.f32.mrb[0].mxu0
      %3191 = vmatprep.mubr.bf16.mxu0 0
      %3192 = vmatmul.mubr.bf16.gmra.mrb[0].mxu0 %v722
      %v3193 = vpop.f32.mrb[0].mxu0
      %v3194 = vadd.f32 %v3030, %v3193
      %v3195 = vpop.f32.mrb[0].mxu0
      %v3196 = vpop.f32.mrb[0].mxu0
      %v3197 = vadd.f32 %v3033, %v3196
      %v3198 = vpop.f32.mrb[0].mxu0
      %3199 = vmatprep.mubr.bf16.mxu0 0
      %3200 = vmatmul.mubr.bf16.gmra.mrb[0].mxu0 %v725
      %v3201 = vpop.f32.mrb[0].mxu0
      %v3202 = vadd.f32 %v3038, %v3201
      %v3203 = vpop.f32.mrb[0].mxu0
      %v3204 = vpop.f32.mrb[0].mxu0
      %v3205 = vadd.f32 %v3041, %v3204
      %v3206 = vpop.f32.mrb[0].mxu0
      %3207 = vmatprep.mubr.bf16.mxu0 0
      %3208 = vmatmul.mubr.bf16.gmra.mrb[0].mxu0 %v728
      %v3209 = vpop.f32.mrb[0].mxu0
      %v3210 = vadd.f32 %v3046, %v3209
      %v3211 = vpop.f32.mrb[0].mxu0
      %v3212 = vpop.f32.mrb[0].mxu0
      %v3213 = vadd.f32 %v3049, %v3212
      %v3214 = vpop.f32.mrb[0].mxu0
      %3215 = vmatprep.mubr.bf16.mxu0 0
      %3216 = vmatmul.mubr.bf16.gmra.mrb[0].mxu0 %v731
      %v3217 = vpop.f32.mrb[0].mxu0
      %v3218 = vadd.f32 %v3054, %v3217
      %v3219 = vpop.f32.mrb[0].mxu0
      %v3220 = vpop.f32.mrb[0].mxu0
      %v3221 = vadd.f32 %v3057, %v3220
      %v3222 = vpop.f32.mrb[0].mxu0
      %3223 = vmatprep.mubr.bf16.mxu0 0
      %3224 = vmatmul.mubr.bf16.gmra.mrb[0].mxu0 %v734
      %v3225 = vpop.f32.mrb[0].mxu0
      %v3226 = vadd.f32 %v3062, %v3225
      %v3227 = vpop.f32.mrb[0].mxu0
      %v3228 = vpop.f32.mrb[0].mxu0
      %v3229 = vadd.f32 %v3065, %v3228
      %v3230 = vpop.f32.mrb[0].mxu0
      %3231 = vmatprep.mubr.bf16.mxu0 0
      %3232 = vmatmul.mubr.bf16.gmra.mrb[0].mxu0 %v737
      %v3233 = vpop.f32.mrb[0].mxu0
      %v3234 = vadd.f32 %v3070, %v3233
      %v3235 = vpop.f32.mrb[0].mxu0
      %v3236 = vpop.f32.mrb[0].mxu0
      %v3237 = vadd.f32 %v3073, %v3236
      %v3238 = vpop.f32.mrb[0].mxu0
      %3239 = vmatprep.mubr.bf16.mxu0 0
      %3240 = vmatmul.mubr.bf16.gmra.mrb[0].mxu0 %v740
      %v3241 = vpop.f32.mrb[0].mxu0
      %v3242 = vadd.f32 %v3078, %v3241
      %v3243 = vpop.f32.mrb[0].mxu0
      %v3244 = vpop.f32.mrb[0].mxu0
      %v3245 = vadd.f32 %v3081, %v3244
      %v3246 = vpop.f32.mrb[0].mxu0
      %3247 = vmatprep.mubr.bf16.mxu0 0
      %3248 = vmatmul.mubr.bf16.gmra.mrb[0].mxu0 %v743
      %v3249 = vpop.f32.mrb[0].mxu0
      %v3250 = vadd.f32 %v3086, %v3249
      %v3251 = vpop.f32.mrb[0].mxu0
      %v3252 = vpop.f32.mrb[0].mxu0
      %v3253 = vadd.f32 %v3089, %v3252
      %v3254 = vpop.f32.mrb[0].mxu0
      %3255 = vmatprep.mubr.bf16.mxu0 0
      %3256 = vmatmul.mubr.bf16.gmra.mrb[0].mxu0 %v746
      %v3257 = vpop.f32.mrb[0].mxu0
      %v3258 = vadd.f32 %v3094, %v3257
      %v3259 = vpop.f32.mrb[0].mxu0
      %v3260 = vpop.f32.mrb[0].mxu0
      %v3261 = vadd.f32 %v3097, %v3260
      %v3262 = vpop.f32.mrb[0].mxu0
      %3263 = vmatprep.mubr.bf16.mxu0 0
      %3264 = vmatmul.mubr.bf16.gmra.mrb[0].mxu0 %v2002
      %v3265 = vpop.f32.mrb[0].mxu0
      %v3266 = vadd.f32 %v3102, %v3265
      %v3267 = vpop.f32.mrb[0].mxu0
      %v3268 = vpop.f32.mrb[0].mxu0
      %v3269 = vadd.f32 %v3105, %v3268
      %v3270 = vpop.f32.mrb[0].mxu0
      %3271 = vdwg.mxu0
      %s3272 = scalar_lea.vmem %s1, 20
      %v3273 = vld [vmem:[%s3272] sm:$0x3]
      %v3276 = vunpack.c.l.b16 %v258
      %v3277 = vunpack.c.l.b16 %v259
      %v3278 = vpack.c.b16 %v3277, %v3276
      %v3280 = vsel %vm699, %v3278, 0
      %v3283 = vsel %vm748, %v3273, 0
      %3285 = vmatprep.subr.bf16.mxu0 0
      %3286 = vmatpush1.bf16.msra.mxu0 %v3283
      %3287 = vmatprep.subr.bf16.mxu0 0
      %3288 = vmatpush1.bf16.msra.mxu0 0
      %3289 = vmatprep.subr.bf16.mxu0 0
      %3290 = vmatpush1.bf16.msra.mxu0 0
      %3291 = vmatprep.subr.bf16.mxu0 0
      %3292 = vmatpush1.bf16.msra.mxu0 0
      %3293 = vmatprep.subr.bf16.mxu0 0
      %3294 = vmatpush1.bf16.msra.mxu0 0
      %3295 = vmatprep.subr.bf16.mxu0 0
      %3296 = vmatpush1.bf16.msra.mxu0 0
      %3297 = vmatprep.subr.bf16.mxu0 0
      %3298 = vmatpush1.bf16.msra.mxu0 0
      %3299 = vmatprep.subr.bf16.mxu0 0
      %3300 = vmatpush1.bf16.msra.mxu0 0
      %3301 = vmatprep.subr.bf16.mxu0 0
      %3302 = vmatpush1.bf16.msra.mxu0 0
      %3303 = vmatprep.subr.bf16.mxu0 0
      %3304 = vmatpush1.bf16.msra.mxu0 0
      %3305 = vmatprep.subr.bf16.mxu0 0
      %3306 = vmatpush1.bf16.msra.mxu0 0
      %3307 = vmatprep.subr.bf16.mxu0 0
      %3308 = vmatpush1.bf16.msra.mxu0 0
      %3309 = vmatprep.subr.bf16.mxu0 0
      %3310 = vmatpush1.bf16.msra.mxu0 0
      %3311 = vmatprep.subr.bf16.mxu0 0
      %3312 = vmatpush1.bf16.msra.mxu0 0
      %3313 = vmatprep.subr.bf16.mxu0 0
      %3314 = vmatpush1.bf16.msra.mxu0 0
      %3315 = vmatprep.subr.bf16.mxu0 0
      %3316 = vmatpush1.bf16.msra.mxu0 0
      %3317 = vmatprep.mubr.bf16.mxu0 0
      %3318 = vmatmul.mubr.bf16.gmra.mrb[0].mxu0 %v1000
      %v3319 = vpop.f32.mrb[0].mxu0
      %v3320 = vadd.f32 0.0, %v3319
      %v3321 = vpop.f32.mrb[0].mxu0
      %v3322 = vpop.f32.mrb[0].mxu0
      %v3323 = vadd.f32 0.0, %v3322
      %v3324 = vpop.f32.mrb[0].mxu0
      %3325 = vmatprep.mubr.bf16.mxu0 0
      %3326 = vmatmul.mubr.bf16.gmra.mrb[0].mxu0 %v1003
      %v3327 = vpop.f32.mrb[0].mxu0
      %v3328 = vadd.f32 0.0, %v3327
      %v3329 = vpop.f32.mrb[0].mxu0
      %v3330 = vpop.f32.mrb[0].mxu0
      %v3331 = vadd.f32 0.0, %v3330
      %v3332 = vpop.f32.mrb[0].mxu0
      %3333 = vmatprep.mubr.bf16.mxu0 0
      %3334 = vmatmul.mubr.bf16.gmra.mrb[0].mxu0 %v1006
      %v3335 = vpop.f32.mrb[0].mxu0
      %v3336 = vadd.f32 0.0, %v3335
      %v3337 = vpop.f32.mrb[0].mxu0
      %v3338 = vpop.f32.mrb[0].mxu0
      %v3339 = vadd.f32 0.0, %v3338
      %v3340 = vpop.f32.mrb[0].mxu0
      %3341 = vmatprep.mubr.bf16.mxu0 0
      %3342 = vmatmul.mubr.bf16.gmra.mrb[0].mxu0 %v1009
      %v3343 = vpop.f32.mrb[0].mxu0
      %v3344 = vadd.f32 0.0, %v3343
      %v3345 = vpop.f32.mrb[0].mxu0
      %v3346 = vpop.f32.mrb[0].mxu0
      %v3347 = vadd.f32 0.0, %v3346
      %v3348 = vpop.f32.mrb[0].mxu0
      %3349 = vmatprep.mubr.bf16.mxu0 0
      %3350 = vmatmul.mubr.bf16.gmra.mrb[0].mxu0 %v1012
      %v3351 = vpop.f32.mrb[0].mxu0
      %v3352 = vadd.f32 0.0, %v3351
      %v3353 = vpop.f32.mrb[0].mxu0
      %v3354 = vpop.f32.mrb[0].mxu0
      %v3355 = vadd.f32 0.0, %v3354
      %v3356 = vpop.f32.mrb[0].mxu0
      %3357 = vmatprep.mubr.bf16.mxu0 0
      %3358 = vmatmul.mubr.bf16.gmra.mrb[0].mxu0 %v1015
      %v3359 = vpop.f32.mrb[0].mxu0
      %v3360 = vadd.f32 0.0, %v3359
      %v3361 = vpop.f32.mrb[0].mxu0
      %v3362 = vpop.f32.mrb[0].mxu0
      %v3363 = vadd.f32 0.0, %v3362
      %v3364 = vpop.f32.mrb[0].mxu0
      %3365 = vmatprep.mubr.bf16.mxu0 0
      %3366 = vmatmul.mubr.bf16.gmra.mrb[0].mxu0 %v1018
      %v3367 = vpop.f32.mrb[0].mxu0
      %v3368 = vadd.f32 0.0, %v3367
      %v3369 = vpop.f32.mrb[0].mxu0
      %v3370 = vpop.f32.mrb[0].mxu0
      %v3371 = vadd.f32 0.0, %v3370
      %v3372 = vpop.f32.mrb[0].mxu0
      %3373 = vmatprep.mubr.bf16.mxu0 0
      %3374 = vmatmul.mubr.bf16.gmra.mrb[0].mxu0 %v1021
      %v3375 = vpop.f32.mrb[0].mxu0
      %v3376 = vadd.f32 0.0, %v3375
      %v3377 = vpop.f32.mrb[0].mxu0
      %v3378 = vpop.f32.mrb[0].mxu0
      %v3379 = vadd.f32 0.0, %v3378
      %v3380 = vpop.f32.mrb[0].mxu0
      %3381 = vmatprep.mubr.bf16.mxu0 0
      %3382 = vmatmul.mubr.bf16.gmra.mrb[0].mxu0 %v1024
      %v3383 = vpop.f32.mrb[0].mxu0
      %v3384 = vadd.f32 0.0, %v3383
      %v3385 = vpop.f32.mrb[0].mxu0
      %v3386 = vpop.f32.mrb[0].mxu0
      %v3387 = vadd.f32 0.0, %v3386
      %v3388 = vpop.f32.mrb[0].mxu0
      %3389 = vmatprep.mubr.bf16.mxu0 0
      %3390 = vmatmul.mubr.bf16.gmra.mrb[0].mxu0 %v1027
      %v3391 = vpop.f32.mrb[0].mxu0
      %v3392 = vadd.f32 0.0, %v3391
      %v3393 = vpop.f32.mrb[0].mxu0
      %v3394 = vpop.f32.mrb[0].mxu0
      %v3395 = vadd.f32 0.0, %v3394
      %v3396 = vpop.f32.mrb[0].mxu0
      %3397 = vmatprep.mubr.bf16.mxu0 0
      %3398 = vmatmul.mubr.bf16.gmra.mrb[0].mxu0 %v1030
      %v3399 = vpop.f32.mrb[0].mxu0
      %v3400 = vadd.f32 0.0, %v3399
      %v3401 = vpop.f32.mrb[0].mxu0
      %v3402 = vpop.f32.mrb[0].mxu0
      %v3403 = vadd.f32 0.0, %v3402
      %v3404 = vpop.f32.mrb[0].mxu0
      %3405 = vmatprep.mubr.bf16.mxu0 0
      %3406 = vmatmul.mubr.bf16.gmra.mrb[0].mxu0 %v1033
      %v3407 = vpop.f32.mrb[0].mxu0
      %v3408 = vadd.f32 0.0, %v3407
      %v3409 = vpop.f32.mrb[0].mxu0
      %v3410 = vpop.f32.mrb[0].mxu0
      %v3411 = vadd.f32 0.0, %v3410
      %v3412 = vpop.f32.mrb[0].mxu0
      %3413 = vmatprep.mubr.bf16.mxu0 0
      %3414 = vmatmul.mubr.bf16.gmra.mrb[0].mxu0 %v1036
      %v3415 = vpop.f32.mrb[0].mxu0
      %v3416 = vadd.f32 0.0, %v3415
      %v3417 = vpop.f32.mrb[0].mxu0
      %v3418 = vpop.f32.mrb[0].mxu0
      %v3419 = vadd.f32 0.0, %v3418
      %v3420 = vpop.f32.mrb[0].mxu0
      %3421 = vmatprep.mubr.bf16.mxu0 0
      %3422 = vmatmul.mubr.bf16.gmra.mrb[0].mxu0 %v1039
      %v3423 = vpop.f32.mrb[0].mxu0
      %v3424 = vadd.f32 0.0, %v3423
      %v3425 = vpop.f32.mrb[0].mxu0
      %v3426 = vpop.f32.mrb[0].mxu0
      %v3427 = vadd.f32 0.0, %v3426
      %v3428 = vpop.f32.mrb[0].mxu0
      %3429 = vmatprep.mubr.bf16.mxu0 0
      %3430 = vmatmul.mubr.bf16.gmra.mrb[0].mxu0 %v1772
      %v3431 = vpop.f32.mrb[0].mxu0
      %v3432 = vadd.f32 0.0, %v3431
      %v3433 = vpop.f32.mrb[0].mxu0
      %v3434 = vpop.f32.mrb[0].mxu0
      %v3435 = vadd.f32 0.0, %v3434
      %v3436 = vpop.f32.mrb[0].mxu0
      %3437 = vmatprep.mubr.bf16.mxu0 0
      %3438 = vmatmul.mubr.bf16.gmra.mrb[0].mxu0 %v3280
      %v3439 = vpop.f32.mrb[0].mxu0
      %v3440 = vadd.f32 0.0, %v3439
      %v3441 = vpop.f32.mrb[0].mxu0
      %v3442 = vpop.f32.mrb[0].mxu0
      %v3443 = vadd.f32 0.0, %v3442
      %v3444 = vpop.f32.mrb[0].mxu0
      %3445 = vdwg.mxu0
      %v3446 = vadd.f32 %v2602, %v3320
      %v3447 = vadd.f32 %v2605, %v3323
      %v3448 = vadd.f32 %v2610, %v3328
      %v3449 = vadd.f32 %v2613, %v3331
      %v3450 = vadd.f32 %v2618, %v3336
      %v3451 = vadd.f32 %v2621, %v3339
      %v3452 = vadd.f32 %v2626, %v3344
      %v3453 = vadd.f32 %v2629, %v3347
      %v3454 = vadd.f32 %v2634, %v3352
      %v3455 = vadd.f32 %v2637, %v3355
      %v3456 = vadd.f32 %v2642, %v3360
      %v3457 = vadd.f32 %v2645, %v3363
      %v3458 = vadd.f32 %v2650, %v3368
      %v3459 = vadd.f32 %v2653, %v3371
      %v3460 = vadd.f32 %v2658, %v3376
      %v3461 = vadd.f32 %v2661, %v3379
      %v3462 = vadd.f32 %v2666, %v3384
      %v3463 = vadd.f32 %v2669, %v3387
      %v3464 = vadd.f32 %v2674, %v3392
      %v3465 = vadd.f32 %v2677, %v3395
      %v3466 = vadd.f32 %v2682, %v3400
      %v3467 = vadd.f32 %v2685, %v3403
      %v3468 = vadd.f32 %v2690, %v3408
      %v3469 = vadd.f32 %v2693, %v3411
      %v3470 = vadd.f32 %v2698, %v3416
      %v3471 = vadd.f32 %v2701, %v3419
      %v3472 = vadd.f32 %v2706, %v3424
      %v3473 = vadd.f32 %v2709, %v3427
      %v3474 = vadd.f32 %v2714, %v3432
      %v3475 = vadd.f32 %v2717, %v3435
      %v3476 = vadd.f32 %v2722, %v3440
      %v3477 = vadd.f32 %v2725, %v3443
      %v3479 = vshrl.u32 %v258, 16
      %v3481 = vrot.slane %v3479, 4
      %v3482 = vshll.u32 %v258, 16
      %v3484 = vrot.slane %v3482, 5
      %v3485 = vor.u32 %v3481, %v3484
      %v3486 = vrot.slane %v3485, 4
      %v3488 = vshll.u32 %v259, 16
      %v3490 = vrot.slane %v3488, 5
      %v3491 = vsel %vm264, %v3486, %v3490
      %v3492 = vshrl.u32 %v259, 16
      %v3494 = vrot.slane %v3492, 4
      %v3495 = vor.u32 %v3494, %v3490
      %v3496 = vrot.slane %v3495, 4
      %v3498 = vshll.u32 %v260, 16
      %v3500 = vrot.slane %v3498, 5
      %v3501 = vsel %vm264, %v3496, %v3500
      %s3502 = scalar_lea.vmem %s1, 22
      %v3503 = vld [vmem:[%s3502] sm:$0x3]
      %v3504 = vunpack.c.l.b16 %v3491
      %v3505 = vunpack.c.l.b16 %v3501
      %v3506 = vpack.c.b16 %v3505, %v3504
      %v3508 = vsel %vm699, %v3506, 0
      %v3511 = vsel %vm748, %v3503, 0
      %3513 = vmatprep.subr.bf16.mxu0 0
      %3514 = vmatpush1.bf16.msra.mxu0 %v3511
      %3515 = vmatprep.subr.bf16.mxu0 0
      %3516 = vmatpush1.bf16.msra.mxu0 0
      %3517 = vmatprep.subr.bf16.mxu0 0
      %3518 = vmatpush1.bf16.msra.mxu0 0
      %3519 = vmatprep.subr.bf16.mxu0 0
      %3520 = vmatpush1.bf16.msra.mxu0 0
      %3521 = vmatprep.subr.bf16.mxu0 0
      %3522 = vmatpush1.bf16.msra.mxu0 0
      %3523 = vmatprep.subr.bf16.mxu0 0
      %3524 = vmatpush1.bf16.msra.mxu0 0
      %3525 = vmatprep.subr.bf16.mxu0 0
      %3526 = vmatpush1.bf16.msra.mxu0 0
      %3527 = vmatprep.subr.bf16.mxu0 0
      %3528 = vmatpush1.bf16.msra.mxu0 0
      %3529 = vmatprep.subr.bf16.mxu0 0
      %3530 = vmatpush1.bf16.msra.mxu0 0
      %3531 = vmatprep.subr.bf16.mxu0 0
      %3532 = vmatpush1.bf16.msra.mxu0 0
      %3533 = vmatprep.subr.bf16.mxu0 0
      %3534 = vmatpush1.bf16.msra.mxu0 0
      %3535 = vmatprep.subr.bf16.mxu0 0
      %3536 = vmatpush1.bf16.msra.mxu0 0
      %3537 = vmatprep.subr.bf16.mxu0 0
      %3538 = vmatpush1.bf16.msra.mxu0 0
      %3539 = vmatprep.subr.bf16.mxu0 0
      %3540 = vmatpush1.bf16.msra.mxu0 0
      %3541 = vmatprep.subr.bf16.mxu0 0
      %3542 = vmatpush1.bf16.msra.mxu0 0
      %3543 = vmatprep.subr.bf16.mxu0 0
      %3544 = vmatpush1.bf16.msra.mxu0 0
      %3545 = vmatprep.mubr.bf16.mxu0 0
      %3546 = vmatmul.mubr.bf16.gmra.mrb[0].mxu0 %v707
      %v3547 = vpop.f32.mrb[0].mxu0
      %v3548 = vadd.f32 0.0, %v3547
      %v3549 = vpop.f32.mrb[0].mxu0
      %v3550 = vpop.f32.mrb[0].mxu0
      %v3551 = vadd.f32 0.0, %v3550
      %v3552 = vpop.f32.mrb[0].mxu0
      %3553 = vmatprep.mubr.bf16.mxu0 0
      %3554 = vmatmul.mubr.bf16.gmra.mrb[0].mxu0 %v710
      %v3555 = vpop.f32.mrb[0].mxu0
      %v3556 = vadd.f32 0.0, %v3555
      %v3557 = vpop.f32.mrb[0].mxu0
      %v3558 = vpop.f32.mrb[0].mxu0
      %v3559 = vadd.f32 0.0, %v3558
      %v3560 = vpop.f32.mrb[0].mxu0
      %3561 = vmatprep.mubr.bf16.mxu0 0
      %3562 = vmatmul.mubr.bf16.gmra.mrb[0].mxu0 %v713
      %v3563 = vpop.f32.mrb[0].mxu0
      %v3564 = vadd.f32 0.0, %v3563
      %v3565 = vpop.f32.mrb[0].mxu0
      %v3566 = vpop.f32.mrb[0].mxu0
      %v3567 = vadd.f32 0.0, %v3566
      %v3568 = vpop.f32.mrb[0].mxu0
      %3569 = vmatprep.mubr.bf16.mxu0 0
      %3570 = vmatmul.mubr.bf16.gmra.mrb[0].mxu0 %v716
      %v3571 = vpop.f32.mrb[0].mxu0
      %v3572 = vadd.f32 0.0, %v3571
      %v3573 = vpop.f32.mrb[0].mxu0
      %v3574 = vpop.f32.mrb[0].mxu0
      %v3575 = vadd.f32 0.0, %v3574
      %v3576 = vpop.f32.mrb[0].mxu0
      %3577 = vmatprep.mubr.bf16.mxu0 0
      %3578 = vmatmul.mubr.bf16.gmra.mrb[0].mxu0 %v719
      %v3579 = vpop.f32.mrb[0].mxu0
      %v3580 = vadd.f32 0.0, %v3579
      %v3581 = vpop.f32.mrb[0].mxu0
      %v3582 = vpop.f32.mrb[0].mxu0
      %v3583 = vadd.f32 0.0, %v3582
      %v3584 = vpop.f32.mrb[0].mxu0
      %3585 = vmatprep.mubr.bf16.mxu0 0
      %3586 = vmatmul.mubr.bf16.gmra.mrb[0].mxu0 %v722
      %v3587 = vpop.f32.mrb[0].mxu0
      %v3588 = vadd.f32 0.0, %v3587
      %v3589 = vpop.f32.mrb[0].mxu0
      %v3590 = vpop.f32.mrb[0].mxu0
      %v3591 = vadd.f32 0.0, %v3590
      %v3592 = vpop.f32.mrb[0].mxu0
      %3593 = vmatprep.mubr.bf16.mxu0 0
      %3594 = vmatmul.mubr.bf16.gmra.mrb[0].mxu0 %v725
      %v3595 = vpop.f32.mrb[0].mxu0
      %v3596 = vadd.f32 0.0, %v3595
      %v3597 = vpop.f32.mrb[0].mxu0
      %v3598 = vpop.f32.mrb[0].mxu0
      %v3599 = vadd.f32 0.0, %v3598
      %v3600 = vpop.f32.mrb[0].mxu0
      %3601 = vmatprep.mubr.bf16.mxu0 0
      %3602 = vmatmul.mubr.bf16.gmra.mrb[0].mxu0 %v728
      %v3603 = vpop.f32.mrb[0].mxu0
      %v3604 = vadd.f32 0.0, %v3603
      %v3605 = vpop.f32.mrb[0].mxu0
      %v3606 = vpop.f32.mrb[0].mxu0
      %v3607 = vadd.f32 0.0, %v3606
      %v3608 = vpop.f32.mrb[0].mxu0
      %3609 = vmatprep.mubr.bf16.mxu0 0
      %3610 = vmatmul.mubr.bf16.gmra.mrb[0].mxu0 %v731
      %v3611 = vpop.f32.mrb[0].mxu0
      %v3612 = vadd.f32 0.0, %v3611
      %v3613 = vpop.f32.mrb[0].mxu0
      %v3614 = vpop.f32.mrb[0].mxu0
      %v3615 = vadd.f32 0.0, %v3614
      %v3616 = vpop.f32.mrb[0].mxu0
      %3617 = vmatprep.mubr.bf16.mxu0 0
      %3618 = vmatmul.mubr.bf16.gmra.mrb[0].mxu0 %v734
      %v3619 = vpop.f32.mrb[0].mxu0
      %v3620 = vadd.f32 0.0, %v3619
      %v3621 = vpop.f32.mrb[0].mxu0
      %v3622 = vpop.f32.mrb[0].mxu0
      %v3623 = vadd.f32 0.0, %v3622
      %v3624 = vpop.f32.mrb[0].mxu0
      %3625 = vmatprep.mubr.bf16.mxu0 0
      %3626 = vmatmul.mubr.bf16.gmra.mrb[0].mxu0 %v737
      %v3627 = vpop.f32.mrb[0].mxu0
      %v3628 = vadd.f32 0.0, %v3627
      %v3629 = vpop.f32.mrb[0].mxu0
      %v3630 = vpop.f32.mrb[0].mxu0
      %v3631 = vadd.f32 0.0, %v3630
      %v3632 = vpop.f32.mrb[0].mxu0
      %3633 = vmatprep.mubr.bf16.mxu0 0
      %3634 = vmatmul.mubr.bf16.gmra.mrb[0].mxu0 %v740
      %v3635 = vpop.f32.mrb[0].mxu0
      %v3636 = vadd.f32 0.0, %v3635
      %v3637 = vpop.f32.mrb[0].mxu0
      %v3638 = vpop.f32.mrb[0].mxu0
      %v3639 = vadd.f32 0.0, %v3638
      %v3640 = vpop.f32.mrb[0].mxu0
      %3641 = vmatprep.mubr.bf16.mxu0 0
      %3642 = vmatmul.mubr.bf16.gmra.mrb[0].mxu0 %v743
      %v3643 = vpop.f32.mrb[0].mxu0
      %v3644 = vadd.f32 0.0, %v3643
      %v3645 = vpop.f32.mrb[0].mxu0
      %v3646 = vpop.f32.mrb[0].mxu0
      %v3647 = vadd.f32 0.0, %v3646
      %v3648 = vpop.f32.mrb[0].mxu0
      %3649 = vmatprep.mubr.bf16.mxu0 0
      %3650 = vmatmul.mubr.bf16.gmra.mrb[0].mxu0 %v746
      %v3651 = vpop.f32.mrb[0].mxu0
      %v3652 = vadd.f32 0.0, %v3651
      %v3653 = vpop.f32.mrb[0].mxu0
      %v3654 = vpop.f32.mrb[0].mxu0
      %v3655 = vadd.f32 0.0, %v3654
      %v3656 = vpop.f32.mrb[0].mxu0
      %3657 = vmatprep.mubr.bf16.mxu0 0
      %3658 = vmatmul.mubr.bf16.gmra.mrb[0].mxu0 %v2002
      %v3659 = vpop.f32.mrb[0].mxu0
      %v3660 = vadd.f32 0.0, %v3659
      %v3661 = vpop.f32.mrb[0].mxu0
      %v3662 = vpop.f32.mrb[0].mxu0
      %v3663 = vadd.f32 0.0, %v3662
      %v3664 = vpop.f32.mrb[0].mxu0
      %3665 = vmatprep.mubr.bf16.mxu0 0
      %3666 = vmatmul.mubr.bf16.gmra.mrb[0].mxu0 %v3508
      %v3667 = vpop.f32.mrb[0].mxu0
      %v3668 = vadd.f32 0.0, %v3667
      %v3669 = vpop.f32.mrb[0].mxu0
      %v3670 = vpop.f32.mrb[0].mxu0
      %v3671 = vadd.f32 0.0, %v3670
      %v3672 = vpop.f32.mrb[0].mxu0
      %3673 = vdwg.mxu0
      %v3674 = vadd.f32 %v3446, %v3548
      %v3675 = vadd.f32 %v3447, %v3551
      %v3676 = vadd.f32 %v3448, %v3556
      %v3677 = vadd.f32 %v3449, %v3559
      %v3678 = vadd.f32 %v3450, %v3564
      %v3679 = vadd.f32 %v3451, %v3567
      %v3680 = vadd.f32 %v3452, %v3572
      %v3681 = vadd.f32 %v3453, %v3575
      %v3682 = vadd.f32 %v3454, %v3580
      %v3683 = vadd.f32 %v3455, %v3583
      %v3684 = vadd.f32 %v3456, %v3588
      %v3685 = vadd.f32 %v3457, %v3591
      %v3686 = vadd.f32 %v3458, %v3596
      %v3687 = vadd.f32 %v3459, %v3599
      %v3688 = vadd.f32 %v3460, %v3604
      %v3689 = vadd.f32 %v3461, %v3607
      %v3690 = vadd.f32 %v3462, %v3612
      %v3691 = vadd.f32 %v3463, %v3615
      %v3692 = vadd.f32 %v3464, %v3620
      %v3693 = vadd.f32 %v3465, %v3623
      %v3694 = vadd.f32 %v3466, %v3628
      %v3695 = vadd.f32 %v3467, %v3631
      %v3696 = vadd.f32 %v3468, %v3636
      %v3697 = vadd.f32 %v3469, %v3639
      %v3698 = vadd.f32 %v3470, %v3644
      %v3699 = vadd.f32 %v3471, %v3647
      %v3700 = vadd.f32 %v3472, %v3652
      %v3701 = vadd.f32 %v3473, %v3655
      %v3702 = vadd.f32 %v3474, %v3660
      %v3703 = vadd.f32 %v3475, %v3663
      %v3704 = vadd.f32 %v3476, %v3668
      %v3705 = vadd.f32 %v3477, %v3671
      %s3706 = scalar_lea.vmem %s1, 28
      %v3707 = vld [vmem:[%s3706] sm:$0x3]
      %v3709 = vsel %vm748, %v3707, 0
      %3711 = vmatprep.subr.bf16.mxu0 0
      %3712 = vmatpush1.bf16.msra.mxu0 %v3709
      %3713 = vmatprep.subr.bf16.mxu0 0
      %3714 = vmatpush1.bf16.msra.mxu0 0
      %3715 = vmatprep.subr.bf16.mxu0 0
      %3716 = vmatpush1.bf16.msra.mxu0 0
      %3717 = vmatprep.subr.bf16.mxu0 0
      %3718 = vmatpush1.bf16.msra.mxu0 0
      %3719 = vmatprep.subr.bf16.mxu0 0
      %3720 = vmatpush1.bf16.msra.mxu0 0
      %3721 = vmatprep.subr.bf16.mxu0 0
      %3722 = vmatpush1.bf16.msra.mxu0 0
      %3723 = vmatprep.subr.bf16.mxu0 0
      %3724 = vmatpush1.bf16.msra.mxu0 0
      %3725 = vmatprep.subr.bf16.mxu0 0
      %3726 = vmatpush1.bf16.msra.mxu0 0
      %3727 = vmatprep.subr.bf16.mxu0 0
      %3728 = vmatpush1.bf16.msra.mxu0 0
      %3729 = vmatprep.subr.bf16.mxu0 0
      %3730 = vmatpush1.bf16.msra.mxu0 0
      %3731 = vmatprep.subr.bf16.mxu0 0
      %3732 = vmatpush1.bf16.msra.mxu0 0
      %3733 = vmatprep.subr.bf16.mxu0 0
      %3734 = vmatpush1.bf16.msra.mxu0 0
      %3735 = vmatprep.subr.bf16.mxu0 0
      %3736 = vmatpush1.bf16.msra.mxu0 0
      %3737 = vmatprep.subr.bf16.mxu0 0
      %3738 = vmatpush1.bf16.msra.mxu0 0
      %3739 = vmatprep.subr.bf16.mxu0 0
      %3740 = vmatpush1.bf16.msra.mxu0 0
      %3741 = vmatprep.subr.bf16.mxu0 0
      %3742 = vmatpush1.bf16.msra.mxu0 0
      %3743 = vmatprep.mubr.bf16.mxu0 0
      %3744 = vmatmul.mubr.bf16.gmra.mrb[0].mxu0 %v707
      %v3745 = vpop.f32.mrb[0].mxu0
      %v3746 = vadd.f32 0.0, %v3745
      %v3747 = vpop.f32.mrb[0].mxu0
      %v3748 = vpop.f32.mrb[0].mxu0
      %v3749 = vadd.f32 0.0, %v3748
      %v3750 = vpop.f32.mrb[0].mxu0
      %3751 = vmatprep.mubr.bf16.mxu0 0
      %3752 = vmatmul.mubr.bf16.gmra.mrb[0].mxu0 %v710
      %v3753 = vpop.f32.mrb[0].mxu0
      %v3754 = vadd.f32 0.0, %v3753
      %v3755 = vpop.f32.mrb[0].mxu0
      %v3756 = vpop.f32.mrb[0].mxu0
      %v3757 = vadd.f32 0.0, %v3756
      %v3758 = vpop.f32.mrb[0].mxu0
      %3759 = vmatprep.mubr.bf16.mxu0 0
      %3760 = vmatmul.mubr.bf16.gmra.mrb[0].mxu0 %v713
      %v3761 = vpop.f32.mrb[0].mxu0
      %v3762 = vadd.f32 0.0, %v3761
      %v3763 = vpop.f32.mrb[0].mxu0
      %v3764 = vpop.f32.mrb[0].mxu0
      %v3765 = vadd.f32 0.0, %v3764
      %v3766 = vpop.f32.mrb[0].mxu0
      %3767 = vmatprep.mubr.bf16.mxu0 0
      %3768 = vmatmul.mubr.bf16.gmra.mrb[0].mxu0 %v716
      %v3769 = vpop.f32.mrb[0].mxu0
      %v3770 = vadd.f32 0.0, %v3769
      %v3771 = vpop.f32.mrb[0].mxu0
      %v3772 = vpop.f32.mrb[0].mxu0
      %v3773 = vadd.f32 0.0, %v3772
      %v3774 = vpop.f32.mrb[0].mxu0
      %3775 = vmatprep.mubr.bf16.mxu0 0
      %3776 = vmatmul.mubr.bf16.gmra.mrb[0].mxu0 %v719
      %v3777 = vpop.f32.mrb[0].mxu0
      %v3778 = vadd.f32 0.0, %v3777
      %v3779 = vpop.f32.mrb[0].mxu0
      %v3780 = vpop.f32.mrb[0].mxu0
      %v3781 = vadd.f32 0.0, %v3780
      %v3782 = vpop.f32.mrb[0].mxu0
      %3783 = vmatprep.mubr.bf16.mxu0 0
      %3784 = vmatmul.mubr.bf16.gmra.mrb[0].mxu0 %v722
      %v3785 = vpop.f32.mrb[0].mxu0
      %v3786 = vadd.f32 0.0, %v3785
      %v3787 = vpop.f32.mrb[0].mxu0
      %v3788 = vpop.f32.mrb[0].mxu0
      %v3789 = vadd.f32 0.0, %v3788
      %v3790 = vpop.f32.mrb[0].mxu0
      %3791 = vmatprep.mubr.bf16.mxu0 0
      %3792 = vmatmul.mubr.bf16.gmra.mrb[0].mxu0 %v725
      %v3793 = vpop.f32.mrb[0].mxu0
      %v3794 = vadd.f32 0.0, %v3793
      %v3795 = vpop.f32.mrb[0].mxu0
      %v3796 = vpop.f32.mrb[0].mxu0
      %v3797 = vadd.f32 0.0, %v3796
      %v3798 = vpop.f32.mrb[0].mxu0
      %3799 = vmatprep.mubr.bf16.mxu0 0
      %3800 = vmatmul.mubr.bf16.gmra.mrb[0].mxu0 %v728
      %v3801 = vpop.f32.mrb[0].mxu0
      %v3802 = vadd.f32 0.0, %v3801
      %v3803 = vpop.f32.mrb[0].mxu0
      %v3804 = vpop.f32.mrb[0].mxu0
      %v3805 = vadd.f32 0.0, %v3804
      %v3806 = vpop.f32.mrb[0].mxu0
      %3807 = vmatprep.mubr.bf16.mxu0 0
      %3808 = vmatmul.mubr.bf16.gmra.mrb[0].mxu0 %v731
      %v3809 = vpop.f32.mrb[0].mxu0
      %v3810 = vadd.f32 0.0, %v3809
      %v3811 = vpop.f32.mrb[0].mxu0
      %v3812 = vpop.f32.mrb[0].mxu0
      %v3813 = vadd.f32 0.0, %v3812
      %v3814 = vpop.f32.mrb[0].mxu0
      %3815 = vmatprep.mubr.bf16.mxu0 0
      %3816 = vmatmul.mubr.bf16.gmra.mrb[0].mxu0 %v734
      %v3817 = vpop.f32.mrb[0].mxu0
      %v3818 = vadd.f32 0.0, %v3817
      %v3819 = vpop.f32.mrb[0].mxu0
      %v3820 = vpop.f32.mrb[0].mxu0
      %v3821 = vadd.f32 0.0, %v3820
      %v3822 = vpop.f32.mrb[0].mxu0
      %3823 = vmatprep.mubr.bf16.mxu0 0
      %3824 = vmatmul.mubr.bf16.gmra.mrb[0].mxu0 %v737
      %v3825 = vpop.f32.mrb[0].mxu0
      %v3826 = vadd.f32 0.0, %v3825
      %v3827 = vpop.f32.mrb[0].mxu0
      %v3828 = vpop.f32.mrb[0].mxu0
      %v3829 = vadd.f32 0.0, %v3828
      %v3830 = vpop.f32.mrb[0].mxu0
      %3831 = vmatprep.mubr.bf16.mxu0 0
      %3832 = vmatmul.mubr.bf16.gmra.mrb[0].mxu0 %v740
      %v3833 = vpop.f32.mrb[0].mxu0
      %v3834 = vadd.f32 0.0, %v3833
      %v3835 = vpop.f32.mrb[0].mxu0
      %v3836 = vpop.f32.mrb[0].mxu0
      %v3837 = vadd.f32 0.0, %v3836
      %v3838 = vpop.f32.mrb[0].mxu0
      %3839 = vmatprep.mubr.bf16.mxu0 0
      %3840 = vmatmul.mubr.bf16.gmra.mrb[0].mxu0 %v743
      %v3841 = vpop.f32.mrb[0].mxu0
      %v3842 = vadd.f32 0.0, %v3841
      %v3843 = vpop.f32.mrb[0].mxu0
      %v3844 = vpop.f32.mrb[0].mxu0
      %v3845 = vadd.f32 0.0, %v3844
      %v3846 = vpop.f32.mrb[0].mxu0
      %3847 = vmatprep.mubr.bf16.mxu0 0
      %3848 = vmatmul.mubr.bf16.gmra.mrb[0].mxu0 %v746
      %v3849 = vpop.f32.mrb[0].mxu0
      %v3850 = vadd.f32 0.0, %v3849
      %v3851 = vpop.f32.mrb[0].mxu0
      %v3852 = vpop.f32.mrb[0].mxu0
      %v3853 = vadd.f32 0.0, %v3852
      %v3854 = vpop.f32.mrb[0].mxu0
      %3855 = vmatprep.mubr.bf16.mxu0 0
      %3856 = vmatmul.mubr.bf16.gmra.mrb[0].mxu0 %v2002
      %v3857 = vpop.f32.mrb[0].mxu0
      %v3858 = vadd.f32 0.0, %v3857
      %v3859 = vpop.f32.mrb[0].mxu0
      %v3860 = vpop.f32.mrb[0].mxu0
      %v3861 = vadd.f32 0.0, %v3860
      %v3862 = vpop.f32.mrb[0].mxu0
      %3863 = vmatprep.mubr.bf16.mxu0 0
      %3864 = vmatmul.mubr.bf16.gmra.mrb[0].mxu0 %v3508
      %v3865 = vpop.f32.mrb[0].mxu0
      %v3866 = vadd.f32 0.0, %v3865
      %v3867 = vpop.f32.mrb[0].mxu0
      %v3868 = vpop.f32.mrb[0].mxu0
      %v3869 = vadd.f32 0.0, %v3868
      %v3870 = vpop.f32.mrb[0].mxu0
      %3871 = vdwg.mxu0
      %v3872 = vadd.f32 %v3146, %v3746
      %v3873 = vadd.f32 %v3149, %v3749
      %v3874 = vadd.f32 %v3154, %v3754
      %v3875 = vadd.f32 %v3157, %v3757
      %v3876 = vadd.f32 %v3162, %v3762
      %v3877 = vadd.f32 %v3165, %v3765
      %v3878 = vadd.f32 %v3170, %v3770
      %v3879 = vadd.f32 %v3173, %v3773
      %v3880 = vadd.f32 %v3178, %v3778
      %v3881 = vadd.f32 %v3181, %v3781
      %v3882 = vadd.f32 %v3186, %v3786
      %v3883 = vadd.f32 %v3189, %v3789
      %v3884 = vadd.f32 %v3194, %v3794
      %v3885 = vadd.f32 %v3197, %v3797
      %v3886 = vadd.f32 %v3202, %v3802
      %v3887 = vadd.f32 %v3205, %v3805
      %v3888 = vadd.f32 %v3210, %v3810
      %v3889 = vadd.f32 %v3213, %v3813
      %v3890 = vadd.f32 %v3218, %v3818
      %v3891 = vadd.f32 %v3221, %v3821
      %v3892 = vadd.f32 %v3226, %v3826
      %v3893 = vadd.f32 %v3229, %v3829
      %v3894 = vadd.f32 %v3234, %v3834
      %v3895 = vadd.f32 %v3237, %v3837
      %v3896 = vadd.f32 %v3242, %v3842
      %v3897 = vadd.f32 %v3245, %v3845
      %v3898 = vadd.f32 %v3250, %v3850
      %v3899 = vadd.f32 %v3253, %v3853
      %v3900 = vadd.f32 %v3258, %v3858
      %v3901 = vadd.f32 %v3261, %v3861
      %v3902 = vadd.f32 %v3266, %v3866
      %v3903 = vadd.f32 %v3269, %v3869
      %v3905 = vrot.slane %v258, 5
      %v3906 = vrot.slane %v3905, 4
      %v3907 = vrot.slane %v259, 5
      %v3908 = vsel %vm1225, %v3906, %v3907
      %v3909 = vrot.slane %v3907, 4
      %v3910 = vrot.slane %v260, 5
      %v3911 = vsel %vm1225, %v3909, %v3910
      %s3912 = scalar_lea.vmem %s1, 30
      %v3913 = vld [vmem:[%s3912] sm:$0x3]
      %v3914 = vunpack.c.l.b16 %v3908
      %v3915 = vunpack.c.l.b16 %v3911
      %v3916 = vpack.c.b16 %v3915, %v3914
      %v3918 = vsel %vm699, %v3916, 0
      %v3921 = vsel %vm748, %v3913, 0
      %3923 = vmatprep.subr.bf16.mxu0 0
      %3924 = vmatpush1.bf16.msra.mxu0 %v3921
      %3925 = vmatprep.subr.bf16.mxu0 0
      %3926 = vmatpush1.bf16.msra.mxu0 0
      %3927 = vmatprep.subr.bf16.mxu0 0
      %3928 = vmatpush1.bf16.msra.mxu0 0
      %3929 = vmatprep.subr.bf16.mxu0 0
      %3930 = vmatpush1.bf16.msra.mxu0 0
      %3931 = vmatprep.subr.bf16.mxu0 0
      %3932 = vmatpush1.bf16.msra.mxu0 0
      %3933 = vmatprep.subr.bf16.mxu0 0
      %3934 = vmatpush1.bf16.msra.mxu0 0
      %3935 = vmatprep.subr.bf16.mxu0 0
      %3936 = vmatpush1.bf16.msra.mxu0 0
      %3937 = vmatprep.subr.bf16.mxu0 0
      %3938 = vmatpush1.bf16.msra.mxu0 0
      %3939 = vmatprep.subr.bf16.mxu0 0
      %3940 = vmatpush1.bf16.msra.mxu0 0
      %3941 = vmatprep.subr.bf16.mxu0 0
      %3942 = vmatpush1.bf16.msra.mxu0 0
      %3943 = vmatprep.subr.bf16.mxu0 0
      %3944 = vmatpush1.bf16.msra.mxu0 0
      %3945 = vmatprep.subr.bf16.mxu0 0
      %3946 = vmatpush1.bf16.msra.mxu0 0
      %3947 = vmatprep.subr.bf16.mxu0 0
      %3948 = vmatpush1.bf16.msra.mxu0 0
      %3949 = vmatprep.subr.bf16.mxu0 0
      %3950 = vmatpush1.bf16.msra.mxu0 0
      %3951 = vmatprep.subr.bf16.mxu0 0
      %3952 = vmatpush1.bf16.msra.mxu0 0
      %3953 = vmatprep.subr.bf16.mxu0 0
      %3954 = vmatpush1.bf16.msra.mxu0 0
      %3955 = vmatprep.mubr.bf16.mxu0 0
      %3956 = vmatmul.mubr.bf16.gmra.mrb[0].mxu0 %v1395
      %v3957 = vpop.f32.mrb[0].mxu0
      %v3958 = vadd.f32 0.0, %v3957
      %v3959 = vpop.f32.mrb[0].mxu0
      %v3960 = vpop.f32.mrb[0].mxu0
      %v3961 = vadd.f32 0.0, %v3960
      %v3962 = vpop.f32.mrb[0].mxu0
      %3963 = vmatprep.mubr.bf16.mxu0 0
      %3964 = vmatmul.mubr.bf16.gmra.mrb[0].mxu0 %v1398
      %v3965 = vpop.f32.mrb[0].mxu0
      %v3966 = vadd.f32 0.0, %v3965
      %v3967 = vpop.f32.mrb[0].mxu0
      %v3968 = vpop.f32.mrb[0].mxu0
      %v3969 = vadd.f32 0.0, %v3968
      %v3970 = vpop.f32.mrb[0].mxu0
      %3971 = vmatprep.mubr.bf16.mxu0 0
      %3972 = vmatmul.mubr.bf16.gmra.mrb[0].mxu0 %v1401
      %v3973 = vpop.f32.mrb[0].mxu0
      %v3974 = vadd.f32 0.0, %v3973
      %v3975 = vpop.f32.mrb[0].mxu0
      %v3976 = vpop.f32.mrb[0].mxu0
      %v3977 = vadd.f32 0.0, %v3976
      %v3978 = vpop.f32.mrb[0].mxu0
      %3979 = vmatprep.mubr.bf16.mxu0 0
      %3980 = vmatmul.mubr.bf16.gmra.mrb[0].mxu0 %v1404
      %v3981 = vpop.f32.mrb[0].mxu0
      %v3982 = vadd.f32 0.0, %v3981
      %v3983 = vpop.f32.mrb[0].mxu0
      %v3984 = vpop.f32.mrb[0].mxu0
      %v3985 = vadd.f32 0.0, %v3984
      %v3986 = vpop.f32.mrb[0].mxu0
      %3987 = vmatprep.mubr.bf16.mxu0 0
      %3988 = vmatmul.mubr.bf16.gmra.mrb[0].mxu0 %v1407
      %v3989 = vpop.f32.mrb[0].mxu0
      %v3990 = vadd.f32 0.0, %v3989
      %v3991 = vpop.f32.mrb[0].mxu0
      %v3992 = vpop.f32.mrb[0].mxu0
      %v3993 = vadd.f32 0.0, %v3992
      %v3994 = vpop.f32.mrb[0].mxu0
      %3995 = vmatprep.mubr.bf16.mxu0 0
      %3996 = vmatmul.mubr.bf16.gmra.mrb[0].mxu0 %v1410
      %v3997 = vpop.f32.mrb[0].mxu0
      %v3998 = vadd.f32 0.0, %v3997
      %v3999 = vpop.f32.mrb[0].mxu0
      %v4000 = vpop.f32.mrb[0].mxu0
      %v4001 = vadd.f32 0.0, %v4000
      %v4002 = vpop.f32.mrb[0].mxu0
      %4003 = vmatprep.mubr.bf16.mxu0 0
      %4004 = vmatmul.mubr.bf16.gmra.mrb[0].mxu0 %v1413
      %v4005 = vpop.f32.mrb[0].mxu0
      %v4006 = vadd.f32 0.0, %v4005
      %v4007 = vpop.f32.mrb[0].mxu0
      %v4008 = vpop.f32.mrb[0].mxu0
      %v4009 = vadd.f32 0.0, %v4008
      %v4010 = vpop.f32.mrb[0].mxu0
      %4011 = vmatprep.mubr.bf16.mxu0 0
      %4012 = vmatmul.mubr.bf16.gmra.mrb[0].mxu0 %v1416
      %v4013 = vpop.f32.mrb[0].mxu0
      %v4014 = vadd.f32 0.0, %v4013
      %v4015 = vpop.f32.mrb[0].mxu0
      %v4016 = vpop.f32.mrb[0].mxu0
      %v4017 = vadd.f32 0.0, %v4016
      %v4018 = vpop.f32.mrb[0].mxu0
      %4019 = vmatprep.mubr.bf16.mxu0 0
      %4020 = vmatmul.mubr.bf16.gmra.mrb[0].mxu0 %v1419
      %v4021 = vpop.f32.mrb[0].mxu0
      %v4022 = vadd.f32 0.0, %v4021
      %v4023 = vpop.f32.mrb[0].mxu0
      %v4024 = vpop.f32.mrb[0].mxu0
      %v4025 = vadd.f32 0.0, %v4024
      %v4026 = vpop.f32.mrb[0].mxu0
      %4027 = vmatprep.mubr.bf16.mxu0 0
      %4028 = vmatmul.mubr.bf16.gmra.mrb[0].mxu0 %v1422
      %v4029 = vpop.f32.mrb[0].mxu0
      %v4030 = vadd.f32 0.0, %v4029
      %v4031 = vpop.f32.mrb[0].mxu0
      %v4032 = vpop.f32.mrb[0].mxu0
      %v4033 = vadd.f32 0.0, %v4032
      %v4034 = vpop.f32.mrb[0].mxu0
      %4035 = vmatprep.mubr.bf16.mxu0 0
      %4036 = vmatmul.mubr.bf16.gmra.mrb[0].mxu0 %v1425
      %v4037 = vpop.f32.mrb[0].mxu0
      %v4038 = vadd.f32 0.0, %v4037
      %v4039 = vpop.f32.mrb[0].mxu0
      %v4040 = vpop.f32.mrb[0].mxu0
      %v4041 = vadd.f32 0.0, %v4040
      %v4042 = vpop.f32.mrb[0].mxu0
      %4043 = vmatprep.mubr.bf16.mxu0 0
      %4044 = vmatmul.mubr.bf16.gmra.mrb[0].mxu0 %v1428
      %v4045 = vpop.f32.mrb[0].mxu0
      %v4046 = vadd.f32 0.0, %v4045
      %v4047 = vpop.f32.mrb[0].mxu0
      %v4048 = vpop.f32.mrb[0].mxu0
      %v4049 = vadd.f32 0.0, %v4048
      %v4050 = vpop.f32.mrb[0].mxu0
      %4051 = vmatprep.mubr.bf16.mxu0 0
      %4052 = vmatmul.mubr.bf16.gmra.mrb[0].mxu0 %v1431
      %v4053 = vpop.f32.mrb[0].mxu0
      %v4054 = vadd.f32 0.0, %v4053
      %v4055 = vpop.f32.mrb[0].mxu0
      %v4056 = vpop.f32.mrb[0].mxu0
      %v4057 = vadd.f32 0.0, %v4056
      %v4058 = vpop.f32.mrb[0].mxu0
      %4059 = vmatprep.mubr.bf16.mxu0 0
      %4060 = vmatmul.mubr.bf16.gmra.mrb[0].mxu0 %v1434
      %v4061 = vpop.f32.mrb[0].mxu0
      %v4062 = vadd.f32 0.0, %v4061
      %v4063 = vpop.f32.mrb[0].mxu0
      %v4064 = vpop.f32.mrb[0].mxu0
      %v4065 = vadd.f32 0.0, %v4064
      %v4066 = vpop.f32.mrb[0].mxu0
      %4067 = vmatprep.mubr.bf16.mxu0 0
      %4068 = vmatmul.mubr.bf16.gmra.mrb[0].mxu0 %v2744
      %v4069 = vpop.f32.mrb[0].mxu0
      %v4070 = vadd.f32 0.0, %v4069
      %v4071 = vpop.f32.mrb[0].mxu0
      %v4072 = vpop.f32.mrb[0].mxu0
      %v4073 = vadd.f32 0.0, %v4072
      %v4074 = vpop.f32.mrb[0].mxu0
      %4075 = vmatprep.mubr.bf16.mxu0 0
      %4076 = vmatmul.mubr.bf16.gmra.mrb[0].mxu0 %v3918
      %v4077 = vpop.f32.mrb[0].mxu0
      %v4078 = vadd.f32 0.0, %v4077
      %v4079 = vpop.f32.mrb[0].mxu0
      %v4080 = vpop.f32.mrb[0].mxu0
      %v4081 = vadd.f32 0.0, %v4080
      %v4082 = vpop.f32.mrb[0].mxu0
      %4083 = vdwg.mxu0
      %v4084 = vadd.f32 %v3872, %v3958
      %v4085 = vadd.f32 %v3873, %v3961
      %v4086 = vadd.f32 %v3874, %v3966
      %v4087 = vadd.f32 %v3875, %v3969
      %v4088 = vadd.f32 %v3876, %v3974
      %v4089 = vadd.f32 %v3877, %v3977
      %v4090 = vadd.f32 %v3878, %v3982
      %v4091 = vadd.f32 %v3879, %v3985
      %v4092 = vadd.f32 %v3880, %v3990
      %v4093 = vadd.f32 %v3881, %v3993
      %v4094 = vadd.f32 %v3882, %v3998
      %v4095 = vadd.f32 %v3883, %v4001
      %v4096 = vadd.f32 %v3884, %v4006
      %v4097 = vadd.f32 %v3885, %v4009
      %v4098 = vadd.f32 %v3886, %v4014
      %v4099 = vadd.f32 %v3887, %v4017
      %v4100 = vadd.f32 %v3888, %v4022
      %v4101 = vadd.f32 %v3889, %v4025
      %v4102 = vadd.f32 %v3890, %v4030
      %v4103 = vadd.f32 %v3891, %v4033
      %v4104 = vadd.f32 %v3892, %v4038
      %v4105 = vadd.f32 %v3893, %v4041
      %v4106 = vadd.f32 %v3894, %v4046
      %v4107 = vadd.f32 %v3895, %v4049
      %v4108 = vadd.f32 %v3896, %v4054
      %v4109 = vadd.f32 %v3897, %v4057
      %v4110 = vadd.f32 %v3898, %v4062
      %v4111 = vadd.f32 %v3899, %v4065
      %v4112 = vadd.f32 %v3900, %v4070
      %v4113 = vadd.f32 %v3901, %v4073
      %v4114 = vadd.f32 %v3902, %v4078
      %v4115 = vadd.f32 %v3903, %v4081
      %vm4116 = vcmask 261120
      %v4117 = vsel %vm4116, %v2168, 0.0
      %v4118 = vsel %vm4116, %v2169, 0.0
      %v4119 = vadd.f32 %v4117, %v4118
      %v4120 = vsel %vm4116, %v2170, 0.0
      %v4121 = vadd.f32 %v4119, %v4120
      %v4122 = vsel %vm4116, %v2171, 0.0
      %v4123 = vadd.f32 %v4121, %v4122
      %v4124 = vsel %vm4116, %v2172, 0.0
      %v4125 = vadd.f32 %v4123, %v4124
      %v4126 = vsel %vm4116, %v2173, 0.0
      %v4127 = vadd.f32 %v4125, %v4126
      %v4128 = vsel %vm4116, %v2174, 0.0
      %v4129 = vadd.f32 %v4127, %v4128
      %v4130 = vsel %vm4116, %v2175, 0.0
      %v4131 = vadd.f32 %v4129, %v4130
      %v4132 = vsel %vm4116, %v2176, 0.0
      %v4133 = vadd.f32 %v4131, %v4132
      %v4134 = vsel %vm4116, %v2177, 0.0
      %v4135 = vadd.f32 %v4133, %v4134
      %v4136 = vsel %vm4116, %v2178, 0.0
      %v4137 = vadd.f32 %v4135, %v4136
      %v4138 = vsel %vm4116, %v2179, 0.0
      %v4139 = vadd.f32 %v4137, %v4138
      %v4140 = vsel %vm4116, %v2180, 0.0
      %v4141 = vadd.f32 %v4139, %v4140
      %v4142 = vsel %vm4116, %v2181, 0.0
      %v4143 = vadd.f32 %v4141, %v4142
      %v4144 = vsel %vm4116, %v2182, 0.0
      %v4145 = vadd.f32 %v4143, %v4144
      %v4146 = vsel %vm4116, %v2183, 0.0
      %v4147 = vadd.f32 %v4145, %v4146
      %v4148 = vsel %vm4116, %v2184, 0.0
      %v4149 = vadd.f32 %v4147, %v4148
      %v4150 = vsel %vm4116, %v2185, 0.0
      %v4151 = vadd.f32 %v4149, %v4150
      %v4152 = vsel %vm4116, %v2186, 0.0
      %v4153 = vadd.f32 %v4151, %v4152
      %v4154 = vsel %vm4116, %v2187, 0.0
      %v4155 = vadd.f32 %v4153, %v4154
      %v4156 = vsel %vm4116, %v2188, 0.0
      %v4157 = vadd.f32 %v4155, %v4156
      %v4158 = vsel %vm4116, %v2189, 0.0
      %v4159 = vadd.f32 %v4157, %v4158
      %v4160 = vsel %vm4116, %v2190, 0.0
      %v4161 = vadd.f32 %v4159, %v4160
      %v4162 = vsel %vm4116, %v2191, 0.0
      %v4163 = vadd.f32 %v4161, %v4162
      %v4164 = vsel %vm4116, %v2192, 0.0
      %v4165 = vadd.f32 %v4163, %v4164
      %v4166 = vsel %vm4116, %v2193, 0.0
      %v4167 = vadd.f32 %v4165, %v4166
      %v4168 = vsel %vm4116, %v2194, 0.0
      %v4169 = vadd.f32 %v4167, %v4168
      %v4170 = vsel %vm4116, %v2195, 0.0
      %v4171 = vadd.f32 %v4169, %v4170
      %v4172 = vsel %vm4116, %v2196, 0.0
      %v4173 = vadd.f32 %v4171, %v4172
      %v4174 = vsel %vm4116, %v2197, 0.0
      %v4175 = vadd.f32 %v4173, %v4174
      %v4176 = vsel %vm4116, %v2198, 0.0
      %v4177 = vadd.f32 %v4175, %v4176
      %v4178 = vsel %vm4116, %v2199, 0.0
      %v4179 = vadd.f32 %v4177, %v4178
      %v4180 = vrot.slane %v4179, 4
      %v4181 = vadd.f32 %v4179, %v4180
      %v4182 = vrot.slane %v4181, 2
      %v4183 = vadd.f32 %v4181, %v4182
      %v4184 = vrot.slane %v4183, 1
      %v4185 = vadd.f32 %v4183, %v4184
      %v4186 = vadd.f32 %v4185, 0.0
      %v4187 = vmul.f32 %v2168, %v2168
      %v4188 = vmul.f32 %v2169, %v2169
      %v4189 = vmul.f32 %v2170, %v2170
      %v4190 = vmul.f32 %v2171, %v2171
      %v4191 = vmul.f32 %v2172, %v2172
      %v4192 = vmul.f32 %v2173, %v2173
      %v4193 = vmul.f32 %v2174, %v2174
      %v4194 = vmul.f32 %v2175, %v2175
      %v4195 = vmul.f32 %v2176, %v2176
      %v4196 = vmul.f32 %v2177, %v2177
      %v4197 = vmul.f32 %v2178, %v2178
      %v4198 = vmul.f32 %v2179, %v2179
      %v4199 = vmul.f32 %v2180, %v2180
      %v4200 = vmul.f32 %v2181, %v2181
      %v4201 = vmul.f32 %v2182, %v2182
      %v4202 = vmul.f32 %v2183, %v2183
      %v4203 = vmul.f32 %v2184, %v2184
      %v4204 = vmul.f32 %v2185, %v2185
      %v4205 = vmul.f32 %v2186, %v2186
      %v4206 = vmul.f32 %v2187, %v2187
      %v4207 = vmul.f32 %v2188, %v2188
      %v4208 = vmul.f32 %v2189, %v2189
      %v4209 = vmul.f32 %v2190, %v2190
      %v4210 = vmul.f32 %v2191, %v2191
      %v4211 = vmul.f32 %v2192, %v2192
      %v4212 = vmul.f32 %v2193, %v2193
      %v4213 = vmul.f32 %v2194, %v2194
      %v4214 = vmul.f32 %v2195, %v2195
      %v4215 = vmul.f32 %v2196, %v2196
      %v4216 = vmul.f32 %v2197, %v2197
      %v4217 = vmul.f32 %v2198, %v2198
      %v4218 = vmul.f32 %v2199, %v2199
      %v4219 = vsel %vm4116, %v4187, 0.0
      %v4220 = vsel %vm4116, %v4188, 0.0
      %v4221 = vadd.f32 %v4219, %v4220
      %v4222 = vsel %vm4116, %v4189, 0.0
      %v4223 = vadd.f32 %v4221, %v4222
      %v4224 = vsel %vm4116, %v4190, 0.0
      %v4225 = vadd.f32 %v4223, %v4224
      %v4226 = vsel %vm4116, %v4191, 0.0
      %v4227 = vadd.f32 %v4225, %v4226
      %v4228 = vsel %vm4116, %v4192, 0.0
      %v4229 = vadd.f32 %v4227, %v4228
      %v4230 = vsel %vm4116, %v4193, 0.0
      %v4231 = vadd.f32 %v4229, %v4230
      %v4232 = vsel %vm4116, %v4194, 0.0
      %v4233 = vadd.f32 %v4231, %v4232
      %v4234 = vsel %vm4116, %v4195, 0.0
      %v4235 = vadd.f32 %v4233, %v4234
      %v4236 = vsel %vm4116, %v4196, 0.0
      %v4237 = vadd.f32 %v4235, %v4236
      %v4238 = vsel %vm4116, %v4197, 0.0
      %v4239 = vadd.f32 %v4237, %v4238
      %v4240 = vsel %vm4116, %v4198, 0.0
      %v4241 = vadd.f32 %v4239, %v4240
      %v4242 = vsel %vm4116, %v4199, 0.0
      %v4243 = vadd.f32 %v4241, %v4242
      %v4244 = vsel %vm4116, %v4200, 0.0
      %v4245 = vadd.f32 %v4243, %v4244
      %v4246 = vsel %vm4116, %v4201, 0.0
      %v4247 = vadd.f32 %v4245, %v4246
      %v4248 = vsel %vm4116, %v4202, 0.0
      %v4249 = vadd.f32 %v4247, %v4248
      %v4250 = vsel %vm4116, %v4203, 0.0
      %v4251 = vadd.f32 %v4249, %v4250
      %v4252 = vsel %vm4116, %v4204, 0.0
      %v4253 = vadd.f32 %v4251, %v4252
      %v4254 = vsel %vm4116, %v4205, 0.0
      %v4255 = vadd.f32 %v4253, %v4254
      %v4256 = vsel %vm4116, %v4206, 0.0
      %v4257 = vadd.f32 %v4255, %v4256
      %v4258 = vsel %vm4116, %v4207, 0.0
      %v4259 = vadd.f32 %v4257, %v4258
      %v4260 = vsel %vm4116, %v4208, 0.0
      %v4261 = vadd.f32 %v4259, %v4260
      %v4262 = vsel %vm4116, %v4209, 0.0
      %v4263 = vadd.f32 %v4261, %v4262
      %v4264 = vsel %vm4116, %v4210, 0.0
      %v4265 = vadd.f32 %v4263, %v4264
      %v4266 = vsel %vm4116, %v4211, 0.0
      %v4267 = vadd.f32 %v4265, %v4266
      %v4268 = vsel %vm4116, %v4212, 0.0
      %v4269 = vadd.f32 %v4267, %v4268
      %v4270 = vsel %vm4116, %v4213, 0.0
      %v4271 = vadd.f32 %v4269, %v4270
      %v4272 = vsel %vm4116, %v4214, 0.0
      %v4273 = vadd.f32 %v4271, %v4272
      %v4274 = vsel %vm4116, %v4215, 0.0
      %v4275 = vadd.f32 %v4273, %v4274
      %v4276 = vsel %vm4116, %v4216, 0.0
      %v4277 = vadd.f32 %v4275, %v4276
      %v4278 = vsel %vm4116, %v4217, 0.0
      %v4279 = vadd.f32 %v4277, %v4278
      %v4280 = vsel %vm4116, %v4218, 0.0
      %v4281 = vadd.f32 %v4279, %v4280
      %v4282 = vrot.slane %v4281, 4
      %v4283 = vadd.f32 %v4281, %v4282
      %v4284 = vrot.slane %v4283, 2
      %v4285 = vadd.f32 %v4283, %v4284
      %v4286 = vrot.slane %v4285, 1
      %v4287 = vadd.f32 %v4285, %v4286
      %v4288 = vadd.f32 %v4287, 0.0
      %v4289 = vsel %vm4116, %v2910, 0.0
      %v4290 = vsel %vm4116, %v2911, 0.0
      %v4291 = vadd.f32 %v4289, %v4290
      %v4292 = vsel %vm4116, %v2912, 0.0
      %v4293 = vadd.f32 %v4291, %v4292
      %v4294 = vsel %vm4116, %v2913, 0.0
      %v4295 = vadd.f32 %v4293, %v4294
      %v4296 = vsel %vm4116, %v2914, 0.0
      %v4297 = vadd.f32 %v4295, %v4296
      %v4298 = vsel %vm4116, %v2915, 0.0
      %v4299 = vadd.f32 %v4297, %v4298
      %v4300 = vsel %vm4116, %v2916, 0.0
      %v4301 = vadd.f32 %v4299, %v4300
      %v4302 = vsel %vm4116, %v2917, 0.0
      %v4303 = vadd.f32 %v4301, %v4302
      %v4304 = vsel %vm4116, %v2918, 0.0
      %v4305 = vadd.f32 %v4303, %v4304
      %v4306 = vsel %vm4116, %v2919, 0.0
      %v4307 = vadd.f32 %v4305, %v4306
      %v4308 = vsel %vm4116, %v2920, 0.0
      %v4309 = vadd.f32 %v4307, %v4308
      %v4310 = vsel %vm4116, %v2921, 0.0
      %v4311 = vadd.f32 %v4309, %v4310
      %v4312 = vsel %vm4116, %v2922, 0.0
      %v4313 = vadd.f32 %v4311, %v4312
      %v4314 = vsel %vm4116, %v2923, 0.0
      %v4315 = vadd.f32 %v4313, %v4314
      %v4316 = vsel %vm4116, %v2924, 0.0
      %v4317 = vadd.f32 %v4315, %v4316
      %v4318 = vsel %vm4116, %v2925, 0.0
      %v4319 = vadd.f32 %v4317, %v4318
      %v4320 = vsel %vm4116, %v2926, 0.0
      %v4321 = vadd.f32 %v4319, %v4320
      %v4322 = vsel %vm4116, %v2927, 0.0
      %v4323 = vadd.f32 %v4321, %v4322
      %v4324 = vsel %vm4116, %v2928, 0.0
      %v4325 = vadd.f32 %v4323, %v4324
      %v4326 = vsel %vm4116, %v2929, 0.0
      %v4327 = vadd.f32 %v4325, %v4326
      %v4328 = vsel %vm4116, %v2930, 0.0
      %v4329 = vadd.f32 %v4327, %v4328
      %v4330 = vsel %vm4116, %v2931, 0.0
      %v4331 = vadd.f32 %v4329, %v4330
      %v4332 = vsel %vm4116, %v2932, 0.0
      %v4333 = vadd.f32 %v4331, %v4332
      %v4334 = vsel %vm4116, %v2933, 0.0
      %v4335 = vadd.f32 %v4333, %v4334
      %v4336 = vsel %vm4116, %v2934, 0.0
      %v4337 = vadd.f32 %v4335, %v4336
      %v4338 = vsel %vm4116, %v2935, 0.0
      %v4339 = vadd.f32 %v4337, %v4338
      %v4340 = vsel %vm4116, %v2936, 0.0
      %v4341 = vadd.f32 %v4339, %v4340
      %v4342 = vsel %vm4116, %v2937, 0.0
      %v4343 = vadd.f32 %v4341, %v4342
      %v4344 = vsel %vm4116, %v2938, 0.0
      %v4345 = vadd.f32 %v4343, %v4344
      %v4346 = vsel %vm4116, %v2939, 0.0
      %v4347 = vadd.f32 %v4345, %v4346
      %v4348 = vsel %vm4116, %v2940, 0.0
      %v4349 = vadd.f32 %v4347, %v4348
      %v4350 = vsel %vm4116, %v2941, 0.0
      %v4351 = vadd.f32 %v4349, %v4350
      %v4352 = vrot.slane %v4351, 4
      %v4353 = vadd.f32 %v4351, %v4352
      %v4354 = vrot.slane %v4353, 2
      %v4355 = vadd.f32 %v4353, %v4354
      %v4356 = vrot.slane %v4355, 1
      %v4357 = vadd.f32 %v4355, %v4356
      %v4358 = vadd.f32 %v4186, %v4357
      %v4359 = vmul.f32 %v2910, %v2910
      %v4360 = vmul.f32 %v2911, %v2911
      %v4361 = vmul.f32 %v2912, %v2912
      %v4362 = vmul.f32 %v2913, %v2913
      %v4363 = vmul.f32 %v2914, %v2914
      %v4364 = vmul.f32 %v2915, %v2915
      %v4365 = vmul.f32 %v2916, %v2916
      %v4366 = vmul.f32 %v2917, %v2917
      %v4367 = vmul.f32 %v2918, %v2918
      %v4368 = vmul.f32 %v2919, %v2919
      %v4369 = vmul.f32 %v2920, %v2920
      %v4370 = vmul.f32 %v2921, %v2921
      %v4371 = vmul.f32 %v2922, %v2922
      %v4372 = vmul.f32 %v2923, %v2923
      %v4373 = vmul.f32 %v2924, %v2924
      %v4374 = vmul.f32 %v2925, %v2925
      %v4375 = vmul.f32 %v2926, %v2926
      %v4376 = vmul.f32 %v2927, %v2927
      %v4377 = vmul.f32 %v2928, %v2928
      %v4378 = vmul.f32 %v2929, %v2929
      %v4379 = vmul.f32 %v2930, %v2930
      %v4380 = vmul.f32 %v2931, %v2931
      %v4381 = vmul.f32 %v2932, %v2932
      %v4382 = vmul.f32 %v2933, %v2933
      %v4383 = vmul.f32 %v2934, %v2934
      %v4384 = vmul.f32 %v2935, %v2935
      %v4385 = vmul.f32 %v2936, %v2936
      %v4386 = vmul.f32 %v2937, %v2937
      %v4387 = vmul.f32 %v2938, %v2938
      %v4388 = vmul.f32 %v2939, %v2939
      %v4389 = vmul.f32 %v2940, %v2940
      %v4390 = vmul.f32 %v2941, %v2941
      %v4391 = vsel %vm4116, %v4359, 0.0
      %v4392 = vsel %vm4116, %v4360, 0.0
      %v4393 = vadd.f32 %v4391, %v4392
      %v4394 = vsel %vm4116, %v4361, 0.0
      %v4395 = vadd.f32 %v4393, %v4394
      %v4396 = vsel %vm4116, %v4362, 0.0
      %v4397 = vadd.f32 %v4395, %v4396
      %v4398 = vsel %vm4116, %v4363, 0.0
      %v4399 = vadd.f32 %v4397, %v4398
      %v4400 = vsel %vm4116, %v4364, 0.0
      %v4401 = vadd.f32 %v4399, %v4400
      %v4402 = vsel %vm4116, %v4365, 0.0
      %v4403 = vadd.f32 %v4401, %v4402
      %v4404 = vsel %vm4116, %v4366, 0.0
      %v4405 = vadd.f32 %v4403, %v4404
      %v4406 = vsel %vm4116, %v4367, 0.0
      %v4407 = vadd.f32 %v4405, %v4406
      %v4408 = vsel %vm4116, %v4368, 0.0
      %v4409 = vadd.f32 %v4407, %v4408
      %v4410 = vsel %vm4116, %v4369, 0.0
      %v4411 = vadd.f32 %v4409, %v4410
      %v4412 = vsel %vm4116, %v4370, 0.0
      %v4413 = vadd.f32 %v4411, %v4412
      %v4414 = vsel %vm4116, %v4371, 0.0
      %v4415 = vadd.f32 %v4413, %v4414
      %v4416 = vsel %vm4116, %v4372, 0.0
      %v4417 = vadd.f32 %v4415, %v4416
      %v4418 = vsel %vm4116, %v4373, 0.0
      %v4419 = vadd.f32 %v4417, %v4418
      %v4420 = vsel %vm4116, %v4374, 0.0
      %v4421 = vadd.f32 %v4419, %v4420
      %v4422 = vsel %vm4116, %v4375, 0.0
      %v4423 = vadd.f32 %v4421, %v4422
      %v4424 = vsel %vm4116, %v4376, 0.0
      %v4425 = vadd.f32 %v4423, %v4424
      %v4426 = vsel %vm4116, %v4377, 0.0
      %v4427 = vadd.f32 %v4425, %v4426
      %v4428 = vsel %vm4116, %v4378, 0.0
      %v4429 = vadd.f32 %v4427, %v4428
      %v4430 = vsel %vm4116, %v4379, 0.0
      %v4431 = vadd.f32 %v4429, %v4430
      %v4432 = vsel %vm4116, %v4380, 0.0
      %v4433 = vadd.f32 %v4431, %v4432
      %v4434 = vsel %vm4116, %v4381, 0.0
      %v4435 = vadd.f32 %v4433, %v4434
      %v4436 = vsel %vm4116, %v4382, 0.0
      %v4437 = vadd.f32 %v4435, %v4436
      %v4438 = vsel %vm4116, %v4383, 0.0
      %v4439 = vadd.f32 %v4437, %v4438
      %v4440 = vsel %vm4116, %v4384, 0.0
      %v4441 = vadd.f32 %v4439, %v4440
      %v4442 = vsel %vm4116, %v4385, 0.0
      %v4443 = vadd.f32 %v4441, %v4442
      %v4444 = vsel %vm4116, %v4386, 0.0
      %v4445 = vadd.f32 %v4443, %v4444
      %v4446 = vsel %vm4116, %v4387, 0.0
      %v4447 = vadd.f32 %v4445, %v4446
      %v4448 = vsel %vm4116, %v4388, 0.0
      %v4449 = vadd.f32 %v4447, %v4448
      %v4450 = vsel %vm4116, %v4389, 0.0
      %v4451 = vadd.f32 %v4449, %v4450
      %v4452 = vsel %vm4116, %v4390, 0.0
      %v4453 = vadd.f32 %v4451, %v4452
      %v4454 = vrot.slane %v4453, 4
      %v4455 = vadd.f32 %v4453, %v4454
      %v4456 = vrot.slane %v4455, 2
      %v4457 = vadd.f32 %v4455, %v4456
      %v4458 = vrot.slane %v4457, 1
      %v4459 = vadd.f32 %v4457, %v4458
      %v4460 = vadd.f32 %v4288, %v4459
      %v4461 = vsel %vm4116, %v3674, 0.0
      %v4462 = vsel %vm4116, %v3675, 0.0
      %v4463 = vadd.f32 %v4461, %v4462
      %v4464 = vsel %vm4116, %v3676, 0.0
      %v4465 = vadd.f32 %v4463, %v4464
      %v4466 = vsel %vm4116, %v3677, 0.0
      %v4467 = vadd.f32 %v4465, %v4466
      %v4468 = vsel %vm4116, %v3678, 0.0
      %v4469 = vadd.f32 %v4467, %v4468
      %v4470 = vsel %vm4116, %v3679, 0.0
      %v4471 = vadd.f32 %v4469, %v4470
      %v4472 = vsel %vm4116, %v3680, 0.0
      %v4473 = vadd.f32 %v4471, %v4472
      %v4474 = vsel %vm4116, %v3681, 0.0
      %v4475 = vadd.f32 %v4473, %v4474
      %v4476 = vsel %vm4116, %v3682, 0.0
      %v4477 = vadd.f32 %v4475, %v4476
      %v4478 = vsel %vm4116, %v3683, 0.0
      %v4479 = vadd.f32 %v4477, %v4478
      %v4480 = vsel %vm4116, %v3684, 0.0
      %v4481 = vadd.f32 %v4479, %v4480
      %v4482 = vsel %vm4116, %v3685, 0.0
      %v4483 = vadd.f32 %v4481, %v4482
      %v4484 = vsel %vm4116, %v3686, 0.0
      %v4485 = vadd.f32 %v4483, %v4484
      %v4486 = vsel %vm4116, %v3687, 0.0
      %v4487 = vadd.f32 %v4485, %v4486
      %v4488 = vsel %vm4116, %v3688, 0.0
      %v4489 = vadd.f32 %v4487, %v4488
      %v4490 = vsel %vm4116, %v3689, 0.0
      %v4491 = vadd.f32 %v4489, %v4490
      %v4492 = vsel %vm4116, %v3690, 0.0
      %v4493 = vadd.f32 %v4491, %v4492
      %v4494 = vsel %vm4116, %v3691, 0.0
      %v4495 = vadd.f32 %v4493, %v4494
      %v4496 = vsel %vm4116, %v3692, 0.0
      %v4497 = vadd.f32 %v4495, %v4496
      %v4498 = vsel %vm4116, %v3693, 0.0
      %v4499 = vadd.f32 %v4497, %v4498
      %v4500 = vsel %vm4116, %v3694, 0.0
      %v4501 = vadd.f32 %v4499, %v4500
      %v4502 = vsel %vm4116, %v3695, 0.0
      %v4503 = vadd.f32 %v4501, %v4502
      %v4504 = vsel %vm4116, %v3696, 0.0
      %v4505 = vadd.f32 %v4503, %v4504
      %v4506 = vsel %vm4116, %v3697, 0.0
      %v4507 = vadd.f32 %v4505, %v4506
      %v4508 = vsel %vm4116, %v3698, 0.0
      %v4509 = vadd.f32 %v4507, %v4508
      %v4510 = vsel %vm4116, %v3699, 0.0
      %v4511 = vadd.f32 %v4509, %v4510
      %v4512 = vsel %vm4116, %v3700, 0.0
      %v4513 = vadd.f32 %v4511, %v4512
      %v4514 = vsel %vm4116, %v3701, 0.0
      %v4515 = vadd.f32 %v4513, %v4514
      %v4516 = vsel %vm4116, %v3702, 0.0
      %v4517 = vadd.f32 %v4515, %v4516
      %v4518 = vsel %vm4116, %v3703, 0.0
      %v4519 = vadd.f32 %v4517, %v4518
      %v4520 = vsel %vm4116, %v3704, 0.0
      %v4521 = vadd.f32 %v4519, %v4520
      %v4522 = vsel %vm4116, %v3705, 0.0
      %v4523 = vadd.f32 %v4521, %v4522
      %v4524 = vrot.slane %v4523, 4
      %v4525 = vadd.f32 %v4523, %v4524
      %v4526 = vrot.slane %v4525, 2
      %v4527 = vadd.f32 %v4525, %v4526
      %v4528 = vrot.slane %v4527, 1
      %v4529 = vadd.f32 %v4527, %v4528
      %v4530 = vadd.f32 %v4358, %v4529
      %v4531 = vmul.f32 %v3674, %v3674
      %v4532 = vmul.f32 %v3675, %v3675
      %v4533 = vmul.f32 %v3676, %v3676
      %v4534 = vmul.f32 %v3677, %v3677
      %v4535 = vmul.f32 %v3678, %v3678
      %v4536 = vmul.f32 %v3679, %v3679
      %v4537 = vmul.f32 %v3680, %v3680
      %v4538 = vmul.f32 %v3681, %v3681
      %v4539 = vmul.f32 %v3682, %v3682
      %v4540 = vmul.f32 %v3683, %v3683
      %v4541 = vmul.f32 %v3684, %v3684
      %v4542 = vmul.f32 %v3685, %v3685
      %v4543 = vmul.f32 %v3686, %v3686
      %v4544 = vmul.f32 %v3687, %v3687
      %v4545 = vmul.f32 %v3688, %v3688
      %v4546 = vmul.f32 %v3689, %v3689
      %v4547 = vmul.f32 %v3690, %v3690
      %v4548 = vmul.f32 %v3691, %v3691
      %v4549 = vmul.f32 %v3692, %v3692
      %v4550 = vmul.f32 %v3693, %v3693
      %v4551 = vmul.f32 %v3694, %v3694
      %v4552 = vmul.f32 %v3695, %v3695
      %v4553 = vmul.f32 %v3696, %v3696
      %v4554 = vmul.f32 %v3697, %v3697
      %v4555 = vmul.f32 %v3698, %v3698
      %v4556 = vmul.f32 %v3699, %v3699
      %v4557 = vmul.f32 %v3700, %v3700
      %v4558 = vmul.f32 %v3701, %v3701
      %v4559 = vmul.f32 %v3702, %v3702
      %v4560 = vmul.f32 %v3703, %v3703
      %v4561 = vmul.f32 %v3704, %v3704
      %v4562 = vmul.f32 %v3705, %v3705
      %v4563 = vsel %vm4116, %v4531, 0.0
      %v4564 = vsel %vm4116, %v4532, 0.0
      %v4565 = vadd.f32 %v4563, %v4564
      %v4566 = vsel %vm4116, %v4533, 0.0
      %v4567 = vadd.f32 %v4565, %v4566
      %v4568 = vsel %vm4116, %v4534, 0.0
      %v4569 = vadd.f32 %v4567, %v4568
      %v4570 = vsel %vm4116, %v4535, 0.0
      %v4571 = vadd.f32 %v4569, %v4570
      %v4572 = vsel %vm4116, %v4536, 0.0
      %v4573 = vadd.f32 %v4571, %v4572
      %v4574 = vsel %vm4116, %v4537, 0.0
      %v4575 = vadd.f32 %v4573, %v4574
      %v4576 = vsel %vm4116, %v4538, 0.0
      %v4577 = vadd.f32 %v4575, %v4576
      %v4578 = vsel %vm4116, %v4539, 0.0
      %v4579 = vadd.f32 %v4577, %v4578
      %v4580 = vsel %vm4116, %v4540, 0.0
      %v4581 = vadd.f32 %v4579, %v4580
      %v4582 = vsel %vm4116, %v4541, 0.0
      %v4583 = vadd.f32 %v4581, %v4582
      %v4584 = vsel %vm4116, %v4542, 0.0
      %v4585 = vadd.f32 %v4583, %v4584
      %v4586 = vsel %vm4116, %v4543, 0.0
      %v4587 = vadd.f32 %v4585, %v4586
      %v4588 = vsel %vm4116, %v4544, 0.0
      %v4589 = vadd.f32 %v4587, %v4588
      %v4590 = vsel %vm4116, %v4545, 0.0
      %v4591 = vadd.f32 %v4589, %v4590
      %v4592 = vsel %vm4116, %v4546, 0.0
      %v4593 = vadd.f32 %v4591, %v4592
      %v4594 = vsel %vm4116, %v4547, 0.0
      %v4595 = vadd.f32 %v4593, %v4594
      %v4596 = vsel %vm4116, %v4548, 0.0
      %v4597 = vadd.f32 %v4595, %v4596
      %v4598 = vsel %vm4116, %v4549, 0.0
      %v4599 = vadd.f32 %v4597, %v4598
      %v4600 = vsel %vm4116, %v4550, 0.0
      %v4601 = vadd.f32 %v4599, %v4600
      %v4602 = vsel %vm4116, %v4551, 0.0
      %v4603 = vadd.f32 %v4601, %v4602
      %v4604 = vsel %vm4116, %v4552, 0.0
      %v4605 = vadd.f32 %v4603, %v4604
      %v4606 = vsel %vm4116, %v4553, 0.0
      %v4607 = vadd.f32 %v4605, %v4606
      %v4608 = vsel %vm4116, %v4554, 0.0
      %v4609 = vadd.f32 %v4607, %v4608
      %v4610 = vsel %vm4116, %v4555, 0.0
      %v4611 = vadd.f32 %v4609, %v4610
      %v4612 = vsel %vm4116, %v4556, 0.0
      %v4613 = vadd.f32 %v4611, %v4612
      %v4614 = vsel %vm4116, %v4557, 0.0
      %v4615 = vadd.f32 %v4613, %v4614
      %v4616 = vsel %vm4116, %v4558, 0.0
      %v4617 = vadd.f32 %v4615, %v4616
      %v4618 = vsel %vm4116, %v4559, 0.0
      %v4619 = vadd.f32 %v4617, %v4618
      %v4620 = vsel %vm4116, %v4560, 0.0
      %v4621 = vadd.f32 %v4619, %v4620
      %v4622 = vsel %vm4116, %v4561, 0.0
      %v4623 = vadd.f32 %v4621, %v4622
      %v4624 = vsel %vm4116, %v4562, 0.0
      %v4625 = vadd.f32 %v4623, %v4624
      %v4626 = vrot.slane %v4625, 4
      %v4627 = vadd.f32 %v4625, %v4626
      %v4628 = vrot.slane %v4627, 2
      %v4629 = vadd.f32 %v4627, %v4628
      %v4630 = vrot.slane %v4629, 1
      %v4631 = vadd.f32 %v4629, %v4630
      %v4632 = vadd.f32 %v4460, %v4631
      %v4633 = vsel %vm4116, %v4084, 0.0
      %v4634 = vsel %vm4116, %v4085, 0.0
      %v4635 = vadd.f32 %v4633, %v4634
      %v4636 = vsel %vm4116, %v4086, 0.0
      %v4637 = vadd.f32 %v4635, %v4636
      %v4638 = vsel %vm4116, %v4087, 0.0
      %v4639 = vadd.f32 %v4637, %v4638
      %v4640 = vsel %vm4116, %v4088, 0.0
      %v4641 = vadd.f32 %v4639, %v4640
      %v4642 = vsel %vm4116, %v4089, 0.0
      %v4643 = vadd.f32 %v4641, %v4642
      %v4644 = vsel %vm4116, %v4090, 0.0
      %v4645 = vadd.f32 %v4643, %v4644
      %v4646 = vsel %vm4116, %v4091, 0.0
      %v4647 = vadd.f32 %v4645, %v4646
      %v4648 = vsel %vm4116, %v4092, 0.0
      %v4649 = vadd.f32 %v4647, %v4648
      %v4650 = vsel %vm4116, %v4093, 0.0
      %v4651 = vadd.f32 %v4649, %v4650
      %v4652 = vsel %vm4116, %v4094, 0.0
      %v4653 = vadd.f32 %v4651, %v4652
      %v4654 = vsel %vm4116, %v4095, 0.0
      %v4655 = vadd.f32 %v4653, %v4654
      %v4656 = vsel %vm4116, %v4096, 0.0
      %v4657 = vadd.f32 %v4655, %v4656
      %v4658 = vsel %vm4116, %v4097, 0.0
      %v4659 = vadd.f32 %v4657, %v4658
      %v4660 = vsel %vm4116, %v4098, 0.0
      %v4661 = vadd.f32 %v4659, %v4660
      %v4662 = vsel %vm4116, %v4099, 0.0
      %v4663 = vadd.f32 %v4661, %v4662
      %v4664 = vsel %vm4116, %v4100, 0.0
      %v4665 = vadd.f32 %v4663, %v4664
      %v4666 = vsel %vm4116, %v4101, 0.0
      %v4667 = vadd.f32 %v4665, %v4666
      %v4668 = vsel %vm4116, %v4102, 0.0
      %v4669 = vadd.f32 %v4667, %v4668
      %v4670 = vsel %vm4116, %v4103, 0.0
      %v4671 = vadd.f32 %v4669, %v4670
      %v4672 = vsel %vm4116, %v4104, 0.0
      %v4673 = vadd.f32 %v4671, %v4672
      %v4674 = vsel %vm4116, %v4105, 0.0
      %v4675 = vadd.f32 %v4673, %v4674
      %v4676 = vsel %vm4116, %v4106, 0.0
      %v4677 = vadd.f32 %v4675, %v4676
      %v4678 = vsel %vm4116, %v4107, 0.0
      %v4679 = vadd.f32 %v4677, %v4678
      %v4680 = vsel %vm4116, %v4108, 0.0
      %v4681 = vadd.f32 %v4679, %v4680
      %v4682 = vsel %vm4116, %v4109, 0.0
      %v4683 = vadd.f32 %v4681, %v4682
      %v4684 = vsel %vm4116, %v4110, 0.0
      %v4685 = vadd.f32 %v4683, %v4684
      %v4686 = vsel %vm4116, %v4111, 0.0
      %v4687 = vadd.f32 %v4685, %v4686
      %v4688 = vsel %vm4116, %v4112, 0.0
      %v4689 = vadd.f32 %v4687, %v4688
      %v4690 = vsel %vm4116, %v4113, 0.0
      %v4691 = vadd.f32 %v4689, %v4690
      %v4692 = vsel %vm4116, %v4114, 0.0
      %v4693 = vadd.f32 %v4691, %v4692
      %v4694 = vsel %vm4116, %v4115, 0.0
      %v4695 = vadd.f32 %v4693, %v4694
      %v4696 = vrot.slane %v4695, 4
      %v4697 = vadd.f32 %v4695, %v4696
      %v4698 = vrot.slane %v4697, 2
      %v4699 = vadd.f32 %v4697, %v4698
      %v4700 = vrot.slane %v4699, 1
      %v4701 = vadd.f32 %v4699, %v4700
      %v4702 = vadd.f32 %v4530, %v4701
      %v4703 = vmul.f32 %v4084, %v4084
      %v4704 = vmul.f32 %v4085, %v4085
      %v4705 = vmul.f32 %v4086, %v4086
      %v4706 = vmul.f32 %v4087, %v4087
      %v4707 = vmul.f32 %v4088, %v4088
      %v4708 = vmul.f32 %v4089, %v4089
      %v4709 = vmul.f32 %v4090, %v4090
      %v4710 = vmul.f32 %v4091, %v4091
      %v4711 = vmul.f32 %v4092, %v4092
      %v4712 = vmul.f32 %v4093, %v4093
      %v4713 = vmul.f32 %v4094, %v4094
      %v4714 = vmul.f32 %v4095, %v4095
      %v4715 = vmul.f32 %v4096, %v4096
      %v4716 = vmul.f32 %v4097, %v4097
      %v4717 = vmul.f32 %v4098, %v4098
      %v4718 = vmul.f32 %v4099, %v4099
      %v4719 = vmul.f32 %v4100, %v4100
      %v4720 = vmul.f32 %v4101, %v4101
      %v4721 = vmul.f32 %v4102, %v4102
      %v4722 = vmul.f32 %v4103, %v4103
      %v4723 = vmul.f32 %v4104, %v4104
      %v4724 = vmul.f32 %v4105, %v4105
      %v4725 = vmul.f32 %v4106, %v4106
      %v4726 = vmul.f32 %v4107, %v4107
      %v4727 = vmul.f32 %v4108, %v4108
      %v4728 = vmul.f32 %v4109, %v4109
      %v4729 = vmul.f32 %v4110, %v4110
      %v4730 = vmul.f32 %v4111, %v4111
      %v4731 = vmul.f32 %v4112, %v4112
      %v4732 = vmul.f32 %v4113, %v4113
      %v4733 = vmul.f32 %v4114, %v4114
      %v4734 = vmul.f32 %v4115, %v4115
      %v4735 = vsel %vm4116, %v4703, 0.0
      %v4736 = vsel %vm4116, %v4704, 0.0
      %v4737 = vadd.f32 %v4735, %v4736
      %v4738 = vsel %vm4116, %v4705, 0.0
      %v4739 = vadd.f32 %v4737, %v4738
      %v4740 = vsel %vm4116, %v4706, 0.0
      %v4741 = vadd.f32 %v4739, %v4740
      %v4742 = vsel %vm4116, %v4707, 0.0
      %v4743 = vadd.f32 %v4741, %v4742
      %v4744 = vsel %vm4116, %v4708, 0.0
      %v4745 = vadd.f32 %v4743, %v4744
      %v4746 = vsel %vm4116, %v4709, 0.0
      %v4747 = vadd.f32 %v4745, %v4746
      %v4748 = vsel %vm4116, %v4710, 0.0
      %v4749 = vadd.f32 %v4747, %v4748
      %v4750 = vsel %vm4116, %v4711, 0.0
      %v4751 = vadd.f32 %v4749, %v4750
      %v4752 = vsel %vm4116, %v4712, 0.0
      %v4753 = vadd.f32 %v4751, %v4752
      %v4754 = vsel %vm4116, %v4713, 0.0
      %v4755 = vadd.f32 %v4753, %v4754
      %v4756 = vsel %vm4116, %v4714, 0.0
      %v4757 = vadd.f32 %v4755, %v4756
      %v4758 = vsel %vm4116, %v4715, 0.0
      %v4759 = vadd.f32 %v4757, %v4758
      %v4760 = vsel %vm4116, %v4716, 0.0
      %v4761 = vadd.f32 %v4759, %v4760
      %v4762 = vsel %vm4116, %v4717, 0.0
      %v4763 = vadd.f32 %v4761, %v4762
      %v4764 = vsel %vm4116, %v4718, 0.0
      %v4765 = vadd.f32 %v4763, %v4764
      %v4766 = vsel %vm4116, %v4719, 0.0
      %v4767 = vadd.f32 %v4765, %v4766
      %v4768 = vsel %vm4116, %v4720, 0.0
      %v4769 = vadd.f32 %v4767, %v4768
      %v4770 = vsel %vm4116, %v4721, 0.0
      %v4771 = vadd.f32 %v4769, %v4770
      %v4772 = vsel %vm4116, %v4722, 0.0
      %v4773 = vadd.f32 %v4771, %v4772
      %v4774 = vsel %vm4116, %v4723, 0.0
      %v4775 = vadd.f32 %v4773, %v4774
      %v4776 = vsel %vm4116, %v4724, 0.0
      %v4777 = vadd.f32 %v4775, %v4776
      %v4778 = vsel %vm4116, %v4725, 0.0
      %v4779 = vadd.f32 %v4777, %v4778
      %v4780 = vsel %vm4116, %v4726, 0.0
      %v4781 = vadd.f32 %v4779, %v4780
      %v4782 = vsel %vm4116, %v4727, 0.0
      %v4783 = vadd.f32 %v4781, %v4782
      %v4784 = vsel %vm4116, %v4728, 0.0
      %v4785 = vadd.f32 %v4783, %v4784
      %v4786 = vsel %vm4116, %v4729, 0.0
      %v4787 = vadd.f32 %v4785, %v4786
      %v4788 = vsel %vm4116, %v4730, 0.0
      %v4789 = vadd.f32 %v4787, %v4788
      %v4790 = vsel %vm4116, %v4731, 0.0
      %v4791 = vadd.f32 %v4789, %v4790
      %v4792 = vsel %vm4116, %v4732, 0.0
      %v4793 = vadd.f32 %v4791, %v4792
      %v4794 = vsel %vm4116, %v4733, 0.0
      %v4795 = vadd.f32 %v4793, %v4794
      %v4796 = vsel %vm4116, %v4734, 0.0
      %v4797 = vadd.f32 %v4795, %v4796
      %v4798 = vrot.slane %v4797, 4
      %v4799 = vadd.f32 %v4797, %v4798
      %v4800 = vrot.slane %v4799, 2
      %v4801 = vadd.f32 %v4799, %v4800
      %v4802 = vrot.slane %v4801, 1
      %v4803 = vadd.f32 %v4801, %v4802
      %v4804 = vadd.f32 %v4632, %v4803
      %4805 = vst.msk [vmem:[%s194] sm:$0xff] %vm4116, %v4702
      %4806 = vst.msk [vmem:[%s200] sm:$0xff] %vm4116, %v4804
      %s4807 = sadd.s32 %s19, %s20
      %p4808 = scmp.lt.s32.totalorder %s4807, 1
      %s4809 = scalar_select %p4808, %s4807, 1
      %s4810 = smul.addr %s4809, 8
      %s4811 = scalar_lea.vmem %s2, %s4810
      %s4812 = sadd.s32 %s19, %s20
      %p4813 = scmp.lt.s32.totalorder %s4812, 1
      %s4814 = scalar_select %p4813, %s4812, 1
      %s4815 = smul.addr %s4814, 8
      %s4816 = scalar_lea.vmem %s3, %s4815
      // Predicated region
      $region29: #{up_conv_forward.2} parent=27 // pred_check
        %p4817 = pneg %p94
      $region30: #{up_conv_forward.2} parent=27 // pred_check_branch
        %4819 = sbr.rel (%p4817) target = $region32
      $region31: #{up_conv_forward.2} parent=27 // pred_region
        %s4820 = sadd.s32 %s19, %s20
      $region32: #{up_conv_forward.2} parent=27 // pred_fallthru
        _
      // Predicated region
      $region33: #{up_conv_forward.2} parent=27 // pred_check
        %p4821 = pneg %p122
      $region34: #{up_conv_forward.2} parent=27 // pred_check_branch
        %4823 = sbr.rel (%p4821) target = $region36
      $region35: #{up_conv_forward.2} parent=27 // pred_region
        %s4824 = sadd.s32 %s19, %s20
      $region36: #{up_conv_forward.2} parent=27 // pred_fallthru
        _
    $region28: #{up_conv_forward.2} parent=5 // pred_fallthru
      _
    %p4825 = scmp.le.s32.totalorder 2, %s10
    // Predicated region
    $region37: #{up_conv_forward.2} parent=5 // pred_check
      %p4826 = pneg %p4825
    $region38: #{up_conv_forward.2} parent=5 // pred_check_branch
      %4828 = sbr.rel (%p4826) target = $region40
    $region39: #{up_conv_forward.2} parent=5 // pred_region
      %s4829 = ssub.s32 %s10, 2
      // Predicated region
      $region41: #{up_conv_forward.2} parent=39 // pred_check
        %p4830 = pneg %p100
      $region42: #{up_conv_forward.2} parent=39 // pred_check_branch
        %4832 = sbr.rel (%p4830) target = $region44
      $region43: #{up_conv_forward.2} parent=39 // pred_region
        %s4833 = sadd.s32 %s21, %s22
        %p4834 = scmp.lt.s32.totalorder %s4833, 1
        %s4835 = scalar_select %p4834, %s4833, 1
        %s4836 = smul.addr %s4835, 8
        %s4837 = scalar_lea.vmem %s2, %s4836
      $region44: #{up_conv_forward.2} parent=39 // pred_fallthru
        _
      // Predicated region
      $region45: #{up_conv_forward.2} parent=39 // pred_check
        %p4838 = pneg %p128
      $region46: #{up_conv_forward.2} parent=39 // pred_check_branch
        %4840 = sbr.rel (%p4838) target = $region48
      $region47: #{up_conv_forward.2} parent=39 // pred_region
        %s4841 = sadd.s32 %s21, %s22
        %p4842 = scmp.lt.s32.totalorder %s4841, 1
        %s4843 = scalar_select %p4842, %s4841, 1
        %s4844 = smul.addr %s4843, 8
        %s4845 = scalar_lea.vmem %s3, %s4844
      $region48: #{up_conv_forward.2} parent=39 // pred_fallthru
        _
    $region40: #{up_conv_forward.2} parent=5 // pred_fallthru
      _
  $region6: #{up_conv_forward.2} parent=0 // loop_footer
    %s14 = sadd.s32 1, %s10
  $region7: #{up_conv_forward.2} parent=0 // loop_footer_branch
    %9 = sbr.rel target = $region3
  $region8: #{up_conv_forward.2} parent=0 // loop_exit
    _

</llo_original>
